<compile_context>
chip_gen: v7x
topology: tpu7x:2x2x1
jax: 0.10.0
libtpu: 0.0.40
codegen_flags: <defaults>
</compile_context>

<pallas_src>
import math
from functools import partial

import jax
import jax.numpy as jnp
from jax.experimental import pallas as pl
from jax.experimental.pallas import tpu as pltpu

_NEG_INF = -1e30                      # finite mask value: avoids inf-inf NaNs
_LANE = 128
_TN_PREF = 512                        # preferred output-column tile
_VMEM_LIMIT = 40 * 1024 * 1024        # explicit scoped-VMEM limit (v5e/v6e/v7x safe)


# --------------------------------------------------------------------------
# helpers
# --------------------------------------------------------------------------
def find_multiple(n: int, k: int) -> int:
    if n % k == 0:
        return n
    return n + k - (n % k)


def _round_up(n: int, k: int) -> int:
    return ((n + k - 1) // k) * k


def _pick_tile(dim: int, pref: int, align: int) -> int:
    # largest tile <= pref that is align-granular; small dims collapse to one block
    return min(pref, _round_up(dim, align))


def _pad2d(x, rows, cols):
    r, c = x.shape
    if r == rows and c == cols:
        return x
    return jnp.pad(x, ((0, rows - r), (0, cols - c)))


def _pad_out_dim(n: int) -> int:
    # column padding policy shared by init-time weight prep and the wrappers'
    # tile picks, so pre-padded weights never get re-padded at runtime.
    return _round_up(n, _TN_PREF) if n >= _TN_PREF else _round_up(n, _LANE)


def _prep_linear(w, *, row_pad_to=None):
    """Pre-cast to bf16 and pre-pad a (K, N) weight to tile-friendly shape (once, at init)."""
    K, N = w.shape
    rows = row_pad_to if row_pad_to is not None else _round_up(K, _LANE)
    cols = _pad_out_dim(N)
    return _pad2d(w.astype(jnp.bfloat16), rows, cols)


# --------------------------------------------------------------------------
# tiled matmul with K-accumulation (bf16 MXU, f32 accumulator),
# optional fused residual add in the epilogue
# --------------------------------------------------------------------------
def _matmul_kernel(x_ref, w_ref, o_ref, acc_ref):
    @pl.when(pl.program_id(2) == 0)
    def _():
        acc_ref[...] = jnp.zeros_like(acc_ref)

    acc_ref[...] += jnp.dot(x_ref[...], w_ref[...],
                            preferred_element_type=jnp.float32)

    @pl.when(pl.program_id(2) == pl.num_programs(2) - 1)
    def _():
        o_ref[...] = acc_ref[...].astype(o_ref.dtype)


def _matmul_res_kernel(x_ref, w_ref, r_ref, o_ref, acc_ref):
    @pl.when(pl.program_id(2) == 0)
    def _():
        acc_ref[...] = jnp.zeros_like(acc_ref)

    acc_ref[...] += jnp.dot(x_ref[...], w_ref[...],
                            preferred_element_type=jnp.float32)

    @pl.when(pl.program_id(2) == pl.num_programs(2) - 1)
    def _():
        o_ref[...] = (acc_ref[...] + r_ref[...].astype(jnp.float32)).astype(o_ref.dtype)


def matmul(x, w, *, residual=None, out_dim=None, out_dtype=jnp.float32,
           tm=1024, tn=512, tk=512):
    """x @ w (+ residual), tiled; bf16 MXU inputs, f32 accumulation."""
    M, K = x.shape
    N = w.shape[1]
    if out_dim is None:
        out_dim = N
    tm = _pick_tile(M, tm, 8)
    tk = _pick_tile(K, tk, 128)
    tn = _pick_tile(N, tn, 128)
    Mp, Kp, Np = _round_up(M, tm), _round_up(K, tk), _round_up(N, tn)
    xp = _pad2d(x.astype(jnp.bfloat16), Mp, Kp)
    wp = _pad2d(w.astype(jnp.bfloat16), Kp, Np)   # no-op for init-prepped weights

    grid = (Mp // tm, Np // tn, Kp // tk)
    x_spec = pl.BlockSpec((tm, tk), lambda i, j, k: (i, k))
    w_spec = pl.BlockSpec((tk, tn), lambda i, j, k: (k, j))
    o_spec = pl.BlockSpec((tm, tn), lambda i, j, k: (i, j))
    cparams = pltpu.CompilerParams(
        dimension_semantics=("parallel", "parallel", "arbitrary"),
        vmem_limit_bytes=_VMEM_LIMIT)

    if residual is None:
        out = pl.pallas_call(
            _matmul_kernel,
            out_shape=jax.ShapeDtypeStruct((Mp, Np), out_dtype),
            grid=grid,
            in_specs=[x_spec, w_spec],
            out_specs=o_spec,
            scratch_shapes=[pltpu.VMEM((tm, tn), jnp.float32)],
            compiler_params=cparams,
        )(xp, wp)
    else:
        rp = _pad2d(residual.astype(jnp.float32), Mp, Np)
        r_spec = pl.BlockSpec((tm, tn), lambda i, j, k: (i, j))  # constant over k -> one DMA
        out = pl.pallas_call(
            _matmul_res_kernel,
            out_shape=jax.ShapeDtypeStruct((Mp, Np), out_dtype),
            grid=grid,
            in_specs=[x_spec, w_spec, r_spec],
            out_specs=o_spec,
            scratch_shapes=[pltpu.VMEM((tm, tn), jnp.float32)],
            compiler_params=cparams,
        )(xp, wp, rp)
    return out[:M, :out_dim]


# --------------------------------------------------------------------------
# fused RMSNorm + matmul:  (norm(x) * scale) @ W
# The normalized activation is computed once per row-tile (j == 0) and cached
# in a VMEM scratch, then reused for every N tile.
# --------------------------------------------------------------------------
def _rms_matmul_kernel(x_ref, s_ref, w_ref, o_ref, xn_ref, *, eps, inv_k):
    @pl.when(pl.program_id(1) == 0)
    def _():
        x = x_ref[...].astype(jnp.float32)
        ms = jnp.sum(x * x, axis=-1, keepdims=True) * inv_k          # mean over true K
        xn_ref[...] = ((x * jax.lax.rsqrt(ms + eps)) * s_ref[...]).astype(jnp.bfloat16)

    o_ref[...] = jnp.dot(xn_ref[...], w_ref[...],
                         preferred_element_type=jnp.float32).astype(o_ref.dtype)


def rmsnorm_matmul(x, scale, w, *, eps=1e-5, out_dim=None, out_dtype=jnp.float32,
                   tm=256, tn=512):
    M, K = x.shape
    N = w.shape[1]
    if out_dim is None:
        out_dim = N
    tm = _pick_tile(M, tm, 8)
    tn = _pick_tile(N, tn, 128)
    Kp = _round_up(K, 128)                 # full K per block (needed for the norm)
    Mp, Np = _round_up(M, tm), _round_up(N, tn)
    xp = _pad2d(x.astype(jnp.float32), Mp, Kp)
    sp = _pad2d(scale.reshape(1, K).astype(jnp.float32), 1, Kp)
    wp = _pad2d(w.astype(jnp.bfloat16), Kp, Np)
    out = pl.pallas_call(
        partial(_rms_matmul_kernel, eps=eps, inv_k=1.0 / K),
        out_shape=jax.ShapeDtypeStruct((Mp, Np), out_dtype),
        grid=(Mp // tm, Np // tn),
        in_specs=[
            pl.BlockSpec((tm, Kp), lambda i, j: (i, 0)),
            pl.BlockSpec((1, Kp), lambda i, j: (0, 0)),
            pl.BlockSpec((Kp, tn), lambda i, j: (0, j)),
        ],
        out_specs=pl.BlockSpec((tm, tn), lambda i, j: (i, j)),
        scratch_shapes=[pltpu.VMEM((tm, Kp), jnp.bfloat16)],        # cached xn
        compiler_params=pltpu.CompilerParams(
            # j must stay sequential per core so the j==0 cached xn is valid
            dimension_semantics=("parallel", "arbitrary"),
            vmem_limit_bytes=_VMEM_LIMIT,
        ),
    )(xp, sp, wp)
    return out[:M, :out_dim]


# --------------------------------------------------------------------------
# fused RMSNorm + SwiGLU:  silu(norm(x) @ W1) * (norm(x) @ W2)
# (same xn caching as rmsnorm_matmul)
# --------------------------------------------------------------------------
def _rms_swiglu_kernel(x_ref, s_ref, w1_ref, w2_ref, o_ref, xn_ref, *, eps, inv_k):
    @pl.when(pl.program_id(1) == 0)
    def _():
        x = x_ref[...].astype(jnp.float32)
        ms = jnp.sum(x * x, axis=-1, keepdims=True) * inv_k
        xn_ref[...] = ((x * jax.lax.rsqrt(ms + eps)) * s_ref[...]).astype(jnp.bfloat16)

    xn = xn_ref[...]
    h1 = jnp.dot(xn, w1_ref[...], preferred_element_type=jnp.float32)
    h2 = jnp.dot(xn, w2_ref[...], preferred_element_type=jnp.float32)
    o_ref[...] = (h1 * jax.nn.sigmoid(h1) * h2).astype(o_ref.dtype)


def rmsnorm_swiglu(x, scale, w1, w2, *, eps=1e-5, out_dtype=jnp.bfloat16,
                   tm=256, tn=512):
    M, K = x.shape
    N = w1.shape[1]
    assert w2.shape[1] == N
    tm = _pick_tile(M, tm, 8)
    tn = _pick_tile(N, tn, 128)
    Kp = _round_up(K, 128)
    Mp, Np = _round_up(M, tm), _round_up(N, tn)
    xp = _pad2d(x.astype(jnp.float32), Mp, Kp)
    sp = _pad2d(scale.reshape(1, K).astype(jnp.float32), 1, Kp)
    w1p = _pad2d(w1.astype(jnp.bfloat16), Kp, Np)
    w2p = _pad2d(w2.astype(jnp.bfloat16), Kp, Np)
    out = pl.pallas_call(
        partial(_rms_swiglu_kernel, eps=eps, inv_k=1.0 / K),
        out_shape=jax.ShapeDtypeStruct((Mp, Np), out_dtype),
        grid=(Mp // tm, Np // tn),
        in_specs=[
            pl.BlockSpec((tm, Kp), lambda i, j: (i, 0)),
            pl.BlockSpec((1, Kp), lambda i, j: (0, 0)),
            pl.BlockSpec((Kp, tn), lambda i, j: (0, j)),
            pl.BlockSpec((Kp, tn), lambda i, j: (0, j)),
        ],
        out_specs=pl.BlockSpec((tm, tn), lambda i, j: (i, j)),
        scratch_shapes=[pltpu.VMEM((tm, Kp), jnp.bfloat16)],
        compiler_params=pltpu.CompilerParams(
            dimension_semantics=("parallel", "arbitrary"),
            vmem_limit_bytes=_VMEM_LIMIT,
        ),
    )(xp, sp, w1p, w2p)
    # keep padded hidden columns (they are exactly zero) so the down-projection
    # never has to re-pad its K dimension at runtime
    return out[:M, :N]


# --------------------------------------------------------------------------
# flash attention with fused RoPE, all heads per block, natural (B,T,3,H,D)
# layout, causal dead-block DMA skipping and mask-free interior blocks.
# --------------------------------------------------------------------------
def _flash_rope_kernel(cos_q_ref, sin_q_ref, cos_k_ref, sin_k_ref,
                       q_ref, k_ref, v_ref, o_ref,
                       qs_ref, m_ref, l_ref, acc_ref, *, scale, true_t):
    i = pl.program_id(1)                   # query block
    j = pl.program_id(2)                   # kv block (sequential / "arbitrary")
    tq, n_head, _ = q_ref.shape
    tkv = k_ref.shape[0]
    d2 = cos_q_ref.shape[-1]

    def rope(xv, cos_ref, sin_ref):
        # rotate-half RoPE; the qkv weight columns were permuted at init so this
        # exactly reproduces the PyTorch interleaved-pair apply_rope.
        x = xv.astype(jnp.float32)                       # (t, H, D)
        c = cos_ref[...][:, None, :]                     # (t, 1, D/2)
        s = sin_ref[...][:, None, :]
        x1 = x[..., :d2]
        x2 = x[..., d2:]
        return jnp.concatenate([x1 * c - x2 * s, x2 * c + x1 * s], axis=-1)

    @pl.when(j == 0)
    def _():
        m_ref[...] = jnp.full_like(m_ref, _NEG_INF)
        l_ref[...] = jnp.zeros_like(l_ref)
        acc_ref[...] = jnp.zeros_like(acc_ref)
        # rotate + pre-scale q once per query block, cache in VMEM
        qs_ref[...] = (rope(q_ref[...], cos_q_ref, sin_q_ref) * scale).astype(jnp.bfloat16)

    def block_scores():
        k_rot = rope(k_ref[...], cos_k_ref, sin_k_ref).astype(jnp.bfloat16)
        # (tq,H,D) x (tkv,H,D) -> (H,tq,tkv); bf16 MXU, f32 accumulate
        return jax.lax.dot_general(
            qs_ref[...], k_rot, (((2,), (2,)), ((1,), (1,))),
            preferred_element_type=jnp.float32)

    def online_update(s):
        m_prev = m_ref[...]
        m_new = jnp.maximum(m_prev, jnp.max(s, axis=-1, keepdims=True))
        alpha = jnp.exp(m_prev - m_new)
        p = jnp.exp(s - m_new)
        l_ref[...] = alpha * l_ref[...] + jnp.sum(p, axis=-1, keepdims=True)
        # (H,tq,tkv) x (tkv,H,D) -> (H,tq,D)
        pv = jax.lax.dot_general(
            p.astype(jnp.bfloat16), v_ref[...], (((2,), (0,)), ((0,), (1,))),
            preferred_element_type=jnp.float32)
        acc_ref[...] = alpha * acc_ref[...] + pv
        m_ref[...] = m_new

    # interior blocks: strictly below the diagonal and fully inside true_t
    # -> no iota / mask work at all
    interior = jnp.logical_and(j < i, (j + 1) * tkv <= true_t)

    @pl.when(interior)
    def _():
        online_update(block_scores())

    # diagonal / padded blocks (still causally visible)
    @pl.when(jnp.logical_and(j <= i, jnp.logical_not(interior)))
    def _():
        s = block_scores()
        q_pos = i * tq + jax.lax.broadcasted_iota(jnp.int32, (1, tq, tkv), 1)
        k_pos = j * tkv + jax.lax.broadcasted_iota(jnp.int32, (1, tq, tkv), 2)
        mask = jnp.logical_and(k_pos <= q_pos, k_pos < true_t)
        online_update(jnp.where(mask, s, _NEG_INF))

    @pl.when(j == pl.num_programs(2) - 1)
    def _():
        l = l_ref[...]
        l = jnp.where(l == 0.0, 1.0, l)                  # guard (padded rows)
        out = acc_ref[...] * pl.reciprocal(l, approx=True)   # (H, tq, D) f32
        for h in range(n_head):                          # static unroll, no 3-D transpose
            o_ref[:, h, :] = out[h].astype(o_ref.dtype)


def flash_attention(qkv, cos, sin, *, tq=128):
    """qkv: (B, T, 3, H, D) bf16; cos/sin: (T, D//2) f32 -> (B, T, H, D) bf16."""
    B, T, three, H, D = qkv.shape
    assert three == 3
    d2 = D // 2
    scale = 1.0 / math.sqrt(D)
    tq = _pick_tile(T, tq, 8)
    tkv = tq
    Tp = _round_up(T, tq)
    if Tp != T:
        qkv = jnp.pad(qkv, ((0, 0), (0, Tp - T), (0, 0), (0, 0), (0, 0)))
        cos = jnp.pad(cos, ((0, Tp - T), (0, 0)))
        sin = jnp.pad(sin, ((0, Tp - T), (0, 0)))

    nq = Tp // tq
    grid = (B, nq, nq)

    # kv blocks above the causal diagonal are clamped to min(i, j): same block
    # index as the previous step -> no DMA is issued for dead blocks.
    out = pl.pallas_call(
        partial(_flash_rope_kernel, scale=scale, true_t=T),
        out_shape=jax.ShapeDtypeStruct((B, Tp, H, D), jnp.bfloat16),
        grid=grid,
        in_specs=[
            pl.BlockSpec((tq, d2), lambda b, i, j: (i, 0)),                         # cos (q rows)
            pl.BlockSpec((tq, d2), lambda b, i, j: (i, 0)),                         # sin (q rows)
            pl.BlockSpec((tkv, d2), lambda b, i, j: (jnp.minimum(i, j), 0)),        # cos (k rows)
            pl.BlockSpec((tkv, d2), lambda b, i, j: (jnp.minimum(i, j), 0)),        # sin (k rows)
            pl.BlockSpec((None, tq, None, H, D),
                         lambda b, i, j: (b, i, 0, 0, 0)),                          # q
            pl.BlockSpec((None, tkv, None, H, D),
                         lambda b, i, j: (b, jnp.minimum(i, j), 1, 0, 0)),          # k
            pl.BlockSpec((None, tkv, None, H, D),
                         lambda b, i, j: (b, jnp.minimum(i, j), 2, 0, 0)),          # v
        ],
        out_specs=pl.BlockSpec((None, tq, H, D), lambda b, i, j: (b, i, 0, 0)),
        scratch_shapes=[
            pltpu.VMEM((tq, H, D), jnp.bfloat16),    # rotated + scaled q
            pltpu.VMEM((H, tq, 1), jnp.float32),     # m
            pltpu.VMEM((H, tq, 1), jnp.float32),     # l
            pltpu.VMEM((H, tq, D), jnp.float32),     # acc
        ],
        compiler_params=pltpu.CompilerParams(
            dimension_semantics=("parallel", "parallel", "arbitrary"),
            vmem_limit_bytes=_VMEM_LIMIT,
        ),
    )(cos, sin, cos, sin, qkv, qkv, qkv)
    return out[:, :T]


# --------------------------------------------------------------------------
# model: parameter init (kernel-ready: bf16, pre-padded, RoPE column permute)
# --------------------------------------------------------------------------
def init_llama_params(key, *, n_layer, n_head, n_embd, block_size, padded_vocab_size):
    C = n_embd
    D = C // n_head
    hidden_dim = 4 * C
    n_hidden = find_multiple(int(2 * hidden_dim / 3), 256)
    std = 0.02 / math.sqrt(2 * n_layer)

    keys = jax.random.split(key, 2 + 5 * n_layer)
    kit = iter(keys)

    def normal(shape):
        return std * jax.random.normal(next(kit), shape, dtype=jnp.float32)

    # Permutation that moves each head's interleaved RoPE pairs (x0,x1,x2,x3,...)
    # into rotate-half layout (evens | odds).  Applied to the q and k output
    # columns of the qkv projection; the attention output is unchanged because
    # q.k is invariant to a common per-head channel permutation (v untouched).
    per_head = jnp.concatenate([jnp.arange(0, D, 2), jnp.arange(1, D, 2)])
    head_perm = (jnp.arange(n_head)[:, None] * D + per_head[None, :]).reshape(-1)
    qkv_perm = jnp.concatenate([head_perm, C + head_perm, 2 * C + jnp.arange(C)])

    theta = 1.0 / (10000.0 ** (jnp.arange(0, D, 2, dtype=jnp.float32) / D))
    idx_theta = jnp.outer(jnp.arange(block_size, dtype=jnp.float32), theta)

    params = {
        "wte": normal((padded_vocab_size, C)),                       # f32 embedding
        "w_lm_head": _prep_linear(normal((C, padded_vocab_size))),
        "ln_f": jnp.ones((C,), jnp.float32),
        "rope_cos": jnp.cos(idx_theta),                              # (block_size, D//2)
        "rope_sin": jnp.sin(idx_theta),
        "layers": [],
    }
    nh_pad = _pad_out_dim(n_hidden)       # fc1/fc2 col pad == mlp_proj row pad
    for _ in range(n_layer):
        params["layers"].append({
            "rms1": jnp.ones((C,), jnp.float32),
            "rms2": jnp.ones((C,), jnp.float32),
            "w_attn": _prep_linear(normal((C, 3 * C))[:, qkv_perm]),
            "w_proj": _prep_linear(normal((C, C))),
            "w_fc1": _prep_linear(normal((C, n_hidden))),
            "w_fc2": _prep_linear(normal((C, n_hidden))),
            "w_mlp_proj": _prep_linear(normal((n_hidden, C)), row_pad_to=nh_pad),
        })
    return params


def llama_forward(params, idx, *, n_head, n_embd):
    B, T = idx.shape
    C = n_embd
    H = n_head
    D = C // H
    V = params["wte"].shape[0]     # padded_vocab_size (static)

    cos = params["rope_cos"][:T]
    sin = params["rope_sin"][:T]

    # TODO(synk): the embedding gather stays in plain JAX.
    x2d = params["wte"][idx].reshape(B * T, C)        # f32 residual stream

    for layer in params["layers"]:
        # --- attention block: RMSNorm fused into the qkv projection (bf16 out)
        qkv = rmsnorm_matmul(x2d, layer["rms1"], layer["w_attn"],
                             out_dim=3 * C, out_dtype=jnp.bfloat16)
        qkv = qkv.reshape(B, T, 3, H, D)              # pure reshape, no transpose
        y = flash_attention(qkv, cos, sin)            # (B, T, H, D) bf16, RoPE fused
        # output projection with the residual add fused into the epilogue
        x2d = matmul(y.reshape(B * T, C), layer["w_proj"],
                     residual=x2d, out_dim=C, out_dtype=jnp.float32)

        # --- MLP block: RMSNorm fused into the SwiGLU up-projections
        h = rmsnorm_swiglu(x2d, layer["rms2"], layer["w_fc1"], layer["w_fc2"])
        x2d = matmul(h, layer["w_mlp_proj"],
                     residual=x2d, out_dim=C, out_dtype=jnp.float32)

    # final RMSNorm fused into the lm_head
    logits = rmsnorm_matmul(x2d, params["ln_f"], params["w_lm_head"],
                            out_dim=V, out_dtype=jnp.float32)
    return logits.reshape(B, T, V)


# TODO(synk): generation-time KV-cache / input_pos path (torch.roll + index_copy)
# is not implemented; only the prefill (input_pos=None) forward is reproduced.

if __name__ == "__main__":
    # small LLaMA config
    n_layer = 2
    n_head = 4
    n_embd = 32
    block_size = 16
    vocab_size = 64
    padded_vocab_size = find_multiple(vocab_size, 64)   # 64

    B, T = 2, 8

    key = jax.random.PRNGKey(0)
    pkey, ikey = jax.random.split(key)
    params = init_llama_params(
        pkey,
        n_layer=n_layer,
        n_head=n_head,
        n_embd=n_embd,
        block_size=block_size,
        padded_vocab_size=padded_vocab_size,
    )
    idx = jax.random.randint(ikey, (B, T), 0, vocab_size, dtype=jnp.int32)

    fwd = jax.jit(partial(llama_forward, n_head=n_head, n_embd=n_embd))
    logits = jax.block_until_ready(fwd(params, idx))

    assert logits.shape == (B, T, padded_vocab_size), logits.shape
    assert bool(jnp.all(jnp.isfinite(logits)))
    print("KERNEL_OK")
</pallas_src>

<mosaic_0001>
module attributes {stable_mosaic.version = 11 : i64} {
  func.func @_rms_matmul_kernel(%arg0: i32, %arg1: i32, %arg2: memref<16x128xf32, #tpu.memory_space<vmem>>, %arg3: memref<1x128xf32, #tpu.memory_space<vmem>>, %arg4: memref<128x128xbf16, #tpu.memory_space<vmem>>, %arg5: memref<16x128xbf16, #tpu.memory_space<vmem>>, %arg6: memref<16x128xbf16, #tpu.memory_space<vmem>>) attributes {dimension_semantics = [#tpu.dimension_semantics<parallel>, #tpu.dimension_semantics<arbitrary>], iteration_bounds = array<i64: 1, 1>, scalar_prefetch = 0 : i64, scratch_operands = 1 : i64, tpu.core_type = #tpu.core_type<tc>, window_params = [{transform_indices = @transform_0, window_bounds = array<i64: 16, 128>}, {pipeline_mode = #tpu.pipeline_mode<synchronous>, transform_indices = @transform_1, window_bounds = array<i64: 1, 128>}, {transform_indices = @transform_2, window_bounds = array<i64: 128, 128>}, {transform_indices = @transform_3, window_bounds = array<i64: 16, 128>}]} {
    %c0_i32 = arith.constant 0 : i32
    %0 = arith.cmpi eq, %arg1, %c0_i32 : i32
    %1 = arith.extui %0 : i1 to i32
    %c0_i32_0 = arith.constant 0 : i32
    %2 = arith.cmpi ne, %1, %c0_i32_0 : i32
    scf.if %2 {
      %c0_6 = arith.constant 0 : index
      %c0_7 = arith.constant 0 : index
      %8 = vector.load %arg2[%c0_6, %c0_7] : memref<16x128xf32, #tpu.memory_space<vmem>>, vector<16x128xf32>
      %9 = arith.mulf %8, %8 : vector<16x128xf32>
      %cst_8 = arith.constant dense<0.000000e+00> : vector<16xf32>
      %10 = vector.multi_reduction <add>, %9, %cst_8 [1] : vector<16x128xf32> to vector<16xf32>
      %11 = vector.shape_cast %10 : vector<16xf32> to vector<16x1xf32>
      %cst_9 = arith.constant 3.125000e-02 : f32
      %12 = vector.broadcast %cst_9 : f32 to vector<16x1xf32>
      %13 = arith.mulf %11, %12 : vector<16x1xf32>
      %cst_10 = arith.constant 9.99999974E-6 : f32
      %14 = vector.broadcast %cst_10 : f32 to vector<16x1xf32>
      %15 = arith.addf %13, %14 : vector<16x1xf32>
      %16 = math.rsqrt %15 : vector<16x1xf32>
      %17 = vector.broadcast %16 : vector<16x1xf32> to vector<16x128xf32>
      %18 = arith.mulf %8, %17 : vector<16x128xf32>
      %c0_11 = arith.constant 0 : index
      %c0_12 = arith.constant 0 : index
      %19 = vector.load %arg3[%c0_11, %c0_12] : memref<1x128xf32, #tpu.memory_space<vmem>>, vector<1x128xf32>
      %20 = vector.broadcast %19 : vector<1x128xf32> to vector<16x128xf32>
      %21 = arith.mulf %18, %20 : vector<16x128xf32>
      %22 = arith.truncf %21 : vector<16x128xf32> to vector<16x128xbf16>
      %c0_13 = arith.constant 0 : index
      %c0_14 = arith.constant 0 : index
      %23 = vector.load %arg6[%c0_13, %c0_14] : memref<16x128xbf16, #tpu.memory_space<vmem>>, vector<16x128xbf16>
      tpu.vector_store %arg6[%c0_13, %c0_14], %22 {strides = array<i32>} : memref<16x128xbf16, #tpu.memory_space<vmem>>, vector<16x128xbf16>,
    } else {
    }
    %c0 = arith.constant 0 : index
    %c0_1 = arith.constant 0 : index
    %3 = vector.load %arg6[%c0, %c0_1] : memref<16x128xbf16, #tpu.memory_space<vmem>>, vector<16x128xbf16>
    %c0_2 = arith.constant 0 : index
    %c0_3 = arith.constant 0 : index
    %4 = vector.load %arg4[%c0_2, %c0_3] : memref<128x128xbf16, #tpu.memory_space<vmem>>, vector<128x128xbf16>
    %cst = arith.constant dense<0.000000e+00> : vector<16x128xf32>
    %5 = tpu.matmul %3, %4, %cst {dimension_numbers = #tpu.dot_dimension_numbers<[1], [0], [0], [1], [0, 0, 1, 1], [], []>} : vector<16x128xbf16>, vector<128x128xbf16>, vector<16x128xf32> -> vector<16x128xf32>
    %6 = arith.truncf %5 : vector<16x128xf32> to vector<16x128xbf16>
    %c0_4 = arith.constant 0 : index
    %c0_5 = arith.constant 0 : index
    %7 = vector.load %arg5[%c0_4, %c0_5] : memref<16x128xbf16, #tpu.memory_space<vmem>>, vector<16x128xbf16>
    tpu.vector_store %arg5[%c0_4, %c0_5], %6 {strides = array<i32>} : memref<16x128xbf16, #tpu.memory_space<vmem>>, vector<16x128xbf16>,
    return
  }
  func.func @transform_0(%arg0: i32, %arg1: i32) -> (i32, i32) {
    %c0_i32 = arith.constant 0 : i32
    %c0_i32_0 = arith.constant 0 : i32
    return %arg0, %c0_i32 : i32, i32
  }
  func.func @transform_1(%arg0: i32, %arg1: i32) -> (i32, i32) {
    %c0_i32 = arith.constant 0 : i32
    %c0_i32_0 = arith.constant 0 : i32
    %c0_i32_1 = arith.constant 0 : i32
    return %c0_i32, %c0_i32_0 : i32, i32
  }
  func.func @transform_2(%arg0: i32, %arg1: i32) -> (i32, i32) {
    %c0_i32 = arith.constant 0 : i32
    %c0_i32_0 = arith.constant 0 : i32
    return %c0_i32, %arg1 : i32, i32
  }
  func.func @transform_3(%arg0: i32, %arg1: i32) -> (i32, i32) {
    %c0_i32 = arith.constant 0 : i32
    return %arg0, %arg1 : i32, i32
  }
}

module attributes {stable_mosaic.version = 11 : i64} {
  func.func @_flash_rope_kernel(%arg0: i32, %arg1: i32, %arg2: i32, %arg3: memref<8x4xf32, #tpu.memory_space<vmem>>, %arg4: memref<8x4xf32, #tpu.memory_space<vmem>>, %arg5: memref<8x4xf32, #tpu.memory_space<vmem>>, %arg6: memref<8x4xf32, #tpu.memory_space<vmem>>, %arg7: memref<1x8x1x4x8xbf16, #tpu.memory_space<vmem>>, %arg8: memref<1x8x1x4x8xbf16, #tpu.memory_space<vmem>>, %arg9: memref<1x8x1x4x8xbf16, #tpu.memory_space<vmem>>, %arg10: memref<1x8x4x8xbf16, #tpu.memory_space<vmem>>, %arg11: memref<8x4x8xbf16, #tpu.memory_space<vmem>>, %arg12: memref<4x8x1xf32, #tpu.memory_space<vmem>>, %arg13: memref<4x8x1xf32, #tpu.memory_space<vmem>>, %arg14: memref<4x8x8xf32, #tpu.memory_space<vmem>>) attributes {dimension_semantics = [#tpu.dimension_semantics<parallel>, #tpu.dimension_semantics<parallel>, #tpu.dimension_semantics<arbitrary>], iteration_bounds = array<i64: 2, 1, 1>, scalar_prefetch = 0 : i64, scratch_operands = 4 : i64, tpu.core_type = #tpu.core_type<tc>, window_params = [{transform_indices = @transform_0, window_bounds = array<i64: 8, 4>}, {transform_indices = @transform_1, window_bounds = array<i64: 8, 4>}, {transform_indices = @transform_2, window_bounds = array<i64: 8, 4>}, {transform_indices = @transform_3, window_bounds = array<i64: 8, 4>}, {transform_indices = @transform_4, window_bounds = array<i64: 1, 8, 1, 4, 8>}, {transform_indices = @transform_5, window_bounds = array<i64: 1, 8, 1, 4, 8>}, {transform_indices = @transform_6, window_bounds = array<i64: 1, 8, 1, 4, 8>}, {transform_indices = @transform_7, window_bounds = array<i64: 1, 8, 4, 8>}]} {
    %c0_i32 = arith.constant 0 : i32
    %0 = arith.cmpi eq, %arg2, %c0_i32 : i32
    %1 = arith.extui %0 : i1 to i32
    %c0_i32_0 = arith.constant 0 : i32
    %2 = arith.cmpi ne, %1, %c0_i32_0 : i32
    scf.if %2 {
      %cst = arith.constant -1.000000e+30 : f32
      %18 = vector.broadcast %cst : f32 to vector<4x8x1xf32>
      %c0 = arith.constant 0 : index
      %c0_6 = arith.constant 0 : index
      %c0_7 = arith.constant 0 : index
      %19 = vector.load %arg12[%c0, %c0_6, %c0_7] : memref<4x8x1xf32, #tpu.memory_space<vmem>>, vector<4x8x1xf32>
      tpu.vector_store %arg12[%c0, %c0_6, %c0_7], %18 {strides = array<i32>} : memref<4x8x1xf32, #tpu.memory_space<vmem>>, vector<4x8x1xf32>,
      %cst_8 = arith.constant 0.000000e+00 : f32
      %20 = vector.broadcast %cst_8 : f32 to vector<4x8x1xf32>
      %c0_9 = arith.constant 0 : index
      %c0_10 = arith.constant 0 : index
      %c0_11 = arith.constant 0 : index
      %21 = vector.load %arg13[%c0_9, %c0_10, %c0_11] : memref<4x8x1xf32, #tpu.memory_space<vmem>>, vector<4x8x1xf32>
      tpu.vector_store %arg13[%c0_9, %c0_10, %c0_11], %20 {strides = array<i32>} : memref<4x8x1xf32, #tpu.memory_space<vmem>>, vector<4x8x1xf32>,
      %cst_12 = arith.constant 0.000000e+00 : f32
      %22 = vector.broadcast %cst_12 : f32 to vector<4x8x8xf32>
      %c0_13 = arith.constant 0 : index
      %c0_14 = arith.constant 0 : index
      %c0_15 = arith.constant 0 : index
      %23 = vector.load %arg14[%c0_13, %c0_14, %c0_15] : memref<4x8x8xf32, #tpu.memory_space<vmem>>, vector<4x8x8xf32>
      tpu.vector_store %arg14[%c0_13, %c0_14, %c0_15], %22 {strides = array<i32>} : memref<4x8x8xf32, #tpu.memory_space<vmem>>, vector<4x8x8xf32>,
      %c0_16 = arith.constant 0 : index
      %c0_17 = arith.constant 0 : index
      %c0_18 = arith.constant 0 : index
      %c0_19 = arith.constant 0 : index
      %c0_20 = arith.constant 0 : index
      %24 = vector.load %arg7[%c0_16, %c0_17, %c0_18, %c0_19, %c0_20] : memref<1x8x1x4x8xbf16, #tpu.memory_space<vmem>>, vector<1x8x1x4x8xbf16>
      %25 = vector.shape_cast %24 : vector<1x8x1x4x8xbf16> to vector<8x4x8xbf16>
      %26 = arith.extf %25 : vector<8x4x8xbf16> to vector<8x4x8xf32>
      %c0_21 = arith.constant 0 : index
      %c0_22 = arith.constant 0 : index
      %27 = vector.load %arg3[%c0_21, %c0_22] : memref<8x4xf32, #tpu.memory_space<vmem>>, vector<8x4xf32>
      %28 = vector.shape_cast %27 : vector<8x4xf32> to vector<8x1x4xf32>
      %c0_23 = arith.constant 0 : index
      %c0_24 = arith.constant 0 : index
      %29 = vector.load %arg4[%c0_23, %c0_24] : memref<8x4xf32, #tpu.memory_space<vmem>>, vector<8x4xf32>
      %30 = vector.shape_cast %29 : vector<8x4xf32> to vector<8x1x4xf32>
      %31 = vector.extract_strided_slice %26 {offsets = [0, 0, 0], sizes = [8, 4, 4], strides = [1, 1, 1]} : vector<8x4x8xf32> to vector<8x4x4xf32>
      %32 = vector.extract_strided_slice %26 {offsets = [0, 0, 4], sizes = [8, 4, 4], strides = [1, 1, 1]} : vector<8x4x8xf32> to vector<8x4x4xf32>
      %33 = vector.broadcast %28 : vector<8x1x4xf32> to vector<8x4x4xf32>
      %34 = arith.mulf %31, %33 : vector<8x4x4xf32>
      %35 = vector.broadcast %30 : vector<8x1x4xf32> to vector<8x4x4xf32>
      %36 = arith.mulf %32, %35 : vector<8x4x4xf32>
      %37 = arith.subf %34, %36 : vector<8x4x4xf32>
      %38 = vector.broadcast %28 : vector<8x1x4xf32> to vector<8x4x4xf32>
      %39 = arith.mulf %32, %38 : vector<8x4x4xf32>
      %40 = vector.broadcast %30 : vector<8x1x4xf32> to vector<8x4x4xf32>
      %41 = arith.mulf %31, %40 : vector<8x4x4xf32>
      %42 = arith.addf %39, %41 : vector<8x4x4xf32>
      %43 = tpu.concatenate %37, %42 in 2 : vector<8x4x4xf32>, vector<8x4x4xf32> -> vector<8x4x8xf32>
      %cst_25 = arith.constant 0.353553385 : f32
      %44 = vector.broadcast %cst_25 : f32 to vector<8x4x8xf32>
      %45 = arith.mulf %43, %44 : vector<8x4x8xf32>
      %46 = arith.truncf %45 : vector<8x4x8xf32> to vector<8x4x8xbf16>
      %c0_26 = arith.constant 0 : index
      %c0_27 = arith.constant 0 : index
      %c0_28 = arith.constant 0 : index
      %47 = vector.load %arg11[%c0_26, %c0_27, %c0_28] : memref<8x4x8xbf16, #tpu.memory_space<vmem>>, vector<8x4x8xbf16>
      tpu.vector_store %arg11[%c0_26, %c0_27, %c0_28], %46 {strides = array<i32>} : memref<8x4x8xbf16, #tpu.memory_space<vmem>>, vector<8x4x8xbf16>,
    } else {
    }
    %3 = arith.cmpi slt, %arg2, %arg1 : i32
    %c1_i32 = arith.constant 1 : i32
    %4 = arith.addi %arg2, %c1_i32 : i32
    %c8_i32 = arith.constant 8 : i32
    %5 = arith.muli %4, %c8_i32 : i32
    %c8_i32_1 = arith.constant 8 : i32
    %6 = arith.cmpi sle, %5, %c8_i32_1 : i32
    %7 = arith.andi %3, %6 : i1
    %8 = arith.extui %7 : i1 to i32
    %c0_i32_2 = arith.constant 0 : i32
    %9 = arith.cmpi ne, %8, %c0_i32_2 : i32
    scf.if %9 {
      %c0 = arith.constant 0 : index
      %c0_6 = arith.constant 0 : index
      %c0_7 = arith.constant 0 : index
      %c0_8 = arith.constant 0 : index
      %c0_9 = arith.constant 0 : index
      %18 = vector.load %arg8[%c0, %c0_6, %c0_7, %c0_8, %c0_9] : memref<1x8x1x4x8xbf16, #tpu.memory_space<vmem>>, vector<1x8x1x4x8xbf16>
      %19 = vector.shape_cast %18 : vector<1x8x1x4x8xbf16> to vector<8x4x8xbf16>
      %20 = arith.extf %19 : vector<8x4x8xbf16> to vector<8x4x8xf32>
      %c0_10 = arith.constant 0 : index
      %c0_11 = arith.constant 0 : index
      %21 = vector.load %arg5[%c0_10, %c0_11] : memref<8x4xf32, #tpu.memory_space<vmem>>, vector<8x4xf32>
      %22 = vector.shape_cast %21 : vector<8x4xf32> to vector<8x1x4xf32>
      %c0_12 = arith.constant 0 : index
      %c0_13 = arith.constant 0 : index
      %23 = vector.load %arg6[%c0_12, %c0_13] : memref<8x4xf32, #tpu.memory_space<vmem>>, vector<8x4xf32>
      %24 = vector.shape_cast %23 : vector<8x4xf32> to vector<8x1x4xf32>
      %25 = vector.extract_strided_slice %20 {offsets = [0, 0, 0], sizes = [8, 4, 4], strides = [1, 1, 1]} : vector<8x4x8xf32> to vector<8x4x4xf32>
      %26 = vector.extract_strided_slice %20 {offsets = [0, 0, 4], sizes = [8, 4, 4], strides = [1, 1, 1]} : vector<8x4x8xf32> to vector<8x4x4xf32>
      %27 = vector.broadcast %22 : vector<8x1x4xf32> to vector<8x4x4xf32>
      %28 = arith.mulf %25, %27 : vector<8x4x4xf32>
      %29 = vector.broadcast %24 : vector<8x1x4xf32> to vector<8x4x4xf32>
      %30 = arith.mulf %26, %29 : vector<8x4x4xf32>
      %31 = arith.subf %28, %30 : vector<8x4x4xf32>
      %32 = vector.broadcast %22 : vector<8x1x4xf32> to vector<8x4x4xf32>
      %33 = arith.mulf %26, %32 : vector<8x4x4xf32>
      %34 = vector.broadcast %24 : vector<8x1x4xf32> to vector<8x4x4xf32>
      %35 = arith.mulf %25, %34 : vector<8x4x4xf32>
      %36 = arith.addf %33, %35 : vector<8x4x4xf32>
      %37 = tpu.concatenate %31, %36 in 2 : vector<8x4x4xf32>, vector<8x4x4xf32> -> vector<8x4x8xf32>
      %38 = arith.truncf %37 : vector<8x4x8xf32> to vector<8x4x8xbf16>
      %c0_14 = arith.constant 0 : index
      %c0_15 = arith.constant 0 : index
      %c0_16 = arith.constant 0 : index
      %39 = vector.load %arg11[%c0_14, %c0_15, %c0_16] : memref<8x4x8xbf16, #tpu.memory_space<vmem>>, vector<8x4x8xbf16>
      %cst = arith.constant dense<0.000000e+00> : vector<4x8x8xf32>
      %40 = tpu.matmul %39, %38, %cst {dimension_numbers = #tpu.dot_dimension_numbers<[2], [2], [0], [0], [0, 1, 0, 0, 1, 0], [1], [1]>} : vector<8x4x8xbf16>, vector<8x4x8xbf16>, vector<4x8x8xf32> -> vector<4x8x8xf32>
      %c0_17 = arith.constant 0 : index
      %c0_18 = arith.constant 0 : index
      %c0_19 = arith.constant 0 : index
      %41 = vector.load %arg12[%c0_17, %c0_18, %c0_19] : memref<4x8x1xf32, #tpu.memory_space<vmem>>, vector<4x8x1xf32>
      %cst_20 = arith.constant dense<0xFF800000> : vector<4x8xf32>
      %42 = vector.multi_reduction <maximumf>, %40, %cst_20 [2] : vector<4x8x8xf32> to vector<4x8xf32>
      %43 = vector.shape_cast %42 : vector<4x8xf32> to vector<4x8x1xf32>
      %44 = arith.maximumf %41, %43 : vector<4x8x1xf32>
      %45 = arith.subf %41, %44 : vector<4x8x1xf32>
      %46 = math.exp %45 : vector<4x8x1xf32>
      %47 = vector.broadcast %44 : vector<4x8x1xf32> to vector<4x8x8xf32>
      %48 = arith.subf %40, %47 : vector<4x8x8xf32>
      %49 = math.exp %48 : vector<4x8x8xf32>
      %c0_21 = arith.constant 0 : index
      %c0_22 = arith.constant 0 : index
      %c0_23 = arith.constant 0 : index
      %50 = vector.load %arg13[%c0_21, %c0_22, %c0_23] : memref<4x8x1xf32, #tpu.memory_space<vmem>>, vector<4x8x1xf32>
      %51 = arith.mulf %46, %50 : vector<4x8x1xf32>
      %cst_24 = arith.constant dense<0.000000e+00> : vector<4x8xf32>
      %52 = vector.multi_reduction <add>, %49, %cst_24 [2] : vector<4x8x8xf32> to vector<4x8xf32>
      %53 = vector.shape_cast %52 : vector<4x8xf32> to vector<4x8x1xf32>
      %54 = arith.addf %51, %53 : vector<4x8x1xf32>
      %c0_25 = arith.constant 0 : index
      %c0_26 = arith.constant 0 : index
      %c0_27 = arith.constant 0 : index
      %55 = vector.load %arg13[%c0_25, %c0_26, %c0_27] : memref<4x8x1xf32, #tpu.memory_space<vmem>>, vector<4x8x1xf32>
      tpu.vector_store %arg13[%c0_25, %c0_26, %c0_27], %54 {strides = array<i32>} : memref<4x8x1xf32, #tpu.memory_space<vmem>>, vector<4x8x1xf32>,
      %56 = arith.truncf %49 : vector<4x8x8xf32> to vector<4x8x8xbf16>
      %c0_28 = arith.constant 0 : index
      %c0_29 = arith.constant 0 : index
      %c0_30 = arith.constant 0 : index
      %c0_31 = arith.constant 0 : index
      %c0_32 = arith.constant 0 : index
      %57 = vector.load %arg9[%c0_28, %c0_29, %c0_30, %c0_31, %c0_32] : memref<1x8x1x4x8xbf16, #tpu.memory_space<vmem>>, vector<1x8x1x4x8xbf16>
      %58 = vector.shape_cast %57 : vector<1x8x1x4x8xbf16> to vector<8x4x8xbf16>
      %cst_33 = arith.constant dense<0.000000e+00> : vector<4x8x8xf32>
      %59 = tpu.matmul %56, %58, %cst_33 {dimension_numbers = #tpu.dot_dimension_numbers<[2], [0], [1], [2], [0, 0, 0, 1, 1, 2], [0], [1]>} : vector<4x8x8xbf16>, vector<8x4x8xbf16>, vector<4x8x8xf32> -> vector<4x8x8xf32>
      %c0_34 = arith.constant 0 : index
      %c0_35 = arith.constant 0 : index
      %c0_36 = arith.constant 0 : index
      %60 = vector.load %arg14[%c0_34, %c0_35, %c0_36] : memref<4x8x8xf32, #tpu.memory_space<vmem>>, vector<4x8x8xf32>
      %61 = vector.broadcast %46 : vector<4x8x1xf32> to vector<4x8x8xf32>
      %62 = arith.mulf %61, %60 : vector<4x8x8xf32>
      %63 = arith.addf %62, %59 : vector<4x8x8xf32>
      %c0_37 = arith.constant 0 : index
      %c0_38 = arith.constant 0 : index
      %c0_39 = arith.constant 0 : index
      %64 = vector.load %arg14[%c0_37, %c0_38, %c0_39] : memref<4x8x8xf32, #tpu.memory_space<vmem>>, vector<4x8x8xf32>
      tpu.vector_store %arg14[%c0_37, %c0_38, %c0_39], %63 {strides = array<i32>} : memref<4x8x8xf32, #tpu.memory_space<vmem>>, vector<4x8x8xf32>,
      %c0_40 = arith.constant 0 : index
      %c0_41 = arith.constant 0 : index
      %c0_42 = arith.constant 0 : index
      %65 = vector.load %arg12[%c0_40, %c0_41, %c0_42] : memref<4x8x1xf32, #tpu.memory_space<vmem>>, vector<4x8x1xf32>
      tpu.vector_store %arg12[%c0_40, %c0_41, %c0_42], %44 {strides = array<i32>} : memref<4x8x1xf32, #tpu.memory_space<vmem>>, vector<4x8x1xf32>,
    } else {
    }
    %10 = arith.cmpi sle, %arg2, %arg1 : i32
    %true = arith.constant true
    %11 = arith.xori %7, %true : i1
    %12 = arith.andi %10, %11 : i1
    %13 = arith.extui %12 : i1 to i32
    %c0_i32_3 = arith.constant 0 : i32
    %14 = arith.cmpi ne, %13, %c0_i32_3 : i32
    scf.if %14 {
      %c0 = arith.constant 0 : index
      %c0_6 = arith.constant 0 : index
      %c0_7 = arith.constant 0 : index
      %c0_8 = arith.constant 0 : index
      %c0_9 = arith.constant 0 : index
      %18 = vector.load %arg8[%c0, %c0_6, %c0_7, %c0_8, %c0_9] : memref<1x8x1x4x8xbf16, #tpu.memory_space<vmem>>, vector<1x8x1x4x8xbf16>
      %19 = vector.shape_cast %18 : vector<1x8x1x4x8xbf16> to vector<8x4x8xbf16>
      %20 = arith.extf %19 : vector<8x4x8xbf16> to vector<8x4x8xf32>
      %c0_10 = arith.constant 0 : index
      %c0_11 = arith.constant 0 : index
      %21 = vector.load %arg5[%c0_10, %c0_11] : memref<8x4xf32, #tpu.memory_space<vmem>>, vector<8x4xf32>
      %22 = vector.shape_cast %21 : vector<8x4xf32> to vector<8x1x4xf32>
      %c0_12 = arith.constant 0 : index
      %c0_13 = arith.constant 0 : index
      %23 = vector.load %arg6[%c0_12, %c0_13] : memref<8x4xf32, #tpu.memory_space<vmem>>, vector<8x4xf32>
      %24 = vector.shape_cast %23 : vector<8x4xf32> to vector<8x1x4xf32>
      %25 = vector.extract_strided_slice %20 {offsets = [0, 0, 0], sizes = [8, 4, 4], strides = [1, 1, 1]} : vector<8x4x8xf32> to vector<8x4x4xf32>
      %26 = vector.extract_strided_slice %20 {offsets = [0, 0, 4], sizes = [8, 4, 4], strides = [1, 1, 1]} : vector<8x4x8xf32> to vector<8x4x4xf32>
      %27 = vector.broadcast %22 : vector<8x1x4xf32> to vector<8x4x4xf32>
      %28 = arith.mulf %25, %27 : vector<8x4x4xf32>
      %29 = vector.broadcast %24 : vector<8x1x4xf32> to vector<8x4x4xf32>
      %30 = arith.mulf %26, %29 : vector<8x4x4xf32>
      %31 = arith.subf %28, %30 : vector<8x4x4xf32>
      %32 = vector.broadcast %22 : vector<8x1x4xf32> to vector<8x4x4xf32>
      %33 = arith.mulf %26, %32 : vector<8x4x4xf32>
      %34 = vector.broadcast %24 : vector<8x1x4xf32> to vector<8x4x4xf32>
      %35 = arith.mulf %25, %34 : vector<8x4x4xf32>
      %36 = arith.addf %33, %35 : vector<8x4x4xf32>
      %37 = tpu.concatenate %31, %36 in 2 : vector<8x4x4xf32>, vector<8x4x4xf32> -> vector<8x4x8xf32>
      %38 = arith.truncf %37 : vector<8x4x8xf32> to vector<8x4x8xbf16>
      %c0_14 = arith.constant 0 : index
      %c0_15 = arith.constant 0 : index
      %c0_16 = arith.constant 0 : index
      %39 = vector.load %arg11[%c0_14, %c0_15, %c0_16] : memref<8x4x8xbf16, #tpu.memory_space<vmem>>, vector<8x4x8xbf16>
      %cst = arith.constant dense<0.000000e+00> : vector<4x8x8xf32>
      %40 = tpu.matmul %39, %38, %cst {dimension_numbers = #tpu.dot_dimension_numbers<[2], [2], [0], [0], [0, 1, 0, 0, 1, 0], [1], [1]>} : vector<8x4x8xbf16>, vector<8x4x8xbf16>, vector<4x8x8xf32> -> vector<4x8x8xf32>
      %c8_i32_17 = arith.constant 8 : i32
      %41 = arith.muli %arg1, %c8_i32_17 : i32
      %42 = tpu.iota {dimensions = array<i32: 1>} : vector<1x8x8xi32>
      %43 = vector.broadcast %41 : i32 to vector<1x8x8xi32>
      %44 = arith.addi %43, %42 : vector<1x8x8xi32>
      %c8_i32_18 = arith.constant 8 : i32
      %45 = arith.muli %arg2, %c8_i32_18 : i32
      %46 = tpu.iota {dimensions = array<i32: 2>} : vector<1x8x8xi32>
      %47 = vector.broadcast %45 : i32 to vector<1x8x8xi32>
      %48 = arith.addi %47, %46 : vector<1x8x8xi32>
      %49 = arith.cmpi sle, %48, %44 : vector<1x8x8xi32>
      %c8_i32_19 = arith.constant 8 : i32
      %50 = vector.broadcast %c8_i32_19 : i32 to vector<1x8x8xi32>
      %51 = arith.cmpi slt, %48, %50 : vector<1x8x8xi32>
      %52 = arith.andi %49, %51 : vector<1x8x8xi1>
      %cst_20 = arith.constant -1.000000e+30 : f32
      %53 = vector.shape_cast %52 : vector<1x8x8xi1> to vector<1x8x8xi1>
      %54 = vector.broadcast %53 : vector<1x8x8xi1> to vector<4x8x8xi1>
      %55 = vector.broadcast %cst_20 : f32 to vector<4x8x8xf32>
      %56 = arith.select %54, %40, %55 : vector<4x8x8xi1>, vector<4x8x8xf32>
      %c0_21 = arith.constant 0 : index
      %c0_22 = arith.constant 0 : index
      %c0_23 = arith.constant 0 : index
      %57 = vector.load %arg12[%c0_21, %c0_22, %c0_23] : memref<4x8x1xf32, #tpu.memory_space<vmem>>, vector<4x8x1xf32>
      %cst_24 = arith.constant dense<0xFF800000> : vector<4x8xf32>
      %58 = vector.multi_reduction <maximumf>, %56, %cst_24 [2] : vector<4x8x8xf32> to vector<4x8xf32>
      %59 = vector.shape_cast %58 : vector<4x8xf32> to vector<4x8x1xf32>
      %60 = arith.maximumf %57, %59 : vector<4x8x1xf32>
      %61 = arith.subf %57, %60 : vector<4x8x1xf32>
      %62 = math.exp %61 : vector<4x8x1xf32>
      %63 = vector.broadcast %60 : vector<4x8x1xf32> to vector<4x8x8xf32>
      %64 = arith.subf %56, %63 : vector<4x8x8xf32>
      %65 = math.exp %64 : vector<4x8x8xf32>
      %c0_25 = arith.constant 0 : index
      %c0_26 = arith.constant 0 : index
      %c0_27 = arith.constant 0 : index
      %66 = vector.load %arg13[%c0_25, %c0_26, %c0_27] : memref<4x8x1xf32, #tpu.memory_space<vmem>>, vector<4x8x1xf32>
      %67 = arith.mulf %62, %66 : vector<4x8x1xf32>
      %cst_28 = arith.constant dense<0.000000e+00> : vector<4x8xf32>
      %68 = vector.multi_reduction <add>, %65, %cst_28 [2] : vector<4x8x8xf32> to vector<4x8xf32>
      %69 = vector.shape_cast %68 : vector<4x8xf32> to vector<4x8x1xf32>
      %70 = arith.addf %67, %69 : vector<4x8x1xf32>
      %c0_29 = arith.constant 0 : index
      %c0_30 = arith.constant 0 : index
      %c0_31 = arith.constant 0 : index
      %71 = vector.load %arg13[%c0_29, %c0_30, %c0_31] : memref<4x8x1xf32, #tpu.memory_space<vmem>>, vector<4x8x1xf32>
      tpu.vector_store %arg13[%c0_29, %c0_30, %c0_31], %70 {strides = array<i32>} : memref<4x8x1xf32, #tpu.memory_space<vmem>>, vector<4x8x1xf32>,
      %72 = arith.truncf %65 : vector<4x8x8xf32> to vector<4x8x8xbf16>
      %c0_32 = arith.constant 0 : index
      %c0_33 = arith.constant 0 : index
      %c0_34 = arith.constant 0 : index
      %c0_35 = arith.constant 0 : index
      %c0_36 = arith.constant 0 : index
      %73 = vector.load %arg9[%c0_32, %c0_33, %c0_34, %c0_35, %c0_36] : memref<1x8x1x4x8xbf16, #tpu.memory_space<vmem>>, vector<1x8x1x4x8xbf16>
      %74 = vector.shape_cast %73 : vector<1x8x1x4x8xbf16> to vector<8x4x8xbf16>
      %cst_37 = arith.constant dense<0.000000e+00> : vector<4x8x8xf32>
      %75 = tpu.matmul %72, %74, %cst_37 {dimension_numbers = #tpu.dot_dimension_numbers<[2], [0], [1], [2], [0, 0, 0, 1, 1, 2], [0], [1]>} : vector<4x8x8xbf16>, vector<8x4x8xbf16>, vector<4x8x8xf32> -> vector<4x8x8xf32>
      %c0_38 = arith.constant 0 : index
      %c0_39 = arith.constant 0 : index
      %c0_40 = arith.constant 0 : index
      %76 = vector.load %arg14[%c0_38, %c0_39, %c0_40] : memref<4x8x8xf32, #tpu.memory_space<vmem>>, vector<4x8x8xf32>
      %77 = vector.broadcast %62 : vector<4x8x1xf32> to vector<4x8x8xf32>
      %78 = arith.mulf %77, %76 : vector<4x8x8xf32>
      %79 = arith.addf %78, %75 : vector<4x8x8xf32>
      %c0_41 = arith.constant 0 : index
      %c0_42 = arith.constant 0 : index
      %c0_43 = arith.constant 0 : index
      %80 = vector.load %arg14[%c0_41, %c0_42, %c0_43] : memref<4x8x8xf32, #tpu.memory_space<vmem>>, vector<4x8x8xf32>
      tpu.vector_store %arg14[%c0_41, %c0_42, %c0_43], %79 {strides = array<i32>} : memref<4x8x8xf32, #tpu.memory_space<vmem>>, vector<4x8x8xf32>,
      %c0_44 = arith.constant 0 : index
      %c0_45 = arith.constant 0 : index
      %c0_46 = arith.constant 0 : index
      %81 = vector.load %arg12[%c0_44, %c0_45, %c0_46] : memref<4x8x1xf32, #tpu.memory_space<vmem>>, vector<4x8x1xf32>
      tpu.vector_store %arg12[%c0_44, %c0_45, %c0_46], %60 {strides = array<i32>} : memref<4x8x1xf32, #tpu.memory_space<vmem>>, vector<4x8x1xf32>,
    } else {
    }
    %c0_i32_4 = arith.constant 0 : i32
    %15 = arith.cmpi eq, %arg2, %c0_i32_4 : i32
    %16 = arith.extui %15 : i1 to i32
    %c0_i32_5 = arith.constant 0 : i32
    %17 = arith.cmpi ne, %16, %c0_i32_5 : i32
    scf.if %17 {
      %c0 = arith.constant 0 : index
      %c0_6 = arith.constant 0 : index
      %c0_7 = arith.constant 0 : index
      %18 = vector.load %arg13[%c0, %c0_6, %c0_7] : memref<4x8x1xf32, #tpu.memory_space<vmem>>, vector<4x8x1xf32>
      %cst = arith.constant 0.000000e+00 : f32
      %19 = vector.broadcast %cst : f32 to vector<4x8x1xf32>
      %20 = arith.cmpf oeq, %18, %19 : vector<4x8x1xf32>
      %cst_8 = arith.constant 1.000000e+00 : f32
      %21 = vector.broadcast %cst_8 : f32 to vector<4x8x1xf32>
      %22 = arith.select %20, %21, %18 : vector<4x8x1xi1>, vector<4x8x1xf32>
      %c0_9 = arith.constant 0 : index
      %c0_10 = arith.constant 0 : index
      %c0_11 = arith.constant 0 : index
      %23 = vector.load %arg14[%c0_9, %c0_10, %c0_11] : memref<4x8x8xf32, #tpu.memory_space<vmem>>, vector<4x8x8xf32>
      %24 = tpu.reciprocal %22 {approx = true} : vector<4x8x1xf32> -> vector<4x8x1xf32>
      %25 = vector.broadcast %24 : vector<4x8x1xf32> to vector<4x8x8xf32>
      %26 = arith.mulf %23, %25 : vector<4x8x8xf32>
      %27 = vector.extract_strided_slice %26 {offsets = [0, 0, 0], sizes = [1, 8, 8], strides = [1, 1, 1]} : vector<4x8x8xf32> to vector<1x8x8xf32>
      %28 = vector.shape_cast %27 : vector<1x8x8xf32> to vector<8x8xf32>
      %29 = arith.truncf %28 : vector<8x8xf32> to vector<8x8xbf16>
      %c0_12 = arith.constant 0 : index
      %c0_13 = arith.constant 0 : index
      %c0_14 = arith.constant 0 : index
      %c0_15 = arith.constant 0 : index
      %30 = vector.load %arg10[%c0_12, %c0_13, %c0_14, %c0_15] : memref<1x8x4x8xbf16, #tpu.memory_space<vmem>>, vector<1x8x1x8xbf16>
      %31 = vector.shape_cast %30 : vector<1x8x1x8xbf16> to vector<8x8xbf16>
      %32 = vector.shape_cast %29 : vector<8x8xbf16> to vector<1x8x1x8xbf16>
      tpu.vector_store %arg10[%c0_12, %c0_13, %c0_14, %c0_15], %32 {strides = array<i32>} : memref<1x8x4x8xbf16, #tpu.memory_space<vmem>>, vector<1x8x1x8xbf16>,
      %33 = vector.extract_strided_slice %26 {offsets = [1, 0, 0], sizes = [1, 8, 8], strides = [1, 1, 1]} : vector<4x8x8xf32> to vector<1x8x8xf32>
      %34 = vector.shape_cast %33 : vector<1x8x8xf32> to vector<8x8xf32>
      %35 = arith.truncf %34 : vector<8x8xf32> to vector<8x8xbf16>
      %c0_16 = arith.constant 0 : index
      %c0_17 = arith.constant 0 : index
      %c1 = arith.constant 1 : index
      %c0_18 = arith.constant 0 : index
      %36 = vector.load %arg10[%c0_16, %c0_17, %c1, %c0_18] : memref<1x8x4x8xbf16, #tpu.memory_space<vmem>>, vector<1x8x1x8xbf16>
      %37 = vector.shape_cast %36 : vector<1x8x1x8xbf16> to vector<8x8xbf16>
      %38 = vector.shape_cast %35 : vector<8x8xbf16> to vector<1x8x1x8xbf16>
      tpu.vector_store %arg10[%c0_16, %c0_17, %c1, %c0_18], %38 {strides = array<i32>} : memref<1x8x4x8xbf16, #tpu.memory_space<vmem>>, vector<1x8x1x8xbf16>,
      %39 = vector.extract_strided_slice %26 {offsets = [2, 0, 0], sizes = [1, 8, 8], strides = [1, 1, 1]} : vector<4x8x8xf32> to vector<1x8x8xf32>
      %40 = vector.shape_cast %39 : vector<1x8x8xf32> to vector<8x8xf32>
      %41 = arith.truncf %40 : vector<8x8xf32> to vector<8x8xbf16>
      %c0_19 = arith.constant 0 : index
      %c0_20 = arith.constant 0 : index
      %c2 = arith.constant 2 : index
      %c0_21 = arith.constant 0 : index
      %42 = vector.load %arg10[%c0_19, %c0_20, %c2, %c0_21] : memref<1x8x4x8xbf16, #tpu.memory_space<vmem>>, vector<1x8x1x8xbf16>
      %43 = vector.shape_cast %42 : vector<1x8x1x8xbf16> to vector<8x8xbf16>
      %44 = vector.shape_cast %41 : vector<8x8xbf16> to vector<1x8x1x8xbf16>
      tpu.vector_store %arg10[%c0_19, %c0_20, %c2, %c0_21], %44 {strides = array<i32>} : memref<1x8x4x8xbf16, #tpu.memory_space<vmem>>, vector<1x8x1x8xbf16>,
      %45 = vector.extract_strided_slice %26 {offsets = [3, 0, 0], sizes = [1, 8, 8], strides = [1, 1, 1]} : vector<4x8x8xf32> to vector<1x8x8xf32>
      %46 = vector.shape_cast %45 : vector<1x8x8xf32> to vector<8x8xf32>
      %47 = arith.truncf %46 : vector<8x8xf32> to vector<8x8xbf16>
      %c0_22 = arith.constant 0 : index
      %c0_23 = arith.constant 0 : index
      %c3 = arith.constant 3 : index
      %c0_24 = arith.constant 0 : index
      %48 = vector.load %arg10[%c0_22, %c0_23, %c3, %c0_24] : memref<1x8x4x8xbf16, #tpu.memory_space<vmem>>, vector<1x8x1x8xbf16>
      %49 = vector.shape_cast %48 : vector<1x8x1x8xbf16> to vector<8x8xbf16>
      %50 = vector.shape_cast %47 : vector<8x8xbf16> to vector<1x8x1x8xbf16>
      tpu.vector_store %arg10[%c0_22, %c0_23, %c3, %c0_24], %50 {strides = array<i32>} : memref<1x8x4x8xbf16, #tpu.memory_space<vmem>>, vector<1x8x1x8xbf16>,
    } else {
    }
    return
  }
  func.func @transform_0(%arg0: i32, %arg1: i32, %arg2: i32) -> (i32, i32) {
    %c0_i32 = arith.constant 0 : i32
    %c0_i32_0 = arith.constant 0 : i32
    return %arg1, %c0_i32 : i32, i32
  }
  func.func @transform_1(%arg0: i32, %arg1: i32, %arg2: i32) -> (i32, i32) {
    %c0_i32 = arith.constant 0 : i32
    %c0_i32_0 = arith.constant 0 : i32
    return %arg1, %c0_i32 : i32, i32
  }
  func.func @transform_2(%arg0: i32, %arg1: i32, %arg2: i32) -> (i32, i32) {
    %0 = arith.minsi %arg1, %arg2 : i32
    %c0_i32 = arith.constant 0 : i32
    %c0_i32_0 = arith.constant 0 : i32
    return %0, %c0_i32 : i32, i32
  }
  func.func @transform_3(%arg0: i32, %arg1: i32, %arg2: i32) -> (i32, i32) {
    %0 = arith.minsi %arg1, %arg2 : i32
    %c0_i32 = arith.constant 0 : i32
    %c0_i32_0 = arith.constant 0 : i32
    return %0, %c0_i32 : i32, i32
  }
  func.func @transform_4(%arg0: i32, %arg1: i32, %arg2: i32) -> (i32, i32, i32, i32, i32) {
    %c0_i32 = arith.constant 0 : i32
    %c0_i32_0 = arith.constant 0 : i32
    %c0_i32_1 = arith.constant 0 : i32
    %c0_i32_2 = arith.constant 0 : i32
    return %arg0, %arg1, %c0_i32, %c0_i32_0, %c0_i32_1 : i32, i32, i32, i32, i32
  }
  func.func @transform_5(%arg0: i32, %arg1: i32, %arg2: i32) -> (i32, i32, i32, i32, i32) {
    %0 = arith.minsi %arg1, %arg2 : i32
    %c1_i32 = arith.constant 1 : i32
    %c0_i32 = arith.constant 0 : i32
    %c0_i32_0 = arith.constant 0 : i32
    %c0_i32_1 = arith.constant 0 : i32
    return %arg0, %0, %c1_i32, %c0_i32, %c0_i32_0 : i32, i32, i32, i32, i32
  }
  func.func @transform_6(%arg0: i32, %arg1: i32, %arg2: i32) -> (i32, i32, i32, i32, i32) {
    %0 = arith.minsi %arg1, %arg2 : i32
    %c2_i32 = arith.constant 2 : i32
    %c0_i32 = arith.constant 0 : i32
    %c0_i32_0 = arith.constant 0 : i32
    %c0_i32_1 = arith.constant 0 : i32
    return %arg0, %0, %c2_i32, %c0_i32, %c0_i32_0 : i32, i32, i32, i32, i32
  }
  func.func @transform_7(%arg0: i32, %arg1: i32, %arg2: i32) -> (i32, i32, i32, i32) {
    %c0_i32 = arith.constant 0 : i32
    %c0_i32_0 = arith.constant 0 : i32
    %c0_i32_1 = arith.constant 0 : i32
    return %arg0, %arg1, %c0_i32, %c0_i32_0 : i32, i32, i32, i32
  }
}

module attributes {stable_mosaic.version = 11 : i64} {
  func.func @_matmul_res_kernel(%arg0: i32, %arg1: i32, %arg2: i32, %arg3: memref<16x128xbf16, #tpu.memory_space<vmem>>, %arg4: memref<128x128xbf16, #tpu.memory_space<vmem>>, %arg5: memref<16x128xf32, #tpu.memory_space<vmem>>, %arg6: memref<16x128xf32, #tpu.memory_space<vmem>>, %arg7: memref<16x128xf32, #tpu.memory_space<vmem>>) attributes {dimension_semantics = [#tpu.dimension_semantics<parallel>, #tpu.dimension_semantics<parallel>, #tpu.dimension_semantics<arbitrary>], iteration_bounds = array<i64: 1, 1, 1>, scalar_prefetch = 0 : i64, scratch_operands = 1 : i64, tpu.core_type = #tpu.core_type<tc>, window_params = [{transform_indices = @transform_0, window_bounds = array<i64: 16, 128>}, {transform_indices = @transform_1, window_bounds = array<i64: 128, 128>}, {transform_indices = @transform_2, window_bounds = array<i64: 16, 128>}, {transform_indices = @transform_3, window_bounds = array<i64: 16, 128>}]} {
    %c0_i32 = arith.constant 0 : i32
    %0 = arith.cmpi eq, %arg2, %c0_i32 : i32
    %1 = arith.extui %0 : i1 to i32
    %c0_i32_0 = arith.constant 0 : i32
    %2 = arith.cmpi ne, %1, %c0_i32_0 : i32
    scf.if %2 {
      %cst_10 = arith.constant 0.000000e+00 : f32
      %12 = vector.broadcast %cst_10 : f32 to vector<16x128xf32>
      %c0_11 = arith.constant 0 : index
      %c0_12 = arith.constant 0 : index
      %13 = vector.load %arg7[%c0_11, %c0_12] : memref<16x128xf32, #tpu.memory_space<vmem>>, vector<16x128xf32>
      tpu.vector_store %arg7[%c0_11, %c0_12], %12 {strides = array<i32>} : memref<16x128xf32, #tpu.memory_space<vmem>>, vector<16x128xf32>,
    } else {
    }
    %c0 = arith.constant 0 : index
    %c0_1 = arith.constant 0 : index
    %3 = vector.load %arg7[%c0, %c0_1] : memref<16x128xf32, #tpu.memory_space<vmem>>, vector<16x128xf32>
    %c0_2 = arith.constant 0 : index
    %c0_3 = arith.constant 0 : index
    %4 = vector.load %arg3[%c0_2, %c0_3] : memref<16x128xbf16, #tpu.memory_space<vmem>>, vector<16x128xbf16>
    %c0_4 = arith.constant 0 : index
    %c0_5 = arith.constant 0 : index
    %5 = vector.load %arg4[%c0_4, %c0_5] : memref<128x128xbf16, #tpu.memory_space<vmem>>, vector<128x128xbf16>
    %cst = arith.constant dense<0.000000e+00> : vector<16x128xf32>
    %6 = tpu.matmul %4, %5, %cst {dimension_numbers = #tpu.dot_dimension_numbers<[1], [0], [0], [1], [0, 0, 1, 1], [], []>} : vector<16x128xbf16>, vector<128x128xbf16>, vector<16x128xf32> -> vector<16x128xf32>
    %7 = arith.addf %3, %6 : vector<16x128xf32>
    %c0_6 = arith.constant 0 : index
    %c0_7 = arith.constant 0 : index
    %8 = vector.load %arg7[%c0_6, %c0_7] : memref<16x128xf32, #tpu.memory_space<vmem>>, vector<16x128xf32>
    tpu.vector_store %arg7[%c0_6, %c0_7], %7 {strides = array<i32>} : memref<16x128xf32, #tpu.memory_space<vmem>>, vector<16x128xf32>,
    %c0_i32_8 = arith.constant 0 : i32
    %9 = arith.cmpi eq, %arg2, %c0_i32_8 : i32
    %10 = arith.extui %9 : i1 to i32
    %c0_i32_9 = arith.constant 0 : i32
    %11 = arith.cmpi ne, %10, %c0_i32_9 : i32
    scf.if %11 {
      %c0_10 = arith.constant 0 : index
      %c0_11 = arith.constant 0 : index
      %12 = vector.load %arg7[%c0_10, %c0_11] : memref<16x128xf32, #tpu.memory_space<vmem>>, vector<16x128xf32>
      %c0_12 = arith.constant 0 : index
      %c0_13 = arith.constant 0 : index
      %13 = vector.load %arg5[%c0_12, %c0_13] : memref<16x128xf32, #tpu.memory_space<vmem>>, vector<16x128xf32>
      %14 = arith.addf %12, %13 : vector<16x128xf32>
      %c0_14 = arith.constant 0 : index
      %c0_15 = arith.constant 0 : index
      %15 = vector.load %arg6[%c0_14, %c0_15] : memref<16x128xf32, #tpu.memory_space<vmem>>, vector<16x128xf32>
      tpu.vector_store %arg6[%c0_14, %c0_15], %14 {strides = array<i32>} : memref<16x128xf32, #tpu.memory_space<vmem>>, vector<16x128xf32>,
    } else {
    }
    return
  }
  func.func @transform_0(%arg0: i32, %arg1: i32, %arg2: i32) -> (i32, i32) {
    %c0_i32 = arith.constant 0 : i32
    return %arg0, %arg2 : i32, i32
  }
  func.func @transform_1(%arg0: i32, %arg1: i32, %arg2: i32) -> (i32, i32) {
    %c0_i32 = arith.constant 0 : i32
    return %arg2, %arg1 : i32, i32
  }
  func.func @transform_2(%arg0: i32, %arg1: i32, %arg2: i32) -> (i32, i32) {
    %c0_i32 = arith.constant 0 : i32
    return %arg0, %arg1 : i32, i32
  }
  func.func @transform_3(%arg0: i32, %arg1: i32, %arg2: i32) -> (i32, i32) {
    %c0_i32 = arith.constant 0 : i32
    return %arg0, %arg1 : i32, i32
  }
}

module attributes {stable_mosaic.version = 11 : i64} {
  func.func @_rms_swiglu_kernel(%arg0: i32, %arg1: i32, %arg2: memref<16x128xf32, #tpu.memory_space<vmem>>, %arg3: memref<1x128xf32, #tpu.memory_space<vmem>>, %arg4: memref<128x256xbf16, #tpu.memory_space<vmem>>, %arg5: memref<128x256xbf16, #tpu.memory_space<vmem>>, %arg6: memref<16x256xbf16, #tpu.memory_space<vmem>>, %arg7: memref<16x128xbf16, #tpu.memory_space<vmem>>) attributes {dimension_semantics = [#tpu.dimension_semantics<parallel>, #tpu.dimension_semantics<arbitrary>], iteration_bounds = array<i64: 1, 1>, scalar_prefetch = 0 : i64, scratch_operands = 1 : i64, tpu.core_type = #tpu.core_type<tc>, window_params = [{transform_indices = @transform_0, window_bounds = array<i64: 16, 128>}, {pipeline_mode = #tpu.pipeline_mode<synchronous>, transform_indices = @transform_1, window_bounds = array<i64: 1, 128>}, {transform_indices = @transform_2, window_bounds = array<i64: 128, 256>}, {transform_indices = @transform_3, window_bounds = array<i64: 128, 256>}, {transform_indices = @transform_4, window_bounds = array<i64: 16, 256>}]} {
    %c0_i32 = arith.constant 0 : i32
    %0 = arith.cmpi eq, %arg1, %c0_i32 : i32
    %1 = arith.extui %0 : i1 to i32
    %c0_i32_0 = arith.constant 0 : i32
    %2 = arith.cmpi ne, %1, %c0_i32_0 : i32
    scf.if %2 {
      %c0_10 = arith.constant 0 : index
      %c0_11 = arith.constant 0 : index
      %17 = vector.load %arg2[%c0_10, %c0_11] : memref<16x128xf32, #tpu.memory_space<vmem>>, vector<16x128xf32>
      %18 = arith.mulf %17, %17 : vector<16x128xf32>
      %cst_12 = arith.constant dense<0.000000e+00> : vector<16xf32>
      %19 = vector.multi_reduction <add>, %18, %cst_12 [1] : vector<16x128xf32> to vector<16xf32>
      %20 = vector.shape_cast %19 : vector<16xf32> to vector<16x1xf32>
      %cst_13 = arith.constant 3.125000e-02 : f32
      %21 = vector.broadcast %cst_13 : f32 to vector<16x1xf32>
      %22 = arith.mulf %20, %21 : vector<16x1xf32>
      %cst_14 = arith.constant 9.99999974E-6 : f32
      %23 = vector.broadcast %cst_14 : f32 to vector<16x1xf32>
      %24 = arith.addf %22, %23 : vector<16x1xf32>
      %25 = math.rsqrt %24 : vector<16x1xf32>
      %26 = vector.broadcast %25 : vector<16x1xf32> to vector<16x128xf32>
      %27 = arith.mulf %17, %26 : vector<16x128xf32>
      %c0_15 = arith.constant 0 : index
      %c0_16 = arith.constant 0 : index
      %28 = vector.load %arg3[%c0_15, %c0_16] : memref<1x128xf32, #tpu.memory_space<vmem>>, vector<1x128xf32>
      %29 = vector.broadcast %28 : vector<1x128xf32> to vector<16x128xf32>
      %30 = arith.mulf %27, %29 : vector<16x128xf32>
      %31 = arith.truncf %30 : vector<16x128xf32> to vector<16x128xbf16>
      %c0_17 = arith.constant 0 : index
      %c0_18 = arith.constant 0 : index
      %32 = vector.load %arg7[%c0_17, %c0_18] : memref<16x128xbf16, #tpu.memory_space<vmem>>, vector<16x128xbf16>
      tpu.vector_store %arg7[%c0_17, %c0_18], %31 {strides = array<i32>} : memref<16x128xbf16, #tpu.memory_space<vmem>>, vector<16x128xbf16>,
    } else {
    }
    %c0 = arith.constant 0 : index
    %c0_1 = arith.constant 0 : index
    %3 = vector.load %arg7[%c0, %c0_1] : memref<16x128xbf16, #tpu.memory_space<vmem>>, vector<16x128xbf16>
    %c0_2 = arith.constant 0 : index
    %c0_3 = arith.constant 0 : index
    %4 = vector.load %arg4[%c0_2, %c0_3] : memref<128x256xbf16, #tpu.memory_space<vmem>>, vector<128x256xbf16>
    %cst = arith.constant dense<0.000000e+00> : vector<16x256xf32>
    %5 = tpu.matmul %3, %4, %cst {dimension_numbers = #tpu.dot_dimension_numbers<[1], [0], [0], [1], [0, 0, 1, 1], [], []>} : vector<16x128xbf16>, vector<128x256xbf16>, vector<16x256xf32> -> vector<16x256xf32>
    %c0_4 = arith.constant 0 : index
    %c0_5 = arith.constant 0 : index
    %6 = vector.load %arg5[%c0_4, %c0_5] : memref<128x256xbf16, #tpu.memory_space<vmem>>, vector<128x256xbf16>
    %cst_6 = arith.constant dense<0.000000e+00> : vector<16x256xf32>
    %7 = tpu.matmul %3, %6, %cst_6 {dimension_numbers = #tpu.dot_dimension_numbers<[1], [0], [0], [1], [0, 0, 1, 1], [], []>} : vector<16x128xbf16>, vector<128x256xbf16>, vector<16x256xf32> -> vector<16x256xf32>
    %8 = arith.negf %5 : vector<16x256xf32>
    %9 = math.exp %8 : vector<16x256xf32>
    %cst_7 = arith.constant 1.000000e+00 : f32
    %10 = vector.broadcast %cst_7 : f32 to vector<16x256xf32>
    %11 = arith.addf %10, %9 : vector<16x256xf32>
    %12 = arith.divf %10, %11 : vector<16x256xf32>
    %13 = arith.mulf %5, %12 : vector<16x256xf32>
    %14 = arith.mulf %13, %7 : vector<16x256xf32>
    %15 = arith.truncf %14 : vector<16x256xf32> to vector<16x256xbf16>
    %c0_8 = arith.constant 0 : index
    %c0_9 = arith.constant 0 : index
    %16 = vector.load %arg6[%c0_8, %c0_9] : memref<16x256xbf16, #tpu.memory_space<vmem>>, vector<16x256xbf16>
    tpu.vector_store %arg6[%c0_8, %c0_9], %15 {strides = array<i32>} : memref<16x256xbf16, #tpu.memory_space<vmem>>, vector<16x256xbf16>,
    return
  }
  func.func @transform_0(%arg0: i32, %arg1: i32) -> (i32, i32) {
    %c0_i32 = arith.constant 0 : i32
    %c0_i32_0 = arith.constant 0 : i32
    return %arg0, %c0_i32 : i32, i32
  }
  func.func @transform_1(%arg0: i32, %arg1: i32) -> (i32, i32) {
    %c0_i32 = arith.constant 0 : i32
    %c0_i32_0 = arith.constant 0 : i32
    %c0_i32_1 = arith.constant 0 : i32
    return %c0_i32, %c0_i32_0 : i32, i32
  }
  func.func @transform_2(%arg0: i32, %arg1: i32) -> (i32, i32) {
    %c0_i32 = arith.constant 0 : i32
    %c0_i32_0 = arith.constant 0 : i32
    return %c0_i32, %arg1 : i32, i32
  }
  func.func @transform_3(%arg0: i32, %arg1: i32) -> (i32, i32) {
    %c0_i32 = arith.constant 0 : i32
    %c0_i32_0 = arith.constant 0 : i32
    return %c0_i32, %arg1 : i32, i32
  }
  func.func @transform_4(%arg0: i32, %arg1: i32) -> (i32, i32) {
    %c0_i32 = arith.constant 0 : i32
    return %arg0, %arg1 : i32, i32
  }
}

module attributes {stable_mosaic.version = 11 : i64} {
  func.func @_matmul_res_kernel(%arg0: i32, %arg1: i32, %arg2: i32, %arg3: memref<16x256xbf16, #tpu.memory_space<vmem>>, %arg4: memref<256x128xbf16, #tpu.memory_space<vmem>>, %arg5: memref<16x128xf32, #tpu.memory_space<vmem>>, %arg6: memref<16x128xf32, #tpu.memory_space<vmem>>, %arg7: memref<16x128xf32, #tpu.memory_space<vmem>>) attributes {dimension_semantics = [#tpu.dimension_semantics<parallel>, #tpu.dimension_semantics<parallel>, #tpu.dimension_semantics<arbitrary>], iteration_bounds = array<i64: 1, 1, 1>, scalar_prefetch = 0 : i64, scratch_operands = 1 : i64, tpu.core_type = #tpu.core_type<tc>, window_params = [{transform_indices = @transform_0, window_bounds = array<i64: 16, 256>}, {transform_indices = @transform_1, window_bounds = array<i64: 256, 128>}, {transform_indices = @transform_2, window_bounds = array<i64: 16, 128>}, {transform_indices = @transform_3, window_bounds = array<i64: 16, 128>}]} {
    %c0_i32 = arith.constant 0 : i32
    %0 = arith.cmpi eq, %arg2, %c0_i32 : i32
    %1 = arith.extui %0 : i1 to i32
    %c0_i32_0 = arith.constant 0 : i32
    %2 = arith.cmpi ne, %1, %c0_i32_0 : i32
    scf.if %2 {
      %cst_10 = arith.constant 0.000000e+00 : f32
      %12 = vector.broadcast %cst_10 : f32 to vector<16x128xf32>
      %c0_11 = arith.constant 0 : index
      %c0_12 = arith.constant 0 : index
      %13 = vector.load %arg7[%c0_11, %c0_12] : memref<16x128xf32, #tpu.memory_space<vmem>>, vector<16x128xf32>
      tpu.vector_store %arg7[%c0_11, %c0_12], %12 {strides = array<i32>} : memref<16x128xf32, #tpu.memory_space<vmem>>, vector<16x128xf32>,
    } else {
    }
    %c0 = arith.constant 0 : index
    %c0_1 = arith.constant 0 : index
    %3 = vector.load %arg7[%c0, %c0_1] : memref<16x128xf32, #tpu.memory_space<vmem>>, vector<16x128xf32>
    %c0_2 = arith.constant 0 : index
    %c0_3 = arith.constant 0 : index
    %4 = vector.load %arg3[%c0_2, %c0_3] : memref<16x256xbf16, #tpu.memory_space<vmem>>, vector<16x256xbf16>
    %c0_4 = arith.constant 0 : index
    %c0_5 = arith.constant 0 : index
    %5 = vector.load %arg4[%c0_4, %c0_5] : memref<256x128xbf16, #tpu.memory_space<vmem>>, vector<256x128xbf16>
    %cst = arith.constant dense<0.000000e+00> : vector<16x128xf32>
    %6 = tpu.matmul %4, %5, %cst {dimension_numbers = #tpu.dot_dimension_numbers<[1], [0], [0], [1], [0, 0, 1, 1], [], []>} : vector<16x256xbf16>, vector<256x128xbf16>, vector<16x128xf32> -> vector<16x128xf32>
    %7 = arith.addf %3, %6 : vector<16x128xf32>
    %c0_6 = arith.constant 0 : index
    %c0_7 = arith.constant 0 : index
    %8 = vector.load %arg7[%c0_6, %c0_7] : memref<16x128xf32, #tpu.memory_space<vmem>>, vector<16x128xf32>
    tpu.vector_store %arg7[%c0_6, %c0_7], %7 {strides = array<i32>} : memref<16x128xf32, #tpu.memory_space<vmem>>, vector<16x128xf32>,
    %c0_i32_8 = arith.constant 0 : i32
    %9 = arith.cmpi eq, %arg2, %c0_i32_8 : i32
    %10 = arith.extui %9 : i1 to i32
    %c0_i32_9 = arith.constant 0 : i32
    %11 = arith.cmpi ne, %10, %c0_i32_9 : i32
    scf.if %11 {
      %c0_10 = arith.constant 0 : index
      %c0_11 = arith.constant 0 : index
      %12 = vector.load %arg7[%c0_10, %c0_11] : memref<16x128xf32, #tpu.memory_space<vmem>>, vector<16x128xf32>
      %c0_12 = arith.constant 0 : index
      %c0_13 = arith.constant 0 : index
      %13 = vector.load %arg5[%c0_12, %c0_13] : memref<16x128xf32, #tpu.memory_space<vmem>>, vector<16x128xf32>
      %14 = arith.addf %12, %13 : vector<16x128xf32>
      %c0_14 = arith.constant 0 : index
      %c0_15 = arith.constant 0 : index
      %15 = vector.load %arg6[%c0_14, %c0_15] : memref<16x128xf32, #tpu.memory_space<vmem>>, vector<16x128xf32>
      tpu.vector_store %arg6[%c0_14, %c0_15], %14 {strides = array<i32>} : memref<16x128xf32, #tpu.memory_space<vmem>>, vector<16x128xf32>,
    } else {
    }
    return
  }
  func.func @transform_0(%arg0: i32, %arg1: i32, %arg2: i32) -> (i32, i32) {
    %c0_i32 = arith.constant 0 : i32
    return %arg0, %arg2 : i32, i32
  }
  func.func @transform_1(%arg0: i32, %arg1: i32, %arg2: i32) -> (i32, i32) {
    %c0_i32 = arith.constant 0 : i32
    return %arg2, %arg1 : i32, i32
  }
  func.func @transform_2(%arg0: i32, %arg1: i32, %arg2: i32) -> (i32, i32) {
    %c0_i32 = arith.constant 0 : i32
    return %arg0, %arg1 : i32, i32
  }
  func.func @transform_3(%arg0: i32, %arg1: i32, %arg2: i32) -> (i32, i32) {
    %c0_i32 = arith.constant 0 : i32
    return %arg0, %arg1 : i32, i32
  }
}

module attributes {stable_mosaic.version = 11 : i64} {
  func.func @_rms_matmul_kernel(%arg0: i32, %arg1: i32, %arg2: memref<16x128xf32, #tpu.memory_space<vmem>>, %arg3: memref<1x128xf32, #tpu.memory_space<vmem>>, %arg4: memref<128x128xbf16, #tpu.memory_space<vmem>>, %arg5: memref<16x128xf32, #tpu.memory_space<vmem>>, %arg6: memref<16x128xbf16, #tpu.memory_space<vmem>>) attributes {dimension_semantics = [#tpu.dimension_semantics<parallel>, #tpu.dimension_semantics<arbitrary>], iteration_bounds = array<i64: 1, 1>, scalar_prefetch = 0 : i64, scratch_operands = 1 : i64, tpu.core_type = #tpu.core_type<tc>, window_params = [{transform_indices = @transform_0, window_bounds = array<i64: 16, 128>}, {pipeline_mode = #tpu.pipeline_mode<synchronous>, transform_indices = @transform_1, window_bounds = array<i64: 1, 128>}, {transform_indices = @transform_2, window_bounds = array<i64: 128, 128>}, {transform_indices = @transform_3, window_bounds = array<i64: 16, 128>}]} {
    %c0_i32 = arith.constant 0 : i32
    %0 = arith.cmpi eq, %arg1, %c0_i32 : i32
    %1 = arith.extui %0 : i1 to i32
    %c0_i32_0 = arith.constant 0 : i32
    %2 = arith.cmpi ne, %1, %c0_i32_0 : i32
    scf.if %2 {
      %c0_6 = arith.constant 0 : index
      %c0_7 = arith.constant 0 : index
      %7 = vector.load %arg2[%c0_6, %c0_7] : memref<16x128xf32, #tpu.memory_space<vmem>>, vector<16x128xf32>
      %8 = arith.mulf %7, %7 : vector<16x128xf32>
      %cst_8 = arith.constant dense<0.000000e+00> : vector<16xf32>
      %9 = vector.multi_reduction <add>, %8, %cst_8 [1] : vector<16x128xf32> to vector<16xf32>
      %10 = vector.shape_cast %9 : vector<16xf32> to vector<16x1xf32>
      %cst_9 = arith.constant 3.125000e-02 : f32
      %11 = vector.broadcast %cst_9 : f32 to vector<16x1xf32>
      %12 = arith.mulf %10, %11 : vector<16x1xf32>
      %cst_10 = arith.constant 9.99999974E-6 : f32
      %13 = vector.broadcast %cst_10 : f32 to vector<16x1xf32>
      %14 = arith.addf %12, %13 : vector<16x1xf32>
      %15 = math.rsqrt %14 : vector<16x1xf32>
      %16 = vector.broadcast %15 : vector<16x1xf32> to vector<16x128xf32>
      %17 = arith.mulf %7, %16 : vector<16x128xf32>
      %c0_11 = arith.constant 0 : index
      %c0_12 = arith.constant 0 : index
      %18 = vector.load %arg3[%c0_11, %c0_12] : memref<1x128xf32, #tpu.memory_space<vmem>>, vector<1x128xf32>
      %19 = vector.broadcast %18 : vector<1x128xf32> to vector<16x128xf32>
      %20 = arith.mulf %17, %19 : vector<16x128xf32>
      %21 = arith.truncf %20 : vector<16x128xf32> to vector<16x128xbf16>
      %c0_13 = arith.constant 0 : index
      %c0_14 = arith.constant 0 : index
      %22 = vector.load %arg6[%c0_13, %c0_14] : memref<16x128xbf16, #tpu.memory_space<vmem>>, vector<16x128xbf16>
      tpu.vector_store %arg6[%c0_13, %c0_14], %21 {strides = array<i32>} : memref<16x128xbf16, #tpu.memory_space<vmem>>, vector<16x128xbf16>,
    } else {
    }
    %c0 = arith.constant 0 : index
    %c0_1 = arith.constant 0 : index
    %3 = vector.load %arg6[%c0, %c0_1] : memref<16x128xbf16, #tpu.memory_space<vmem>>, vector<16x128xbf16>
    %c0_2 = arith.constant 0 : index
    %c0_3 = arith.constant 0 : index
    %4 = vector.load %arg4[%c0_2, %c0_3] : memref<128x128xbf16, #tpu.memory_space<vmem>>, vector<128x128xbf16>
    %cst = arith.constant dense<0.000000e+00> : vector<16x128xf32>
    %5 = tpu.matmul %3, %4, %cst {dimension_numbers = #tpu.dot_dimension_numbers<[1], [0], [0], [1], [0, 0, 1, 1], [], []>} : vector<16x128xbf16>, vector<128x128xbf16>, vector<16x128xf32> -> vector<16x128xf32>
    %c0_4 = arith.constant 0 : index
    %c0_5 = arith.constant 0 : index
    %6 = vector.load %arg5[%c0_4, %c0_5] : memref<16x128xf32, #tpu.memory_space<vmem>>, vector<16x128xf32>
    tpu.vector_store %arg5[%c0_4, %c0_5], %5 {strides = array<i32>} : memref<16x128xf32, #tpu.memory_space<vmem>>, vector<16x128xf32>,
    return
  }
  func.func @transform_0(%arg0: i32, %arg1: i32) -> (i32, i32) {
    %c0_i32 = arith.constant 0 : i32
    %c0_i32_0 = arith.constant 0 : i32
    return %arg0, %c0_i32 : i32, i32
  }
  func.func @transform_1(%arg0: i32, %arg1: i32) -> (i32, i32) {
    %c0_i32 = arith.constant 0 : i32
    %c0_i32_0 = arith.constant 0 : i32
    %c0_i32_1 = arith.constant 0 : i32
    return %c0_i32, %c0_i32_0 : i32, i32
  }
  func.func @transform_2(%arg0: i32, %arg1: i32) -> (i32, i32) {
    %c0_i32 = arith.constant 0 : i32
    %c0_i32_0 = arith.constant 0 : i32
    return %c0_i32, %arg1 : i32, i32
  }
  func.func @transform_3(%arg0: i32, %arg1: i32) -> (i32, i32) {
    %c0_i32 = arith.constant 0 : i32
    return %arg0, %arg1 : i32, i32
  }
}

</mosaic_0001>

<llo_original>
// kernel: llama_forward.11
$region0: #{llama_forward.11}
  #allocation0 [shape = 'u32[]', space=smem, size = 0x4, offset = 0x4, fixed_abs, tag = 'smem constant byte address 0x4 - core index']
  #allocation1 [shape = 'u32[144,128]{1,0:T(1,128)}', space=vmem, size = 0x12000, scoped, tag = 'internal scratch']
  #allocation2 [shape = 'bf16[16,128]{1,0:T(16,128)(2,1)}', space=vmem, size = 0x1000, scoped, tag = 'scratch operand']
  %s0 = inlined_call_operand.vmem [shape: f32[16,128], index: 0, kind: input, shape index: {}]
  %s1 = inlined_call_operand.vmem [shape: f32[1,128], index: 1, kind: input, shape index: {}]
  %s2 = inlined_call_operand.vmem [shape: bf16[128,128], index: 2, kind: input, shape index: {}]
  %s3 = inlined_call_operand.vmem [shape: bf16[16,128], index: 3, kind: output, shape index: {}]
  %s4 = sld [smem:[#allocation0]]
  $region26: #{llama_forward.11} parent=0
    _
  %s6 = ssub.s32 1, %s4
  %s7 = scalar_select 0, %s6, %s4
  // Predicated region
  $region2: #{llama_forward.11} parent=0 // pred_check
    _
  $region3: #{llama_forward.11} parent=0 // pred_check_branch
    %9 = sbr.rel (0) target = $region5
  $region4: #{llama_forward.11} parent=0 // pred_region
    _
  $region5: #{llama_forward.11} parent=0 // pred_fallthru
    _
  // Predicated region
  $region6: #{llama_forward.11} parent=0 // pred_check
    _
  $region7: #{llama_forward.11} parent=0 // pred_check_branch
    %11 = sbr.rel (0) target = $region9
  $region8: #{llama_forward.11} parent=0 // pred_region
    _
  $region9: #{llama_forward.11} parent=0 // pred_fallthru
    _
  // Predicated region
  $region10: #{llama_forward.11} parent=0 // pred_check
    _
  $region11: #{llama_forward.11} parent=0 // pred_check_branch
    %13 = sbr.rel (0) target = $region13
  $region12: #{llama_forward.11} parent=0 // pred_region
    _
  $region13: #{llama_forward.11} parent=0 // pred_fallthru
    _
  %p15 = scmp.eq.s32.totalorder 0, 0
  // Predicated region
  $region14: #{llama_forward.11} parent=0 // pred_check
    %p16 = pneg %p15
  $region15: #{llama_forward.11} parent=0 // pred_check_branch
    %18 = sbr.rel (%p16) target = $region17
  $region16: #{llama_forward.11} parent=0 // pred_region
    %v19 = vld [vmem:[%s0] sm:$0xff]
    %v20 = vld [vmem:[%s0 + $0x8] sm:$0xff]
    %v21 = vmul.f32 %v19, %v19
    %v22 = vmul.f32 %v20, %v20
    %23 = vadd.xlane.f32.xlu0 %v21
    %v24 = vpop.xlane.xlu0 %23
    %25 = vadd.xlane.f32.xlu0 %v22
    %v26 = vpop.xlane.xlu0 %25
    %v27 = vmul.f32 %v24, 0.03125
    %v28 = vmul.f32 %v26, 0.03125
    %v29 = vadd.f32 %v27, 1e-05
    %v30 = vadd.f32 %v28, 1e-05
    %v31 = vrsqrt.pop %v29
    %v32 = vrsqrt.pop %v30
    %v33 = vmul.f32 %v19, %v31
    %v34 = vmul.f32 %v20, %v32
    %v35 = vld [vmem:[%s1] sm:$0x1]
    %v37 = vlaneseq
    %v38 = vshrl.u32 %v37, 7
    %v39 = vsub.s32 0, %v38
    %v40 = vrot.slane %v35, %v39
    %v42 = vmul.f32 %v33, %v40
    %v43 = vmul.f32 %v34, %v40
    %v44 = vpack.c.bf16 %v43, %v42
    %45 = vst [vmem:[#allocation2] sm:$0xff] %v44
  $region17: #{llama_forward.11} parent=0 // pred_fallthru
    _
  %v46 = vld [vmem:[#allocation2] sm:$0xff]
  %v47 = vld [vmem:[%s2] sm:$0xf]
  %v48 = vld [vmem:[%s2 + $0x4] sm:$0xf]
  %v49 = vld [vmem:[%s2 + $0x8] sm:$0xf]
  %v50 = vld [vmem:[%s2 + $0xc] sm:$0xf]
  %v51 = vld [vmem:[%s2 + $0x10] sm:$0xf]
  %v52 = vld [vmem:[%s2 + $0x14] sm:$0xf]
  %v53 = vld [vmem:[%s2 + $0x18] sm:$0xf]
  %v54 = vld [vmem:[%s2 + $0x1c] sm:$0xf]
  %v55 = vld [vmem:[%s2 + $0x20] sm:$0xf]
  %v56 = vld [vmem:[%s2 + $0x24] sm:$0xf]
  %v57 = vld [vmem:[%s2 + $0x28] sm:$0xf]
  %v58 = vld [vmem:[%s2 + $0x2c] sm:$0xf]
  %v59 = vld [vmem:[%s2 + $0x30] sm:$0xf]
  %v60 = vld [vmem:[%s2 + $0x34] sm:$0xf]
  %v61 = vld [vmem:[%s2 + $0x38] sm:$0xf]
  %v62 = vld [vmem:[%s2 + $0x3c] sm:$0xf]
  %v79 = vunpack.c.l.b16 %v47
  %v80 = vunpack.c.l.b16 %v48
  %v81 = vunpack.c.l.b16 %v49
  %v82 = vunpack.c.l.b16 %v50
  %v83 = vunpack.c.l.b16 %v51
  %v84 = vunpack.c.l.b16 %v52
  %v85 = vunpack.c.l.b16 %v53
  %v86 = vunpack.c.l.b16 %v54
  %v87 = vunpack.c.l.b16 %v55
  %v88 = vunpack.c.l.b16 %v56
  %v89 = vunpack.c.l.b16 %v57
  %v90 = vunpack.c.l.b16 %v58
  %v91 = vunpack.c.l.b16 %v59
  %v92 = vunpack.c.l.b16 %v60
  %v93 = vunpack.c.l.b16 %v61
  %v94 = vunpack.c.l.b16 %v62
  %v95 = vpack.c.b16 %v80, %v79
  %v96 = vpack.c.b16 %v82, %v81
  %v97 = vpack.c.b16 %v84, %v83
  %v98 = vpack.c.b16 %v86, %v85
  %v99 = vpack.c.b16 %v88, %v87
  %v100 = vpack.c.b16 %v90, %v89
  %v101 = vpack.c.b16 %v92, %v91
  %v102 = vpack.c.b16 %v94, %v93
  %111 = vmatprep.subr.bf16.mxu0 0
  %112 = vmatpush1.bf16.msra.mxu0 %v95
  %113 = vmatprep.subr.bf16.mxu0 0
  %114 = vmatpush1.bf16.msra.mxu0 %v96
  %115 = vmatprep.subr.bf16.mxu0 0
  %116 = vmatpush1.bf16.msra.mxu0 %v97
  %117 = vmatprep.subr.bf16.mxu0 0
  %118 = vmatpush1.bf16.msra.mxu0 %v98
  %119 = vmatprep.subr.bf16.mxu0 0
  %120 = vmatpush1.bf16.msra.mxu0 %v99
  %121 = vmatprep.subr.bf16.mxu0 0
  %122 = vmatpush1.bf16.msra.mxu0 %v100
  %123 = vmatprep.subr.bf16.mxu0 0
  %124 = vmatpush1.bf16.msra.mxu0 %v101
  %125 = vmatprep.subr.bf16.mxu0 0
  %126 = vmatpush1.bf16.msra.mxu0 %v102
  %127 = vmatprep.subr.bf16.mxu0 0
  %128 = vmatpush1.bf16.msra.mxu0 0
  %129 = vmatprep.subr.bf16.mxu0 0
  %130 = vmatpush1.bf16.msra.mxu0 0
  %131 = vmatprep.subr.bf16.mxu0 0
  %132 = vmatpush1.bf16.msra.mxu0 0
  %133 = vmatprep.subr.bf16.mxu0 0
  %134 = vmatpush1.bf16.msra.mxu0 0
  %135 = vmatprep.subr.bf16.mxu0 0
  %136 = vmatpush1.bf16.msra.mxu0 0
  %137 = vmatprep.subr.bf16.mxu0 0
  %138 = vmatpush1.bf16.msra.mxu0 0
  %139 = vmatprep.subr.bf16.mxu0 0
  %140 = vmatpush1.bf16.msra.mxu0 0
  %141 = vmatprep.subr.bf16.mxu0 0
  %142 = vmatpush1.bf16.msra.mxu0 0
  %143 = vmatprep.mubr.bf16.mxu0 0
  %144 = vmatmul.mubr.bf16.gmra.mrb[0].mxu0 %v46
  %v145 = vpop.f32.mrb[0].mxu0
  %v146 = vadd.f32 0.0, %v145
  %v147 = vpop.f32.mrb[0].mxu0
  %v148 = vpop.f32.mrb[0].mxu0
  %v149 = vadd.f32 0.0, %v148
  %v150 = vpop.f32.mrb[0].mxu0
  %151 = vdwg.mxu0
  %v152 = vpack.c.bf16 %v149, %v146
  %v154 = vunpack.c.l.b16 %v152
  %v155 = vunpack.c.h.b16 %v152
  %v156 = vpack.c.b16 %v154, %v154
  %v157 = vpack.c.b16 %v155, %v155
  %160 = vst [vmem:[%s3] sm:$0xf] %v156
  %161 = vst [vmem:[%s3 + $0x4] sm:$0xf] %v157
  // Predicated region
  $region18: #{llama_forward.11} parent=0 // pred_check
    _
  $region19: #{llama_forward.11} parent=0 // pred_check_branch
    %163 = sbr.rel (0) target = $region21
  $region20: #{llama_forward.11} parent=0 // pred_region
    _
  $region21: #{llama_forward.11} parent=0 // pred_fallthru
    _
  // Predicated region
  $region22: #{llama_forward.11} parent=0 // pred_check
    _
  $region23: #{llama_forward.11} parent=0 // pred_check_branch
    %165 = sbr.rel (0) target = $region25
  $region24: #{llama_forward.11} parent=0 // pred_region
    _
  $region25: #{llama_forward.11} parent=0 // pred_fallthru
    _

// kernel: llama_forward.14
$region0: #{llama_forward.14}
  #allocation0 [shape = 'u32[]', space=smem, size = 0x4, offset = 0x4, fixed_abs, tag = 'smem constant byte address 0x4 - core index']
  #allocation1 [shape = 'u32[144,128]{1,0:T(1,128)}', space=vmem, size = 0x12000, scoped, tag = 'internal scratch']
  #allocation2 [shape = 'bf16[16,128]{1,0:T(16,128)(2,1)}', space=vmem, size = 0x1000, scoped, tag = 'scratch operand']
  %s0 = inlined_call_operand.vmem [shape: f32[16,128], index: 0, kind: input, shape index: {}]
  %s1 = inlined_call_operand.vmem [shape: f32[1,128], index: 1, kind: input, shape index: {}]
  %s2 = inlined_call_operand.vmem [shape: bf16[128,256], index: 2, kind: input, shape index: {}]
  %s3 = inlined_call_operand.vmem [shape: bf16[128,256], index: 3, kind: input, shape index: {}]
  %s4 = inlined_call_operand.vmem [shape: bf16[16,256], index: 4, kind: output, shape index: {}]
  %s5 = sld [smem:[#allocation0]]
  $region30: #{llama_forward.14} parent=0
    _
  %s7 = ssub.s32 1, %s5
  %s8 = scalar_select 0, %s7, %s5
  // Predicated region
  $region2: #{llama_forward.14} parent=0 // pred_check
    _
  $region3: #{llama_forward.14} parent=0 // pred_check_branch
    %10 = sbr.rel (0) target = $region5
  $region4: #{llama_forward.14} parent=0 // pred_region
    _
  $region5: #{llama_forward.14} parent=0 // pred_fallthru
    _
  // Predicated region
  $region6: #{llama_forward.14} parent=0 // pred_check
    _
  $region7: #{llama_forward.14} parent=0 // pred_check_branch
    %12 = sbr.rel (0) target = $region9
  $region8: #{llama_forward.14} parent=0 // pred_region
    _
  $region9: #{llama_forward.14} parent=0 // pred_fallthru
    _
  // Predicated region
  $region10: #{llama_forward.14} parent=0 // pred_check
    _
  $region11: #{llama_forward.14} parent=0 // pred_check_branch
    %14 = sbr.rel (0) target = $region13
  $region12: #{llama_forward.14} parent=0 // pred_region
    _
  $region13: #{llama_forward.14} parent=0 // pred_fallthru
    _
  // Predicated region
  $region14: #{llama_forward.14} parent=0 // pred_check
    _
  $region15: #{llama_forward.14} parent=0 // pred_check_branch
    %16 = sbr.rel (0) target = $region17
  $region16: #{llama_forward.14} parent=0 // pred_region
    _
  $region17: #{llama_forward.14} parent=0 // pred_fallthru
    _
  %p18 = scmp.eq.s32.totalorder 0, 0
  // Predicated region
  $region18: #{llama_forward.14} parent=0 // pred_check
    %p19 = pneg %p18
  $region19: #{llama_forward.14} parent=0 // pred_check_branch
    %21 = sbr.rel (%p19) target = $region21
  $region20: #{llama_forward.14} parent=0 // pred_region
    %v22 = vld [vmem:[%s0] sm:$0xff]
    %v23 = vld [vmem:[%s0 + $0x8] sm:$0xff]
    %v24 = vmul.f32 %v22, %v22
    %v25 = vmul.f32 %v23, %v23
    %26 = vadd.xlane.f32.xlu0 %v24
    %v27 = vpop.xlane.xlu0 %26
    %28 = vadd.xlane.f32.xlu0 %v25
    %v29 = vpop.xlane.xlu0 %28
    %v30 = vmul.f32 %v27, 0.03125
    %v31 = vmul.f32 %v29, 0.03125
    %v32 = vadd.f32 %v30, 1e-05
    %v33 = vadd.f32 %v31, 1e-05
    %v34 = vrsqrt.pop %v32
    %v35 = vrsqrt.pop %v33
    %v36 = vmul.f32 %v22, %v34
    %v37 = vmul.f32 %v23, %v35
    %v38 = vld [vmem:[%s1] sm:$0x1]
    %v40 = vlaneseq
    %v41 = vshrl.u32 %v40, 7
    %v42 = vsub.s32 0, %v41
    %v43 = vrot.slane %v38, %v42
    %v45 = vmul.f32 %v36, %v43
    %v46 = vmul.f32 %v37, %v43
    %v47 = vpack.c.bf16 %v46, %v45
    %48 = vst [vmem:[#allocation2] sm:$0xff] %v47
  $region21: #{llama_forward.14} parent=0 // pred_fallthru
    _
  %v49 = vld [vmem:[#allocation2] sm:$0xff]
  %v50 = vld [vmem:[%s2] sm:$0xff]
  %v51 = vld [vmem:[%s2 + $0x8] sm:$0xff]
  %v52 = vld [vmem:[%s2 + $0x10] sm:$0xff]
  %v53 = vld [vmem:[%s2 + $0x18] sm:$0xff]
  %v54 = vld [vmem:[%s2 + $0x20] sm:$0xff]
  %v55 = vld [vmem:[%s2 + $0x28] sm:$0xff]
  %v56 = vld [vmem:[%s2 + $0x30] sm:$0xff]
  %v57 = vld [vmem:[%s2 + $0x38] sm:$0xff]
  %v58 = vld [vmem:[%s2 + $0x40] sm:$0xff]
  %v59 = vld [vmem:[%s2 + $0x48] sm:$0xff]
  %v60 = vld [vmem:[%s2 + $0x50] sm:$0xff]
  %v61 = vld [vmem:[%s2 + $0x58] sm:$0xff]
  %v62 = vld [vmem:[%s2 + $0x60] sm:$0xff]
  %v63 = vld [vmem:[%s2 + $0x68] sm:$0xff]
  %v64 = vld [vmem:[%s2 + $0x70] sm:$0xff]
  %v65 = vld [vmem:[%s2 + $0x78] sm:$0xff]
  %v82 = vunpack.c.l.b16 %v50
  %v83 = vunpack.c.h.b16 %v50
  %v84 = vunpack.c.l.b16 %v51
  %v85 = vunpack.c.h.b16 %v51
  %v86 = vunpack.c.l.b16 %v52
  %v87 = vunpack.c.h.b16 %v52
  %v88 = vunpack.c.l.b16 %v53
  %v89 = vunpack.c.h.b16 %v53
  %v90 = vunpack.c.l.b16 %v54
  %v91 = vunpack.c.h.b16 %v54
  %v92 = vunpack.c.l.b16 %v55
  %v93 = vunpack.c.h.b16 %v55
  %v94 = vunpack.c.l.b16 %v56
  %v95 = vunpack.c.h.b16 %v56
  %v96 = vunpack.c.l.b16 %v57
  %v97 = vunpack.c.h.b16 %v57
  %v98 = vunpack.c.l.b16 %v58
  %v99 = vunpack.c.h.b16 %v58
  %v100 = vunpack.c.l.b16 %v59
  %v101 = vunpack.c.h.b16 %v59
  %v102 = vunpack.c.l.b16 %v60
  %v103 = vunpack.c.h.b16 %v60
  %v104 = vunpack.c.l.b16 %v61
  %v105 = vunpack.c.h.b16 %v61
  %v106 = vunpack.c.l.b16 %v62
  %v107 = vunpack.c.h.b16 %v62
  %v108 = vunpack.c.l.b16 %v63
  %v109 = vunpack.c.h.b16 %v63
  %v110 = vunpack.c.l.b16 %v64
  %v111 = vunpack.c.h.b16 %v64
  %v112 = vunpack.c.l.b16 %v65
  %v113 = vunpack.c.h.b16 %v65
  %v114 = vpack.c.b16 %v84, %v82
  %v115 = vpack.c.b16 %v85, %v83
  %v116 = vpack.c.b16 %v88, %v86
  %v117 = vpack.c.b16 %v89, %v87
  %v118 = vpack.c.b16 %v92, %v90
  %v119 = vpack.c.b16 %v93, %v91
  %v120 = vpack.c.b16 %v96, %v94
  %v121 = vpack.c.b16 %v97, %v95
  %v122 = vpack.c.b16 %v100, %v98
  %v123 = vpack.c.b16 %v101, %v99
  %v124 = vpack.c.b16 %v104, %v102
  %v125 = vpack.c.b16 %v105, %v103
  %v126 = vpack.c.b16 %v108, %v106
  %v127 = vpack.c.b16 %v109, %v107
  %v128 = vpack.c.b16 %v112, %v110
  %v129 = vpack.c.b16 %v113, %v111
  %146 = vmatprep.subr.bf16.mxu0 %v115
  %147 = vmatpush1.bf16.msra.mxu0 %v114
  %148 = vmatprep.subr.bf16.mxu0 %v117
  %149 = vmatpush1.bf16.msra.mxu0 %v116
  %150 = vmatprep.subr.bf16.mxu0 %v119
  %151 = vmatpush1.bf16.msra.mxu0 %v118
  %152 = vmatprep.subr.bf16.mxu0 %v121
  %153 = vmatpush1.bf16.msra.mxu0 %v120
  %154 = vmatprep.subr.bf16.mxu0 %v123
  %155 = vmatpush1.bf16.msra.mxu0 %v122
  %156 = vmatprep.subr.bf16.mxu0 %v125
  %157 = vmatpush1.bf16.msra.mxu0 %v124
  %158 = vmatprep.subr.bf16.mxu0 %v127
  %159 = vmatpush1.bf16.msra.mxu0 %v126
  %160 = vmatprep.subr.bf16.mxu0 %v129
  %161 = vmatpush1.bf16.msra.mxu0 %v128
  %162 = vmatprep.subr.bf16.mxu0 0
  %163 = vmatpush1.bf16.msra.mxu0 0
  %164 = vmatprep.subr.bf16.mxu0 0
  %165 = vmatpush1.bf16.msra.mxu0 0
  %166 = vmatprep.subr.bf16.mxu0 0
  %167 = vmatpush1.bf16.msra.mxu0 0
  %168 = vmatprep.subr.bf16.mxu0 0
  %169 = vmatpush1.bf16.msra.mxu0 0
  %170 = vmatprep.subr.bf16.mxu0 0
  %171 = vmatpush1.bf16.msra.mxu0 0
  %172 = vmatprep.subr.bf16.mxu0 0
  %173 = vmatpush1.bf16.msra.mxu0 0
  %174 = vmatprep.subr.bf16.mxu0 0
  %175 = vmatpush1.bf16.msra.mxu0 0
  %176 = vmatprep.subr.bf16.mxu0 0
  %177 = vmatpush1.bf16.msra.mxu0 0
  %178 = vmatprep.mubr.bf16.mxu0 0
  %179 = vmatmul.mubr.bf16.gmra.mrb[0].mxu0 %v49
  %v180 = vpop.f32.mrb[0].mxu0
  %v181 = vadd.f32 0.0, %v180
  %v182 = vpop.f32.mrb[0].mxu0
  %v183 = vadd.f32 0.0, %v182
  %v184 = vpop.f32.mrb[0].mxu0
  %v185 = vadd.f32 0.0, %v184
  %v186 = vpop.f32.mrb[0].mxu0
  %v187 = vadd.f32 0.0, %v186
  %188 = vdwg.mxu0
  %v189 = vld [vmem:[%s3] sm:$0xff]
  %v190 = vld [vmem:[%s3 + $0x8] sm:$0xff]
  %v191 = vld [vmem:[%s3 + $0x10] sm:$0xff]
  %v192 = vld [vmem:[%s3 + $0x18] sm:$0xff]
  %v193 = vld [vmem:[%s3 + $0x20] sm:$0xff]
  %v194 = vld [vmem:[%s3 + $0x28] sm:$0xff]
  %v195 = vld [vmem:[%s3 + $0x30] sm:$0xff]
  %v196 = vld [vmem:[%s3 + $0x38] sm:$0xff]
  %v197 = vld [vmem:[%s3 + $0x40] sm:$0xff]
  %v198 = vld [vmem:[%s3 + $0x48] sm:$0xff]
  %v199 = vld [vmem:[%s3 + $0x50] sm:$0xff]
  %v200 = vld [vmem:[%s3 + $0x58] sm:$0xff]
  %v201 = vld [vmem:[%s3 + $0x60] sm:$0xff]
  %v202 = vld [vmem:[%s3 + $0x68] sm:$0xff]
  %v203 = vld [vmem:[%s3 + $0x70] sm:$0xff]
  %v204 = vld [vmem:[%s3 + $0x78] sm:$0xff]
  %v221 = vunpack.c.l.b16 %v189
  %v222 = vunpack.c.h.b16 %v189
  %v223 = vunpack.c.l.b16 %v190
  %v224 = vunpack.c.h.b16 %v190
  %v225 = vunpack.c.l.b16 %v191
  %v226 = vunpack.c.h.b16 %v191
  %v227 = vunpack.c.l.b16 %v192
  %v228 = vunpack.c.h.b16 %v192
  %v229 = vunpack.c.l.b16 %v193
  %v230 = vunpack.c.h.b16 %v193
  %v231 = vunpack.c.l.b16 %v194
  %v232 = vunpack.c.h.b16 %v194
  %v233 = vunpack.c.l.b16 %v195
  %v234 = vunpack.c.h.b16 %v195
  %v235 = vunpack.c.l.b16 %v196
  %v236 = vunpack.c.h.b16 %v196
  %v237 = vunpack.c.l.b16 %v197
  %v238 = vunpack.c.h.b16 %v197
  %v239 = vunpack.c.l.b16 %v198
  %v240 = vunpack.c.h.b16 %v198
  %v241 = vunpack.c.l.b16 %v199
  %v242 = vunpack.c.h.b16 %v199
  %v243 = vunpack.c.l.b16 %v200
  %v244 = vunpack.c.h.b16 %v200
  %v245 = vunpack.c.l.b16 %v201
  %v246 = vunpack.c.h.b16 %v201
  %v247 = vunpack.c.l.b16 %v202
  %v248 = vunpack.c.h.b16 %v202
  %v249 = vunpack.c.l.b16 %v203
  %v250 = vunpack.c.h.b16 %v203
  %v251 = vunpack.c.l.b16 %v204
  %v252 = vunpack.c.h.b16 %v204
  %v253 = vpack.c.b16 %v223, %v221
  %v254 = vpack.c.b16 %v224, %v222
  %v255 = vpack.c.b16 %v227, %v225
  %v256 = vpack.c.b16 %v228, %v226
  %v257 = vpack.c.b16 %v231, %v229
  %v258 = vpack.c.b16 %v232, %v230
  %v259 = vpack.c.b16 %v235, %v233
  %v260 = vpack.c.b16 %v236, %v234
  %v261 = vpack.c.b16 %v239, %v237
  %v262 = vpack.c.b16 %v240, %v238
  %v263 = vpack.c.b16 %v243, %v241
  %v264 = vpack.c.b16 %v244, %v242
  %v265 = vpack.c.b16 %v247, %v245
  %v266 = vpack.c.b16 %v248, %v246
  %v267 = vpack.c.b16 %v251, %v249
  %v268 = vpack.c.b16 %v252, %v250
  %285 = vmatprep.subr.bf16.mxu0 %v254
  %286 = vmatpush1.bf16.msra.mxu0 %v253
  %287 = vmatprep.subr.bf16.mxu0 %v256
  %288 = vmatpush1.bf16.msra.mxu0 %v255
  %289 = vmatprep.subr.bf16.mxu0 %v258
  %290 = vmatpush1.bf16.msra.mxu0 %v257
  %291 = vmatprep.subr.bf16.mxu0 %v260
  %292 = vmatpush1.bf16.msra.mxu0 %v259
  %293 = vmatprep.subr.bf16.mxu0 %v262
  %294 = vmatpush1.bf16.msra.mxu0 %v261
  %295 = vmatprep.subr.bf16.mxu0 %v264
  %296 = vmatpush1.bf16.msra.mxu0 %v263
  %297 = vmatprep.subr.bf16.mxu0 %v266
  %298 = vmatpush1.bf16.msra.mxu0 %v265
  %299 = vmatprep.subr.bf16.mxu0 %v268
  %300 = vmatpush1.bf16.msra.mxu0 %v267
  %301 = vmatprep.subr.bf16.mxu0 0
  %302 = vmatpush1.bf16.msra.mxu0 0
  %303 = vmatprep.subr.bf16.mxu0 0
  %304 = vmatpush1.bf16.msra.mxu0 0
  %305 = vmatprep.subr.bf16.mxu0 0
  %306 = vmatpush1.bf16.msra.mxu0 0
  %307 = vmatprep.subr.bf16.mxu0 0
  %308 = vmatpush1.bf16.msra.mxu0 0
  %309 = vmatprep.subr.bf16.mxu0 0
  %310 = vmatpush1.bf16.msra.mxu0 0
  %311 = vmatprep.subr.bf16.mxu0 0
  %312 = vmatpush1.bf16.msra.mxu0 0
  %313 = vmatprep.subr.bf16.mxu0 0
  %314 = vmatpush1.bf16.msra.mxu0 0
  %315 = vmatprep.subr.bf16.mxu0 0
  %316 = vmatpush1.bf16.msra.mxu0 0
  %317 = vmatprep.mubr.bf16.mxu0 0
  %318 = vmatmul.mubr.bf16.gmra.mrb[0].mxu0 %v49
  %v319 = vpop.f32.mrb[0].mxu0
  %v320 = vadd.f32 0.0, %v319
  %v321 = vpop.f32.mrb[0].mxu0
  %v322 = vadd.f32 0.0, %v321
  %v323 = vpop.f32.mrb[0].mxu0
  %v324 = vadd.f32 0.0, %v323
  %v325 = vpop.f32.mrb[0].mxu0
  %v326 = vadd.f32 0.0, %v325
  %327 = vdwg.mxu0
  %v328 = vxor.u32 %v181, 2147483648
  %v329 = vxor.u32 %v183, 2147483648
  %v330 = vxor.u32 %v185, 2147483648
  %v331 = vxor.u32 %v187, 2147483648
  %v332 = vmul.f32 %v328, 1.442695
  %v333 = vpow.pop %v332
  %v334 = vmul.f32 %v329, 1.442695
  %v335 = vpow.pop %v334
  %v336 = vmul.f32 %v330, 1.442695
  %v337 = vpow.pop %v336
  %v338 = vmul.f32 %v331, 1.442695
  %v339 = vpow.pop %v338
  %v340 = vadd.f32 %v333, 1.0
  %v341 = vadd.f32 %v335, 1.0
  %v342 = vadd.f32 %v337, 1.0
  %v343 = vadd.f32 %v339, 1.0
  %v344 = vrcp.pop %v340
  %v345 = vmul.f32 1.0, %v344
  %v346 = vrcp.pop %v341
  %v347 = vmul.f32 1.0, %v346
  %v348 = vrcp.pop %v342
  %v349 = vmul.f32 1.0, %v348
  %v350 = vrcp.pop %v343
  %v351 = vmul.f32 1.0, %v350
  %v352 = vmul.f32 %v181, %v345
  %v353 = vmul.f32 %v183, %v347
  %v354 = vmul.f32 %v185, %v349
  %v355 = vmul.f32 %v187, %v351
  %v356 = vmul.f32 %v352, %v320
  %v357 = vmul.f32 %v353, %v322
  %v358 = vmul.f32 %v354, %v324
  %v359 = vmul.f32 %v355, %v326
  %v360 = vpack.c.bf16 %v358, %v356
  %v361 = vpack.c.bf16 %v359, %v357
  %v364 = vunpack.c.l.b16 %v360
  %v365 = vunpack.c.l.b16 %v361
  %v366 = vunpack.c.h.b16 %v360
  %v367 = vunpack.c.h.b16 %v361
  %v368 = vpack.c.b16 %v365, %v364
  %v369 = vpack.c.b16 %v367, %v366
  %372 = vst [vmem:[%s4] sm:$0xff] %v368
  %373 = vst [vmem:[%s4 + $0x8] sm:$0xff] %v369
  // Predicated region
  $region22: #{llama_forward.14} parent=0 // pred_check
    _
  $region23: #{llama_forward.14} parent=0 // pred_check_branch
    %375 = sbr.rel (0) target = $region25
  $region24: #{llama_forward.14} parent=0 // pred_region
    _
  $region25: #{llama_forward.14} parent=0 // pred_fallthru
    _
  // Predicated region
  $region26: #{llama_forward.14} parent=0 // pred_check
    _
  $region27: #{llama_forward.14} parent=0 // pred_check_branch
    %377 = sbr.rel (0) target = $region29
  $region28: #{llama_forward.14} parent=0 // pred_region
    _
  $region29: #{llama_forward.14} parent=0 // pred_fallthru
    _

// kernel: llama_forward.13
$region0: #{llama_forward.13}
  #allocation0 [shape = 'u32[]', space=smem, size = 0x4, offset = 0x4, fixed_abs, tag = 'smem constant byte address 0x4 - core index']
  #allocation1 [shape = 'u32[144,128]{1,0:T(1,128)}', space=vmem, size = 0x12000, scoped, tag = 'internal scratch']
  #allocation2 [shape = 'f32[16,128]{1,0:T(8,128)}', space=vmem, size = 0x2000, scoped, tag = 'scratch operand']
  %s0 = inlined_call_operand.vmem [shape: bf16[16,128], index: 0, kind: input, shape index: {}]
  %s1 = inlined_call_operand.vmem [shape: bf16[128,128], index: 1, kind: input, shape index: {}]
  %s2 = inlined_call_operand.vmem [shape: f32[16,128], index: 2, kind: input, shape index: {}]
  %s3 = inlined_call_operand.vmem [shape: f32[16,128], index: 3, kind: output, shape index: {}]
  %s4 = sld [smem:[#allocation0]]
  $region30: #{llama_forward.13} parent=0
    _
  %s6 = ssub.s32 1, %s4
  %s7 = scalar_select 0, %s6, %s4
  // Predicated region
  $region2: #{llama_forward.13} parent=0 // pred_check
    _
  $region3: #{llama_forward.13} parent=0 // pred_check_branch
    %9 = sbr.rel (0) target = $region5
  $region4: #{llama_forward.13} parent=0 // pred_region
    _
  $region5: #{llama_forward.13} parent=0 // pred_fallthru
    _
  // Predicated region
  $region6: #{llama_forward.13} parent=0 // pred_check
    _
  $region7: #{llama_forward.13} parent=0 // pred_check_branch
    %11 = sbr.rel (0) target = $region9
  $region8: #{llama_forward.13} parent=0 // pred_region
    _
  $region9: #{llama_forward.13} parent=0 // pred_fallthru
    _
  // Predicated region
  $region10: #{llama_forward.13} parent=0 // pred_check
    _
  $region11: #{llama_forward.13} parent=0 // pred_check_branch
    %13 = sbr.rel (0) target = $region13
  $region12: #{llama_forward.13} parent=0 // pred_region
    _
  $region13: #{llama_forward.13} parent=0 // pred_fallthru
    _
  %p15 = scmp.eq.s32.totalorder 0, 0
  // Predicated region
  $region14: #{llama_forward.13} parent=0 // pred_check
    %p16 = pneg %p15
  $region15: #{llama_forward.13} parent=0 // pred_check_branch
    %18 = sbr.rel (%p16) target = $region17
  $region16: #{llama_forward.13} parent=0 // pred_region
    %19 = vst [vmem:[#allocation2] sm:$0xff] 0.0
    %20 = vst [vmem:[#allocation2 + $0x8] sm:$0xff] 0.0
  $region17: #{llama_forward.13} parent=0 // pred_fallthru
    _
  %v21 = vld [vmem:[#allocation2] sm:$0xff]
  %v22 = vld [vmem:[#allocation2 + $0x8] sm:$0xff]
  %v23 = vld [vmem:[%s0] sm:$0xf]
  %v24 = vld [vmem:[%s0 + $0x4] sm:$0xf]
  %v25 = vld [vmem:[%s1] sm:$0xf]
  %v26 = vld [vmem:[%s1 + $0x4] sm:$0xf]
  %v27 = vld [vmem:[%s1 + $0x8] sm:$0xf]
  %v28 = vld [vmem:[%s1 + $0xc] sm:$0xf]
  %v29 = vld [vmem:[%s1 + $0x10] sm:$0xf]
  %v30 = vld [vmem:[%s1 + $0x14] sm:$0xf]
  %v31 = vld [vmem:[%s1 + $0x18] sm:$0xf]
  %v32 = vld [vmem:[%s1 + $0x1c] sm:$0xf]
  %v33 = vld [vmem:[%s1 + $0x20] sm:$0xf]
  %v34 = vld [vmem:[%s1 + $0x24] sm:$0xf]
  %v35 = vld [vmem:[%s1 + $0x28] sm:$0xf]
  %v36 = vld [vmem:[%s1 + $0x2c] sm:$0xf]
  %v37 = vld [vmem:[%s1 + $0x30] sm:$0xf]
  %v38 = vld [vmem:[%s1 + $0x34] sm:$0xf]
  %v39 = vld [vmem:[%s1 + $0x38] sm:$0xf]
  %v40 = vld [vmem:[%s1 + $0x3c] sm:$0xf]
  %v43 = vunpack.c.l.b16 %v23
  %v44 = vunpack.c.l.b16 %v24
  %v45 = vpack.c.b16 %v44, %v43
  %v63 = vunpack.c.l.b16 %v25
  %v64 = vunpack.c.l.b16 %v26
  %v65 = vunpack.c.l.b16 %v27
  %v66 = vunpack.c.l.b16 %v28
  %v67 = vunpack.c.l.b16 %v29
  %v68 = vunpack.c.l.b16 %v30
  %v69 = vunpack.c.l.b16 %v31
  %v70 = vunpack.c.l.b16 %v32
  %v71 = vunpack.c.l.b16 %v33
  %v72 = vunpack.c.l.b16 %v34
  %v73 = vunpack.c.l.b16 %v35
  %v74 = vunpack.c.l.b16 %v36
  %v75 = vunpack.c.l.b16 %v37
  %v76 = vunpack.c.l.b16 %v38
  %v77 = vunpack.c.l.b16 %v39
  %v78 = vunpack.c.l.b16 %v40
  %v79 = vpack.c.b16 %v64, %v63
  %v80 = vpack.c.b16 %v66, %v65
  %v81 = vpack.c.b16 %v68, %v67
  %v82 = vpack.c.b16 %v70, %v69
  %v83 = vpack.c.b16 %v72, %v71
  %v84 = vpack.c.b16 %v74, %v73
  %v85 = vpack.c.b16 %v76, %v75
  %v86 = vpack.c.b16 %v78, %v77
  %95 = vmatprep.subr.bf16.mxu0 0
  %96 = vmatpush1.bf16.msra.mxu0 %v79
  %97 = vmatprep.subr.bf16.mxu0 0
  %98 = vmatpush1.bf16.msra.mxu0 %v80
  %99 = vmatprep.subr.bf16.mxu0 0
  %100 = vmatpush1.bf16.msra.mxu0 %v81
  %101 = vmatprep.subr.bf16.mxu0 0
  %102 = vmatpush1.bf16.msra.mxu0 %v82
  %103 = vmatprep.subr.bf16.mxu0 0
  %104 = vmatpush1.bf16.msra.mxu0 %v83
  %105 = vmatprep.subr.bf16.mxu0 0
  %106 = vmatpush1.bf16.msra.mxu0 %v84
  %107 = vmatprep.subr.bf16.mxu0 0
  %108 = vmatpush1.bf16.msra.mxu0 %v85
  %109 = vmatprep.subr.bf16.mxu0 0
  %110 = vmatpush1.bf16.msra.mxu0 %v86
  %111 = vmatprep.subr.bf16.mxu0 0
  %112 = vmatpush1.bf16.msra.mxu0 0
  %113 = vmatprep.subr.bf16.mxu0 0
  %114 = vmatpush1.bf16.msra.mxu0 0
  %115 = vmatprep.subr.bf16.mxu0 0
  %116 = vmatpush1.bf16.msra.mxu0 0
  %117 = vmatprep.subr.bf16.mxu0 0
  %118 = vmatpush1.bf16.msra.mxu0 0
  %119 = vmatprep.subr.bf16.mxu0 0
  %120 = vmatpush1.bf16.msra.mxu0 0
  %121 = vmatprep.subr.bf16.mxu0 0
  %122 = vmatpush1.bf16.msra.mxu0 0
  %123 = vmatprep.subr.bf16.mxu0 0
  %124 = vmatpush1.bf16.msra.mxu0 0
  %125 = vmatprep.subr.bf16.mxu0 0
  %126 = vmatpush1.bf16.msra.mxu0 0
  %127 = vmatprep.mubr.bf16.mxu0 0
  %128 = vmatmul.mubr.bf16.gmra.mrb[0].mxu0 %v45
  %v129 = vpop.f32.mrb[0].mxu0
  %v130 = vadd.f32 0.0, %v129
  %v131 = vpop.f32.mrb[0].mxu0
  %v132 = vpop.f32.mrb[0].mxu0
  %v133 = vadd.f32 0.0, %v132
  %v134 = vpop.f32.mrb[0].mxu0
  %135 = vdwg.mxu0
  %v136 = vadd.f32 %v21, %v130
  %v137 = vadd.f32 %v22, %v133
  %138 = vst [vmem:[#allocation2] sm:$0xff] %v136
  %139 = vst [vmem:[#allocation2 + $0x8] sm:$0xff] %v137
  // Predicated region
  $region18: #{llama_forward.13} parent=0 // pred_check
    %p140 = pneg %p15
  $region19: #{llama_forward.13} parent=0 // pred_check_branch
    %142 = sbr.rel (%p140) target = $region21
  $region20: #{llama_forward.13} parent=0 // pred_region
    %v143 = vld [vmem:[#allocation2] sm:$0xff]
    %v144 = vld [vmem:[#allocation2 + $0x8] sm:$0xff]
    %v145 = vld [vmem:[%s2] sm:$0xff]
    %v146 = vld [vmem:[%s2 + $0x8] sm:$0xff]
    %v147 = vadd.f32 %v143, %v145
    %v148 = vadd.f32 %v144, %v146
    %149 = vst [vmem:[%s3] sm:$0xff] %v147
    %150 = vst [vmem:[%s3 + $0x8] sm:$0xff] %v148
  $region21: #{llama_forward.13} parent=0 // pred_fallthru
    _
  // Predicated region
  $region22: #{llama_forward.13} parent=0 // pred_check
    _
  $region23: #{llama_forward.13} parent=0 // pred_check_branch
    %152 = sbr.rel (0) target = $region25
  $region24: #{llama_forward.13} parent=0 // pred_region
    _
  $region25: #{llama_forward.13} parent=0 // pred_fallthru
    _
  // Predicated region
  $region26: #{llama_forward.13} parent=0 // pred_check
    _
  $region27: #{llama_forward.13} parent=0 // pred_check_branch
    %154 = sbr.rel (0) target = $region29
  $region28: #{llama_forward.13} parent=0 // pred_region
    _
  $region29: #{llama_forward.13} parent=0 // pred_fallthru
    _

// kernel: llama_forward.15
$region0: #{llama_forward.15}
  #allocation0 [shape = 'u32[]', space=smem, size = 0x4, offset = 0x4, fixed_abs, tag = 'smem constant byte address 0x4 - core index']
  #allocation1 [shape = 'u32[144,128]{1,0:T(1,128)}', space=vmem, size = 0x12000, scoped, tag = 'internal scratch']
  #allocation2 [shape = 'f32[16,128]{1,0:T(8,128)}', space=vmem, size = 0x2000, scoped, tag = 'scratch operand']
  %s0 = inlined_call_operand.vmem [shape: bf16[16,256], index: 0, kind: input, shape index: {}]
  %s1 = inlined_call_operand.vmem [shape: bf16[256,128], index: 1, kind: input, shape index: {}]
  %s2 = inlined_call_operand.vmem [shape: f32[16,128], index: 2, kind: input, shape index: {}]
  %s3 = inlined_call_operand.vmem [shape: f32[16,128], index: 3, kind: output, shape index: {}]
  %s4 = sld [smem:[#allocation0]]
  $region30: #{llama_forward.15} parent=0
    _
  %s6 = ssub.s32 1, %s4
  %s7 = scalar_select 0, %s6, %s4
  // Predicated region
  $region2: #{llama_forward.15} parent=0 // pred_check
    _
  $region3: #{llama_forward.15} parent=0 // pred_check_branch
    %9 = sbr.rel (0) target = $region5
  $region4: #{llama_forward.15} parent=0 // pred_region
    _
  $region5: #{llama_forward.15} parent=0 // pred_fallthru
    _
  // Predicated region
  $region6: #{llama_forward.15} parent=0 // pred_check
    _
  $region7: #{llama_forward.15} parent=0 // pred_check_branch
    %11 = sbr.rel (0) target = $region9
  $region8: #{llama_forward.15} parent=0 // pred_region
    _
  $region9: #{llama_forward.15} parent=0 // pred_fallthru
    _
  // Predicated region
  $region10: #{llama_forward.15} parent=0 // pred_check
    _
  $region11: #{llama_forward.15} parent=0 // pred_check_branch
    %13 = sbr.rel (0) target = $region13
  $region12: #{llama_forward.15} parent=0 // pred_region
    _
  $region13: #{llama_forward.15} parent=0 // pred_fallthru
    _
  %p15 = scmp.eq.s32.totalorder 0, 0
  // Predicated region
  $region14: #{llama_forward.15} parent=0 // pred_check
    %p16 = pneg %p15
  $region15: #{llama_forward.15} parent=0 // pred_check_branch
    %18 = sbr.rel (%p16) target = $region17
  $region16: #{llama_forward.15} parent=0 // pred_region
    %19 = vst [vmem:[#allocation2] sm:$0xff] 0.0
    %20 = vst [vmem:[#allocation2 + $0x8] sm:$0xff] 0.0
  $region17: #{llama_forward.15} parent=0 // pred_fallthru
    _
  %v21 = vld [vmem:[#allocation2] sm:$0xff]
  %v22 = vld [vmem:[#allocation2 + $0x8] sm:$0xff]
  %v23 = vld [vmem:[%s0] sm:$0xff]
  %v24 = vld [vmem:[%s0 + $0x8] sm:$0xff]
  %v25 = vld [vmem:[%s1] sm:$0xf]
  %v26 = vld [vmem:[%s1 + $0x4] sm:$0xf]
  %v27 = vld [vmem:[%s1 + $0x8] sm:$0xf]
  %v28 = vld [vmem:[%s1 + $0xc] sm:$0xf]
  %v29 = vld [vmem:[%s1 + $0x10] sm:$0xf]
  %v30 = vld [vmem:[%s1 + $0x14] sm:$0xf]
  %v31 = vld [vmem:[%s1 + $0x18] sm:$0xf]
  %v32 = vld [vmem:[%s1 + $0x1c] sm:$0xf]
  %v33 = vld [vmem:[%s1 + $0x20] sm:$0xf]
  %v34 = vld [vmem:[%s1 + $0x24] sm:$0xf]
  %v35 = vld [vmem:[%s1 + $0x28] sm:$0xf]
  %v36 = vld [vmem:[%s1 + $0x2c] sm:$0xf]
  %v37 = vld [vmem:[%s1 + $0x30] sm:$0xf]
  %v38 = vld [vmem:[%s1 + $0x34] sm:$0xf]
  %v39 = vld [vmem:[%s1 + $0x38] sm:$0xf]
  %v40 = vld [vmem:[%s1 + $0x3c] sm:$0xf]
  %v41 = vld [vmem:[%s1 + $0x40] sm:$0xf]
  %v42 = vld [vmem:[%s1 + $0x44] sm:$0xf]
  %v43 = vld [vmem:[%s1 + $0x48] sm:$0xf]
  %v44 = vld [vmem:[%s1 + $0x4c] sm:$0xf]
  %v45 = vld [vmem:[%s1 + $0x50] sm:$0xf]
  %v46 = vld [vmem:[%s1 + $0x54] sm:$0xf]
  %v47 = vld [vmem:[%s1 + $0x58] sm:$0xf]
  %v48 = vld [vmem:[%s1 + $0x5c] sm:$0xf]
  %v49 = vld [vmem:[%s1 + $0x60] sm:$0xf]
  %v50 = vld [vmem:[%s1 + $0x64] sm:$0xf]
  %v51 = vld [vmem:[%s1 + $0x68] sm:$0xf]
  %v52 = vld [vmem:[%s1 + $0x6c] sm:$0xf]
  %v53 = vld [vmem:[%s1 + $0x70] sm:$0xf]
  %v54 = vld [vmem:[%s1 + $0x74] sm:$0xf]
  %v55 = vld [vmem:[%s1 + $0x78] sm:$0xf]
  %v56 = vld [vmem:[%s1 + $0x7c] sm:$0xf]
  %v59 = vunpack.c.l.b16 %v23
  %v60 = vunpack.c.h.b16 %v23
  %v61 = vunpack.c.l.b16 %v24
  %v62 = vunpack.c.h.b16 %v24
  %v63 = vpack.c.b16 %v61, %v59
  %v64 = vpack.c.b16 %v62, %v60
  %v99 = vunpack.c.l.b16 %v25
  %v100 = vunpack.c.l.b16 %v26
  %v101 = vunpack.c.l.b16 %v27
  %v102 = vunpack.c.l.b16 %v28
  %v103 = vunpack.c.l.b16 %v29
  %v104 = vunpack.c.l.b16 %v30
  %v105 = vunpack.c.l.b16 %v31
  %v106 = vunpack.c.l.b16 %v32
  %v107 = vunpack.c.l.b16 %v33
  %v108 = vunpack.c.l.b16 %v34
  %v109 = vunpack.c.l.b16 %v35
  %v110 = vunpack.c.l.b16 %v36
  %v111 = vunpack.c.l.b16 %v37
  %v112 = vunpack.c.l.b16 %v38
  %v113 = vunpack.c.l.b16 %v39
  %v114 = vunpack.c.l.b16 %v40
  %v115 = vunpack.c.l.b16 %v41
  %v116 = vunpack.c.l.b16 %v42
  %v117 = vunpack.c.l.b16 %v43
  %v118 = vunpack.c.l.b16 %v44
  %v119 = vunpack.c.l.b16 %v45
  %v120 = vunpack.c.l.b16 %v46
  %v121 = vunpack.c.l.b16 %v47
  %v122 = vunpack.c.l.b16 %v48
  %v123 = vunpack.c.l.b16 %v49
  %v124 = vunpack.c.l.b16 %v50
  %v125 = vunpack.c.l.b16 %v51
  %v126 = vunpack.c.l.b16 %v52
  %v127 = vunpack.c.l.b16 %v53
  %v128 = vunpack.c.l.b16 %v54
  %v129 = vunpack.c.l.b16 %v55
  %v130 = vunpack.c.l.b16 %v56
  %v131 = vpack.c.b16 %v100, %v99
  %v132 = vpack.c.b16 %v102, %v101
  %v133 = vpack.c.b16 %v104, %v103
  %v134 = vpack.c.b16 %v106, %v105
  %v135 = vpack.c.b16 %v108, %v107
  %v136 = vpack.c.b16 %v110, %v109
  %v137 = vpack.c.b16 %v112, %v111
  %v138 = vpack.c.b16 %v114, %v113
  %v139 = vpack.c.b16 %v116, %v115
  %v140 = vpack.c.b16 %v118, %v117
  %v141 = vpack.c.b16 %v120, %v119
  %v142 = vpack.c.b16 %v122, %v121
  %v143 = vpack.c.b16 %v124, %v123
  %v144 = vpack.c.b16 %v126, %v125
  %v145 = vpack.c.b16 %v128, %v127
  %v146 = vpack.c.b16 %v130, %v129
  %163 = vmatprep.subr.bf16.mxu0 0
  %164 = vmatpush1.bf16.msra.mxu0 %v131
  %165 = vmatprep.subr.bf16.mxu0 0
  %166 = vmatpush1.bf16.msra.mxu0 %v132
  %167 = vmatprep.subr.bf16.mxu0 0
  %168 = vmatpush1.bf16.msra.mxu0 %v133
  %169 = vmatprep.subr.bf16.mxu0 0
  %170 = vmatpush1.bf16.msra.mxu0 %v134
  %171 = vmatprep.subr.bf16.mxu0 0
  %172 = vmatpush1.bf16.msra.mxu0 %v135
  %173 = vmatprep.subr.bf16.mxu0 0
  %174 = vmatpush1.bf16.msra.mxu0 %v136
  %175 = vmatprep.subr.bf16.mxu0 0
  %176 = vmatpush1.bf16.msra.mxu0 %v137
  %177 = vmatprep.subr.bf16.mxu0 0
  %178 = vmatpush1.bf16.msra.mxu0 %v138
  %179 = vmatprep.subr.bf16.mxu0 0
  %180 = vmatpush1.bf16.msra.mxu0 %v139
  %181 = vmatprep.subr.bf16.mxu0 0
  %182 = vmatpush1.bf16.msra.mxu0 %v140
  %183 = vmatprep.subr.bf16.mxu0 0
  %184 = vmatpush1.bf16.msra.mxu0 %v141
  %185 = vmatprep.subr.bf16.mxu0 0
  %186 = vmatpush1.bf16.msra.mxu0 %v142
  %187 = vmatprep.subr.bf16.mxu0 0
  %188 = vmatpush1.bf16.msra.mxu0 %v143
  %189 = vmatprep.subr.bf16.mxu0 0
  %190 = vmatpush1.bf16.msra.mxu0 %v144
  %191 = vmatprep.subr.bf16.mxu0 0
  %192 = vmatpush1.bf16.msra.mxu0 %v145
  %193 = vmatprep.subr.bf16.mxu0 0
  %194 = vmatpush1.bf16.msra.mxu0 %v146
  %195 = vmatprep.mubr.bf16.mxu0 %v64
  %196 = vmatmul.mubr.bf16.gmra.mrb[0].mxu0 %v63
  %v197 = vpop.f32.mrb[0].mxu0
  %v198 = vadd.f32 0.0, %v197
  %v199 = vpop.f32.mrb[0].mxu0
  %v200 = vpop.f32.mrb[0].mxu0
  %v201 = vadd.f32 0.0, %v200
  %v202 = vpop.f32.mrb[0].mxu0
  %203 = vdwg.mxu0
  %v204 = vadd.f32 %v21, %v198
  %v205 = vadd.f32 %v22, %v201
  %206 = vst [vmem:[#allocation2] sm:$0xff] %v204
  %207 = vst [vmem:[#allocation2 + $0x8] sm:$0xff] %v205
  // Predicated region
  $region18: #{llama_forward.15} parent=0 // pred_check
    %p208 = pneg %p15
  $region19: #{llama_forward.15} parent=0 // pred_check_branch
    %210 = sbr.rel (%p208) target = $region21
  $region20: #{llama_forward.15} parent=0 // pred_region
    %v211 = vld [vmem:[#allocation2] sm:$0xff]
    %v212 = vld [vmem:[#allocation2 + $0x8] sm:$0xff]
    %v213 = vld [vmem:[%s2] sm:$0xff]
    %v214 = vld [vmem:[%s2 + $0x8] sm:$0xff]
    %v215 = vadd.f32 %v211, %v213
    %v216 = vadd.f32 %v212, %v214
    %217 = vst [vmem:[%s3] sm:$0xff] %v215
    %218 = vst [vmem:[%s3 + $0x8] sm:$0xff] %v216
  $region21: #{llama_forward.15} parent=0 // pred_fallthru
    _
  // Predicated region
  $region22: #{llama_forward.15} parent=0 // pred_check
    _
  $region23: #{llama_forward.15} parent=0 // pred_check_branch
    %220 = sbr.rel (0) target = $region25
  $region24: #{llama_forward.15} parent=0 // pred_region
    _
  $region25: #{llama_forward.15} parent=0 // pred_fallthru
    _
  // Predicated region
  $region26: #{llama_forward.15} parent=0 // pred_check
    _
  $region27: #{llama_forward.15} parent=0 // pred_check_branch
    %222 = sbr.rel (0) target = $region29
  $region28: #{llama_forward.15} parent=0 // pred_region
    _
  $region29: #{llama_forward.15} parent=0 // pred_fallthru
    _

// kernel: llama_forward.21
$region0: #{llama_forward.21}
  #allocation0 [shape = 'u32[]', space=smem, size = 0x4, offset = 0x4, fixed_abs, tag = 'smem constant byte address 0x4 - core index']
  #allocation1 [shape = 'u32[144,128]{1,0:T(1,128)}', space=vmem, size = 0x12000, scoped, tag = 'internal scratch']
  #allocation2 [shape = 'bf16[16,128]{1,0:T(16,128)(2,1)}', space=vmem, size = 0x1000, scoped, tag = 'scratch operand']
  %s0 = inlined_call_operand.vmem [shape: f32[16,128], index: 0, kind: input, shape index: {}]
  %s1 = inlined_call_operand.vmem [shape: f32[1,128], index: 1, kind: input, shape index: {}]
  %s2 = inlined_call_operand.vmem [shape: bf16[128,128], index: 2, kind: input, shape index: {}]
  %s3 = inlined_call_operand.vmem [shape: f32[16,128], index: 3, kind: output, shape index: {}]
  %s4 = sld [smem:[#allocation0]]
  $region26: #{llama_forward.21} parent=0
    _
  %s6 = ssub.s32 1, %s4
  %s7 = scalar_select 0, %s6, %s4
  // Predicated region
  $region2: #{llama_forward.21} parent=0 // pred_check
    _
  $region3: #{llama_forward.21} parent=0 // pred_check_branch
    %9 = sbr.rel (0) target = $region5
  $region4: #{llama_forward.21} parent=0 // pred_region
    _
  $region5: #{llama_forward.21} parent=0 // pred_fallthru
    _
  // Predicated region
  $region6: #{llama_forward.21} parent=0 // pred_check
    _
  $region7: #{llama_forward.21} parent=0 // pred_check_branch
    %11 = sbr.rel (0) target = $region9
  $region8: #{llama_forward.21} parent=0 // pred_region
    _
  $region9: #{llama_forward.21} parent=0 // pred_fallthru
    _
  // Predicated region
  $region10: #{llama_forward.21} parent=0 // pred_check
    _
  $region11: #{llama_forward.21} parent=0 // pred_check_branch
    %13 = sbr.rel (0) target = $region13
  $region12: #{llama_forward.21} parent=0 // pred_region
    _
  $region13: #{llama_forward.21} parent=0 // pred_fallthru
    _
  %p15 = scmp.eq.s32.totalorder 0, 0
  // Predicated region
  $region14: #{llama_forward.21} parent=0 // pred_check
    %p16 = pneg %p15
  $region15: #{llama_forward.21} parent=0 // pred_check_branch
    %18 = sbr.rel (%p16) target = $region17
  $region16: #{llama_forward.21} parent=0 // pred_region
    %v19 = vld [vmem:[%s0] sm:$0xff]
    %v20 = vld [vmem:[%s0 + $0x8] sm:$0xff]
    %v21 = vmul.f32 %v19, %v19
    %v22 = vmul.f32 %v20, %v20
    %23 = vadd.xlane.f32.xlu0 %v21
    %v24 = vpop.xlane.xlu0 %23
    %25 = vadd.xlane.f32.xlu0 %v22
    %v26 = vpop.xlane.xlu0 %25
    %v27 = vmul.f32 %v24, 0.03125
    %v28 = vmul.f32 %v26, 0.03125
    %v29 = vadd.f32 %v27, 1e-05
    %v30 = vadd.f32 %v28, 1e-05
    %v31 = vrsqrt.pop %v29
    %v32 = vrsqrt.pop %v30
    %v33 = vmul.f32 %v19, %v31
    %v34 = vmul.f32 %v20, %v32
    %v35 = vld [vmem:[%s1] sm:$0x1]
    %v37 = vlaneseq
    %v38 = vshrl.u32 %v37, 7
    %v39 = vsub.s32 0, %v38
    %v40 = vrot.slane %v35, %v39
    %v42 = vmul.f32 %v33, %v40
    %v43 = vmul.f32 %v34, %v40
    %v44 = vpack.c.bf16 %v43, %v42
    %45 = vst [vmem:[#allocation2] sm:$0xff] %v44
  $region17: #{llama_forward.21} parent=0 // pred_fallthru
    _
  %v46 = vld [vmem:[#allocation2] sm:$0xff]
  %v47 = vld [vmem:[%s2] sm:$0xf]
  %v48 = vld [vmem:[%s2 + $0x4] sm:$0xf]
  %v49 = vld [vmem:[%s2 + $0x8] sm:$0xf]
  %v50 = vld [vmem:[%s2 + $0xc] sm:$0xf]
  %v51 = vld [vmem:[%s2 + $0x10] sm:$0xf]
  %v52 = vld [vmem:[%s2 + $0x14] sm:$0xf]
  %v53 = vld [vmem:[%s2 + $0x18] sm:$0xf]
  %v54 = vld [vmem:[%s2 + $0x1c] sm:$0xf]
  %v55 = vld [vmem:[%s2 + $0x20] sm:$0xf]
  %v56 = vld [vmem:[%s2 + $0x24] sm:$0xf]
  %v57 = vld [vmem:[%s2 + $0x28] sm:$0xf]
  %v58 = vld [vmem:[%s2 + $0x2c] sm:$0xf]
  %v59 = vld [vmem:[%s2 + $0x30] sm:$0xf]
  %v60 = vld [vmem:[%s2 + $0x34] sm:$0xf]
  %v61 = vld [vmem:[%s2 + $0x38] sm:$0xf]
  %v62 = vld [vmem:[%s2 + $0x3c] sm:$0xf]
  %v79 = vunpack.c.l.b16 %v47
  %v80 = vunpack.c.l.b16 %v48
  %v81 = vunpack.c.l.b16 %v49
  %v82 = vunpack.c.l.b16 %v50
  %v83 = vunpack.c.l.b16 %v51
  %v84 = vunpack.c.l.b16 %v52
  %v85 = vunpack.c.l.b16 %v53
  %v86 = vunpack.c.l.b16 %v54
  %v87 = vunpack.c.l.b16 %v55
  %v88 = vunpack.c.l.b16 %v56
  %v89 = vunpack.c.l.b16 %v57
  %v90 = vunpack.c.l.b16 %v58
  %v91 = vunpack.c.l.b16 %v59
  %v92 = vunpack.c.l.b16 %v60
  %v93 = vunpack.c.l.b16 %v61
  %v94 = vunpack.c.l.b16 %v62
  %v95 = vpack.c.b16 %v80, %v79
  %v96 = vpack.c.b16 %v82, %v81
  %v97 = vpack.c.b16 %v84, %v83
  %v98 = vpack.c.b16 %v86, %v85
  %v99 = vpack.c.b16 %v88, %v87
  %v100 = vpack.c.b16 %v90, %v89
  %v101 = vpack.c.b16 %v92, %v91
  %v102 = vpack.c.b16 %v94, %v93
  %111 = vmatprep.subr.bf16.mxu0 0
  %112 = vmatpush1.bf16.msra.mxu0 %v95
  %113 = vmatprep.subr.bf16.mxu0 0
  %114 = vmatpush1.bf16.msra.mxu0 %v96
  %115 = vmatprep.subr.bf16.mxu0 0
  %116 = vmatpush1.bf16.msra.mxu0 %v97
  %117 = vmatprep.subr.bf16.mxu0 0
  %118 = vmatpush1.bf16.msra.mxu0 %v98
  %119 = vmatprep.subr.bf16.mxu0 0
  %120 = vmatpush1.bf16.msra.mxu0 %v99
  %121 = vmatprep.subr.bf16.mxu0 0
  %122 = vmatpush1.bf16.msra.mxu0 %v100
  %123 = vmatprep.subr.bf16.mxu0 0
  %124 = vmatpush1.bf16.msra.mxu0 %v101
  %125 = vmatprep.subr.bf16.mxu0 0
  %126 = vmatpush1.bf16.msra.mxu0 %v102
  %127 = vmatprep.subr.bf16.mxu0 0
  %128 = vmatpush1.bf16.msra.mxu0 0
  %129 = vmatprep.subr.bf16.mxu0 0
  %130 = vmatpush1.bf16.msra.mxu0 0
  %131 = vmatprep.subr.bf16.mxu0 0
  %132 = vmatpush1.bf16.msra.mxu0 0
  %133 = vmatprep.subr.bf16.mxu0 0
  %134 = vmatpush1.bf16.msra.mxu0 0
  %135 = vmatprep.subr.bf16.mxu0 0
  %136 = vmatpush1.bf16.msra.mxu0 0
  %137 = vmatprep.subr.bf16.mxu0 0
  %138 = vmatpush1.bf16.msra.mxu0 0
  %139 = vmatprep.subr.bf16.mxu0 0
  %140 = vmatpush1.bf16.msra.mxu0 0
  %141 = vmatprep.subr.bf16.mxu0 0
  %142 = vmatpush1.bf16.msra.mxu0 0
  %143 = vmatprep.mubr.bf16.mxu0 0
  %144 = vmatmul.mubr.bf16.gmra.mrb[0].mxu0 %v46
  %v145 = vpop.f32.mrb[0].mxu0
  %v146 = vadd.f32 0.0, %v145
  %v147 = vpop.f32.mrb[0].mxu0
  %v148 = vpop.f32.mrb[0].mxu0
  %v149 = vadd.f32 0.0, %v148
  %v150 = vpop.f32.mrb[0].mxu0
  %151 = vdwg.mxu0
  %152 = vst [vmem:[%s3] sm:$0xff] %v146
  %153 = vst [vmem:[%s3 + $0x8] sm:$0xff] %v149
  // Predicated region
  $region18: #{llama_forward.21} parent=0 // pred_check
    _
  $region19: #{llama_forward.21} parent=0 // pred_check_branch
    %155 = sbr.rel (0) target = $region21
  $region20: #{llama_forward.21} parent=0 // pred_region
    _
  $region21: #{llama_forward.21} parent=0 // pred_fallthru
    _
  // Predicated region
  $region22: #{llama_forward.21} parent=0 // pred_check
    _
  $region23: #{llama_forward.21} parent=0 // pred_check_branch
    %157 = sbr.rel (0) target = $region25
  $region24: #{llama_forward.21} parent=0 // pred_region
    _
  $region25: #{llama_forward.21} parent=0 // pred_fallthru
    _

// kernel: llama_forward.12
$region0: #{llama_forward.12}
  #allocation0 [shape = 'u32[]', space=smem, size = 0x4, offset = 0x4, fixed_abs, tag = 'smem constant byte address 0x4 - core index']
  #allocation1 [shape = 'u32[144,128]{1,0:T(1,128)}', space=vmem, size = 0x12000, scoped, tag = 'internal scratch']
  #allocation2 [shape = 'bf16[8,4,8]{2,1,0:T(4,128)(2,1)}', space=vmem, size = 0x2000, scoped, tag = 'scratch operand']
  #allocation3 [shape = 'f32[4,8,1]{2,1,0:T(8,128)}', space=vmem, size = 0x4000, scoped, tag = 'scratch operand']
  #allocation4 [shape = 'f32[4,8,1]{2,1,0:T(8,128)}', space=vmem, size = 0x4000, scoped, tag = 'scratch operand']
  #allocation5 [shape = 'f32[4,8,8]{2,1,0:T(8,128)}', space=vmem, size = 0x4000, scoped, tag = 'scratch operand']
  %s0 = inlined_call_operand.vmem [shape: f32[8,4], index: 0, kind: input, shape index: {}, may-alias: {0,2}]
  %s1 = inlined_call_operand.vmem [shape: f32[8,4], index: 1, kind: input, shape index: {}, may-alias: {1,3}]
  %s2 = inlined_call_operand.vmem [shape: f32[8,4], index: 2, kind: input, shape index: {}, may-alias: {0,2}]
  %s3 = inlined_call_operand.vmem [shape: f32[8,4], index: 3, kind: input, shape index: {}, may-alias: {1,3}]
  %s4 = inlined_call_operand.vmem [shape: bf16[2,8,3,4,8], index: 4, kind: input, shape index: {}, may-alias: {4,5,6}]
  %s5 = inlined_call_operand.vmem [shape: bf16[2,8,3,4,8], index: 5, kind: input, shape index: {}, may-alias: {4,5,6}]
  %s6 = inlined_call_operand.vmem [shape: bf16[2,8,3,4,8], index: 6, kind: input, shape index: {}, may-alias: {4,5,6}]
  %s7 = inlined_call_operand.vmem [shape: bf16[2,8,4,8], index: 7, kind: output, shape index: {}]
  %s8 = sld [smem:[#allocation0]]
  $region200: #{llama_forward.12} parent=0
    _
  %s10 = ssub.s32 1, %s8
  %s11 = scalar_select 0, %s10, %s8
  $region1: #{llama_forward.12} parent=0
    #allocation6 [shape = 'u8[16384]{0}', space=vmem, size = 0x4000, scoped, tag = 'input window, operand 4']
    #allocation7 [shape = 'u8[16384]{0}', space=vmem, size = 0x4000, scoped, tag = 'input window, operand 5']
    #allocation8 [shape = 'u8[16384]{0}', space=vmem, size = 0x4000, scoped, tag = 'input window, operand 6']
    loop: start=0, step=1, limit=4
    $region2: #{llama_forward.12} parent=1 // loop_pre_header
      _
    $region3: #{llama_forward.12} parent=1 // loop_header
      %s13 = sphi 0, %s17
      %p14 = scmp.ge.s32.totalorder %s13, 4
      %s20 = sphi 0, %s39
      %s21 = sphi 0, %s35
      %s22 = sphi 0, %s31
      %s23 = sphi 0, %s20
      %s24 = sphi 0, %s21
      %s25 = sphi 0, %s22
      %s26 = sphi 0, %s23
      %s27 = sphi 0, %s24
      %s28 = sphi 0, %s25
      %s42 = sphi 0, %s44
      %s45 = sphi 0, %s42
      %s46 = sphi 0, %s45
      %s62 = sphi 0, %s46
      %s68 = sphi 0, %s70
      %s71 = sphi 0, %s68
      %s72 = sphi 0, %s71
      %s88 = sphi 0, %s72
      %s98 = sphi 0, %s100
      %s101 = sphi 0, %s98
      %s102 = sphi 0, %s101
      %s118 = sphi 0, %s102
      %s128 = sphi 0, %s130
      %s131 = sphi 0, %s128
      %s132 = sphi 0, %s131
      %s148 = sphi 0, %s132
      %s156 = sphi 0, %s158
      %s159 = sphi 0, %s156
      %s160 = sphi 0, %s159
      %s176 = sphi 0, %s160
      %s188 = sphi 0, %s190
      %s191 = sphi 0, %s188
      %s192 = sphi 0, %s191
      %s208 = sphi 0, %s192
      %s220 = sphi 0, %s222
      %s223 = sphi 0, %s220
      %s224 = sphi 0, %s223
      %s240 = sphi 0, %s224
      %s248 = sphi 0, %s250
      %s251 = sphi 0, %s248
      %s252 = sphi 0, %s251
      %s268 = sphi 0, %s252
    $region4: #{llama_forward.12} parent=1 // loop_header_branch
      %16 = sbr.rel (%p14) target = $region8
    $region5: #{llama_forward.12} parent=1 // loop_body
      %s18 = ssub.s32 %s13, 1
      %s19 = ssub.s32 %s13, 2
      %s29 = sadd.s32 1, %s22
      %p30 = scmp.ge.s32.totalorder %s29, 1
      %s31 = scalar_select %p30, 0, %s29
      %s32 = sadd.s32 1, %s21
      %s33 = scalar_select %p30, %s32, %s21
      %p34 = scmp.ge.s32.totalorder %s33, 1
      %s35 = scalar_select %p34, 0, %s33
      %s36 = sadd.s32 1, %s20
      %s37 = scalar_select %p34, %s36, %s20
      %p38 = scmp.ge.s32.totalorder %s37, 2
      %s39 = scalar_select %p38, 0, %s37
      %s40 = ssub.s32 %s21, %s35
      %p41 = scmp.eq.s32.totalorder %s40, 0
      %s43 = sadd.s32 %s42, 1
      %s44 = scalar_select %p41, %s42, %s43
      %p47 = pneg %p41
      %p48 = scmp.eq.s32.totalorder %s13, 1
      %p49 = por %p47, %p48
      %p50 = scmp.ne.s32.totalorder %s42, %s45
      %p51 = scmp.eq.s32.totalorder %s13, 0
      %p52 = por %p50, %p51
      %p53 = scmp.ne.s32.totalorder %s42, %s45
      %p54 = scmp.eq.s32.totalorder %s18, 1
      %p55 = por %p53, %p54
      %p56 = scmp.ne.s32.totalorder %s45, %s46
      %p57 = scmp.eq.s32.totalorder %s18, 0
      %p58 = por %p56, %p57
      %p59 = scmp.ne.s32.totalorder %s45, %s46
      %p60 = scmp.eq.s32.totalorder %s19, 1
      %p61 = por %p59, %p60
      %p63 = scmp.ne.s32.totalorder %s46, %s62
      %p64 = scmp.eq.s32.totalorder %s19, 0
      %p65 = por %p63, %p64
      %s66 = ssub.s32 %s21, %s35
      %p67 = scmp.eq.s32.totalorder %s66, 0
      %s69 = sadd.s32 %s68, 1
      %s70 = scalar_select %p67, %s68, %s69
      %p73 = pneg %p67
      %p74 = scmp.eq.s32.totalorder %s13, 1
      %p75 = por %p73, %p74
      %p76 = scmp.ne.s32.totalorder %s68, %s71
      %p77 = scmp.eq.s32.totalorder %s13, 0
      %p78 = por %p76, %p77
      %p79 = scmp.ne.s32.totalorder %s68, %s71
      %p80 = scmp.eq.s32.totalorder %s18, 1
      %p81 = por %p79, %p80
      %p82 = scmp.ne.s32.totalorder %s71, %s72
      %p83 = scmp.eq.s32.totalorder %s18, 0
      %p84 = por %p82, %p83
      %p85 = scmp.ne.s32.totalorder %s71, %s72
      %p86 = scmp.eq.s32.totalorder %s19, 1
      %p87 = por %p85, %p86
      %p89 = scmp.ne.s32.totalorder %s72, %s88
      %p90 = scmp.eq.s32.totalorder %s19, 0
      %p91 = por %p89, %p90
      %p92 = scmp.lt.s32.totalorder %s21, %s22
      %s93 = scalar_select %p92, %s21, %s22
      %p94 = scmp.lt.s32.totalorder %s35, %s31
      %s95 = scalar_select %p94, %s35, %s31
      %s96 = ssub.s32 %s93, %s95
      %p97 = scmp.eq.s32.totalorder %s96, 0
      %s99 = sadd.s32 %s98, 1
      %s100 = scalar_select %p97, %s98, %s99
      %p103 = pneg %p97
      %p104 = scmp.eq.s32.totalorder %s13, 1
      %p105 = por %p103, %p104
      %p106 = scmp.ne.s32.totalorder %s98, %s101
      %p107 = scmp.eq.s32.totalorder %s13, 0
      %p108 = por %p106, %p107
      %p109 = scmp.ne.s32.totalorder %s98, %s101
      %p110 = scmp.eq.s32.totalorder %s18, 1
      %p111 = por %p109, %p110
      %p112 = scmp.ne.s32.totalorder %s101, %s102
      %p113 = scmp.eq.s32.totalorder %s18, 0
      %p114 = por %p112, %p113
      %p115 = scmp.ne.s32.totalorder %s101, %s102
      %p116 = scmp.eq.s32.totalorder %s19, 1
      %p117 = por %p115, %p116
      %p119 = scmp.ne.s32.totalorder %s102, %s118
      %p120 = scmp.eq.s32.totalorder %s19, 0
      %p121 = por %p119, %p120
      %p122 = scmp.lt.s32.totalorder %s21, %s22
      %s123 = scalar_select %p122, %s21, %s22
      %p124 = scmp.lt.s32.totalorder %s35, %s31
      %s125 = scalar_select %p124, %s35, %s31
      %s126 = ssub.s32 %s123, %s125
      %p127 = scmp.eq.s32.totalorder %s126, 0
      %s129 = sadd.s32 %s128, 1
      %s130 = scalar_select %p127, %s128, %s129
      %p133 = pneg %p127
      %p134 = scmp.eq.s32.totalorder %s13, 1
      %p135 = por %p133, %p134
      %p136 = scmp.ne.s32.totalorder %s128, %s131
      %p137 = scmp.eq.s32.totalorder %s13, 0
      %p138 = por %p136, %p137
      %p139 = scmp.ne.s32.totalorder %s128, %s131
      %p140 = scmp.eq.s32.totalorder %s18, 1
      %p141 = por %p139, %p140
      %p142 = scmp.ne.s32.totalorder %s131, %s132
      %p143 = scmp.eq.s32.totalorder %s18, 0
      %p144 = por %p142, %p143
      %p145 = scmp.ne.s32.totalorder %s131, %s132
      %p146 = scmp.eq.s32.totalorder %s19, 1
      %p147 = por %p145, %p146
      %p149 = scmp.ne.s32.totalorder %s132, %s148
      %p150 = scmp.eq.s32.totalorder %s19, 0
      %p151 = por %p149, %p150
      %s152 = ssub.s32 %s20, %s39
      %s153 = ssub.s32 %s21, %s35
      %s154 = sor.u32 %s152, %s153
      %p155 = scmp.eq.s32.totalorder %s154, 0
      %s157 = sadd.s32 %s156, 1
      %s158 = scalar_select %p155, %s156, %s157
      %p161 = pneg %p155
      %p162 = scmp.eq.s32.totalorder %s13, 1
      %p163 = por %p161, %p162
      %p164 = scmp.ne.s32.totalorder %s156, %s159
      %p165 = scmp.eq.s32.totalorder %s13, 0
      %p166 = por %p164, %p165
      %p167 = scmp.ne.s32.totalorder %s156, %s159
      %p168 = scmp.eq.s32.totalorder %s18, 1
      %p169 = por %p167, %p168
      %p170 = scmp.ne.s32.totalorder %s159, %s160
      %p171 = scmp.eq.s32.totalorder %s18, 0
      %p172 = por %p170, %p171
      %p173 = scmp.ne.s32.totalorder %s159, %s160
      %p174 = scmp.eq.s32.totalorder %s19, 1
      %p175 = por %p173, %p174
      %p177 = scmp.ne.s32.totalorder %s160, %s176
      %p178 = scmp.eq.s32.totalorder %s19, 0
      %p179 = por %p177, %p178
      %p180 = scmp.lt.s32.totalorder %s21, %s22
      %s181 = scalar_select %p180, %s21, %s22
      %p182 = scmp.lt.s32.totalorder %s35, %s31
      %s183 = scalar_select %p182, %s35, %s31
      %s184 = ssub.s32 %s20, %s39
      %s185 = ssub.s32 %s181, %s183
      %s186 = sor.u32 %s184, %s185
      %p187 = scmp.eq.s32.totalorder %s186, 0
      %s189 = sadd.s32 %s188, 1
      %s190 = scalar_select %p187, %s188, %s189
      %p193 = pneg %p187
      %p194 = scmp.eq.s32.totalorder %s13, 1
      %p195 = por %p193, %p194
      %p196 = scmp.ne.s32.totalorder %s188, %s191
      %p197 = scmp.eq.s32.totalorder %s13, 0
      %p198 = por %p196, %p197
      %p199 = scmp.ne.s32.totalorder %s188, %s191
      %p200 = scmp.eq.s32.totalorder %s18, 1
      %p201 = por %p199, %p200
      %p202 = scmp.ne.s32.totalorder %s191, %s192
      %p203 = scmp.eq.s32.totalorder %s18, 0
      %p204 = por %p202, %p203
      %p205 = scmp.ne.s32.totalorder %s191, %s192
      %p206 = scmp.eq.s32.totalorder %s19, 1
      %p207 = por %p205, %p206
      %p209 = scmp.ne.s32.totalorder %s192, %s208
      %p210 = scmp.eq.s32.totalorder %s19, 0
      %p211 = por %p209, %p210
      %p212 = scmp.lt.s32.totalorder %s21, %s22
      %s213 = scalar_select %p212, %s21, %s22
      %p214 = scmp.lt.s32.totalorder %s35, %s31
      %s215 = scalar_select %p214, %s35, %s31
      %s216 = ssub.s32 %s20, %s39
      %s217 = ssub.s32 %s213, %s215
      %s218 = sor.u32 %s216, %s217
      %p219 = scmp.eq.s32.totalorder %s218, 0
      %s221 = sadd.s32 %s220, 1
      %s222 = scalar_select %p219, %s220, %s221
      %p225 = pneg %p219
      %p226 = scmp.eq.s32.totalorder %s13, 1
      %p227 = por %p225, %p226
      %p228 = scmp.ne.s32.totalorder %s220, %s223
      %p229 = scmp.eq.s32.totalorder %s13, 0
      %p230 = por %p228, %p229
      %p231 = scmp.ne.s32.totalorder %s220, %s223
      %p232 = scmp.eq.s32.totalorder %s18, 1
      %p233 = por %p231, %p232
      %p234 = scmp.ne.s32.totalorder %s223, %s224
      %p235 = scmp.eq.s32.totalorder %s18, 0
      %p236 = por %p234, %p235
      %p237 = scmp.ne.s32.totalorder %s223, %s224
      %p238 = scmp.eq.s32.totalorder %s19, 1
      %p239 = por %p237, %p238
      %p241 = scmp.ne.s32.totalorder %s224, %s240
      %p242 = scmp.eq.s32.totalorder %s19, 0
      %p243 = por %p241, %p242
      %s244 = ssub.s32 %s20, %s39
      %s245 = ssub.s32 %s21, %s35
      %s246 = sor.u32 %s244, %s245
      %p247 = scmp.eq.s32.totalorder %s246, 0
      %s249 = sadd.s32 %s248, 1
      %s250 = scalar_select %p247, %s248, %s249
      %p253 = pneg %p247
      %p254 = scmp.eq.s32.totalorder %s13, 1
      %p255 = por %p253, %p254
      %p256 = scmp.ne.s32.totalorder %s248, %s251
      %p257 = scmp.eq.s32.totalorder %s13, 0
      %p258 = por %p256, %p257
      %p259 = scmp.ne.s32.totalorder %s248, %s251
      %p260 = scmp.eq.s32.totalorder %s18, 1
      %p261 = por %p259, %p260
      %p262 = scmp.ne.s32.totalorder %s251, %s252
      %p263 = scmp.eq.s32.totalorder %s18, 0
      %p264 = por %p262, %p263
      %p265 = scmp.ne.s32.totalorder %s251, %s252
      %p266 = scmp.eq.s32.totalorder %s19, 1
      %p267 = por %p265, %p266
      %p269 = scmp.ne.s32.totalorder %s252, %s268
      %p270 = scmp.eq.s32.totalorder %s19, 0
      %p271 = por %p269, %p270
      %p272 = scmp.le.s32.totalorder 1, %s13
      %p273 = scmp.lt.s32.totalorder %s13, 3
      %p274 = pnand %p272, %p273
      %p275 = pneg %p274
      // Predicated region
      $region9: #{llama_forward.12} parent=5 // pred_check
        _
      $region10: #{llama_forward.12} parent=5 // pred_check_branch
        %277 = sbr.rel (%p274) target = $region12
      $region11: #{llama_forward.12} parent=5 // pred_region
        %s278 = ssub.s32 %s13, 1
        // Predicated region
        $region13: #{llama_forward.12} parent=11 // pred_check
          %p279 = pneg %p58
        $region14: #{llama_forward.12} parent=11 // pred_check_branch
          %281 = sbr.rel (%p279) target = $region16
        $region15: #{llama_forward.12} parent=11 // pred_region
          %p282 = scmp.lt.s32.totalorder %s24, 0
          %s283 = scalar_select %p282, %s24, 0
          %s284 = smul.addr %s283, 8
          %s285 = scalar_lea.vmem %s0, %s284
        $region16: #{llama_forward.12} parent=11 // pred_fallthru
          _
        // Predicated region
        $region17: #{llama_forward.12} parent=11 // pred_check
          %p286 = pneg %p84
        $region18: #{llama_forward.12} parent=11 // pred_check_branch
          %288 = sbr.rel (%p286) target = $region20
        $region19: #{llama_forward.12} parent=11 // pred_region
          %p289 = scmp.lt.s32.totalorder %s24, 0
          %s290 = scalar_select %p289, %s24, 0
          %s291 = smul.addr %s290, 8
          %s292 = scalar_lea.vmem %s1, %s291
        $region20: #{llama_forward.12} parent=11 // pred_fallthru
          _
        // Predicated region
        $region21: #{llama_forward.12} parent=11 // pred_check
          %p293 = pneg %p114
        $region22: #{llama_forward.12} parent=11 // pred_check_branch
          %295 = sbr.rel (%p293) target = $region24
        $region23: #{llama_forward.12} parent=11 // pred_region
          %p296 = scmp.lt.s32.totalorder %s24, %s25
          %s297 = scalar_select %p296, %s24, %s25
          %p298 = scmp.lt.s32.totalorder %s297, 0
          %s299 = scalar_select %p298, %s297, 0
          %s300 = smul.addr %s299, 8
          %s301 = scalar_lea.vmem %s2, %s300
          %p302 = scmp.lt.s32.totalorder %s24, %s25
          %s303 = scalar_select %p302, %s24, %s25
        $region24: #{llama_forward.12} parent=11 // pred_fallthru
          _
        // Predicated region
        $region25: #{llama_forward.12} parent=11 // pred_check
          %p304 = pneg %p144
        $region26: #{llama_forward.12} parent=11 // pred_check_branch
          %306 = sbr.rel (%p304) target = $region28
        $region27: #{llama_forward.12} parent=11 // pred_region
          %p307 = scmp.lt.s32.totalorder %s24, %s25
          %s308 = scalar_select %p307, %s24, %s25
          %p309 = scmp.lt.s32.totalorder %s308, 0
          %s310 = scalar_select %p309, %s308, 0
          %s311 = smul.addr %s310, 8
          %s312 = scalar_lea.vmem %s3, %s311
          %p313 = scmp.lt.s32.totalorder %s24, %s25
          %s314 = scalar_select %p313, %s24, %s25
        $region28: #{llama_forward.12} parent=11 // pred_fallthru
          _
      $region12: #{llama_forward.12} parent=5 // pred_fallthru
        _
      %p315 = scmp.lt.s32.totalorder %s13, 2
      // Predicated region
      $region29: #{llama_forward.12} parent=5 // pred_check
        %p316 = pneg %p315
      $region30: #{llama_forward.12} parent=5 // pred_check_branch
        %318 = sbr.rel (%p316) target = $region32
      $region31: #{llama_forward.12} parent=5 // pred_region
        // Predicated region
        $region33: #{llama_forward.12} parent=31 // pred_check
          %p319 = pneg %p166
        $region34: #{llama_forward.12} parent=31 // pred_check_branch
          %321 = sbr.rel (%p319) target = $region36
        $region35: #{llama_forward.12} parent=31 // pred_region
          %s322 = sand.u32 %s156, 1
          %s323 = sand.u32 %s156, 1
          %s324 = smul.addr %s323, 16
          %s325 = scalar_lea.vmem [#allocation6], %s324
          %s326 = smul.u32 8, %s21
          %s327 = smul.addr %s326, 3
          %s328 = smul.addr %s20, 24
          %s329 = sadd.s32 %s327, %s328
          %s330 = smul.addr %s329, 2
          %s331 = scalar_lea.vmem %s4, %s330
          // Predicated region
          $region37: #{llama_forward.12} parent=35 // pred_check
            _
          $region38: #{llama_forward.12} parent=35 // pred_check_branch
            %333 = sbr.rel (0) target = $region40
          $region39: #{llama_forward.12} parent=35 // pred_region
            // Predicated region
            $region41: #{llama_forward.12} parent=39 // pred_check
              _
            $region42: #{llama_forward.12} parent=39 // pred_check_branch
              %335 = sbr.rel target = $region44
            $region43: #{llama_forward.12} parent=39 // pred_region
              // Predicated region
              $region56: #{llama_forward.12} parent=43 // pred_check
                _
              $region57: #{llama_forward.12} parent=43 // pred_check_branch
                %364 = sbr.rel (0) target = $region59
              $region58: #{llama_forward.12} parent=43 // pred_region
                loop: start=0, step=1, limit=1
                $region60: #{llama_forward.12} parent=58 // loop_pre_header
                  _
                $region61: #{llama_forward.12} parent=58 // loop_header
                  %s366 = sphi 0, %s370
                  %p367 = scmp.ge.s32.totalorder %s366, 1
                  %s371 = sphi %s331, %s331
                  %s372 = sphi %s325, %s325
                $region62: #{llama_forward.12} parent=58 // loop_header_branch
                  %369 = sbr.rel (%p367) target = $region66
                $region63: #{llama_forward.12} parent=58 // loop_body
                  _
                $region64: #{llama_forward.12} parent=58 // loop_footer
                  %s370 = sadd.s32 1, %s366
                $region65: #{llama_forward.12} parent=58 // loop_footer_branch
                  %365 = sbr.rel target = $region61
                $region66: #{llama_forward.12} parent=58 // loop_exit
                  _
                loop: start=0, step=1, limit=1
                $region67: #{llama_forward.12} parent=58 // loop_pre_header
                  _
                $region68: #{llama_forward.12} parent=58 // loop_header
                  %s375 = sphi 0, %s379
                  %p376 = scmp.ge.s32.totalorder %s375, 1
                  %s380 = sphi %s331, %s331
                  %s381 = sphi %s325, %s325
                $region69: #{llama_forward.12} parent=58 // loop_header_branch
                  %378 = sbr.rel (%p376) target = $region73
                $region70: #{llama_forward.12} parent=58 // loop_body
                  %v382 = vld [vmem:[%s380] sm:$0x3]
                  %383 = vst [vmem:[%s381] sm:$0x3] %v382
                  %v384 = vld [vmem:[%s380 + $0x6] sm:$0x3]
                  %385 = vst [vmem:[%s381 + $0x2] sm:$0x3] %v384
                  %v386 = vld [vmem:[%s380 + $0xc] sm:$0x3]
                  %387 = vst [vmem:[%s381 + $0x4] sm:$0x3] %v386
                  %v388 = vld [vmem:[%s380 + $0x12] sm:$0x3]
                  %389 = vst [vmem:[%s381 + $0x6] sm:$0x3] %v388
                  %v390 = vld [vmem:[%s380 + $0x18] sm:$0x3]
                  %391 = vst [vmem:[%s381 + $0x8] sm:$0x3] %v390
                  %v392 = vld [vmem:[%s380 + $0x1e] sm:$0x3]
                  %393 = vst [vmem:[%s381 + $0xa] sm:$0x3] %v392
                  %v394 = vld [vmem:[%s380 + $0x24] sm:$0x3]
                  %395 = vst [vmem:[%s381 + $0xc] sm:$0x3] %v394
                  %v396 = vld [vmem:[%s380 + $0x2a] sm:$0x3]
                  %397 = vst [vmem:[%s381 + $0xe] sm:$0x3] %v396
                $region71: #{llama_forward.12} parent=58 // loop_footer
                  %s379 = sadd.s32 1, %s375
                $region72: #{llama_forward.12} parent=58 // loop_footer_branch
                  %374 = sbr.rel target = $region68
                $region73: #{llama_forward.12} parent=58 // loop_exit
                  _
              $region59: #{llama_forward.12} parent=43 // pred_fallthru
                _
            $region44: #{llama_forward.12} parent=39 // pred_fallthru
              _
            // Predicated region
            $region45: #{llama_forward.12} parent=39 // pred_check
              _
            $region46: #{llama_forward.12} parent=39 // pred_check_branch
              %337 = sbr.rel (0) target = $region48
            $region47: #{llama_forward.12} parent=39 // pred_region
              loop: start=0, step=1, limit=1
              $region49: #{llama_forward.12} parent=47 // loop_pre_header
                _
              $region50: #{llama_forward.12} parent=47 // loop_header
                %s340 = sphi 0, %s344
                %p341 = scmp.ge.s32.totalorder %s340, 1
                %s345 = sphi %s331, %s331
                %s346 = sphi %s325, %s325
              $region51: #{llama_forward.12} parent=47 // loop_header_branch
                %343 = sbr.rel (%p341) target = $region55
              $region52: #{llama_forward.12} parent=47 // loop_body
                %v347 = vld [vmem:[%s345] sm:$0x3]
                %348 = vst [vmem:[%s346] sm:$0x3] %v347
                %v349 = vld [vmem:[%s345 + $0x6] sm:$0x3]
                %350 = vst [vmem:[%s346 + $0x2] sm:$0x3] %v349
                %v351 = vld [vmem:[%s345 + $0xc] sm:$0x3]
                %352 = vst [vmem:[%s346 + $0x4] sm:$0x3] %v351
                %v353 = vld [vmem:[%s345 + $0x12] sm:$0x3]
                %354 = vst [vmem:[%s346 + $0x6] sm:$0x3] %v353
                %v355 = vld [vmem:[%s345 + $0x18] sm:$0x3]
                %356 = vst [vmem:[%s346 + $0x8] sm:$0x3] %v355
                %v357 = vld [vmem:[%s345 + $0x1e] sm:$0x3]
                %358 = vst [vmem:[%s346 + $0xa] sm:$0x3] %v357
                %v359 = vld [vmem:[%s345 + $0x24] sm:$0x3]
                %360 = vst [vmem:[%s346 + $0xc] sm:$0x3] %v359
                %v361 = vld [vmem:[%s345 + $0x2a] sm:$0x3]
                %362 = vst [vmem:[%s346 + $0xe] sm:$0x3] %v361
              $region53: #{llama_forward.12} parent=47 // loop_footer
                %s344 = sadd.s32 1, %s340
              $region54: #{llama_forward.12} parent=47 // loop_footer_branch
                %339 = sbr.rel target = $region50
              $region55: #{llama_forward.12} parent=47 // loop_exit
                _
            $region48: #{llama_forward.12} parent=39 // pred_fallthru
              _
          $region40: #{llama_forward.12} parent=35 // pred_fallthru
            _
          %398 = vnop
        $region36: #{llama_forward.12} parent=31 // pred_fallthru
          _
        // Predicated region
        $region74: #{llama_forward.12} parent=31 // pred_check
          %p399 = pneg %p198
        $region75: #{llama_forward.12} parent=31 // pred_check_branch
          %401 = sbr.rel (%p399) target = $region77
        $region76: #{llama_forward.12} parent=31 // pred_region
          %s402 = sand.u32 %s188, 1
          %s403 = sand.u32 %s188, 1
          %s404 = smul.addr %s403, 16
          %s405 = scalar_lea.vmem [#allocation7], %s404
          %p406 = scmp.lt.s32.totalorder %s21, %s22
          %s407 = scalar_select %p406, %s21, %s22
          %s408 = smul.u32 8, %s407
          %s409 = smul.addr %s408, 3
          %s410 = sadd.s32 1, %s409
          %s411 = smul.addr %s20, 24
          %s412 = sadd.s32 %s410, %s411
          %s413 = smul.addr %s412, 2
          %s414 = scalar_lea.vmem %s5, %s413
          // Predicated region
          $region78: #{llama_forward.12} parent=76 // pred_check
            _
          $region79: #{llama_forward.12} parent=76 // pred_check_branch
            %416 = sbr.rel (0) target = $region81
          $region80: #{llama_forward.12} parent=76 // pred_region
            // Predicated region
            $region82: #{llama_forward.12} parent=80 // pred_check
              _
            $region83: #{llama_forward.12} parent=80 // pred_check_branch
              %418 = sbr.rel target = $region85
            $region84: #{llama_forward.12} parent=80 // pred_region
              // Predicated region
              $region97: #{llama_forward.12} parent=84 // pred_check
                _
              $region98: #{llama_forward.12} parent=84 // pred_check_branch
                %447 = sbr.rel (0) target = $region100
              $region99: #{llama_forward.12} parent=84 // pred_region
                loop: start=0, step=1, limit=1
                $region101: #{llama_forward.12} parent=99 // loop_pre_header
                  _
                $region102: #{llama_forward.12} parent=99 // loop_header
                  %s449 = sphi 0, %s453
                  %p450 = scmp.ge.s32.totalorder %s449, 1
                  %s454 = sphi %s414, %s414
                  %s455 = sphi %s405, %s405
                $region103: #{llama_forward.12} parent=99 // loop_header_branch
                  %452 = sbr.rel (%p450) target = $region107
                $region104: #{llama_forward.12} parent=99 // loop_body
                  _
                $region105: #{llama_forward.12} parent=99 // loop_footer
                  %s453 = sadd.s32 1, %s449
                $region106: #{llama_forward.12} parent=99 // loop_footer_branch
                  %448 = sbr.rel target = $region102
                $region107: #{llama_forward.12} parent=99 // loop_exit
                  _
                loop: start=0, step=1, limit=1
                $region108: #{llama_forward.12} parent=99 // loop_pre_header
                  _
                $region109: #{llama_forward.12} parent=99 // loop_header
                  %s458 = sphi 0, %s462
                  %p459 = scmp.ge.s32.totalorder %s458, 1
                  %s463 = sphi %s414, %s414
                  %s464 = sphi %s405, %s405
                $region110: #{llama_forward.12} parent=99 // loop_header_branch
                  %461 = sbr.rel (%p459) target = $region114
                $region111: #{llama_forward.12} parent=99 // loop_body
                  %v465 = vld [vmem:[%s463] sm:$0x3]
                  %466 = vst [vmem:[%s464] sm:$0x3] %v465
                  %v467 = vld [vmem:[%s463 + $0x6] sm:$0x3]
                  %468 = vst [vmem:[%s464 + $0x2] sm:$0x3] %v467
                  %v469 = vld [vmem:[%s463 + $0xc] sm:$0x3]
                  %470 = vst [vmem:[%s464 + $0x4] sm:$0x3] %v469
                  %v471 = vld [vmem:[%s463 + $0x12] sm:$0x3]
                  %472 = vst [vmem:[%s464 + $0x6] sm:$0x3] %v471
                  %v473 = vld [vmem:[%s463 + $0x18] sm:$0x3]
                  %474 = vst [vmem:[%s464 + $0x8] sm:$0x3] %v473
                  %v475 = vld [vmem:[%s463 + $0x1e] sm:$0x3]
                  %476 = vst [vmem:[%s464 + $0xa] sm:$0x3] %v475
                  %v477 = vld [vmem:[%s463 + $0x24] sm:$0x3]
                  %478 = vst [vmem:[%s464 + $0xc] sm:$0x3] %v477
                  %v479 = vld [vmem:[%s463 + $0x2a] sm:$0x3]
                  %480 = vst [vmem:[%s464 + $0xe] sm:$0x3] %v479
                $region112: #{llama_forward.12} parent=99 // loop_footer
                  %s462 = sadd.s32 1, %s458
                $region113: #{llama_forward.12} parent=99 // loop_footer_branch
                  %457 = sbr.rel target = $region109
                $region114: #{llama_forward.12} parent=99 // loop_exit
                  _
              $region100: #{llama_forward.12} parent=84 // pred_fallthru
                _
            $region85: #{llama_forward.12} parent=80 // pred_fallthru
              _
            // Predicated region
            $region86: #{llama_forward.12} parent=80 // pred_check
              _
            $region87: #{llama_forward.12} parent=80 // pred_check_branch
              %420 = sbr.rel (0) target = $region89
            $region88: #{llama_forward.12} parent=80 // pred_region
              loop: start=0, step=1, limit=1
              $region90: #{llama_forward.12} parent=88 // loop_pre_header
                _
              $region91: #{llama_forward.12} parent=88 // loop_header
                %s423 = sphi 0, %s427
                %p424 = scmp.ge.s32.totalorder %s423, 1
                %s428 = sphi %s414, %s414
                %s429 = sphi %s405, %s405
              $region92: #{llama_forward.12} parent=88 // loop_header_branch
                %426 = sbr.rel (%p424) target = $region96
              $region93: #{llama_forward.12} parent=88 // loop_body
                %v430 = vld [vmem:[%s428] sm:$0x3]
                %431 = vst [vmem:[%s429] sm:$0x3] %v430
                %v432 = vld [vmem:[%s428 + $0x6] sm:$0x3]
                %433 = vst [vmem:[%s429 + $0x2] sm:$0x3] %v432
                %v434 = vld [vmem:[%s428 + $0xc] sm:$0x3]
                %435 = vst [vmem:[%s429 + $0x4] sm:$0x3] %v434
                %v436 = vld [vmem:[%s428 + $0x12] sm:$0x3]
                %437 = vst [vmem:[%s429 + $0x6] sm:$0x3] %v436
                %v438 = vld [vmem:[%s428 + $0x18] sm:$0x3]
                %439 = vst [vmem:[%s429 + $0x8] sm:$0x3] %v438
                %v440 = vld [vmem:[%s428 + $0x1e] sm:$0x3]
                %441 = vst [vmem:[%s429 + $0xa] sm:$0x3] %v440
                %v442 = vld [vmem:[%s428 + $0x24] sm:$0x3]
                %443 = vst [vmem:[%s429 + $0xc] sm:$0x3] %v442
                %v444 = vld [vmem:[%s428 + $0x2a] sm:$0x3]
                %445 = vst [vmem:[%s429 + $0xe] sm:$0x3] %v444
              $region94: #{llama_forward.12} parent=88 // loop_footer
                %s427 = sadd.s32 1, %s423
              $region95: #{llama_forward.12} parent=88 // loop_footer_branch
                %422 = sbr.rel target = $region91
              $region96: #{llama_forward.12} parent=88 // loop_exit
                _
            $region89: #{llama_forward.12} parent=80 // pred_fallthru
              _
          $region81: #{llama_forward.12} parent=76 // pred_fallthru
            _
          %481 = vnop
        $region77: #{llama_forward.12} parent=31 // pred_fallthru
          _
        // Predicated region
        $region115: #{llama_forward.12} parent=31 // pred_check
          %p482 = pneg %p230
        $region116: #{llama_forward.12} parent=31 // pred_check_branch
          %484 = sbr.rel (%p482) target = $region118
        $region117: #{llama_forward.12} parent=31 // pred_region
          %s485 = sand.u32 %s220, 1
          %s486 = sand.u32 %s220, 1
          %s487 = smul.addr %s486, 16
          %s488 = scalar_lea.vmem [#allocation8], %s487
          %p489 = scmp.lt.s32.totalorder %s21, %s22
          %s490 = scalar_select %p489, %s21, %s22
          %s491 = smul.u32 8, %s490
          %s492 = smul.addr %s491, 3
          %s493 = sadd.s32 2, %s492
          %s494 = smul.addr %s20, 24
          %s495 = sadd.s32 %s493, %s494
          %s496 = smul.addr %s495, 2
          %s497 = scalar_lea.vmem %s6, %s496
          // Predicated region
          $region119: #{llama_forward.12} parent=117 // pred_check
            _
          $region120: #{llama_forward.12} parent=117 // pred_check_branch
            %499 = sbr.rel (0) target = $region122
          $region121: #{llama_forward.12} parent=117 // pred_region
            // Predicated region
            $region123: #{llama_forward.12} parent=121 // pred_check
              _
            $region124: #{llama_forward.12} parent=121 // pred_check_branch
              %501 = sbr.rel target = $region126
            $region125: #{llama_forward.12} parent=121 // pred_region
              // Predicated region
              $region138: #{llama_forward.12} parent=125 // pred_check
                _
              $region139: #{llama_forward.12} parent=125 // pred_check_branch
                %530 = sbr.rel (0) target = $region141
              $region140: #{llama_forward.12} parent=125 // pred_region
                loop: start=0, step=1, limit=1
                $region142: #{llama_forward.12} parent=140 // loop_pre_header
                  _
                $region143: #{llama_forward.12} parent=140 // loop_header
                  %s532 = sphi 0, %s536
                  %p533 = scmp.ge.s32.totalorder %s532, 1
                  %s537 = sphi %s497, %s497
                  %s538 = sphi %s488, %s488
                $region144: #{llama_forward.12} parent=140 // loop_header_branch
                  %535 = sbr.rel (%p533) target = $region148
                $region145: #{llama_forward.12} parent=140 // loop_body
                  _
                $region146: #{llama_forward.12} parent=140 // loop_footer
                  %s536 = sadd.s32 1, %s532
                $region147: #{llama_forward.12} parent=140 // loop_footer_branch
                  %531 = sbr.rel target = $region143
                $region148: #{llama_forward.12} parent=140 // loop_exit
                  _
                loop: start=0, step=1, limit=1
                $region149: #{llama_forward.12} parent=140 // loop_pre_header
                  _
                $region150: #{llama_forward.12} parent=140 // loop_header
                  %s541 = sphi 0, %s545
                  %p542 = scmp.ge.s32.totalorder %s541, 1
                  %s546 = sphi %s497, %s497
                  %s547 = sphi %s488, %s488
                $region151: #{llama_forward.12} parent=140 // loop_header_branch
                  %544 = sbr.rel (%p542) target = $region155
                $region152: #{llama_forward.12} parent=140 // loop_body
                  %v548 = vld [vmem:[%s546] sm:$0x3]
                  %549 = vst [vmem:[%s547] sm:$0x3] %v548
                  %v550 = vld [vmem:[%s546 + $0x6] sm:$0x3]
                  %551 = vst [vmem:[%s547 + $0x2] sm:$0x3] %v550
                  %v552 = vld [vmem:[%s546 + $0xc] sm:$0x3]
                  %553 = vst [vmem:[%s547 + $0x4] sm:$0x3] %v552
                  %v554 = vld [vmem:[%s546 + $0x12] sm:$0x3]
                  %555 = vst [vmem:[%s547 + $0x6] sm:$0x3] %v554
                  %v556 = vld [vmem:[%s546 + $0x18] sm:$0x3]
                  %557 = vst [vmem:[%s547 + $0x8] sm:$0x3] %v556
                  %v558 = vld [vmem:[%s546 + $0x1e] sm:$0x3]
                  %559 = vst [vmem:[%s547 + $0xa] sm:$0x3] %v558
                  %v560 = vld [vmem:[%s546 + $0x24] sm:$0x3]
                  %561 = vst [vmem:[%s547 + $0xc] sm:$0x3] %v560
                  %v562 = vld [vmem:[%s546 + $0x2a] sm:$0x3]
                  %563 = vst [vmem:[%s547 + $0xe] sm:$0x3] %v562
                $region153: #{llama_forward.12} parent=140 // loop_footer
                  %s545 = sadd.s32 1, %s541
                $region154: #{llama_forward.12} parent=140 // loop_footer_branch
                  %540 = sbr.rel target = $region150
                $region155: #{llama_forward.12} parent=140 // loop_exit
                  _
              $region141: #{llama_forward.12} parent=125 // pred_fallthru
                _
            $region126: #{llama_forward.12} parent=121 // pred_fallthru
              _
            // Predicated region
            $region127: #{llama_forward.12} parent=121 // pred_check
              _
            $region128: #{llama_forward.12} parent=121 // pred_check_branch
              %503 = sbr.rel (0) target = $region130
            $region129: #{llama_forward.12} parent=121 // pred_region
              loop: start=0, step=1, limit=1
              $region131: #{llama_forward.12} parent=129 // loop_pre_header
                _
              $region132: #{llama_forward.12} parent=129 // loop_header
                %s506 = sphi 0, %s510
                %p507 = scmp.ge.s32.totalorder %s506, 1
                %s511 = sphi %s497, %s497
                %s512 = sphi %s488, %s488
              $region133: #{llama_forward.12} parent=129 // loop_header_branch
                %509 = sbr.rel (%p507) target = $region137
              $region134: #{llama_forward.12} parent=129 // loop_body
                %v513 = vld [vmem:[%s511] sm:$0x3]
                %514 = vst [vmem:[%s512] sm:$0x3] %v513
                %v515 = vld [vmem:[%s511 + $0x6] sm:$0x3]
                %516 = vst [vmem:[%s512 + $0x2] sm:$0x3] %v515
                %v517 = vld [vmem:[%s511 + $0xc] sm:$0x3]
                %518 = vst [vmem:[%s512 + $0x4] sm:$0x3] %v517
                %v519 = vld [vmem:[%s511 + $0x12] sm:$0x3]
                %520 = vst [vmem:[%s512 + $0x6] sm:$0x3] %v519
                %v521 = vld [vmem:[%s511 + $0x18] sm:$0x3]
                %522 = vst [vmem:[%s512 + $0x8] sm:$0x3] %v521
                %v523 = vld [vmem:[%s511 + $0x1e] sm:$0x3]
                %524 = vst [vmem:[%s512 + $0xa] sm:$0x3] %v523
                %v525 = vld [vmem:[%s511 + $0x24] sm:$0x3]
                %526 = vst [vmem:[%s512 + $0xc] sm:$0x3] %v525
                %v527 = vld [vmem:[%s511 + $0x2a] sm:$0x3]
                %528 = vst [vmem:[%s512 + $0xe] sm:$0x3] %v527
              $region135: #{llama_forward.12} parent=129 // loop_footer
                %s510 = sadd.s32 1, %s506
              $region136: #{llama_forward.12} parent=129 // loop_footer_branch
                %505 = sbr.rel target = $region132
              $region137: #{llama_forward.12} parent=129 // loop_exit
                _
            $region130: #{llama_forward.12} parent=121 // pred_fallthru
              _
          $region122: #{llama_forward.12} parent=117 // pred_fallthru
            _
          %564 = vnop
        $region118: #{llama_forward.12} parent=31 // pred_fallthru
          _
      $region32: #{llama_forward.12} parent=5 // pred_fallthru
        _
      %p565 = scmp.le.s32.totalorder 1, %s13
      %p566 = scmp.lt.s32.totalorder %s13, 3
      %p567 = pnand %p565, %p566
      %p568 = pneg %p567
      // Predicated region
      $region156: #{llama_forward.12} parent=5 // pred_check
        _
      $region157: #{llama_forward.12} parent=5 // pred_check_branch
        %570 = sbr.rel (%p567) target = $region159
      $region158: #{llama_forward.12} parent=5 // pred_region
        %s571 = ssub.s32 %s13, 1
        %s572 = sand.u32 %s159, 1
        %s573 = sand.u32 %s159, 1
        %s574 = smul.addr %s573, 16
        %s575 = scalar_lea.vmem [#allocation6], %s574
        // Predicated region
        $region160: #{llama_forward.12} parent=158 // pred_check
          %p576 = pneg %p172
        $region161: #{llama_forward.12} parent=158 // pred_check_branch
          %578 = sbr.rel (%p576) target = $region163
        $region162: #{llama_forward.12} parent=158 // pred_region
          _
        $region163: #{llama_forward.12} parent=158 // pred_fallthru
          _
        %s579 = sand.u32 %s191, 1
        %s580 = sand.u32 %s191, 1
        %s581 = smul.addr %s580, 16
        %s582 = scalar_lea.vmem [#allocation7], %s581
        // Predicated region
        $region164: #{llama_forward.12} parent=158 // pred_check
          %p583 = pneg %p204
        $region165: #{llama_forward.12} parent=158 // pred_check_branch
          %585 = sbr.rel (%p583) target = $region167
        $region166: #{llama_forward.12} parent=158 // pred_region
          _
        $region167: #{llama_forward.12} parent=158 // pred_fallthru
          _
        %s586 = sand.u32 %s223, 1
        %s587 = sand.u32 %s223, 1
        %s588 = smul.addr %s587, 16
        %s589 = scalar_lea.vmem [#allocation8], %s588
        // Predicated region
        $region168: #{llama_forward.12} parent=158 // pred_check
          %p590 = pneg %p236
        $region169: #{llama_forward.12} parent=158 // pred_check_branch
          %592 = sbr.rel (%p590) target = $region171
        $region170: #{llama_forward.12} parent=158 // pred_region
          _
        $region171: #{llama_forward.12} parent=158 // pred_fallthru
          _
        %p593 = scmp.lt.s32.totalorder %s24, 0
        %s594 = scalar_select %p593, %s24, 0
        %s595 = smul.addr %s594, 8
        %s596 = scalar_lea.vmem %s0, %s595
        %p597 = pneg %p58
        %p598 = pneg %p55
        %p599 = scmp.lt.s32.totalorder %s24, 0
        %s600 = scalar_select %p599, %s24, 0
        %s601 = smul.addr %s600, 8
        %s602 = scalar_lea.vmem %s1, %s601
        %p603 = pneg %p84
        %p604 = pneg %p81
        %p605 = scmp.lt.s32.totalorder %s24, %s25
        %s606 = scalar_select %p605, %s24, %s25
        %p607 = scmp.lt.s32.totalorder %s606, 0
        %s608 = scalar_select %p607, %s606, 0
        %s609 = smul.addr %s608, 8
        %s610 = scalar_lea.vmem %s2, %s609
        %p611 = pneg %p114
        %p612 = pneg %p111
        %p613 = scmp.lt.s32.totalorder %s24, %s25
        %s614 = scalar_select %p613, %s24, %s25
        %p615 = scmp.lt.s32.totalorder %s614, 0
        %s616 = scalar_select %p615, %s614, 0
        %s617 = smul.addr %s616, 8
        %s618 = scalar_lea.vmem %s3, %s617
        %p619 = pneg %p144
        %p620 = pneg %p141
        %s621 = sand.u32 %s159, 1
        %s622 = sand.u32 %s159, 1
        %s623 = smul.addr %s622, 16
        %s624 = scalar_lea.vmem [#allocation6], %s623
        %p625 = pneg %p172
        %p626 = pneg %p169
        %s627 = sand.u32 %s191, 1
        %s628 = sand.u32 %s191, 1
        %s629 = smul.addr %s628, 16
        %s630 = scalar_lea.vmem [#allocation7], %s629
        %p631 = pneg %p204
        %p632 = pneg %p201
        %s633 = sand.u32 %s223, 1
        %s634 = sand.u32 %s223, 1
        %s635 = smul.addr %s634, 16
        %s636 = scalar_lea.vmem [#allocation8], %s635
        %p637 = pneg %p236
        %p638 = pneg %p233
        %p639 = pneg %p264
        %p640 = pneg %p261
        %s641 = smul.u32 8, %s24
        %p642 = scmp.lt.s32.totalorder %s23, 1
        %s643 = scalar_select %p642, %s23, 1
        %p644 = scmp.lt.s32.totalorder %s641, 7
        %s645 = scalar_select %p644, %s641, 7
        %s646 = smul.addr %s643, 8
        %s647 = sadd.s32 %s645, %s646
        %s648 = smul.addr %s647, 2
        %s649 = scalar_lea.vmem %s7, %s648
        %p650 = scmp.lt.s32.totalorder %s24, 0
        %s651 = scalar_select %p650, %s24, 0
        %s652 = smul.addr %s651, 8
        %s653 = scalar_lea.vmem %s0, %s652
        %p654 = scmp.lt.s32.totalorder %s24, 0
        %s655 = scalar_select %p654, %s24, 0
        %s656 = smul.addr %s655, 8
        %s657 = scalar_lea.vmem %s1, %s656
        %p658 = scmp.lt.s32.totalorder %s24, %s25
        %s659 = scalar_select %p658, %s24, %s25
        %p660 = scmp.lt.s32.totalorder %s659, 0
        %s661 = scalar_select %p660, %s659, 0
        %s662 = smul.addr %s661, 8
        %s663 = scalar_lea.vmem %s2, %s662
        %p664 = scmp.lt.s32.totalorder %s24, %s25
        %s665 = scalar_select %p664, %s24, %s25
        %p666 = scmp.lt.s32.totalorder %s24, %s25
        %s667 = scalar_select %p666, %s24, %s25
        %p668 = scmp.lt.s32.totalorder %s667, 0
        %s669 = scalar_select %p668, %s667, 0
        %s670 = smul.addr %s669, 8
        %s671 = scalar_lea.vmem %s3, %s670
        %p672 = scmp.lt.s32.totalorder %s24, %s25
        %s673 = scalar_select %p672, %s24, %s25
        %s674 = smul.u32 8, %s24
        %p675 = scmp.lt.s32.totalorder %s24, %s25
        %s676 = scalar_select %p675, %s24, %s25
        %s677 = smul.u32 8, %s676
        %p678 = scmp.lt.s32.totalorder %s24, %s25
        %s679 = scalar_select %p678, %s24, %s25
        %s680 = smul.u32 8, %s679
        %s681 = smul.u32 8, %s24
        %p682 = scmp.lt.s32.totalorder %s23, 1
        %s683 = scalar_select %p682, %s23, 1
        %p684 = scmp.lt.s32.totalorder %s681, 7
        %s685 = scalar_select %p684, %s681, 7
        %s686 = smul.addr %s683, 8
        %s687 = sadd.s32 %s685, %s686
        %s688 = smul.addr %s687, 2
        %s689 = scalar_lea.vmem %s7, %s688
        %s690 = smul.u32 8, %s24
        %p692 = scmp.eq.s32.totalorder %s25, 0
        // Predicated region
        $region172: #{llama_forward.12} parent=158 // pred_check
          %p693 = pneg %p692
        $region173: #{llama_forward.12} parent=158 // pred_check_branch
          %695 = sbr.rel (%p693) target = $region175
        $region174: #{llama_forward.12} parent=158 // pred_region
          %vm696 = vcmask 7168
          %697 = vst.msk [vmem:[#allocation3] sm:$0xff] %vm696, -1e+30
          %698 = vst.msk [vmem:[#allocation3 + $0x8] sm:$0xff] %vm696, -1e+30
          %699 = vst.msk [vmem:[#allocation3 + $0x10] sm:$0xff] %vm696, -1e+30
          %700 = vst.msk [vmem:[#allocation3 + $0x18] sm:$0xff] %vm696, -1e+30
          %701 = vst.msk [vmem:[#allocation4] sm:$0xff] %vm696, 0.0
          %702 = vst.msk [vmem:[#allocation4 + $0x8] sm:$0xff] %vm696, 0.0
          %703 = vst.msk [vmem:[#allocation4 + $0x10] sm:$0xff] %vm696, 0.0
          %704 = vst.msk [vmem:[#allocation4 + $0x18] sm:$0xff] %vm696, 0.0
          %vm705 = vcmask 64512
          %706 = vst.msk [vmem:[#allocation5] sm:$0xff] %vm705, 0.0
          %707 = vst.msk [vmem:[#allocation5 + $0x8] sm:$0xff] %vm705, 0.0
          %708 = vst.msk [vmem:[#allocation5 + $0x10] sm:$0xff] %vm705, 0.0
          %709 = vst.msk [vmem:[#allocation5 + $0x18] sm:$0xff] %vm705, 0.0
          %v710 = vld [vmem:[%s575] sm:$0x3]
          %v711 = vld [vmem:[%s575 + $0x2] sm:$0x3]
          %v712 = vld [vmem:[%s575 + $0x4] sm:$0x3]
          %v713 = vld [vmem:[%s575 + $0x6] sm:$0x3]
          %v714 = vld [vmem:[%s575 + $0x8] sm:$0x3]
          %v715 = vld [vmem:[%s575 + $0xa] sm:$0x3]
          %v716 = vld [vmem:[%s575 + $0xc] sm:$0x3]
          %v717 = vld [vmem:[%s575 + $0xe] sm:$0x3]
          %v718 = vunpack.c.l.bf16 %v710
          %v719 = vunpack.c.l.bf16 %v711
          %v720 = vunpack.c.l.bf16 %v712
          %v721 = vunpack.c.l.bf16 %v713
          %v722 = vunpack.c.l.bf16 %v714
          %v723 = vunpack.c.l.bf16 %v715
          %v724 = vunpack.c.l.bf16 %v716
          %v725 = vunpack.c.l.bf16 %v717
          %v726 = vld [vmem:[%s653] sm:$0xff]
          %v728 = vcombine.high %v726, %v726
          %v730 = vunpack.c.l.s4 1966171168
          %v731 = vunpack.c.0.s8 %v730
          %v732 = vlaneseq
          %v733 = vshrl.u32 %v732, 7
          %v734 = vsub.s32 %v731, %v733
          %v735 = vrot.slane %v726, %v734
          %v737 = vunpack.c.l.s4 1966171168
          %v738 = vunpack.c.0.s8 %v737
          %v739 = vlaneseq
          %v740 = vshrl.u32 %v739, 7
          %v741 = vsub.s32 %v738, %v740
          %v742 = vrot.slane %v728, %v741
          %v743 = vcombine.high %v735, %v735
          %v744 = vcombine.high %v742, %v742
          %v746 = vunpack.c.l.s4 1966171168
          %v747 = vunpack.c.0.s8 %v746
          %v748 = vlaneseq
          %v749 = vshrl.u32 %v748, 7
          %v750 = vsub.s32 %v747, %v749
          %v751 = vrot.slane %v735, %v750
          %v753 = vunpack.c.l.s4 1966171168
          %v754 = vunpack.c.0.s8 %v753
          %v755 = vlaneseq
          %v756 = vshrl.u32 %v755, 7
          %v757 = vsub.s32 %v754, %v756
          %v758 = vrot.slane %v742, %v757
          %v760 = vunpack.c.l.s4 1966171168
          %v761 = vunpack.c.0.s8 %v760
          %v762 = vlaneseq
          %v763 = vshrl.u32 %v762, 7
          %v764 = vsub.s32 %v761, %v763
          %v765 = vrot.slane %v743, %v764
          %v767 = vunpack.c.l.s4 1966171168
          %v768 = vunpack.c.0.s8 %v767
          %v769 = vlaneseq
          %v770 = vshrl.u32 %v769, 7
          %v771 = vsub.s32 %v768, %v770
          %v772 = vrot.slane %v744, %v771
          %v773 = vcombine.high %v751, %v751
          %v774 = vcombine.high %v758, %v758
          %v775 = vcombine.high %v765, %v765
          %v776 = vcombine.high %v772, %v772
          %v777 = vld [vmem:[%s657] sm:$0xff]
          %v779 = vcombine.high %v777, %v777
          %v781 = vunpack.c.l.s4 1966171168
          %v782 = vunpack.c.0.s8 %v781
          %v783 = vlaneseq
          %v784 = vshrl.u32 %v783, 7
          %v785 = vsub.s32 %v782, %v784
          %v786 = vrot.slane %v777, %v785
          %v788 = vunpack.c.l.s4 1966171168
          %v789 = vunpack.c.0.s8 %v788
          %v790 = vlaneseq
          %v791 = vshrl.u32 %v790, 7
          %v792 = vsub.s32 %v789, %v791
          %v793 = vrot.slane %v779, %v792
          %v794 = vcombine.high %v786, %v786
          %v795 = vcombine.high %v793, %v793
          %v797 = vunpack.c.l.s4 1966171168
          %v798 = vunpack.c.0.s8 %v797
          %v799 = vlaneseq
          %v800 = vshrl.u32 %v799, 7
          %v801 = vsub.s32 %v798, %v800
          %v802 = vrot.slane %v786, %v801
          %v804 = vunpack.c.l.s4 1966171168
          %v805 = vunpack.c.0.s8 %v804
          %v806 = vlaneseq
          %v807 = vshrl.u32 %v806, 7
          %v808 = vsub.s32 %v805, %v807
          %v809 = vrot.slane %v793, %v808
          %v811 = vunpack.c.l.s4 1966171168
          %v812 = vunpack.c.0.s8 %v811
          %v813 = vlaneseq
          %v814 = vshrl.u32 %v813, 7
          %v815 = vsub.s32 %v812, %v814
          %v816 = vrot.slane %v794, %v815
          %v818 = vunpack.c.l.s4 1966171168
          %v819 = vunpack.c.0.s8 %v818
          %v820 = vlaneseq
          %v821 = vshrl.u32 %v820, 7
          %v822 = vsub.s32 %v819, %v821
          %v823 = vrot.slane %v795, %v822
          %v824 = vcombine.high %v802, %v802
          %v825 = vcombine.high %v809, %v809
          %v826 = vcombine.high %v816, %v816
          %v827 = vcombine.high %v823, %v823
          %v828 = vlaneseq
          %v829 = vshrl.u32 %v828, 7
          %v830 = vsub.s32 0, %v829
          %v831 = vrot.slane %v751, %v830
          %v832 = vlaneseq
          %v833 = vshrl.u32 %v832, 7
          %v834 = vsub.s32 0, %v833
          %v835 = vrot.slane %v765, %v834
          %v836 = vlaneseq
          %v837 = vshrl.u32 %v836, 7
          %v838 = vsub.s32 0, %v837
          %v839 = vrot.slane %v773, %v838
          %v840 = vlaneseq
          %v841 = vshrl.u32 %v840, 7
          %v842 = vsub.s32 0, %v841
          %v843 = vrot.slane %v775, %v842
          %v844 = vlaneseq
          %v845 = vshrl.u32 %v844, 7
          %v846 = vsub.s32 0, %v845
          %v847 = vrot.slane %v758, %v846
          %v848 = vlaneseq
          %v849 = vshrl.u32 %v848, 7
          %v850 = vsub.s32 0, %v849
          %v851 = vrot.slane %v772, %v850
          %v852 = vlaneseq
          %v853 = vshrl.u32 %v852, 7
          %v854 = vsub.s32 0, %v853
          %v855 = vrot.slane %v774, %v854
          %v856 = vlaneseq
          %v857 = vshrl.u32 %v856, 7
          %v858 = vsub.s32 0, %v857
          %v859 = vrot.slane %v776, %v858
          %v868 = vmul.f32 %v718, %v831
          %v869 = vmul.f32 %v719, %v835
          %v870 = vmul.f32 %v720, %v839
          %v871 = vmul.f32 %v721, %v843
          %v872 = vmul.f32 %v722, %v847
          %v873 = vmul.f32 %v723, %v851
          %v874 = vmul.f32 %v724, %v855
          %v875 = vmul.f32 %v725, %v859
          %v876 = vlaneseq
          %v877 = vshrl.u32 %v876, 7
          %v878 = vsub.s32 0, %v877
          %v879 = vrot.slane %v802, %v878
          %v880 = vlaneseq
          %v881 = vshrl.u32 %v880, 7
          %v882 = vsub.s32 0, %v881
          %v883 = vrot.slane %v816, %v882
          %v884 = vlaneseq
          %v885 = vshrl.u32 %v884, 7
          %v886 = vsub.s32 0, %v885
          %v887 = vrot.slane %v824, %v886
          %v888 = vlaneseq
          %v889 = vshrl.u32 %v888, 7
          %v890 = vsub.s32 0, %v889
          %v891 = vrot.slane %v826, %v890
          %v892 = vlaneseq
          %v893 = vshrl.u32 %v892, 7
          %v894 = vsub.s32 0, %v893
          %v895 = vrot.slane %v809, %v894
          %v896 = vlaneseq
          %v897 = vshrl.u32 %v896, 7
          %v898 = vsub.s32 0, %v897
          %v899 = vrot.slane %v823, %v898
          %v900 = vlaneseq
          %v901 = vshrl.u32 %v900, 7
          %v902 = vsub.s32 0, %v901
          %v903 = vrot.slane %v825, %v902
          %v904 = vlaneseq
          %v905 = vshrl.u32 %v904, 7
          %v906 = vsub.s32 0, %v905
          %v907 = vrot.slane %v827, %v906
          %916 = vrot.lane.b32.xlu0 %v879, 4
          %v917 = vpop.permute.xlu0 %916
          %918 = vrot.lane.b32.xlu0 %v883, 4
          %v919 = vpop.permute.xlu0 %918
          %920 = vrot.lane.b32.xlu0 %v887, 4
          %v921 = vpop.permute.xlu0 %920
          %922 = vrot.lane.b32.xlu0 %v891, 4
          %v923 = vpop.permute.xlu0 %922
          %924 = vrot.lane.b32.xlu0 %v895, 4
          %v925 = vpop.permute.xlu0 %924
          %926 = vrot.lane.b32.xlu0 %v899, 4
          %v927 = vpop.permute.xlu0 %926
          %928 = vrot.lane.b32.xlu0 %v903, 4
          %v929 = vpop.permute.xlu0 %928
          %930 = vrot.lane.b32.xlu0 %v907, 4
          %v931 = vpop.permute.xlu0 %930
          %v940 = vmul.f32 %v718, %v917
          %v941 = vmul.f32 %v719, %v919
          %v942 = vmul.f32 %v720, %v921
          %v943 = vmul.f32 %v721, %v923
          %v944 = vmul.f32 %v722, %v925
          %v945 = vmul.f32 %v723, %v927
          %v946 = vmul.f32 %v724, %v929
          %v947 = vmul.f32 %v725, %v931
          %956 = vrot.lane.b32.xlu0 %v940, 124
          %v957 = vpop.permute.xlu0 %956
          %958 = vrot.lane.b32.xlu0 %v941, 124
          %v959 = vpop.permute.xlu0 %958
          %960 = vrot.lane.b32.xlu0 %v942, 124
          %v961 = vpop.permute.xlu0 %960
          %962 = vrot.lane.b32.xlu0 %v943, 124
          %v963 = vpop.permute.xlu0 %962
          %964 = vrot.lane.b32.xlu0 %v944, 124
          %v965 = vpop.permute.xlu0 %964
          %966 = vrot.lane.b32.xlu0 %v945, 124
          %v967 = vpop.permute.xlu0 %966
          %968 = vrot.lane.b32.xlu0 %v946, 124
          %v969 = vpop.permute.xlu0 %968
          %970 = vrot.lane.b32.xlu0 %v947, 124
          %v971 = vpop.permute.xlu0 %970
          %v980 = vsub.f32 %v868, %v957
          %v981 = vsub.f32 %v869, %v959
          %v982 = vsub.f32 %v870, %v961
          %v983 = vsub.f32 %v871, %v963
          %v984 = vsub.f32 %v872, %v965
          %v985 = vsub.f32 %v873, %v967
          %v986 = vsub.f32 %v874, %v969
          %v987 = vsub.f32 %v875, %v971
          %988 = vrot.lane.b32.xlu0 %v831, 4
          %v989 = vpop.permute.xlu0 %988
          %990 = vrot.lane.b32.xlu0 %v835, 4
          %v991 = vpop.permute.xlu0 %990
          %992 = vrot.lane.b32.xlu0 %v839, 4
          %v993 = vpop.permute.xlu0 %992
          %994 = vrot.lane.b32.xlu0 %v843, 4
          %v995 = vpop.permute.xlu0 %994
          %996 = vrot.lane.b32.xlu0 %v847, 4
          %v997 = vpop.permute.xlu0 %996
          %998 = vrot.lane.b32.xlu0 %v851, 4
          %v999 = vpop.permute.xlu0 %998
          %1000 = vrot.lane.b32.xlu0 %v855, 4
          %v1001 = vpop.permute.xlu0 %1000
          %1002 = vrot.lane.b32.xlu0 %v859, 4
          %v1003 = vpop.permute.xlu0 %1002
          %v1012 = vmul.f32 %v718, %v989
          %v1013 = vmul.f32 %v719, %v991
          %v1014 = vmul.f32 %v720, %v993
          %v1015 = vmul.f32 %v721, %v995
          %v1016 = vmul.f32 %v722, %v997
          %v1017 = vmul.f32 %v723, %v999
          %v1018 = vmul.f32 %v724, %v1001
          %v1019 = vmul.f32 %v725, %v1003
          %v1020 = vmul.f32 %v718, %v879
          %v1021 = vmul.f32 %v719, %v883
          %v1022 = vmul.f32 %v720, %v887
          %v1023 = vmul.f32 %v721, %v891
          %v1024 = vmul.f32 %v722, %v895
          %v1025 = vmul.f32 %v723, %v899
          %v1026 = vmul.f32 %v724, %v903
          %v1027 = vmul.f32 %v725, %v907
          %1036 = vrot.lane.b32.xlu0 %v1020, 4
          %v1037 = vpop.permute.xlu0 %1036
          %1038 = vrot.lane.b32.xlu0 %v1021, 4
          %v1039 = vpop.permute.xlu0 %1038
          %1040 = vrot.lane.b32.xlu0 %v1022, 4
          %v1041 = vpop.permute.xlu0 %1040
          %1042 = vrot.lane.b32.xlu0 %v1023, 4
          %v1043 = vpop.permute.xlu0 %1042
          %1044 = vrot.lane.b32.xlu0 %v1024, 4
          %v1045 = vpop.permute.xlu0 %1044
          %1046 = vrot.lane.b32.xlu0 %v1025, 4
          %v1047 = vpop.permute.xlu0 %1046
          %1048 = vrot.lane.b32.xlu0 %v1026, 4
          %v1049 = vpop.permute.xlu0 %1048
          %1050 = vrot.lane.b32.xlu0 %v1027, 4
          %v1051 = vpop.permute.xlu0 %1050
          %v1060 = vadd.f32 %v1012, %v1037
          %v1061 = vadd.f32 %v1013, %v1039
          %v1062 = vadd.f32 %v1014, %v1041
          %v1063 = vadd.f32 %v1015, %v1043
          %v1064 = vadd.f32 %v1016, %v1045
          %v1065 = vadd.f32 %v1017, %v1047
          %v1066 = vadd.f32 %v1018, %v1049
          %v1067 = vadd.f32 %v1019, %v1051
          %vm1068 = vcmask 31744
          %v1069 = vsel %vm1068, %v980, %v1060
          %v1070 = vsel %vm1068, %v981, %v1061
          %v1071 = vsel %vm1068, %v982, %v1062
          %v1072 = vsel %vm1068, %v983, %v1063
          %v1073 = vsel %vm1068, %v984, %v1064
          %v1074 = vsel %vm1068, %v985, %v1065
          %v1075 = vsel %vm1068, %v986, %v1066
          %v1076 = vsel %vm1068, %v987, %v1067
          %v1077 = vmul.f32 %v1069, 0.35355338
          %v1078 = vmul.f32 %v1070, 0.35355338
          %v1079 = vmul.f32 %v1071, 0.35355338
          %v1080 = vmul.f32 %v1072, 0.35355338
          %v1081 = vmul.f32 %v1073, 0.35355338
          %v1082 = vmul.f32 %v1074, 0.35355338
          %v1083 = vmul.f32 %v1075, 0.35355338
          %v1084 = vmul.f32 %v1076, 0.35355338
          %v1085 = vpack.c.bf16 %v1077, %v1077
          %v1086 = vpack.c.bf16 %v1078, %v1078
          %v1087 = vpack.c.bf16 %v1079, %v1079
          %v1088 = vpack.c.bf16 %v1080, %v1080
          %v1089 = vpack.c.bf16 %v1081, %v1081
          %v1090 = vpack.c.bf16 %v1082, %v1082
          %v1091 = vpack.c.bf16 %v1083, %v1083
          %v1092 = vpack.c.bf16 %v1084, %v1084
          %vm1093 = vcmask 58368
          %1094 = vst.msk [vmem:[#allocation2] sm:$0x3] %vm1093, %v1085
          %1095 = vst.msk [vmem:[#allocation2 + $0x2] sm:$0x3] %vm1093, %v1086
          %1096 = vst.msk [vmem:[#allocation2 + $0x4] sm:$0x3] %vm1093, %v1087
          %1097 = vst.msk [vmem:[#allocation2 + $0x6] sm:$0x3] %vm1093, %v1088
          %1098 = vst.msk [vmem:[#allocation2 + $0x8] sm:$0x3] %vm1093, %v1089
          %1099 = vst.msk [vmem:[#allocation2 + $0xa] sm:$0x3] %vm1093, %v1090
          %1100 = vst.msk [vmem:[#allocation2 + $0xc] sm:$0x3] %vm1093, %v1091
          %1101 = vst.msk [vmem:[#allocation2 + $0xe] sm:$0x3] %vm1093, %v1092
        $region175: #{llama_forward.12} parent=158 // pred_fallthru
          _
        %p1102 = scmp.lt.s32.totalorder %s25, %s24
        %s1103 = sadd.s32 %s25, 1
        %s1104 = smul.u32 %s1103, 8
        %p1105 = scmp.le.s32.totalorder %s1104, 8
        %p1106 = pnand %p1102, %p1105
        %p1107 = pneg %p1106
        // Predicated region
        $region176: #{llama_forward.12} parent=158 // pred_check
          _
        $region177: #{llama_forward.12} parent=158 // pred_check_branch
          %1109 = sbr.rel (%p1106) target = $region179
        $region178: #{llama_forward.12} parent=158 // pred_region
          %v1110 = vld [vmem:[%s582] sm:$0x3]
          %v1111 = vld [vmem:[%s582 + $0x2] sm:$0x3]
          %v1112 = vld [vmem:[%s582 + $0x4] sm:$0x3]
          %v1113 = vld [vmem:[%s582 + $0x6] sm:$0x3]
          %v1114 = vld [vmem:[%s582 + $0x8] sm:$0x3]
          %v1115 = vld [vmem:[%s582 + $0xa] sm:$0x3]
          %v1116 = vld [vmem:[%s582 + $0xc] sm:$0x3]
          %v1117 = vld [vmem:[%s582 + $0xe] sm:$0x3]
          %v1118 = vunpack.c.l.bf16 %v1110
          %v1119 = vunpack.c.l.bf16 %v1111
          %v1120 = vunpack.c.l.bf16 %v1112
          %v1121 = vunpack.c.l.bf16 %v1113
          %v1122 = vunpack.c.l.bf16 %v1114
          %v1123 = vunpack.c.l.bf16 %v1115
          %v1124 = vunpack.c.l.bf16 %v1116
          %v1125 = vunpack.c.l.bf16 %v1117
          %v1126 = vld [vmem:[%s663] sm:$0xff]
          %v1128 = vcombine.high %v1126, %v1126
          %v1130 = vunpack.c.l.s4 1966171168
          %v1131 = vunpack.c.0.s8 %v1130
          %v1132 = vlaneseq
          %v1133 = vshrl.u32 %v1132, 7
          %v1134 = vsub.s32 %v1131, %v1133
          %v1135 = vrot.slane %v1126, %v1134
          %v1137 = vunpack.c.l.s4 1966171168
          %v1138 = vunpack.c.0.s8 %v1137
          %v1139 = vlaneseq
          %v1140 = vshrl.u32 %v1139, 7
          %v1141 = vsub.s32 %v1138, %v1140
          %v1142 = vrot.slane %v1128, %v1141
          %v1143 = vcombine.high %v1135, %v1135
          %v1144 = vcombine.high %v1142, %v1142
          %v1146 = vunpack.c.l.s4 1966171168
          %v1147 = vunpack.c.0.s8 %v1146
          %v1148 = vlaneseq
          %v1149 = vshrl.u32 %v1148, 7
          %v1150 = vsub.s32 %v1147, %v1149
          %v1151 = vrot.slane %v1135, %v1150
          %v1153 = vunpack.c.l.s4 1966171168
          %v1154 = vunpack.c.0.s8 %v1153
          %v1155 = vlaneseq
          %v1156 = vshrl.u32 %v1155, 7
          %v1157 = vsub.s32 %v1154, %v1156
          %v1158 = vrot.slane %v1142, %v1157
          %v1160 = vunpack.c.l.s4 1966171168
          %v1161 = vunpack.c.0.s8 %v1160
          %v1162 = vlaneseq
          %v1163 = vshrl.u32 %v1162, 7
          %v1164 = vsub.s32 %v1161, %v1163
          %v1165 = vrot.slane %v1143, %v1164
          %v1167 = vunpack.c.l.s4 1966171168
          %v1168 = vunpack.c.0.s8 %v1167
          %v1169 = vlaneseq
          %v1170 = vshrl.u32 %v1169, 7
          %v1171 = vsub.s32 %v1168, %v1170
          %v1172 = vrot.slane %v1144, %v1171
          %v1173 = vcombine.high %v1151, %v1151
          %v1174 = vcombine.high %v1158, %v1158
          %v1175 = vcombine.high %v1165, %v1165
          %v1176 = vcombine.high %v1172, %v1172
          %v1177 = vld [vmem:[%s671] sm:$0xff]
          %v1179 = vcombine.high %v1177, %v1177
          %v1181 = vunpack.c.l.s4 1966171168
          %v1182 = vunpack.c.0.s8 %v1181
          %v1183 = vlaneseq
          %v1184 = vshrl.u32 %v1183, 7
          %v1185 = vsub.s32 %v1182, %v1184
          %v1186 = vrot.slane %v1177, %v1185
          %v1188 = vunpack.c.l.s4 1966171168
          %v1189 = vunpack.c.0.s8 %v1188
          %v1190 = vlaneseq
          %v1191 = vshrl.u32 %v1190, 7
          %v1192 = vsub.s32 %v1189, %v1191
          %v1193 = vrot.slane %v1179, %v1192
          %v1194 = vcombine.high %v1186, %v1186
          %v1195 = vcombine.high %v1193, %v1193
          %v1197 = vunpack.c.l.s4 1966171168
          %v1198 = vunpack.c.0.s8 %v1197
          %v1199 = vlaneseq
          %v1200 = vshrl.u32 %v1199, 7
          %v1201 = vsub.s32 %v1198, %v1200
          %v1202 = vrot.slane %v1186, %v1201
          %v1204 = vunpack.c.l.s4 1966171168
          %v1205 = vunpack.c.0.s8 %v1204
          %v1206 = vlaneseq
          %v1207 = vshrl.u32 %v1206, 7
          %v1208 = vsub.s32 %v1205, %v1207
          %v1209 = vrot.slane %v1193, %v1208
          %v1211 = vunpack.c.l.s4 1966171168
          %v1212 = vunpack.c.0.s8 %v1211
          %v1213 = vlaneseq
          %v1214 = vshrl.u32 %v1213, 7
          %v1215 = vsub.s32 %v1212, %v1214
          %v1216 = vrot.slane %v1194, %v1215
          %v1218 = vunpack.c.l.s4 1966171168
          %v1219 = vunpack.c.0.s8 %v1218
          %v1220 = vlaneseq
          %v1221 = vshrl.u32 %v1220, 7
          %v1222 = vsub.s32 %v1219, %v1221
          %v1223 = vrot.slane %v1195, %v1222
          %v1224 = vcombine.high %v1202, %v1202
          %v1225 = vcombine.high %v1209, %v1209
          %v1226 = vcombine.high %v1216, %v1216
          %v1227 = vcombine.high %v1223, %v1223
          %v1228 = vlaneseq
          %v1229 = vshrl.u32 %v1228, 7
          %v1230 = vsub.s32 0, %v1229
          %v1231 = vrot.slane %v1151, %v1230
          %v1232 = vlaneseq
          %v1233 = vshrl.u32 %v1232, 7
          %v1234 = vsub.s32 0, %v1233
          %v1235 = vrot.slane %v1165, %v1234
          %v1236 = vlaneseq
          %v1237 = vshrl.u32 %v1236, 7
          %v1238 = vsub.s32 0, %v1237
          %v1239 = vrot.slane %v1173, %v1238
          %v1240 = vlaneseq
          %v1241 = vshrl.u32 %v1240, 7
          %v1242 = vsub.s32 0, %v1241
          %v1243 = vrot.slane %v1175, %v1242
          %v1244 = vlaneseq
          %v1245 = vshrl.u32 %v1244, 7
          %v1246 = vsub.s32 0, %v1245
          %v1247 = vrot.slane %v1158, %v1246
          %v1248 = vlaneseq
          %v1249 = vshrl.u32 %v1248, 7
          %v1250 = vsub.s32 0, %v1249
          %v1251 = vrot.slane %v1172, %v1250
          %v1252 = vlaneseq
          %v1253 = vshrl.u32 %v1252, 7
          %v1254 = vsub.s32 0, %v1253
          %v1255 = vrot.slane %v1174, %v1254
          %v1256 = vlaneseq
          %v1257 = vshrl.u32 %v1256, 7
          %v1258 = vsub.s32 0, %v1257
          %v1259 = vrot.slane %v1176, %v1258
          %v1268 = vmul.f32 %v1118, %v1231
          %v1269 = vmul.f32 %v1119, %v1235
          %v1270 = vmul.f32 %v1120, %v1239
          %v1271 = vmul.f32 %v1121, %v1243
          %v1272 = vmul.f32 %v1122, %v1247
          %v1273 = vmul.f32 %v1123, %v1251
          %v1274 = vmul.f32 %v1124, %v1255
          %v1275 = vmul.f32 %v1125, %v1259
          %v1276 = vlaneseq
          %v1277 = vshrl.u32 %v1276, 7
          %v1278 = vsub.s32 0, %v1277
          %v1279 = vrot.slane %v1202, %v1278
          %v1280 = vlaneseq
          %v1281 = vshrl.u32 %v1280, 7
          %v1282 = vsub.s32 0, %v1281
          %v1283 = vrot.slane %v1216, %v1282
          %v1284 = vlaneseq
          %v1285 = vshrl.u32 %v1284, 7
          %v1286 = vsub.s32 0, %v1285
          %v1287 = vrot.slane %v1224, %v1286
          %v1288 = vlaneseq
          %v1289 = vshrl.u32 %v1288, 7
          %v1290 = vsub.s32 0, %v1289
          %v1291 = vrot.slane %v1226, %v1290
          %v1292 = vlaneseq
          %v1293 = vshrl.u32 %v1292, 7
          %v1294 = vsub.s32 0, %v1293
          %v1295 = vrot.slane %v1209, %v1294
          %v1296 = vlaneseq
          %v1297 = vshrl.u32 %v1296, 7
          %v1298 = vsub.s32 0, %v1297
          %v1299 = vrot.slane %v1223, %v1298
          %v1300 = vlaneseq
          %v1301 = vshrl.u32 %v1300, 7
          %v1302 = vsub.s32 0, %v1301
          %v1303 = vrot.slane %v1225, %v1302
          %v1304 = vlaneseq
          %v1305 = vshrl.u32 %v1304, 7
          %v1306 = vsub.s32 0, %v1305
          %v1307 = vrot.slane %v1227, %v1306
          %1316 = vrot.lane.b32.xlu0 %v1279, 4
          %v1317 = vpop.permute.xlu0 %1316
          %1318 = vrot.lane.b32.xlu0 %v1283, 4
          %v1319 = vpop.permute.xlu0 %1318
          %1320 = vrot.lane.b32.xlu0 %v1287, 4
          %v1321 = vpop.permute.xlu0 %1320
          %1322 = vrot.lane.b32.xlu0 %v1291, 4
          %v1323 = vpop.permute.xlu0 %1322
          %1324 = vrot.lane.b32.xlu0 %v1295, 4
          %v1325 = vpop.permute.xlu0 %1324
          %1326 = vrot.lane.b32.xlu0 %v1299, 4
          %v1327 = vpop.permute.xlu0 %1326
          %1328 = vrot.lane.b32.xlu0 %v1303, 4
          %v1329 = vpop.permute.xlu0 %1328
          %1330 = vrot.lane.b32.xlu0 %v1307, 4
          %v1331 = vpop.permute.xlu0 %1330
          %v1340 = vmul.f32 %v1118, %v1317
          %v1341 = vmul.f32 %v1119, %v1319
          %v1342 = vmul.f32 %v1120, %v1321
          %v1343 = vmul.f32 %v1121, %v1323
          %v1344 = vmul.f32 %v1122, %v1325
          %v1345 = vmul.f32 %v1123, %v1327
          %v1346 = vmul.f32 %v1124, %v1329
          %v1347 = vmul.f32 %v1125, %v1331
          %1356 = vrot.lane.b32.xlu0 %v1340, 124
          %v1357 = vpop.permute.xlu0 %1356
          %1358 = vrot.lane.b32.xlu0 %v1341, 124
          %v1359 = vpop.permute.xlu0 %1358
          %1360 = vrot.lane.b32.xlu0 %v1342, 124
          %v1361 = vpop.permute.xlu0 %1360
          %1362 = vrot.lane.b32.xlu0 %v1343, 124
          %v1363 = vpop.permute.xlu0 %1362
          %1364 = vrot.lane.b32.xlu0 %v1344, 124
          %v1365 = vpop.permute.xlu0 %1364
          %1366 = vrot.lane.b32.xlu0 %v1345, 124
          %v1367 = vpop.permute.xlu0 %1366
          %1368 = vrot.lane.b32.xlu0 %v1346, 124
          %v1369 = vpop.permute.xlu0 %1368
          %1370 = vrot.lane.b32.xlu0 %v1347, 124
          %v1371 = vpop.permute.xlu0 %1370
          %v1380 = vsub.f32 %v1268, %v1357
          %v1381 = vsub.f32 %v1269, %v1359
          %v1382 = vsub.f32 %v1270, %v1361
          %v1383 = vsub.f32 %v1271, %v1363
          %v1384 = vsub.f32 %v1272, %v1365
          %v1385 = vsub.f32 %v1273, %v1367
          %v1386 = vsub.f32 %v1274, %v1369
          %v1387 = vsub.f32 %v1275, %v1371
          %1388 = vrot.lane.b32.xlu0 %v1231, 4
          %v1389 = vpop.permute.xlu0 %1388
          %1390 = vrot.lane.b32.xlu0 %v1235, 4
          %v1391 = vpop.permute.xlu0 %1390
          %1392 = vrot.lane.b32.xlu0 %v1239, 4
          %v1393 = vpop.permute.xlu0 %1392
          %1394 = vrot.lane.b32.xlu0 %v1243, 4
          %v1395 = vpop.permute.xlu0 %1394
          %1396 = vrot.lane.b32.xlu0 %v1247, 4
          %v1397 = vpop.permute.xlu0 %1396
          %1398 = vrot.lane.b32.xlu0 %v1251, 4
          %v1399 = vpop.permute.xlu0 %1398
          %1400 = vrot.lane.b32.xlu0 %v1255, 4
          %v1401 = vpop.permute.xlu0 %1400
          %1402 = vrot.lane.b32.xlu0 %v1259, 4
          %v1403 = vpop.permute.xlu0 %1402
          %v1412 = vmul.f32 %v1118, %v1389
          %v1413 = vmul.f32 %v1119, %v1391
          %v1414 = vmul.f32 %v1120, %v1393
          %v1415 = vmul.f32 %v1121, %v1395
          %v1416 = vmul.f32 %v1122, %v1397
          %v1417 = vmul.f32 %v1123, %v1399
          %v1418 = vmul.f32 %v1124, %v1401
          %v1419 = vmul.f32 %v1125, %v1403
          %v1420 = vmul.f32 %v1118, %v1279
          %v1421 = vmul.f32 %v1119, %v1283
          %v1422 = vmul.f32 %v1120, %v1287
          %v1423 = vmul.f32 %v1121, %v1291
          %v1424 = vmul.f32 %v1122, %v1295
          %v1425 = vmul.f32 %v1123, %v1299
          %v1426 = vmul.f32 %v1124, %v1303
          %v1427 = vmul.f32 %v1125, %v1307
          %1436 = vrot.lane.b32.xlu0 %v1420, 4
          %v1437 = vpop.permute.xlu0 %1436
          %1438 = vrot.lane.b32.xlu0 %v1421, 4
          %v1439 = vpop.permute.xlu0 %1438
          %1440 = vrot.lane.b32.xlu0 %v1422, 4
          %v1441 = vpop.permute.xlu0 %1440
          %1442 = vrot.lane.b32.xlu0 %v1423, 4
          %v1443 = vpop.permute.xlu0 %1442
          %1444 = vrot.lane.b32.xlu0 %v1424, 4
          %v1445 = vpop.permute.xlu0 %1444
          %1446 = vrot.lane.b32.xlu0 %v1425, 4
          %v1447 = vpop.permute.xlu0 %1446
          %1448 = vrot.lane.b32.xlu0 %v1426, 4
          %v1449 = vpop.permute.xlu0 %1448
          %1450 = vrot.lane.b32.xlu0 %v1427, 4
          %v1451 = vpop.permute.xlu0 %1450
          %v1460 = vadd.f32 %v1412, %v1437
          %v1461 = vadd.f32 %v1413, %v1439
          %v1462 = vadd.f32 %v1414, %v1441
          %v1463 = vadd.f32 %v1415, %v1443
          %v1464 = vadd.f32 %v1416, %v1445
          %v1465 = vadd.f32 %v1417, %v1447
          %v1466 = vadd.f32 %v1418, %v1449
          %v1467 = vadd.f32 %v1419, %v1451
          %vm1468 = vcmask 31744
          %v1469 = vsel %vm1468, %v1380, %v1460
          %v1470 = vsel %vm1468, %v1381, %v1461
          %v1471 = vsel %vm1468, %v1382, %v1462
          %v1472 = vsel %vm1468, %v1383, %v1463
          %v1473 = vsel %vm1468, %v1384, %v1464
          %v1474 = vsel %vm1468, %v1385, %v1465
          %v1475 = vsel %vm1468, %v1386, %v1466
          %v1476 = vsel %vm1468, %v1387, %v1467
          %v1477 = vpack.c.bf16 %v1469, %v1469
          %v1478 = vpack.c.bf16 %v1470, %v1470
          %v1479 = vpack.c.bf16 %v1471, %v1471
          %v1480 = vpack.c.bf16 %v1472, %v1472
          %v1481 = vpack.c.bf16 %v1473, %v1473
          %v1482 = vpack.c.bf16 %v1474, %v1474
          %v1483 = vpack.c.bf16 %v1475, %v1475
          %v1484 = vpack.c.bf16 %v1476, %v1476
          %v1485 = vld [vmem:[#allocation2] sm:$0x3]
          %v1486 = vld [vmem:[#allocation2 + $0x2] sm:$0x3]
          %v1487 = vld [vmem:[#allocation2 + $0x4] sm:$0x3]
          %v1488 = vld [vmem:[#allocation2 + $0x6] sm:$0x3]
          %v1489 = vld [vmem:[#allocation2 + $0x8] sm:$0x3]
          %v1490 = vld [vmem:[#allocation2 + $0xa] sm:$0x3]
          %v1491 = vld [vmem:[#allocation2 + $0xc] sm:$0x3]
          %v1492 = vld [vmem:[#allocation2 + $0xe] sm:$0x3]
          %v1493 = vcombine.low %v1485, %v1487
          %v1495 = vunpack.c.l.s4 1934713408
          %v1496 = vunpack.c.0.s8 %v1495
          %v1497 = vlaneseq
          %v1498 = vshrl.u32 %v1497, 7
          %v1499 = vsub.s32 %v1496, %v1498
          %v1500 = vrot.slane %v1493, %v1499
          %v1501 = vcombine.high %v1500, 0
          %v1502 = vcombine.low %v1486, %v1488
          %v1504 = vunpack.c.l.s4 1934713408
          %v1505 = vunpack.c.0.s8 %v1504
          %v1506 = vlaneseq
          %v1507 = vshrl.u32 %v1506, 7
          %v1508 = vsub.s32 %v1505, %v1507
          %v1509 = vrot.slane %v1502, %v1508
          %v1510 = vcombine.high %v1509, 0
          %v1511 = vcombine.low %v1489, %v1491
          %v1513 = vunpack.c.l.s4 1934713408
          %v1514 = vunpack.c.0.s8 %v1513
          %v1515 = vlaneseq
          %v1516 = vshrl.u32 %v1515, 7
          %v1517 = vsub.s32 %v1514, %v1516
          %v1518 = vrot.slane %v1511, %v1517
          %v1519 = vcombine.high %v1518, 0
          %v1520 = vcombine.low %v1490, %v1492
          %v1522 = vunpack.c.l.s4 1934713408
          %v1523 = vunpack.c.0.s8 %v1522
          %v1524 = vlaneseq
          %v1525 = vshrl.u32 %v1524, 7
          %v1526 = vsub.s32 %v1523, %v1525
          %v1527 = vrot.slane %v1520, %v1526
          %v1528 = vcombine.high %v1527, 0
          %v1531 = vpack.i.b16 %v1509, %v1500
          %v1532 = vshrl.u32 %v1500, 16
          %v1533 = vshrl.u32 %v1509, 16
          %v1534 = vpack.i.b16 %v1533, %v1532
          %v1537 = vpack.i.b16 %v1510, %v1501
          %v1538 = vshrl.u32 %v1501, 16
          %v1539 = vshrl.u32 %v1510, 16
          %v1540 = vpack.i.b16 %v1539, %v1538
          %v1543 = vpack.i.b16 %v1527, %v1518
          %v1544 = vshrl.u32 %v1518, 16
          %v1545 = vshrl.u32 %v1527, 16
          %v1546 = vpack.i.b16 %v1545, %v1544
          %v1549 = vpack.i.b16 %v1528, %v1519
          %v1550 = vshrl.u32 %v1519, 16
          %v1551 = vshrl.u32 %v1528, 16
          %v1552 = vpack.i.b16 %v1551, %v1550
          %1553 = vxpose.xlu0.c.b16.start [1/8] %v1477, 128
          %1554 = vxpose.xlu0.c.b16.cont [2/8] 0, 128
          %1555 = vxpose.xlu0.c.b16.cont [3/8] 0, 128
          %1556 = vxpose.xlu0.c.b16.cont [4/8] 0, 128
          %1557 = vxpose.xlu0.c.b16.cont [5/8] 0, 128
          %1558 = vxpose.xlu0.c.b16.cont [6/8] 0, 128
          %1559 = vxpose.xlu0.c.b16.cont [7/8] 0, 128
          %1560 = vxpose.xlu0.c.b16.end [8/8] 0, 128
          %v1561 = vpop.trf.xlu0
          %v1562 = vpop.trf.xlu0
          %v1563 = vpop.trf.xlu0
          %v1564 = vpop.trf.xlu0
          %v1565 = vpop.trf.xlu0
          %v1566 = vpop.trf.xlu0
          %v1567 = vpop.trf.xlu0
          %v1568 = vpop.trf.xlu0
          %1569 = vxpose.xlu0.c.b16.start [1/8] %v1478, 128
          %1570 = vxpose.xlu0.c.b16.cont [2/8] 0, 128
          %1571 = vxpose.xlu0.c.b16.cont [3/8] 0, 128
          %1572 = vxpose.xlu0.c.b16.cont [4/8] 0, 128
          %1573 = vxpose.xlu0.c.b16.cont [5/8] 0, 128
          %1574 = vxpose.xlu0.c.b16.cont [6/8] 0, 128
          %1575 = vxpose.xlu0.c.b16.cont [7/8] 0, 128
          %1576 = vxpose.xlu0.c.b16.end [8/8] 0, 128
          %v1577 = vpop.trf.xlu0
          %v1578 = vpop.trf.xlu0
          %v1579 = vpop.trf.xlu0
          %v1580 = vpop.trf.xlu0
          %v1581 = vpop.trf.xlu0
          %v1582 = vpop.trf.xlu0
          %v1583 = vpop.trf.xlu0
          %v1584 = vpop.trf.xlu0
          %1585 = vxpose.xlu0.c.b16.start [1/8] %v1479, 128
          %1586 = vxpose.xlu0.c.b16.cont [2/8] 0, 128
          %1587 = vxpose.xlu0.c.b16.cont [3/8] 0, 128
          %1588 = vxpose.xlu0.c.b16.cont [4/8] 0, 128
          %1589 = vxpose.xlu0.c.b16.cont [5/8] 0, 128
          %1590 = vxpose.xlu0.c.b16.cont [6/8] 0, 128
          %1591 = vxpose.xlu0.c.b16.cont [7/8] 0, 128
          %1592 = vxpose.xlu0.c.b16.end [8/8] 0, 128
          %v1593 = vpop.trf.xlu0
          %v1594 = vpop.trf.xlu0
          %v1595 = vpop.trf.xlu0
          %v1596 = vpop.trf.xlu0
          %v1597 = vpop.trf.xlu0
          %v1598 = vpop.trf.xlu0
          %v1599 = vpop.trf.xlu0
          %v1600 = vpop.trf.xlu0
          %1601 = vxpose.xlu0.c.b16.start [1/8] %v1480, 128
          %1602 = vxpose.xlu0.c.b16.cont [2/8] 0, 128
          %1603 = vxpose.xlu0.c.b16.cont [3/8] 0, 128
          %1604 = vxpose.xlu0.c.b16.cont [4/8] 0, 128
          %1605 = vxpose.xlu0.c.b16.cont [5/8] 0, 128
          %1606 = vxpose.xlu0.c.b16.cont [6/8] 0, 128
          %1607 = vxpose.xlu0.c.b16.cont [7/8] 0, 128
          %1608 = vxpose.xlu0.c.b16.end [8/8] 0, 128
          %v1609 = vpop.trf.xlu0
          %v1610 = vpop.trf.xlu0
          %v1611 = vpop.trf.xlu0
          %v1612 = vpop.trf.xlu0
          %v1613 = vpop.trf.xlu0
          %v1614 = vpop.trf.xlu0
          %v1615 = vpop.trf.xlu0
          %v1616 = vpop.trf.xlu0
          %1617 = vxpose.xlu0.c.b16.start [1/8] %v1481, 128
          %1618 = vxpose.xlu0.c.b16.cont [2/8] 0, 128
          %1619 = vxpose.xlu0.c.b16.cont [3/8] 0, 128
          %1620 = vxpose.xlu0.c.b16.cont [4/8] 0, 128
          %1621 = vxpose.xlu0.c.b16.cont [5/8] 0, 128
          %1622 = vxpose.xlu0.c.b16.cont [6/8] 0, 128
          %1623 = vxpose.xlu0.c.b16.cont [7/8] 0, 128
          %1624 = vxpose.xlu0.c.b16.end [8/8] 0, 128
          %v1625 = vpop.trf.xlu0
          %v1626 = vpop.trf.xlu0
          %v1627 = vpop.trf.xlu0
          %v1628 = vpop.trf.xlu0
          %v1629 = vpop.trf.xlu0
          %v1630 = vpop.trf.xlu0
          %v1631 = vpop.trf.xlu0
          %v1632 = vpop.trf.xlu0
          %1633 = vxpose.xlu0.c.b16.start [1/8] %v1482, 128
          %1634 = vxpose.xlu0.c.b16.cont [2/8] 0, 128
          %1635 = vxpose.xlu0.c.b16.cont [3/8] 0, 128
          %1636 = vxpose.xlu0.c.b16.cont [4/8] 0, 128
          %1637 = vxpose.xlu0.c.b16.cont [5/8] 0, 128
          %1638 = vxpose.xlu0.c.b16.cont [6/8] 0, 128
          %1639 = vxpose.xlu0.c.b16.cont [7/8] 0, 128
          %1640 = vxpose.xlu0.c.b16.end [8/8] 0, 128
          %v1641 = vpop.trf.xlu0
          %v1642 = vpop.trf.xlu0
          %v1643 = vpop.trf.xlu0
          %v1644 = vpop.trf.xlu0
          %v1645 = vpop.trf.xlu0
          %v1646 = vpop.trf.xlu0
          %v1647 = vpop.trf.xlu0
          %v1648 = vpop.trf.xlu0
          %1649 = vxpose.xlu0.c.b16.start [1/8] %v1483, 128
          %1650 = vxpose.xlu0.c.b16.cont [2/8] 0, 128
          %1651 = vxpose.xlu0.c.b16.cont [3/8] 0, 128
          %1652 = vxpose.xlu0.c.b16.cont [4/8] 0, 128
          %1653 = vxpose.xlu0.c.b16.cont [5/8] 0, 128
          %1654 = vxpose.xlu0.c.b16.cont [6/8] 0, 128
          %1655 = vxpose.xlu0.c.b16.cont [7/8] 0, 128
          %1656 = vxpose.xlu0.c.b16.end [8/8] 0, 128
          %v1657 = vpop.trf.xlu0
          %v1658 = vpop.trf.xlu0
          %v1659 = vpop.trf.xlu0
          %v1660 = vpop.trf.xlu0
          %v1661 = vpop.trf.xlu0
          %v1662 = vpop.trf.xlu0
          %v1663 = vpop.trf.xlu0
          %v1664 = vpop.trf.xlu0
          %1665 = vxpose.xlu0.c.b16.start [1/8] %v1484, 128
          %1666 = vxpose.xlu0.c.b16.cont [2/8] 0, 128
          %1667 = vxpose.xlu0.c.b16.cont [3/8] 0, 128
          %1668 = vxpose.xlu0.c.b16.cont [4/8] 0, 128
          %1669 = vxpose.xlu0.c.b16.cont [5/8] 0, 128
          %1670 = vxpose.xlu0.c.b16.cont [6/8] 0, 128
          %1671 = vxpose.xlu0.c.b16.cont [7/8] 0, 128
          %1672 = vxpose.xlu0.c.b16.end [8/8] 0, 128
          %v1673 = vpop.trf.xlu0
          %v1674 = vpop.trf.xlu0
          %v1675 = vpop.trf.xlu0
          %v1676 = vpop.trf.xlu0
          %v1677 = vpop.trf.xlu0
          %v1678 = vpop.trf.xlu0
          %v1679 = vpop.trf.xlu0
          %v1680 = vpop.trf.xlu0
          %v1681 = vcombine.low %v1561, %v1625
          %v1683 = vunpack.c.l.s4 1983009808
          %v1684 = vunpack.c.0.s8 %v1683
          %v1685 = vlaneseq
          %v1686 = vshrl.u32 %v1685, 7
          %v1687 = vsub.s32 %v1684, %v1686
          %v1688 = vrot.slane %v1681, %v1687
          %v1689 = vcombine.low %v1593, %v1657
          %v1691 = vunpack.c.l.s4 1983009808
          %v1692 = vunpack.c.0.s8 %v1691
          %v1693 = vlaneseq
          %v1694 = vshrl.u32 %v1693, 7
          %v1695 = vsub.s32 %v1692, %v1694
          %v1696 = vrot.slane %v1689, %v1695
          %v1697 = vcombine.low %v1688, %v1696
          %v1698 = vcombine.high %v1688, %v1696
          %v1700 = vunpack.c.l.s4 1934713408
          %v1701 = vunpack.c.0.s8 %v1700
          %v1702 = vlaneseq
          %v1703 = vshrl.u32 %v1702, 7
          %v1704 = vsub.s32 %v1701, %v1703
          %v1705 = vrot.slane %v1697, %v1704
          %v1707 = vunpack.c.l.s4 1934713408
          %v1708 = vunpack.c.0.s8 %v1707
          %v1709 = vlaneseq
          %v1710 = vshrl.u32 %v1709, 7
          %v1711 = vsub.s32 %v1708, %v1710
          %v1712 = vrot.slane %v1698, %v1711
          %v1713 = vcombine.high %v1705, 0
          %v1714 = vcombine.high %v1712, 0
          %v1715 = vcombine.low %v1577, %v1641
          %v1717 = vunpack.c.l.s4 1983009808
          %v1718 = vunpack.c.0.s8 %v1717
          %v1719 = vlaneseq
          %v1720 = vshrl.u32 %v1719, 7
          %v1721 = vsub.s32 %v1718, %v1720
          %v1722 = vrot.slane %v1715, %v1721
          %v1723 = vcombine.low %v1609, %v1673
          %v1725 = vunpack.c.l.s4 1983009808
          %v1726 = vunpack.c.0.s8 %v1725
          %v1727 = vlaneseq
          %v1728 = vshrl.u32 %v1727, 7
          %v1729 = vsub.s32 %v1726, %v1728
          %v1730 = vrot.slane %v1723, %v1729
          %v1731 = vcombine.low %v1722, %v1730
          %v1732 = vcombine.high %v1722, %v1730
          %v1734 = vunpack.c.l.s4 1934713408
          %v1735 = vunpack.c.0.s8 %v1734
          %v1736 = vlaneseq
          %v1737 = vshrl.u32 %v1736, 7
          %v1738 = vsub.s32 %v1735, %v1737
          %v1739 = vrot.slane %v1731, %v1738
          %v1741 = vunpack.c.l.s4 1934713408
          %v1742 = vunpack.c.0.s8 %v1741
          %v1743 = vlaneseq
          %v1744 = vshrl.u32 %v1743, 7
          %v1745 = vsub.s32 %v1742, %v1744
          %v1746 = vrot.slane %v1732, %v1745
          %v1747 = vcombine.high %v1739, 0
          %v1748 = vcombine.high %v1746, 0
          %v1751 = vpack.i.b16 %v1739, %v1705
          %v1753 = vshrl.u32 %v1705, 16
          %v1754 = vshrl.u32 %v1739, 16
          %v1755 = vpack.i.b16 %v1754, %v1753
          %v1759 = vpack.i.b16 %v1747, %v1713
          %v1761 = vshrl.u32 %v1713, 16
          %v1762 = vshrl.u32 %v1747, 16
          %v1763 = vpack.i.b16 %v1762, %v1761
          %v1767 = vpack.i.b16 %v1746, %v1712
          %v1769 = vshrl.u32 %v1712, 16
          %v1770 = vshrl.u32 %v1746, 16
          %v1771 = vpack.i.b16 %v1770, %v1769
          %v1775 = vpack.i.b16 %v1748, %v1714
          %v1777 = vshrl.u32 %v1714, 16
          %v1778 = vshrl.u32 %v1748, 16
          %v1779 = vpack.i.b16 %v1778, %v1777
          %1781 = vxpose.xlu0.c.b16.start [1/8] %v1751, 128
          %1782 = vxpose.xlu0.c.b16.cont [2/8] 0, 128
          %1783 = vxpose.xlu0.c.b16.cont [3/8] 0, 128
          %1784 = vxpose.xlu0.c.b16.cont [4/8] 0, 128
          %1785 = vxpose.xlu0.c.b16.cont [5/8] 0, 128
          %1786 = vxpose.xlu0.c.b16.cont [6/8] 0, 128
          %1787 = vxpose.xlu0.c.b16.cont [7/8] 0, 128
          %1788 = vxpose.xlu0.c.b16.end [8/8] 0, 128
          %v1789 = vpop.trf.xlu0
          %v1790 = vpop.trf.xlu0
          %v1791 = vpop.trf.xlu0
          %v1792 = vpop.trf.xlu0
          %v1793 = vpop.trf.xlu0
          %v1794 = vpop.trf.xlu0
          %v1795 = vpop.trf.xlu0
          %v1796 = vpop.trf.xlu0
          %1797 = vxpose.xlu0.c.b16.start [1/8] %v1755, 128
          %1798 = vxpose.xlu0.c.b16.cont [2/8] 0, 128
          %1799 = vxpose.xlu0.c.b16.cont [3/8] 0, 128
          %1800 = vxpose.xlu0.c.b16.cont [4/8] 0, 128
          %1801 = vxpose.xlu0.c.b16.cont [5/8] 0, 128
          %1802 = vxpose.xlu0.c.b16.cont [6/8] 0, 128
          %1803 = vxpose.xlu0.c.b16.cont [7/8] 0, 128
          %1804 = vxpose.xlu0.c.b16.end [8/8] 0, 128
          %v1805 = vpop.trf.xlu0
          %v1806 = vpop.trf.xlu0
          %v1807 = vpop.trf.xlu0
          %v1808 = vpop.trf.xlu0
          %v1809 = vpop.trf.xlu0
          %v1810 = vpop.trf.xlu0
          %v1811 = vpop.trf.xlu0
          %v1812 = vpop.trf.xlu0
          %1813 = vxpose.xlu0.c.b16.start [1/8] %v1759, 128
          %1814 = vxpose.xlu0.c.b16.cont [2/8] 0, 128
          %1815 = vxpose.xlu0.c.b16.cont [3/8] 0, 128
          %1816 = vxpose.xlu0.c.b16.cont [4/8] 0, 128
          %1817 = vxpose.xlu0.c.b16.cont [5/8] 0, 128
          %1818 = vxpose.xlu0.c.b16.cont [6/8] 0, 128
          %1819 = vxpose.xlu0.c.b16.cont [7/8] 0, 128
          %1820 = vxpose.xlu0.c.b16.end [8/8] 0, 128
          %v1821 = vpop.trf.xlu0
          %v1822 = vpop.trf.xlu0
          %v1823 = vpop.trf.xlu0
          %v1824 = vpop.trf.xlu0
          %v1825 = vpop.trf.xlu0
          %v1826 = vpop.trf.xlu0
          %v1827 = vpop.trf.xlu0
          %v1828 = vpop.trf.xlu0
          %1829 = vxpose.xlu0.c.b16.start [1/8] %v1763, 128
          %1830 = vxpose.xlu0.c.b16.cont [2/8] 0, 128
          %1831 = vxpose.xlu0.c.b16.cont [3/8] 0, 128
          %1832 = vxpose.xlu0.c.b16.cont [4/8] 0, 128
          %1833 = vxpose.xlu0.c.b16.cont [5/8] 0, 128
          %1834 = vxpose.xlu0.c.b16.cont [6/8] 0, 128
          %1835 = vxpose.xlu0.c.b16.cont [7/8] 0, 128
          %1836 = vxpose.xlu0.c.b16.end [8/8] 0, 128
          %v1837 = vpop.trf.xlu0
          %v1838 = vpop.trf.xlu0
          %v1839 = vpop.trf.xlu0
          %v1840 = vpop.trf.xlu0
          %v1841 = vpop.trf.xlu0
          %v1842 = vpop.trf.xlu0
          %v1843 = vpop.trf.xlu0
          %v1844 = vpop.trf.xlu0
          %1845 = vxpose.xlu0.c.b16.start [1/8] %v1767, 128
          %1846 = vxpose.xlu0.c.b16.cont [2/8] 0, 128
          %1847 = vxpose.xlu0.c.b16.cont [3/8] 0, 128
          %1848 = vxpose.xlu0.c.b16.cont [4/8] 0, 128
          %1849 = vxpose.xlu0.c.b16.cont [5/8] 0, 128
          %1850 = vxpose.xlu0.c.b16.cont [6/8] 0, 128
          %1851 = vxpose.xlu0.c.b16.cont [7/8] 0, 128
          %1852 = vxpose.xlu0.c.b16.end [8/8] 0, 128
          %v1853 = vpop.trf.xlu0
          %v1854 = vpop.trf.xlu0
          %v1855 = vpop.trf.xlu0
          %v1856 = vpop.trf.xlu0
          %v1857 = vpop.trf.xlu0
          %v1858 = vpop.trf.xlu0
          %v1859 = vpop.trf.xlu0
          %v1860 = vpop.trf.xlu0
          %1861 = vxpose.xlu0.c.b16.start [1/8] %v1771, 128
          %1862 = vxpose.xlu0.c.b16.cont [2/8] 0, 128
          %1863 = vxpose.xlu0.c.b16.cont [3/8] 0, 128
          %1864 = vxpose.xlu0.c.b16.cont [4/8] 0, 128
          %1865 = vxpose.xlu0.c.b16.cont [5/8] 0, 128
          %1866 = vxpose.xlu0.c.b16.cont [6/8] 0, 128
          %1867 = vxpose.xlu0.c.b16.cont [7/8] 0, 128
          %1868 = vxpose.xlu0.c.b16.end [8/8] 0, 128
          %v1869 = vpop.trf.xlu0
          %v1870 = vpop.trf.xlu0
          %v1871 = vpop.trf.xlu0
          %v1872 = vpop.trf.xlu0
          %v1873 = vpop.trf.xlu0
          %v1874 = vpop.trf.xlu0
          %v1875 = vpop.trf.xlu0
          %v1876 = vpop.trf.xlu0
          %1877 = vxpose.xlu0.c.b16.start [1/8] %v1775, 128
          %1878 = vxpose.xlu0.c.b16.cont [2/8] 0, 128
          %1879 = vxpose.xlu0.c.b16.cont [3/8] 0, 128
          %1880 = vxpose.xlu0.c.b16.cont [4/8] 0, 128
          %1881 = vxpose.xlu0.c.b16.cont [5/8] 0, 128
          %1882 = vxpose.xlu0.c.b16.cont [6/8] 0, 128
          %1883 = vxpose.xlu0.c.b16.cont [7/8] 0, 128
          %1884 = vxpose.xlu0.c.b16.end [8/8] 0, 128
          %v1885 = vpop.trf.xlu0
          %v1886 = vpop.trf.xlu0
          %v1887 = vpop.trf.xlu0
          %v1888 = vpop.trf.xlu0
          %v1889 = vpop.trf.xlu0
          %v1890 = vpop.trf.xlu0
          %v1891 = vpop.trf.xlu0
          %v1892 = vpop.trf.xlu0
          %1893 = vxpose.xlu0.c.b16.start [1/8] %v1779, 128
          %1894 = vxpose.xlu0.c.b16.cont [2/8] 0, 128
          %1895 = vxpose.xlu0.c.b16.cont [3/8] 0, 128
          %1896 = vxpose.xlu0.c.b16.cont [4/8] 0, 128
          %1897 = vxpose.xlu0.c.b16.cont [5/8] 0, 128
          %1898 = vxpose.xlu0.c.b16.cont [6/8] 0, 128
          %1899 = vxpose.xlu0.c.b16.cont [7/8] 0, 128
          %1900 = vxpose.xlu0.c.b16.end [8/8] 0, 128
          %v1901 = vpop.trf.xlu0
          %v1902 = vpop.trf.xlu0
          %v1903 = vpop.trf.xlu0
          %v1904 = vpop.trf.xlu0
          %v1905 = vpop.trf.xlu0
          %v1906 = vpop.trf.xlu0
          %v1907 = vpop.trf.xlu0
          %v1908 = vpop.trf.xlu0
          %v1909 = vcombine.low %v1789, %v1853
          %v1911 = vunpack.c.l.s4 1983009808
          %v1912 = vunpack.c.0.s8 %v1911
          %v1913 = vlaneseq
          %v1914 = vshrl.u32 %v1913, 7
          %v1915 = vsub.s32 %v1912, %v1914
          %v1916 = vrot.slane %v1909, %v1915
          %v1917 = vcombine.low %v1821, %v1885
          %v1919 = vunpack.c.l.s4 1983009808
          %v1920 = vunpack.c.0.s8 %v1919
          %v1921 = vlaneseq
          %v1922 = vshrl.u32 %v1921, 7
          %v1923 = vsub.s32 %v1920, %v1922
          %v1924 = vrot.slane %v1917, %v1923
          %v1925 = vcombine.low %v1916, %v1924
          %v1927 = vunpack.c.l.s4 1934713408
          %v1928 = vunpack.c.0.s8 %v1927
          %v1929 = vlaneseq
          %v1930 = vshrl.u32 %v1929, 7
          %v1931 = vsub.s32 %v1928, %v1930
          %v1932 = vrot.slane %v1925, %v1931
          %v1933 = vcombine.high %v1932, 0
          %v1934 = vcombine.low %v1805, %v1869
          %v1936 = vunpack.c.l.s4 1983009808
          %v1937 = vunpack.c.0.s8 %v1936
          %v1938 = vlaneseq
          %v1939 = vshrl.u32 %v1938, 7
          %v1940 = vsub.s32 %v1937, %v1939
          %v1941 = vrot.slane %v1934, %v1940
          %v1942 = vcombine.low %v1837, %v1901
          %v1944 = vunpack.c.l.s4 1983009808
          %v1945 = vunpack.c.0.s8 %v1944
          %v1946 = vlaneseq
          %v1947 = vshrl.u32 %v1946, 7
          %v1948 = vsub.s32 %v1945, %v1947
          %v1949 = vrot.slane %v1942, %v1948
          %v1950 = vcombine.low %v1941, %v1949
          %v1952 = vunpack.c.l.s4 1934713408
          %v1953 = vunpack.c.0.s8 %v1952
          %v1954 = vlaneseq
          %v1955 = vshrl.u32 %v1954, 7
          %v1956 = vsub.s32 %v1953, %v1955
          %v1957 = vrot.slane %v1950, %v1956
          %v1958 = vcombine.high %v1957, 0
          %v1961 = vpack.i.b16 %v1957, %v1932
          %v1962 = vshrl.u32 %v1932, 16
          %v1963 = vshrl.u32 %v1957, 16
          %v1964 = vpack.i.b16 %v1963, %v1962
          %v1967 = vpack.i.b16 %v1958, %v1933
          %v1968 = vshrl.u32 %v1933, 16
          %v1969 = vshrl.u32 %v1958, 16
          %v1970 = vpack.i.b16 %v1969, %v1968
          %v1971 = vcombine.low %v1531, %v1543
          %v1973 = vunpack.c.l.s4 1983009808
          %v1974 = vunpack.c.0.s8 %v1973
          %v1975 = vlaneseq
          %v1976 = vshrl.u32 %v1975, 7
          %v1977 = vsub.s32 %v1974, %v1976
          %v1978 = vrot.slane %v1971, %v1977
          %vm1979 = vcmask 64512
          %v1981 = vsel %vm1979, %v1978, 0
          %vm1983 = vcmask 1043456
          %v1985 = vsel %vm1983, %v1961, 0
          %1987 = vmatprep.subr.bf16.mxu0 0
          %1988 = vmatpush1.bf16.msra.mxu0 %v1985
          %1989 = vmatprep.subr.bf16.mxu0 0
          %1990 = vmatpush1.bf16.msra.mxu0 0
          %1991 = vmatprep.subr.bf16.mxu0 0
          %1992 = vmatpush1.bf16.msra.mxu0 0
          %1993 = vmatprep.subr.bf16.mxu0 0
          %1994 = vmatpush1.bf16.msra.mxu0 0
          %1995 = vmatprep.subr.bf16.mxu0 0
          %1996 = vmatpush1.bf16.msra.mxu0 0
          %1997 = vmatprep.subr.bf16.mxu0 0
          %1998 = vmatpush1.bf16.msra.mxu0 0
          %1999 = vmatprep.subr.bf16.mxu0 0
          %2000 = vmatpush1.bf16.msra.mxu0 0
          %2001 = vmatprep.subr.bf16.mxu0 0
          %2002 = vmatpush1.bf16.msra.mxu0 0
          %2003 = vmatprep.subr.bf16.mxu0 0
          %2004 = vmatpush1.bf16.msra.mxu0 0
          %2005 = vmatprep.subr.bf16.mxu0 0
          %2006 = vmatpush1.bf16.msra.mxu0 0
          %2007 = vmatprep.subr.bf16.mxu0 0
          %2008 = vmatpush1.bf16.msra.mxu0 0
          %2009 = vmatprep.subr.bf16.mxu0 0
          %2010 = vmatpush1.bf16.msra.mxu0 0
          %2011 = vmatprep.subr.bf16.mxu0 0
          %2012 = vmatpush1.bf16.msra.mxu0 0
          %2013 = vmatprep.subr.bf16.mxu0 0
          %2014 = vmatpush1.bf16.msra.mxu0 0
          %2015 = vmatprep.subr.bf16.mxu0 0
          %2016 = vmatpush1.bf16.msra.mxu0 0
          %2017 = vmatprep.subr.bf16.mxu0 0
          %2018 = vmatpush1.bf16.msra.mxu0 0
          %2019 = vmatprep.mubr.bf16.mxu0 0
          %2020 = vmatmul.mubr.bf16.gmra.mrb[0].mxu0 %v1981
          %v2021 = vpop.f32.mrb[0].mxu0
          %v2022 = vadd.f32 0.0, %v2021
          %v2023 = vpop.f32.mrb[0].mxu0
          %v2024 = vpop.f32.mrb[0].mxu0
          %v2025 = vpop.f32.mrb[0].mxu0
          %2026 = vdwg.mxu0
          %v2027 = vcombine.low %v1534, %v1546
          %v2029 = vunpack.c.l.s4 1983009808
          %v2030 = vunpack.c.0.s8 %v2029
          %v2031 = vlaneseq
          %v2032 = vshrl.u32 %v2031, 7
          %v2033 = vsub.s32 %v2030, %v2032
          %v2034 = vrot.slane %v2027, %v2033
          %v2036 = vsel %vm1979, %v2034, 0
          %v2039 = vsel %vm1983, %v1964, 0
          %2041 = vmatprep.subr.bf16.mxu0 0
          %2042 = vmatpush1.bf16.msra.mxu0 %v2039
          %2043 = vmatprep.subr.bf16.mxu0 0
          %2044 = vmatpush1.bf16.msra.mxu0 0
          %2045 = vmatprep.subr.bf16.mxu0 0
          %2046 = vmatpush1.bf16.msra.mxu0 0
          %2047 = vmatprep.subr.bf16.mxu0 0
          %2048 = vmatpush1.bf16.msra.mxu0 0
          %2049 = vmatprep.subr.bf16.mxu0 0
          %2050 = vmatpush1.bf16.msra.mxu0 0
          %2051 = vmatprep.subr.bf16.mxu0 0
          %2052 = vmatpush1.bf16.msra.mxu0 0
          %2053 = vmatprep.subr.bf16.mxu0 0
          %2054 = vmatpush1.bf16.msra.mxu0 0
          %2055 = vmatprep.subr.bf16.mxu0 0
          %2056 = vmatpush1.bf16.msra.mxu0 0
          %2057 = vmatprep.subr.bf16.mxu0 0
          %2058 = vmatpush1.bf16.msra.mxu0 0
          %2059 = vmatprep.subr.bf16.mxu0 0
          %2060 = vmatpush1.bf16.msra.mxu0 0
          %2061 = vmatprep.subr.bf16.mxu0 0
          %2062 = vmatpush1.bf16.msra.mxu0 0
          %2063 = vmatprep.subr.bf16.mxu0 0
          %2064 = vmatpush1.bf16.msra.mxu0 0
          %2065 = vmatprep.subr.bf16.mxu0 0
          %2066 = vmatpush1.bf16.msra.mxu0 0
          %2067 = vmatprep.subr.bf16.mxu0 0
          %2068 = vmatpush1.bf16.msra.mxu0 0
          %2069 = vmatprep.subr.bf16.mxu0 0
          %2070 = vmatpush1.bf16.msra.mxu0 0
          %2071 = vmatprep.subr.bf16.mxu0 0
          %2072 = vmatpush1.bf16.msra.mxu0 0
          %2073 = vmatprep.mubr.bf16.mxu0 0
          %2074 = vmatmul.mubr.bf16.gmra.mrb[0].mxu0 %v2036
          %v2075 = vpop.f32.mrb[0].mxu0
          %v2076 = vadd.f32 0.0, %v2075
          %v2077 = vpop.f32.mrb[0].mxu0
          %v2078 = vpop.f32.mrb[0].mxu0
          %v2079 = vpop.f32.mrb[0].mxu0
          %2080 = vdwg.mxu0
          %v2081 = vcombine.low %v1537, %v1549
          %v2083 = vunpack.c.l.s4 1983009808
          %v2084 = vunpack.c.0.s8 %v2083
          %v2085 = vlaneseq
          %v2086 = vshrl.u32 %v2085, 7
          %v2087 = vsub.s32 %v2084, %v2086
          %v2088 = vrot.slane %v2081, %v2087
          %v2090 = vsel %vm1979, %v2088, 0
          %v2093 = vsel %vm1983, %v1967, 0
          %2095 = vmatprep.subr.bf16.mxu0 0
          %2096 = vmatpush1.bf16.msra.mxu0 %v2093
          %2097 = vmatprep.subr.bf16.mxu0 0
          %2098 = vmatpush1.bf16.msra.mxu0 0
          %2099 = vmatprep.subr.bf16.mxu0 0
          %2100 = vmatpush1.bf16.msra.mxu0 0
          %2101 = vmatprep.subr.bf16.mxu0 0
          %2102 = vmatpush1.bf16.msra.mxu0 0
          %2103 = vmatprep.subr.bf16.mxu0 0
          %2104 = vmatpush1.bf16.msra.mxu0 0
          %2105 = vmatprep.subr.bf16.mxu0 0
          %2106 = vmatpush1.bf16.msra.mxu0 0
          %2107 = vmatprep.subr.bf16.mxu0 0
          %2108 = vmatpush1.bf16.msra.mxu0 0
          %2109 = vmatprep.subr.bf16.mxu0 0
          %2110 = vmatpush1.bf16.msra.mxu0 0
          %2111 = vmatprep.subr.bf16.mxu0 0
          %2112 = vmatpush1.bf16.msra.mxu0 0
          %2113 = vmatprep.subr.bf16.mxu0 0
          %2114 = vmatpush1.bf16.msra.mxu0 0
          %2115 = vmatprep.subr.bf16.mxu0 0
          %2116 = vmatpush1.bf16.msra.mxu0 0
          %2117 = vmatprep.subr.bf16.mxu0 0
          %2118 = vmatpush1.bf16.msra.mxu0 0
          %2119 = vmatprep.subr.bf16.mxu0 0
          %2120 = vmatpush1.bf16.msra.mxu0 0
          %2121 = vmatprep.subr.bf16.mxu0 0
          %2122 = vmatpush1.bf16.msra.mxu0 0
          %2123 = vmatprep.subr.bf16.mxu0 0
          %2124 = vmatpush1.bf16.msra.mxu0 0
          %2125 = vmatprep.subr.bf16.mxu0 0
          %2126 = vmatpush1.bf16.msra.mxu0 0
          %2127 = vmatprep.mubr.bf16.mxu0 0
          %2128 = vmatmul.mubr.bf16.gmra.mrb[0].mxu0 %v2090
          %v2129 = vpop.f32.mrb[0].mxu0
          %v2130 = vadd.f32 0.0, %v2129
          %v2131 = vpop.f32.mrb[0].mxu0
          %v2132 = vpop.f32.mrb[0].mxu0
          %v2133 = vpop.f32.mrb[0].mxu0
          %2134 = vdwg.mxu0
          %v2135 = vcombine.low %v1540, %v1552
          %v2137 = vunpack.c.l.s4 1983009808
          %v2138 = vunpack.c.0.s8 %v2137
          %v2139 = vlaneseq
          %v2140 = vshrl.u32 %v2139, 7
          %v2141 = vsub.s32 %v2138, %v2140
          %v2142 = vrot.slane %v2135, %v2141
          %v2144 = vsel %vm1979, %v2142, 0
          %v2147 = vsel %vm1983, %v1970, 0
          %2149 = vmatprep.subr.bf16.mxu0 0
          %2150 = vmatpush1.bf16.msra.mxu0 %v2147
          %2151 = vmatprep.subr.bf16.mxu0 0
          %2152 = vmatpush1.bf16.msra.mxu0 0
          %2153 = vmatprep.subr.bf16.mxu0 0
          %2154 = vmatpush1.bf16.msra.mxu0 0
          %2155 = vmatprep.subr.bf16.mxu0 0
          %2156 = vmatpush1.bf16.msra.mxu0 0
          %2157 = vmatprep.subr.bf16.mxu0 0
          %2158 = vmatpush1.bf16.msra.mxu0 0
          %2159 = vmatprep.subr.bf16.mxu0 0
          %2160 = vmatpush1.bf16.msra.mxu0 0
          %2161 = vmatprep.subr.bf16.mxu0 0
          %2162 = vmatpush1.bf16.msra.mxu0 0
          %2163 = vmatprep.subr.bf16.mxu0 0
          %2164 = vmatpush1.bf16.msra.mxu0 0
          %2165 = vmatprep.subr.bf16.mxu0 0
          %2166 = vmatpush1.bf16.msra.mxu0 0
          %2167 = vmatprep.subr.bf16.mxu0 0
          %2168 = vmatpush1.bf16.msra.mxu0 0
          %2169 = vmatprep.subr.bf16.mxu0 0
          %2170 = vmatpush1.bf16.msra.mxu0 0
          %2171 = vmatprep.subr.bf16.mxu0 0
          %2172 = vmatpush1.bf16.msra.mxu0 0
          %2173 = vmatprep.subr.bf16.mxu0 0
          %2174 = vmatpush1.bf16.msra.mxu0 0
          %2175 = vmatprep.subr.bf16.mxu0 0
          %2176 = vmatpush1.bf16.msra.mxu0 0
          %2177 = vmatprep.subr.bf16.mxu0 0
          %2178 = vmatpush1.bf16.msra.mxu0 0
          %2179 = vmatprep.subr.bf16.mxu0 0
          %2180 = vmatpush1.bf16.msra.mxu0 0
          %2181 = vmatprep.mubr.bf16.mxu0 0
          %2182 = vmatmul.mubr.bf16.gmra.mrb[0].mxu0 %v2144
          %v2183 = vpop.f32.mrb[0].mxu0
          %v2184 = vadd.f32 0.0, %v2183
          %v2185 = vpop.f32.mrb[0].mxu0
          %v2186 = vpop.f32.mrb[0].mxu0
          %v2187 = vpop.f32.mrb[0].mxu0
          %2188 = vdwg.mxu0
          %v2189 = vld [vmem:[#allocation3] sm:$0xff]
          %v2190 = vld [vmem:[#allocation3 + $0x8] sm:$0xff]
          %v2191 = vld [vmem:[#allocation3 + $0x10] sm:$0xff]
          %v2192 = vld [vmem:[#allocation3 + $0x18] sm:$0xff]
          %v2193 = vsel %vm1979, %v2022, -inf
          %2194 = vmax.xlane.f32.xlu0 %v2193
          %v2195 = vpop.xlane.xlu0 %2194
          %v2196 = vsel %vm1979, %v2076, -inf
          %2197 = vmax.xlane.f32.xlu0 %v2196
          %v2198 = vpop.xlane.xlu0 %2197
          %v2199 = vsel %vm1979, %v2130, -inf
          %2200 = vmax.xlane.f32.xlu0 %v2199
          %v2201 = vpop.xlane.xlu0 %2200
          %v2202 = vsel %vm1979, %v2184, -inf
          %2203 = vmax.xlane.f32.xlu0 %v2202
          %v2204 = vpop.xlane.xlu0 %2203
          %v2205 = vmax.f32 %v2189, %v2195
          %v2206 = vmax.f32 %v2190, %v2198
          %v2207 = vmax.f32 %v2191, %v2201
          %v2208 = vmax.f32 %v2192, %v2204
          %v2209 = vsub.f32 %v2189, %v2205
          %v2210 = vsub.f32 %v2190, %v2206
          %v2211 = vsub.f32 %v2191, %v2207
          %v2212 = vsub.f32 %v2192, %v2208
          %v2213 = vmul.f32 %v2209, 1.442695
          %v2214 = vpow.pop %v2213
          %v2215 = vmul.f32 %v2210, 1.442695
          %v2216 = vpow.pop %v2215
          %v2217 = vmul.f32 %v2211, 1.442695
          %v2218 = vpow.pop %v2217
          %v2219 = vmul.f32 %v2212, 1.442695
          %v2220 = vpow.pop %v2219
          %2222 = vset.pattern.permute.xlu0 0
          %2223 = vperm.xlu0 %2222, %v2205
          %v2224 = vpop.permute.xlu0 %2223
          %2227 = vset.pattern.permute.xlu0 0
          %2228 = vperm.xlu0 %2227, %v2206
          %v2229 = vpop.permute.xlu0 %2228
          %2232 = vset.pattern.permute.xlu0 0
          %2233 = vperm.xlu0 %2232, %v2207
          %v2234 = vpop.permute.xlu0 %2233
          %2237 = vset.pattern.permute.xlu0 0
          %2238 = vperm.xlu0 %2237, %v2208
          %v2239 = vpop.permute.xlu0 %2238
          %v2241 = vsub.f32 %v2022, %v2224
          %v2242 = vsub.f32 %v2076, %v2229
          %v2243 = vsub.f32 %v2130, %v2234
          %v2244 = vsub.f32 %v2184, %v2239
          %v2245 = vmul.f32 %v2241, 1.442695
          %v2246 = vpow.pop %v2245
          %v2247 = vmul.f32 %v2242, 1.442695
          %v2248 = vpow.pop %v2247
          %v2249 = vmul.f32 %v2243, 1.442695
          %v2250 = vpow.pop %v2249
          %v2251 = vmul.f32 %v2244, 1.442695
          %v2252 = vpow.pop %v2251
          %v2253 = vld [vmem:[#allocation4] sm:$0xff]
          %v2254 = vld [vmem:[#allocation4 + $0x8] sm:$0xff]
          %v2255 = vld [vmem:[#allocation4 + $0x10] sm:$0xff]
          %v2256 = vld [vmem:[#allocation4 + $0x18] sm:$0xff]
          %v2257 = vmul.f32 %v2214, %v2253
          %v2258 = vmul.f32 %v2216, %v2254
          %v2259 = vmul.f32 %v2218, %v2255
          %v2260 = vmul.f32 %v2220, %v2256
          %v2261 = vsel %vm1979, %v2246, 0.0
          %2262 = vadd.xlane.f32.xlu0 %v2261
          %v2263 = vpop.xlane.xlu0 %2262
          %v2264 = vsel %vm1979, %v2248, 0.0
          %2265 = vadd.xlane.f32.xlu0 %v2264
          %v2266 = vpop.xlane.xlu0 %2265
          %v2267 = vsel %vm1979, %v2250, 0.0
          %2268 = vadd.xlane.f32.xlu0 %v2267
          %v2269 = vpop.xlane.xlu0 %2268
          %v2270 = vsel %vm1979, %v2252, 0.0
          %2271 = vadd.xlane.f32.xlu0 %v2270
          %v2272 = vpop.xlane.xlu0 %2271
          %v2273 = vadd.f32 %v2257, %v2263
          %v2274 = vadd.f32 %v2258, %v2266
          %v2275 = vadd.f32 %v2259, %v2269
          %v2276 = vadd.f32 %v2260, %v2272
          %vm2277 = vcmask 7168
          %2278 = vst.msk [vmem:[#allocation4] sm:$0xff] %vm2277, %v2273
          %2279 = vst.msk [vmem:[#allocation4 + $0x8] sm:$0xff] %vm2277, %v2274
          %2280 = vst.msk [vmem:[#allocation4 + $0x10] sm:$0xff] %vm2277, %v2275
          %2281 = vst.msk [vmem:[#allocation4 + $0x18] sm:$0xff] %vm2277, %v2276
          %v2282 = vpack.c.bf16 %v2246, %v2246
          %v2283 = vpack.c.bf16 %v2248, %v2248
          %v2284 = vpack.c.bf16 %v2250, %v2250
          %v2285 = vpack.c.bf16 %v2252, %v2252
          %v2286 = vld [vmem:[%s589] sm:$0x3]
          %v2287 = vld [vmem:[%s589 + $0x2] sm:$0x3]
          %v2288 = vld [vmem:[%s589 + $0x4] sm:$0x3]
          %v2289 = vld [vmem:[%s589 + $0x6] sm:$0x3]
          %v2290 = vld [vmem:[%s589 + $0x8] sm:$0x3]
          %v2291 = vld [vmem:[%s589 + $0xa] sm:$0x3]
          %v2292 = vld [vmem:[%s589 + $0xc] sm:$0x3]
          %v2293 = vld [vmem:[%s589 + $0xe] sm:$0x3]
          %v2294 = vcombine.low %v2286, %v2288
          %v2296 = vunpack.c.l.s4 1934713408
          %v2297 = vunpack.c.0.s8 %v2296
          %v2298 = vlaneseq
          %v2299 = vshrl.u32 %v2298, 7
          %v2300 = vsub.s32 %v2297, %v2299
          %v2301 = vrot.slane %v2294, %v2300
          %v2302 = vcombine.high %v2301, 0
          %v2303 = vcombine.low %v2287, %v2289
          %v2305 = vunpack.c.l.s4 1934713408
          %v2306 = vunpack.c.0.s8 %v2305
          %v2307 = vlaneseq
          %v2308 = vshrl.u32 %v2307, 7
          %v2309 = vsub.s32 %v2306, %v2308
          %v2310 = vrot.slane %v2303, %v2309
          %v2311 = vcombine.high %v2310, 0
          %v2312 = vcombine.low %v2290, %v2292
          %v2314 = vunpack.c.l.s4 1934713408
          %v2315 = vunpack.c.0.s8 %v2314
          %v2316 = vlaneseq
          %v2317 = vshrl.u32 %v2316, 7
          %v2318 = vsub.s32 %v2315, %v2317
          %v2319 = vrot.slane %v2312, %v2318
          %v2320 = vcombine.high %v2319, 0
          %v2321 = vcombine.low %v2291, %v2293
          %v2323 = vunpack.c.l.s4 1934713408
          %v2324 = vunpack.c.0.s8 %v2323
          %v2325 = vlaneseq
          %v2326 = vshrl.u32 %v2325, 7
          %v2327 = vsub.s32 %v2324, %v2326
          %v2328 = vrot.slane %v2321, %v2327
          %v2329 = vcombine.high %v2328, 0
          %v2332 = vpack.i.b16 %v2310, %v2301
          %v2333 = vshrl.u32 %v2301, 16
          %v2334 = vshrl.u32 %v2310, 16
          %v2335 = vpack.i.b16 %v2334, %v2333
          %v2338 = vpack.i.b16 %v2311, %v2302
          %v2339 = vshrl.u32 %v2302, 16
          %v2340 = vshrl.u32 %v2311, 16
          %v2341 = vpack.i.b16 %v2340, %v2339
          %v2344 = vpack.i.b16 %v2328, %v2319
          %v2345 = vshrl.u32 %v2319, 16
          %v2346 = vshrl.u32 %v2328, 16
          %v2347 = vpack.i.b16 %v2346, %v2345
          %v2350 = vpack.i.b16 %v2329, %v2320
          %v2351 = vshrl.u32 %v2320, 16
          %v2352 = vshrl.u32 %v2329, 16
          %v2353 = vpack.i.b16 %v2352, %v2351
          %v2354 = vcombine.low %v2332, %v2344
          %v2356 = vunpack.c.l.s4 1983009808
          %v2357 = vunpack.c.0.s8 %v2356
          %v2358 = vlaneseq
          %v2359 = vshrl.u32 %v2358, 7
          %v2360 = vsub.s32 %v2357, %v2359
          %v2361 = vrot.slane %v2354, %v2360
          %v2363 = vsel %vm1979, %v2282, 0
          %v2366 = vsel %vm1983, %v2361, 0
          %2368 = vmatprep.subr.bf16.mxu0 0
          %2369 = vmatpush1.bf16.msra.mxu0 %v2366
          %2370 = vmatprep.subr.bf16.mxu0 0
          %2371 = vmatpush1.bf16.msra.mxu0 0
          %2372 = vmatprep.subr.bf16.mxu0 0
          %2373 = vmatpush1.bf16.msra.mxu0 0
          %2374 = vmatprep.subr.bf16.mxu0 0
          %2375 = vmatpush1.bf16.msra.mxu0 0
          %2376 = vmatprep.subr.bf16.mxu0 0
          %2377 = vmatpush1.bf16.msra.mxu0 0
          %2378 = vmatprep.subr.bf16.mxu0 0
          %2379 = vmatpush1.bf16.msra.mxu0 0
          %2380 = vmatprep.subr.bf16.mxu0 0
          %2381 = vmatpush1.bf16.msra.mxu0 0
          %2382 = vmatprep.subr.bf16.mxu0 0
          %2383 = vmatpush1.bf16.msra.mxu0 0
          %2384 = vmatprep.subr.bf16.mxu0 0
          %2385 = vmatpush1.bf16.msra.mxu0 0
          %2386 = vmatprep.subr.bf16.mxu0 0
          %2387 = vmatpush1.bf16.msra.mxu0 0
          %2388 = vmatprep.subr.bf16.mxu0 0
          %2389 = vmatpush1.bf16.msra.mxu0 0
          %2390 = vmatprep.subr.bf16.mxu0 0
          %2391 = vmatpush1.bf16.msra.mxu0 0
          %2392 = vmatprep.subr.bf16.mxu0 0
          %2393 = vmatpush1.bf16.msra.mxu0 0
          %2394 = vmatprep.subr.bf16.mxu0 0
          %2395 = vmatpush1.bf16.msra.mxu0 0
          %2396 = vmatprep.subr.bf16.mxu0 0
          %2397 = vmatpush1.bf16.msra.mxu0 0
          %2398 = vmatprep.subr.bf16.mxu0 0
          %2399 = vmatpush1.bf16.msra.mxu0 0
          %2400 = vmatprep.mubr.bf16.mxu0 0
          %2401 = vmatmul.mubr.bf16.gmra.mrb[0].mxu0 %v2363
          %v2402 = vpop.f32.mrb[0].mxu0
          %v2403 = vadd.f32 0.0, %v2402
          %v2404 = vpop.f32.mrb[0].mxu0
          %v2405 = vpop.f32.mrb[0].mxu0
          %v2406 = vpop.f32.mrb[0].mxu0
          %2407 = vdwg.mxu0
          %v2408 = vcombine.low %v2335, %v2347
          %v2410 = vunpack.c.l.s4 1983009808
          %v2411 = vunpack.c.0.s8 %v2410
          %v2412 = vlaneseq
          %v2413 = vshrl.u32 %v2412, 7
          %v2414 = vsub.s32 %v2411, %v2413
          %v2415 = vrot.slane %v2408, %v2414
          %v2417 = vsel %vm1979, %v2283, 0
          %v2420 = vsel %vm1983, %v2415, 0
          %2422 = vmatprep.subr.bf16.mxu0 0
          %2423 = vmatpush1.bf16.msra.mxu0 %v2420
          %2424 = vmatprep.subr.bf16.mxu0 0
          %2425 = vmatpush1.bf16.msra.mxu0 0
          %2426 = vmatprep.subr.bf16.mxu0 0
          %2427 = vmatpush1.bf16.msra.mxu0 0
          %2428 = vmatprep.subr.bf16.mxu0 0
          %2429 = vmatpush1.bf16.msra.mxu0 0
          %2430 = vmatprep.subr.bf16.mxu0 0
          %2431 = vmatpush1.bf16.msra.mxu0 0
          %2432 = vmatprep.subr.bf16.mxu0 0
          %2433 = vmatpush1.bf16.msra.mxu0 0
          %2434 = vmatprep.subr.bf16.mxu0 0
          %2435 = vmatpush1.bf16.msra.mxu0 0
          %2436 = vmatprep.subr.bf16.mxu0 0
          %2437 = vmatpush1.bf16.msra.mxu0 0
          %2438 = vmatprep.subr.bf16.mxu0 0
          %2439 = vmatpush1.bf16.msra.mxu0 0
          %2440 = vmatprep.subr.bf16.mxu0 0
          %2441 = vmatpush1.bf16.msra.mxu0 0
          %2442 = vmatprep.subr.bf16.mxu0 0
          %2443 = vmatpush1.bf16.msra.mxu0 0
          %2444 = vmatprep.subr.bf16.mxu0 0
          %2445 = vmatpush1.bf16.msra.mxu0 0
          %2446 = vmatprep.subr.bf16.mxu0 0
          %2447 = vmatpush1.bf16.msra.mxu0 0
          %2448 = vmatprep.subr.bf16.mxu0 0
          %2449 = vmatpush1.bf16.msra.mxu0 0
          %2450 = vmatprep.subr.bf16.mxu0 0
          %2451 = vmatpush1.bf16.msra.mxu0 0
          %2452 = vmatprep.subr.bf16.mxu0 0
          %2453 = vmatpush1.bf16.msra.mxu0 0
          %2454 = vmatprep.mubr.bf16.mxu0 0
          %2455 = vmatmul.mubr.bf16.gmra.mrb[0].mxu0 %v2417
          %v2456 = vpop.f32.mrb[0].mxu0
          %v2457 = vadd.f32 0.0, %v2456
          %v2458 = vpop.f32.mrb[0].mxu0
          %v2459 = vpop.f32.mrb[0].mxu0
          %v2460 = vpop.f32.mrb[0].mxu0
          %2461 = vdwg.mxu0
          %v2462 = vcombine.low %v2338, %v2350
          %v2464 = vunpack.c.l.s4 1983009808
          %v2465 = vunpack.c.0.s8 %v2464
          %v2466 = vlaneseq
          %v2467 = vshrl.u32 %v2466, 7
          %v2468 = vsub.s32 %v2465, %v2467
          %v2469 = vrot.slane %v2462, %v2468
          %v2471 = vsel %vm1979, %v2284, 0
          %v2474 = vsel %vm1983, %v2469, 0
          %2476 = vmatprep.subr.bf16.mxu0 0
          %2477 = vmatpush1.bf16.msra.mxu0 %v2474
          %2478 = vmatprep.subr.bf16.mxu0 0
          %2479 = vmatpush1.bf16.msra.mxu0 0
          %2480 = vmatprep.subr.bf16.mxu0 0
          %2481 = vmatpush1.bf16.msra.mxu0 0
          %2482 = vmatprep.subr.bf16.mxu0 0
          %2483 = vmatpush1.bf16.msra.mxu0 0
          %2484 = vmatprep.subr.bf16.mxu0 0
          %2485 = vmatpush1.bf16.msra.mxu0 0
          %2486 = vmatprep.subr.bf16.mxu0 0
          %2487 = vmatpush1.bf16.msra.mxu0 0
          %2488 = vmatprep.subr.bf16.mxu0 0
          %2489 = vmatpush1.bf16.msra.mxu0 0
          %2490 = vmatprep.subr.bf16.mxu0 0
          %2491 = vmatpush1.bf16.msra.mxu0 0
          %2492 = vmatprep.subr.bf16.mxu0 0
          %2493 = vmatpush1.bf16.msra.mxu0 0
          %2494 = vmatprep.subr.bf16.mxu0 0
          %2495 = vmatpush1.bf16.msra.mxu0 0
          %2496 = vmatprep.subr.bf16.mxu0 0
          %2497 = vmatpush1.bf16.msra.mxu0 0
          %2498 = vmatprep.subr.bf16.mxu0 0
          %2499 = vmatpush1.bf16.msra.mxu0 0
          %2500 = vmatprep.subr.bf16.mxu0 0
          %2501 = vmatpush1.bf16.msra.mxu0 0
          %2502 = vmatprep.subr.bf16.mxu0 0
          %2503 = vmatpush1.bf16.msra.mxu0 0
          %2504 = vmatprep.subr.bf16.mxu0 0
          %2505 = vmatpush1.bf16.msra.mxu0 0
          %2506 = vmatprep.subr.bf16.mxu0 0
          %2507 = vmatpush1.bf16.msra.mxu0 0
          %2508 = vmatprep.mubr.bf16.mxu0 0
          %2509 = vmatmul.mubr.bf16.gmra.mrb[0].mxu0 %v2471
          %v2510 = vpop.f32.mrb[0].mxu0
          %v2511 = vadd.f32 0.0, %v2510
          %v2512 = vpop.f32.mrb[0].mxu0
          %v2513 = vpop.f32.mrb[0].mxu0
          %v2514 = vpop.f32.mrb[0].mxu0
          %2515 = vdwg.mxu0
          %v2516 = vcombine.low %v2341, %v2353
          %v2518 = vunpack.c.l.s4 1983009808
          %v2519 = vunpack.c.0.s8 %v2518
          %v2520 = vlaneseq
          %v2521 = vshrl.u32 %v2520, 7
          %v2522 = vsub.s32 %v2519, %v2521
          %v2523 = vrot.slane %v2516, %v2522
          %v2525 = vsel %vm1979, %v2285, 0
          %v2528 = vsel %vm1983, %v2523, 0
          %2530 = vmatprep.subr.bf16.mxu0 0
          %2531 = vmatpush1.bf16.msra.mxu0 %v2528
          %2532 = vmatprep.subr.bf16.mxu0 0
          %2533 = vmatpush1.bf16.msra.mxu0 0
          %2534 = vmatprep.subr.bf16.mxu0 0
          %2535 = vmatpush1.bf16.msra.mxu0 0
          %2536 = vmatprep.subr.bf16.mxu0 0
          %2537 = vmatpush1.bf16.msra.mxu0 0
          %2538 = vmatprep.subr.bf16.mxu0 0
          %2539 = vmatpush1.bf16.msra.mxu0 0
          %2540 = vmatprep.subr.bf16.mxu0 0
          %2541 = vmatpush1.bf16.msra.mxu0 0
          %2542 = vmatprep.subr.bf16.mxu0 0
          %2543 = vmatpush1.bf16.msra.mxu0 0
          %2544 = vmatprep.subr.bf16.mxu0 0
          %2545 = vmatpush1.bf16.msra.mxu0 0
          %2546 = vmatprep.subr.bf16.mxu0 0
          %2547 = vmatpush1.bf16.msra.mxu0 0
          %2548 = vmatprep.subr.bf16.mxu0 0
          %2549 = vmatpush1.bf16.msra.mxu0 0
          %2550 = vmatprep.subr.bf16.mxu0 0
          %2551 = vmatpush1.bf16.msra.mxu0 0
          %2552 = vmatprep.subr.bf16.mxu0 0
          %2553 = vmatpush1.bf16.msra.mxu0 0
          %2554 = vmatprep.subr.bf16.mxu0 0
          %2555 = vmatpush1.bf16.msra.mxu0 0
          %2556 = vmatprep.subr.bf16.mxu0 0
          %2557 = vmatpush1.bf16.msra.mxu0 0
          %2558 = vmatprep.subr.bf16.mxu0 0
          %2559 = vmatpush1.bf16.msra.mxu0 0
          %2560 = vmatprep.subr.bf16.mxu0 0
          %2561 = vmatpush1.bf16.msra.mxu0 0
          %2562 = vmatprep.mubr.bf16.mxu0 0
          %2563 = vmatmul.mubr.bf16.gmra.mrb[0].mxu0 %v2525
          %v2564 = vpop.f32.mrb[0].mxu0
          %v2565 = vadd.f32 0.0, %v2564
          %v2566 = vpop.f32.mrb[0].mxu0
          %v2567 = vpop.f32.mrb[0].mxu0
          %v2568 = vpop.f32.mrb[0].mxu0
          %2569 = vdwg.mxu0
          %v2570 = vld [vmem:[#allocation5] sm:$0xff]
          %v2571 = vld [vmem:[#allocation5 + $0x8] sm:$0xff]
          %v2572 = vld [vmem:[#allocation5 + $0x10] sm:$0xff]
          %v2573 = vld [vmem:[#allocation5 + $0x18] sm:$0xff]
          %2575 = vset.pattern.permute.xlu0 0
          %2576 = vperm.xlu0 %2575, %v2214
          %v2577 = vpop.permute.xlu0 %2576
          %2580 = vset.pattern.permute.xlu0 0
          %2581 = vperm.xlu0 %2580, %v2216
          %v2582 = vpop.permute.xlu0 %2581
          %2585 = vset.pattern.permute.xlu0 0
          %2586 = vperm.xlu0 %2585, %v2218
          %v2587 = vpop.permute.xlu0 %2586
          %2590 = vset.pattern.permute.xlu0 0
          %2591 = vperm.xlu0 %2590, %v2220
          %v2592 = vpop.permute.xlu0 %2591
          %v2594 = vmul.f32 %v2577, %v2570
          %v2595 = vmul.f32 %v2582, %v2571
          %v2596 = vmul.f32 %v2587, %v2572
          %v2597 = vmul.f32 %v2592, %v2573
          %v2598 = vadd.f32 %v2594, %v2403
          %v2599 = vadd.f32 %v2595, %v2457
          %v2600 = vadd.f32 %v2596, %v2511
          %v2601 = vadd.f32 %v2597, %v2565
          %2602 = vst.msk [vmem:[#allocation5] sm:$0xff] %vm1979, %v2598
          %2603 = vst.msk [vmem:[#allocation5 + $0x8] sm:$0xff] %vm1979, %v2599
          %2604 = vst.msk [vmem:[#allocation5 + $0x10] sm:$0xff] %vm1979, %v2600
          %2605 = vst.msk [vmem:[#allocation5 + $0x18] sm:$0xff] %vm1979, %v2601
          %2606 = vst.msk [vmem:[#allocation3] sm:$0xff] %vm2277, %v2205
          %2607 = vst.msk [vmem:[#allocation3 + $0x8] sm:$0xff] %vm2277, %v2206
          %2608 = vst.msk [vmem:[#allocation3 + $0x10] sm:$0xff] %vm2277, %v2207
          %2609 = vst.msk [vmem:[#allocation3 + $0x18] sm:$0xff] %vm2277, %v2208
        $region179: #{llama_forward.12} parent=158 // pred_fallthru
          _
        %p2610 = scmp.le.s32.totalorder %s25, %s24
        %p2611 = pneg %p1107
        %p2612 = pnand %p2610, %p2611
        %p2613 = pneg %p2612
        // Predicated region
        $region180: #{llama_forward.12} parent=158 // pred_check
          _
        $region181: #{llama_forward.12} parent=158 // pred_check_branch
          %2615 = sbr.rel (%p2612) target = $region183
        $region182: #{llama_forward.12} parent=158 // pred_region
          %v2616 = vld [vmem:[%s582] sm:$0x3]
          %v2617 = vld [vmem:[%s582 + $0x2] sm:$0x3]
          %v2618 = vld [vmem:[%s582 + $0x4] sm:$0x3]
          %v2619 = vld [vmem:[%s582 + $0x6] sm:$0x3]
          %v2620 = vld [vmem:[%s582 + $0x8] sm:$0x3]
          %v2621 = vld [vmem:[%s582 + $0xa] sm:$0x3]
          %v2622 = vld [vmem:[%s582 + $0xc] sm:$0x3]
          %v2623 = vld [vmem:[%s582 + $0xe] sm:$0x3]
          %v2624 = vunpack.c.l.bf16 %v2616
          %v2625 = vunpack.c.l.bf16 %v2617
          %v2626 = vunpack.c.l.bf16 %v2618
          %v2627 = vunpack.c.l.bf16 %v2619
          %v2628 = vunpack.c.l.bf16 %v2620
          %v2629 = vunpack.c.l.bf16 %v2621
          %v2630 = vunpack.c.l.bf16 %v2622
          %v2631 = vunpack.c.l.bf16 %v2623
          %v2632 = vld [vmem:[%s663] sm:$0xff]
          %v2634 = vcombine.high %v2632, %v2632
          %v2636 = vunpack.c.l.s4 1966171168
          %v2637 = vunpack.c.0.s8 %v2636
          %v2638 = vlaneseq
          %v2639 = vshrl.u32 %v2638, 7
          %v2640 = vsub.s32 %v2637, %v2639
          %v2641 = vrot.slane %v2632, %v2640
          %v2643 = vunpack.c.l.s4 1966171168
          %v2644 = vunpack.c.0.s8 %v2643
          %v2645 = vlaneseq
          %v2646 = vshrl.u32 %v2645, 7
          %v2647 = vsub.s32 %v2644, %v2646
          %v2648 = vrot.slane %v2634, %v2647
          %v2649 = vcombine.high %v2641, %v2641
          %v2650 = vcombine.high %v2648, %v2648
          %v2652 = vunpack.c.l.s4 1966171168
          %v2653 = vunpack.c.0.s8 %v2652
          %v2654 = vlaneseq
          %v2655 = vshrl.u32 %v2654, 7
          %v2656 = vsub.s32 %v2653, %v2655
          %v2657 = vrot.slane %v2641, %v2656
          %v2659 = vunpack.c.l.s4 1966171168
          %v2660 = vunpack.c.0.s8 %v2659
          %v2661 = vlaneseq
          %v2662 = vshrl.u32 %v2661, 7
          %v2663 = vsub.s32 %v2660, %v2662
          %v2664 = vrot.slane %v2648, %v2663
          %v2666 = vunpack.c.l.s4 1966171168
          %v2667 = vunpack.c.0.s8 %v2666
          %v2668 = vlaneseq
          %v2669 = vshrl.u32 %v2668, 7
          %v2670 = vsub.s32 %v2667, %v2669
          %v2671 = vrot.slane %v2649, %v2670
          %v2673 = vunpack.c.l.s4 1966171168
          %v2674 = vunpack.c.0.s8 %v2673
          %v2675 = vlaneseq
          %v2676 = vshrl.u32 %v2675, 7
          %v2677 = vsub.s32 %v2674, %v2676
          %v2678 = vrot.slane %v2650, %v2677
          %v2679 = vcombine.high %v2657, %v2657
          %v2680 = vcombine.high %v2664, %v2664
          %v2681 = vcombine.high %v2671, %v2671
          %v2682 = vcombine.high %v2678, %v2678
          %v2683 = vld [vmem:[%s671] sm:$0xff]
          %v2685 = vcombine.high %v2683, %v2683
          %v2687 = vunpack.c.l.s4 1966171168
          %v2688 = vunpack.c.0.s8 %v2687
          %v2689 = vlaneseq
          %v2690 = vshrl.u32 %v2689, 7
          %v2691 = vsub.s32 %v2688, %v2690
          %v2692 = vrot.slane %v2683, %v2691
          %v2694 = vunpack.c.l.s4 1966171168
          %v2695 = vunpack.c.0.s8 %v2694
          %v2696 = vlaneseq
          %v2697 = vshrl.u32 %v2696, 7
          %v2698 = vsub.s32 %v2695, %v2697
          %v2699 = vrot.slane %v2685, %v2698
          %v2700 = vcombine.high %v2692, %v2692
          %v2701 = vcombine.high %v2699, %v2699
          %v2703 = vunpack.c.l.s4 1966171168
          %v2704 = vunpack.c.0.s8 %v2703
          %v2705 = vlaneseq
          %v2706 = vshrl.u32 %v2705, 7
          %v2707 = vsub.s32 %v2704, %v2706
          %v2708 = vrot.slane %v2692, %v2707
          %v2710 = vunpack.c.l.s4 1966171168
          %v2711 = vunpack.c.0.s8 %v2710
          %v2712 = vlaneseq
          %v2713 = vshrl.u32 %v2712, 7
          %v2714 = vsub.s32 %v2711, %v2713
          %v2715 = vrot.slane %v2699, %v2714
          %v2717 = vunpack.c.l.s4 1966171168
          %v2718 = vunpack.c.0.s8 %v2717
          %v2719 = vlaneseq
          %v2720 = vshrl.u32 %v2719, 7
          %v2721 = vsub.s32 %v2718, %v2720
          %v2722 = vrot.slane %v2700, %v2721
          %v2724 = vunpack.c.l.s4 1966171168
          %v2725 = vunpack.c.0.s8 %v2724
          %v2726 = vlaneseq
          %v2727 = vshrl.u32 %v2726, 7
          %v2728 = vsub.s32 %v2725, %v2727
          %v2729 = vrot.slane %v2701, %v2728
          %v2730 = vcombine.high %v2708, %v2708
          %v2731 = vcombine.high %v2715, %v2715
          %v2732 = vcombine.high %v2722, %v2722
          %v2733 = vcombine.high %v2729, %v2729
          %v2734 = vlaneseq
          %v2735 = vshrl.u32 %v2734, 7
          %v2736 = vsub.s32 0, %v2735
          %v2737 = vrot.slane %v2657, %v2736
          %v2738 = vlaneseq
          %v2739 = vshrl.u32 %v2738, 7
          %v2740 = vsub.s32 0, %v2739
          %v2741 = vrot.slane %v2671, %v2740
          %v2742 = vlaneseq
          %v2743 = vshrl.u32 %v2742, 7
          %v2744 = vsub.s32 0, %v2743
          %v2745 = vrot.slane %v2679, %v2744
          %v2746 = vlaneseq
          %v2747 = vshrl.u32 %v2746, 7
          %v2748 = vsub.s32 0, %v2747
          %v2749 = vrot.slane %v2681, %v2748
          %v2750 = vlaneseq
          %v2751 = vshrl.u32 %v2750, 7
          %v2752 = vsub.s32 0, %v2751
          %v2753 = vrot.slane %v2664, %v2752
          %v2754 = vlaneseq
          %v2755 = vshrl.u32 %v2754, 7
          %v2756 = vsub.s32 0, %v2755
          %v2757 = vrot.slane %v2678, %v2756
          %v2758 = vlaneseq
          %v2759 = vshrl.u32 %v2758, 7
          %v2760 = vsub.s32 0, %v2759
          %v2761 = vrot.slane %v2680, %v2760
          %v2762 = vlaneseq
          %v2763 = vshrl.u32 %v2762, 7
          %v2764 = vsub.s32 0, %v2763
          %v2765 = vrot.slane %v2682, %v2764
          %v2774 = vmul.f32 %v2624, %v2737
          %v2775 = vmul.f32 %v2625, %v2741
          %v2776 = vmul.f32 %v2626, %v2745
          %v2777 = vmul.f32 %v2627, %v2749
          %v2778 = vmul.f32 %v2628, %v2753
          %v2779 = vmul.f32 %v2629, %v2757
          %v2780 = vmul.f32 %v2630, %v2761
          %v2781 = vmul.f32 %v2631, %v2765
          %v2782 = vlaneseq
          %v2783 = vshrl.u32 %v2782, 7
          %v2784 = vsub.s32 0, %v2783
          %v2785 = vrot.slane %v2708, %v2784
          %v2786 = vlaneseq
          %v2787 = vshrl.u32 %v2786, 7
          %v2788 = vsub.s32 0, %v2787
          %v2789 = vrot.slane %v2722, %v2788
          %v2790 = vlaneseq
          %v2791 = vshrl.u32 %v2790, 7
          %v2792 = vsub.s32 0, %v2791
          %v2793 = vrot.slane %v2730, %v2792
          %v2794 = vlaneseq
          %v2795 = vshrl.u32 %v2794, 7
          %v2796 = vsub.s32 0, %v2795
          %v2797 = vrot.slane %v2732, %v2796
          %v2798 = vlaneseq
          %v2799 = vshrl.u32 %v2798, 7
          %v2800 = vsub.s32 0, %v2799
          %v2801 = vrot.slane %v2715, %v2800
          %v2802 = vlaneseq
          %v2803 = vshrl.u32 %v2802, 7
          %v2804 = vsub.s32 0, %v2803
          %v2805 = vrot.slane %v2729, %v2804
          %v2806 = vlaneseq
          %v2807 = vshrl.u32 %v2806, 7
          %v2808 = vsub.s32 0, %v2807
          %v2809 = vrot.slane %v2731, %v2808
          %v2810 = vlaneseq
          %v2811 = vshrl.u32 %v2810, 7
          %v2812 = vsub.s32 0, %v2811
          %v2813 = vrot.slane %v2733, %v2812
          %2822 = vrot.lane.b32.xlu0 %v2785, 4
          %v2823 = vpop.permute.xlu0 %2822
          %2824 = vrot.lane.b32.xlu0 %v2789, 4
          %v2825 = vpop.permute.xlu0 %2824
          %2826 = vrot.lane.b32.xlu0 %v2793, 4
          %v2827 = vpop.permute.xlu0 %2826
          %2828 = vrot.lane.b32.xlu0 %v2797, 4
          %v2829 = vpop.permute.xlu0 %2828
          %2830 = vrot.lane.b32.xlu0 %v2801, 4
          %v2831 = vpop.permute.xlu0 %2830
          %2832 = vrot.lane.b32.xlu0 %v2805, 4
          %v2833 = vpop.permute.xlu0 %2832
          %2834 = vrot.lane.b32.xlu0 %v2809, 4
          %v2835 = vpop.permute.xlu0 %2834
          %2836 = vrot.lane.b32.xlu0 %v2813, 4
          %v2837 = vpop.permute.xlu0 %2836
          %v2846 = vmul.f32 %v2624, %v2823
          %v2847 = vmul.f32 %v2625, %v2825
          %v2848 = vmul.f32 %v2626, %v2827
          %v2849 = vmul.f32 %v2627, %v2829
          %v2850 = vmul.f32 %v2628, %v2831
          %v2851 = vmul.f32 %v2629, %v2833
          %v2852 = vmul.f32 %v2630, %v2835
          %v2853 = vmul.f32 %v2631, %v2837
          %2862 = vrot.lane.b32.xlu0 %v2846, 124
          %v2863 = vpop.permute.xlu0 %2862
          %2864 = vrot.lane.b32.xlu0 %v2847, 124
          %v2865 = vpop.permute.xlu0 %2864
          %2866 = vrot.lane.b32.xlu0 %v2848, 124
          %v2867 = vpop.permute.xlu0 %2866
          %2868 = vrot.lane.b32.xlu0 %v2849, 124
          %v2869 = vpop.permute.xlu0 %2868
          %2870 = vrot.lane.b32.xlu0 %v2850, 124
          %v2871 = vpop.permute.xlu0 %2870
          %2872 = vrot.lane.b32.xlu0 %v2851, 124
          %v2873 = vpop.permute.xlu0 %2872
          %2874 = vrot.lane.b32.xlu0 %v2852, 124
          %v2875 = vpop.permute.xlu0 %2874
          %2876 = vrot.lane.b32.xlu0 %v2853, 124
          %v2877 = vpop.permute.xlu0 %2876
          %v2886 = vsub.f32 %v2774, %v2863
          %v2887 = vsub.f32 %v2775, %v2865
          %v2888 = vsub.f32 %v2776, %v2867
          %v2889 = vsub.f32 %v2777, %v2869
          %v2890 = vsub.f32 %v2778, %v2871
          %v2891 = vsub.f32 %v2779, %v2873
          %v2892 = vsub.f32 %v2780, %v2875
          %v2893 = vsub.f32 %v2781, %v2877
          %2894 = vrot.lane.b32.xlu0 %v2737, 4
          %v2895 = vpop.permute.xlu0 %2894
          %2896 = vrot.lane.b32.xlu0 %v2741, 4
          %v2897 = vpop.permute.xlu0 %2896
          %2898 = vrot.lane.b32.xlu0 %v2745, 4
          %v2899 = vpop.permute.xlu0 %2898
          %2900 = vrot.lane.b32.xlu0 %v2749, 4
          %v2901 = vpop.permute.xlu0 %2900
          %2902 = vrot.lane.b32.xlu0 %v2753, 4
          %v2903 = vpop.permute.xlu0 %2902
          %2904 = vrot.lane.b32.xlu0 %v2757, 4
          %v2905 = vpop.permute.xlu0 %2904
          %2906 = vrot.lane.b32.xlu0 %v2761, 4
          %v2907 = vpop.permute.xlu0 %2906
          %2908 = vrot.lane.b32.xlu0 %v2765, 4
          %v2909 = vpop.permute.xlu0 %2908
          %v2918 = vmul.f32 %v2624, %v2895
          %v2919 = vmul.f32 %v2625, %v2897
          %v2920 = vmul.f32 %v2626, %v2899
          %v2921 = vmul.f32 %v2627, %v2901
          %v2922 = vmul.f32 %v2628, %v2903
          %v2923 = vmul.f32 %v2629, %v2905
          %v2924 = vmul.f32 %v2630, %v2907
          %v2925 = vmul.f32 %v2631, %v2909
          %v2926 = vmul.f32 %v2624, %v2785
          %v2927 = vmul.f32 %v2625, %v2789
          %v2928 = vmul.f32 %v2626, %v2793
          %v2929 = vmul.f32 %v2627, %v2797
          %v2930 = vmul.f32 %v2628, %v2801
          %v2931 = vmul.f32 %v2629, %v2805
          %v2932 = vmul.f32 %v2630, %v2809
          %v2933 = vmul.f32 %v2631, %v2813
          %2942 = vrot.lane.b32.xlu0 %v2926, 4
          %v2943 = vpop.permute.xlu0 %2942
          %2944 = vrot.lane.b32.xlu0 %v2927, 4
          %v2945 = vpop.permute.xlu0 %2944
          %2946 = vrot.lane.b32.xlu0 %v2928, 4
          %v2947 = vpop.permute.xlu0 %2946
          %2948 = vrot.lane.b32.xlu0 %v2929, 4
          %v2949 = vpop.permute.xlu0 %2948
          %2950 = vrot.lane.b32.xlu0 %v2930, 4
          %v2951 = vpop.permute.xlu0 %2950
          %2952 = vrot.lane.b32.xlu0 %v2931, 4
          %v2953 = vpop.permute.xlu0 %2952
          %2954 = vrot.lane.b32.xlu0 %v2932, 4
          %v2955 = vpop.permute.xlu0 %2954
          %2956 = vrot.lane.b32.xlu0 %v2933, 4
          %v2957 = vpop.permute.xlu0 %2956
          %v2966 = vadd.f32 %v2918, %v2943
          %v2967 = vadd.f32 %v2919, %v2945
          %v2968 = vadd.f32 %v2920, %v2947
          %v2969 = vadd.f32 %v2921, %v2949
          %v2970 = vadd.f32 %v2922, %v2951
          %v2971 = vadd.f32 %v2923, %v2953
          %v2972 = vadd.f32 %v2924, %v2955
          %v2973 = vadd.f32 %v2925, %v2957
          %vm2974 = vcmask 31744
          %v2975 = vsel %vm2974, %v2886, %v2966
          %v2976 = vsel %vm2974, %v2887, %v2967
          %v2977 = vsel %vm2974, %v2888, %v2968
          %v2978 = vsel %vm2974, %v2889, %v2969
          %v2979 = vsel %vm2974, %v2890, %v2970
          %v2980 = vsel %vm2974, %v2891, %v2971
          %v2981 = vsel %vm2974, %v2892, %v2972
          %v2982 = vsel %vm2974, %v2893, %v2973
          %v2983 = vpack.c.bf16 %v2975, %v2975
          %v2984 = vpack.c.bf16 %v2976, %v2976
          %v2985 = vpack.c.bf16 %v2977, %v2977
          %v2986 = vpack.c.bf16 %v2978, %v2978
          %v2987 = vpack.c.bf16 %v2979, %v2979
          %v2988 = vpack.c.bf16 %v2980, %v2980
          %v2989 = vpack.c.bf16 %v2981, %v2981
          %v2990 = vpack.c.bf16 %v2982, %v2982
          %v2991 = vld [vmem:[#allocation2] sm:$0x3]
          %v2992 = vld [vmem:[#allocation2 + $0x2] sm:$0x3]
          %v2993 = vld [vmem:[#allocation2 + $0x4] sm:$0x3]
          %v2994 = vld [vmem:[#allocation2 + $0x6] sm:$0x3]
          %v2995 = vld [vmem:[#allocation2 + $0x8] sm:$0x3]
          %v2996 = vld [vmem:[#allocation2 + $0xa] sm:$0x3]
          %v2997 = vld [vmem:[#allocation2 + $0xc] sm:$0x3]
          %v2998 = vld [vmem:[#allocation2 + $0xe] sm:$0x3]
          %v2999 = vcombine.low %v2991, %v2993
          %v3001 = vunpack.c.l.s4 1934713408
          %v3002 = vunpack.c.0.s8 %v3001
          %v3003 = vlaneseq
          %v3004 = vshrl.u32 %v3003, 7
          %v3005 = vsub.s32 %v3002, %v3004
          %v3006 = vrot.slane %v2999, %v3005
          %v3007 = vcombine.high %v3006, 0
          %v3008 = vcombine.low %v2992, %v2994
          %v3010 = vunpack.c.l.s4 1934713408
          %v3011 = vunpack.c.0.s8 %v3010
          %v3012 = vlaneseq
          %v3013 = vshrl.u32 %v3012, 7
          %v3014 = vsub.s32 %v3011, %v3013
          %v3015 = vrot.slane %v3008, %v3014
          %v3016 = vcombine.high %v3015, 0
          %v3017 = vcombine.low %v2995, %v2997
          %v3019 = vunpack.c.l.s4 1934713408
          %v3020 = vunpack.c.0.s8 %v3019
          %v3021 = vlaneseq
          %v3022 = vshrl.u32 %v3021, 7
          %v3023 = vsub.s32 %v3020, %v3022
          %v3024 = vrot.slane %v3017, %v3023
          %v3025 = vcombine.high %v3024, 0
          %v3026 = vcombine.low %v2996, %v2998
          %v3028 = vunpack.c.l.s4 1934713408
          %v3029 = vunpack.c.0.s8 %v3028
          %v3030 = vlaneseq
          %v3031 = vshrl.u32 %v3030, 7
          %v3032 = vsub.s32 %v3029, %v3031
          %v3033 = vrot.slane %v3026, %v3032
          %v3034 = vcombine.high %v3033, 0
          %v3037 = vpack.i.b16 %v3015, %v3006
          %v3038 = vshrl.u32 %v3006, 16
          %v3039 = vshrl.u32 %v3015, 16
          %v3040 = vpack.i.b16 %v3039, %v3038
          %v3043 = vpack.i.b16 %v3016, %v3007
          %v3044 = vshrl.u32 %v3007, 16
          %v3045 = vshrl.u32 %v3016, 16
          %v3046 = vpack.i.b16 %v3045, %v3044
          %v3049 = vpack.i.b16 %v3033, %v3024
          %v3050 = vshrl.u32 %v3024, 16
          %v3051 = vshrl.u32 %v3033, 16
          %v3052 = vpack.i.b16 %v3051, %v3050
          %v3055 = vpack.i.b16 %v3034, %v3025
          %v3056 = vshrl.u32 %v3025, 16
          %v3057 = vshrl.u32 %v3034, 16
          %v3058 = vpack.i.b16 %v3057, %v3056
          %3059 = vxpose.xlu0.c.b16.start [1/8] %v2983, 128
          %3060 = vxpose.xlu0.c.b16.cont [2/8] 0, 128
          %3061 = vxpose.xlu0.c.b16.cont [3/8] 0, 128
          %3062 = vxpose.xlu0.c.b16.cont [4/8] 0, 128
          %3063 = vxpose.xlu0.c.b16.cont [5/8] 0, 128
          %3064 = vxpose.xlu0.c.b16.cont [6/8] 0, 128
          %3065 = vxpose.xlu0.c.b16.cont [7/8] 0, 128
          %3066 = vxpose.xlu0.c.b16.end [8/8] 0, 128
          %v3067 = vpop.trf.xlu0
          %v3068 = vpop.trf.xlu0
          %v3069 = vpop.trf.xlu0
          %v3070 = vpop.trf.xlu0
          %v3071 = vpop.trf.xlu0
          %v3072 = vpop.trf.xlu0
          %v3073 = vpop.trf.xlu0
          %v3074 = vpop.trf.xlu0
          %3075 = vxpose.xlu0.c.b16.start [1/8] %v2984, 128
          %3076 = vxpose.xlu0.c.b16.cont [2/8] 0, 128
          %3077 = vxpose.xlu0.c.b16.cont [3/8] 0, 128
          %3078 = vxpose.xlu0.c.b16.cont [4/8] 0, 128
          %3079 = vxpose.xlu0.c.b16.cont [5/8] 0, 128
          %3080 = vxpose.xlu0.c.b16.cont [6/8] 0, 128
          %3081 = vxpose.xlu0.c.b16.cont [7/8] 0, 128
          %3082 = vxpose.xlu0.c.b16.end [8/8] 0, 128
          %v3083 = vpop.trf.xlu0
          %v3084 = vpop.trf.xlu0
          %v3085 = vpop.trf.xlu0
          %v3086 = vpop.trf.xlu0
          %v3087 = vpop.trf.xlu0
          %v3088 = vpop.trf.xlu0
          %v3089 = vpop.trf.xlu0
          %v3090 = vpop.trf.xlu0
          %3091 = vxpose.xlu0.c.b16.start [1/8] %v2985, 128
          %3092 = vxpose.xlu0.c.b16.cont [2/8] 0, 128
          %3093 = vxpose.xlu0.c.b16.cont [3/8] 0, 128
          %3094 = vxpose.xlu0.c.b16.cont [4/8] 0, 128
          %3095 = vxpose.xlu0.c.b16.cont [5/8] 0, 128
          %3096 = vxpose.xlu0.c.b16.cont [6/8] 0, 128
          %3097 = vxpose.xlu0.c.b16.cont [7/8] 0, 128
          %3098 = vxpose.xlu0.c.b16.end [8/8] 0, 128
          %v3099 = vpop.trf.xlu0
          %v3100 = vpop.trf.xlu0
          %v3101 = vpop.trf.xlu0
          %v3102 = vpop.trf.xlu0
          %v3103 = vpop.trf.xlu0
          %v3104 = vpop.trf.xlu0
          %v3105 = vpop.trf.xlu0
          %v3106 = vpop.trf.xlu0
          %3107 = vxpose.xlu0.c.b16.start [1/8] %v2986, 128
          %3108 = vxpose.xlu0.c.b16.cont [2/8] 0, 128
          %3109 = vxpose.xlu0.c.b16.cont [3/8] 0, 128
          %3110 = vxpose.xlu0.c.b16.cont [4/8] 0, 128
          %3111 = vxpose.xlu0.c.b16.cont [5/8] 0, 128
          %3112 = vxpose.xlu0.c.b16.cont [6/8] 0, 128
          %3113 = vxpose.xlu0.c.b16.cont [7/8] 0, 128
          %3114 = vxpose.xlu0.c.b16.end [8/8] 0, 128
          %v3115 = vpop.trf.xlu0
          %v3116 = vpop.trf.xlu0
          %v3117 = vpop.trf.xlu0
          %v3118 = vpop.trf.xlu0
          %v3119 = vpop.trf.xlu0
          %v3120 = vpop.trf.xlu0
          %v3121 = vpop.trf.xlu0
          %v3122 = vpop.trf.xlu0
          %3123 = vxpose.xlu0.c.b16.start [1/8] %v2987, 128
          %3124 = vxpose.xlu0.c.b16.cont [2/8] 0, 128
          %3125 = vxpose.xlu0.c.b16.cont [3/8] 0, 128
          %3126 = vxpose.xlu0.c.b16.cont [4/8] 0, 128
          %3127 = vxpose.xlu0.c.b16.cont [5/8] 0, 128
          %3128 = vxpose.xlu0.c.b16.cont [6/8] 0, 128
          %3129 = vxpose.xlu0.c.b16.cont [7/8] 0, 128
          %3130 = vxpose.xlu0.c.b16.end [8/8] 0, 128
          %v3131 = vpop.trf.xlu0
          %v3132 = vpop.trf.xlu0
          %v3133 = vpop.trf.xlu0
          %v3134 = vpop.trf.xlu0
          %v3135 = vpop.trf.xlu0
          %v3136 = vpop.trf.xlu0
          %v3137 = vpop.trf.xlu0
          %v3138 = vpop.trf.xlu0
          %3139 = vxpose.xlu0.c.b16.start [1/8] %v2988, 128
          %3140 = vxpose.xlu0.c.b16.cont [2/8] 0, 128
          %3141 = vxpose.xlu0.c.b16.cont [3/8] 0, 128
          %3142 = vxpose.xlu0.c.b16.cont [4/8] 0, 128
          %3143 = vxpose.xlu0.c.b16.cont [5/8] 0, 128
          %3144 = vxpose.xlu0.c.b16.cont [6/8] 0, 128
          %3145 = vxpose.xlu0.c.b16.cont [7/8] 0, 128
          %3146 = vxpose.xlu0.c.b16.end [8/8] 0, 128
          %v3147 = vpop.trf.xlu0
          %v3148 = vpop.trf.xlu0
          %v3149 = vpop.trf.xlu0
          %v3150 = vpop.trf.xlu0
          %v3151 = vpop.trf.xlu0
          %v3152 = vpop.trf.xlu0
          %v3153 = vpop.trf.xlu0
          %v3154 = vpop.trf.xlu0
          %3155 = vxpose.xlu0.c.b16.start [1/8] %v2989, 128
          %3156 = vxpose.xlu0.c.b16.cont [2/8] 0, 128
          %3157 = vxpose.xlu0.c.b16.cont [3/8] 0, 128
          %3158 = vxpose.xlu0.c.b16.cont [4/8] 0, 128
          %3159 = vxpose.xlu0.c.b16.cont [5/8] 0, 128
          %3160 = vxpose.xlu0.c.b16.cont [6/8] 0, 128
          %3161 = vxpose.xlu0.c.b16.cont [7/8] 0, 128
          %3162 = vxpose.xlu0.c.b16.end [8/8] 0, 128
          %v3163 = vpop.trf.xlu0
          %v3164 = vpop.trf.xlu0
          %v3165 = vpop.trf.xlu0
          %v3166 = vpop.trf.xlu0
          %v3167 = vpop.trf.xlu0
          %v3168 = vpop.trf.xlu0
          %v3169 = vpop.trf.xlu0
          %v3170 = vpop.trf.xlu0
          %3171 = vxpose.xlu0.c.b16.start [1/8] %v2990, 128
          %3172 = vxpose.xlu0.c.b16.cont [2/8] 0, 128
          %3173 = vxpose.xlu0.c.b16.cont [3/8] 0, 128
          %3174 = vxpose.xlu0.c.b16.cont [4/8] 0, 128
          %3175 = vxpose.xlu0.c.b16.cont [5/8] 0, 128
          %3176 = vxpose.xlu0.c.b16.cont [6/8] 0, 128
          %3177 = vxpose.xlu0.c.b16.cont [7/8] 0, 128
          %3178 = vxpose.xlu0.c.b16.end [8/8] 0, 128
          %v3179 = vpop.trf.xlu0
          %v3180 = vpop.trf.xlu0
          %v3181 = vpop.trf.xlu0
          %v3182 = vpop.trf.xlu0
          %v3183 = vpop.trf.xlu0
          %v3184 = vpop.trf.xlu0
          %v3185 = vpop.trf.xlu0
          %v3186 = vpop.trf.xlu0
          %v3187 = vcombine.low %v3067, %v3131
          %v3189 = vunpack.c.l.s4 1983009808
          %v3190 = vunpack.c.0.s8 %v3189
          %v3191 = vlaneseq
          %v3192 = vshrl.u32 %v3191, 7
          %v3193 = vsub.s32 %v3190, %v3192
          %v3194 = vrot.slane %v3187, %v3193
          %v3195 = vcombine.low %v3099, %v3163
          %v3197 = vunpack.c.l.s4 1983009808
          %v3198 = vunpack.c.0.s8 %v3197
          %v3199 = vlaneseq
          %v3200 = vshrl.u32 %v3199, 7
          %v3201 = vsub.s32 %v3198, %v3200
          %v3202 = vrot.slane %v3195, %v3201
          %v3203 = vcombine.low %v3194, %v3202
          %v3204 = vcombine.high %v3194, %v3202
          %v3206 = vunpack.c.l.s4 1934713408
          %v3207 = vunpack.c.0.s8 %v3206
          %v3208 = vlaneseq
          %v3209 = vshrl.u32 %v3208, 7
          %v3210 = vsub.s32 %v3207, %v3209
          %v3211 = vrot.slane %v3203, %v3210
          %v3213 = vunpack.c.l.s4 1934713408
          %v3214 = vunpack.c.0.s8 %v3213
          %v3215 = vlaneseq
          %v3216 = vshrl.u32 %v3215, 7
          %v3217 = vsub.s32 %v3214, %v3216
          %v3218 = vrot.slane %v3204, %v3217
          %v3219 = vcombine.high %v3211, 0
          %v3220 = vcombine.high %v3218, 0
          %v3221 = vcombine.low %v3083, %v3147
          %v3223 = vunpack.c.l.s4 1983009808
          %v3224 = vunpack.c.0.s8 %v3223
          %v3225 = vlaneseq
          %v3226 = vshrl.u32 %v3225, 7
          %v3227 = vsub.s32 %v3224, %v3226
          %v3228 = vrot.slane %v3221, %v3227
          %v3229 = vcombine.low %v3115, %v3179
          %v3231 = vunpack.c.l.s4 1983009808
          %v3232 = vunpack.c.0.s8 %v3231
          %v3233 = vlaneseq
          %v3234 = vshrl.u32 %v3233, 7
          %v3235 = vsub.s32 %v3232, %v3234
          %v3236 = vrot.slane %v3229, %v3235
          %v3237 = vcombine.low %v3228, %v3236
          %v3238 = vcombine.high %v3228, %v3236
          %v3240 = vunpack.c.l.s4 1934713408
          %v3241 = vunpack.c.0.s8 %v3240
          %v3242 = vlaneseq
          %v3243 = vshrl.u32 %v3242, 7
          %v3244 = vsub.s32 %v3241, %v3243
          %v3245 = vrot.slane %v3237, %v3244
          %v3247 = vunpack.c.l.s4 1934713408
          %v3248 = vunpack.c.0.s8 %v3247
          %v3249 = vlaneseq
          %v3250 = vshrl.u32 %v3249, 7
          %v3251 = vsub.s32 %v3248, %v3250
          %v3252 = vrot.slane %v3238, %v3251
          %v3253 = vcombine.high %v3245, 0
          %v3254 = vcombine.high %v3252, 0
          %v3257 = vpack.i.b16 %v3245, %v3211
          %v3259 = vshrl.u32 %v3211, 16
          %v3260 = vshrl.u32 %v3245, 16
          %v3261 = vpack.i.b16 %v3260, %v3259
          %v3265 = vpack.i.b16 %v3253, %v3219
          %v3267 = vshrl.u32 %v3219, 16
          %v3268 = vshrl.u32 %v3253, 16
          %v3269 = vpack.i.b16 %v3268, %v3267
          %v3273 = vpack.i.b16 %v3252, %v3218
          %v3275 = vshrl.u32 %v3218, 16
          %v3276 = vshrl.u32 %v3252, 16
          %v3277 = vpack.i.b16 %v3276, %v3275
          %v3281 = vpack.i.b16 %v3254, %v3220
          %v3283 = vshrl.u32 %v3220, 16
          %v3284 = vshrl.u32 %v3254, 16
          %v3285 = vpack.i.b16 %v3284, %v3283
          %3287 = vxpose.xlu0.c.b16.start [1/8] %v3257, 128
          %3288 = vxpose.xlu0.c.b16.cont [2/8] 0, 128
          %3289 = vxpose.xlu0.c.b16.cont [3/8] 0, 128
          %3290 = vxpose.xlu0.c.b16.cont [4/8] 0, 128
          %3291 = vxpose.xlu0.c.b16.cont [5/8] 0, 128
          %3292 = vxpose.xlu0.c.b16.cont [6/8] 0, 128
          %3293 = vxpose.xlu0.c.b16.cont [7/8] 0, 128
          %3294 = vxpose.xlu0.c.b16.end [8/8] 0, 128
          %v3295 = vpop.trf.xlu0
          %v3296 = vpop.trf.xlu0
          %v3297 = vpop.trf.xlu0
          %v3298 = vpop.trf.xlu0
          %v3299 = vpop.trf.xlu0
          %v3300 = vpop.trf.xlu0
          %v3301 = vpop.trf.xlu0
          %v3302 = vpop.trf.xlu0
          %3303 = vxpose.xlu0.c.b16.start [1/8] %v3261, 128
          %3304 = vxpose.xlu0.c.b16.cont [2/8] 0, 128
          %3305 = vxpose.xlu0.c.b16.cont [3/8] 0, 128
          %3306 = vxpose.xlu0.c.b16.cont [4/8] 0, 128
          %3307 = vxpose.xlu0.c.b16.cont [5/8] 0, 128
          %3308 = vxpose.xlu0.c.b16.cont [6/8] 0, 128
          %3309 = vxpose.xlu0.c.b16.cont [7/8] 0, 128
          %3310 = vxpose.xlu0.c.b16.end [8/8] 0, 128
          %v3311 = vpop.trf.xlu0
          %v3312 = vpop.trf.xlu0
          %v3313 = vpop.trf.xlu0
          %v3314 = vpop.trf.xlu0
          %v3315 = vpop.trf.xlu0
          %v3316 = vpop.trf.xlu0
          %v3317 = vpop.trf.xlu0
          %v3318 = vpop.trf.xlu0
          %3319 = vxpose.xlu0.c.b16.start [1/8] %v3265, 128
          %3320 = vxpose.xlu0.c.b16.cont [2/8] 0, 128
          %3321 = vxpose.xlu0.c.b16.cont [3/8] 0, 128
          %3322 = vxpose.xlu0.c.b16.cont [4/8] 0, 128
          %3323 = vxpose.xlu0.c.b16.cont [5/8] 0, 128
          %3324 = vxpose.xlu0.c.b16.cont [6/8] 0, 128
          %3325 = vxpose.xlu0.c.b16.cont [7/8] 0, 128
          %3326 = vxpose.xlu0.c.b16.end [8/8] 0, 128
          %v3327 = vpop.trf.xlu0
          %v3328 = vpop.trf.xlu0
          %v3329 = vpop.trf.xlu0
          %v3330 = vpop.trf.xlu0
          %v3331 = vpop.trf.xlu0
          %v3332 = vpop.trf.xlu0
          %v3333 = vpop.trf.xlu0
          %v3334 = vpop.trf.xlu0
          %3335 = vxpose.xlu0.c.b16.start [1/8] %v3269, 128
          %3336 = vxpose.xlu0.c.b16.cont [2/8] 0, 128
          %3337 = vxpose.xlu0.c.b16.cont [3/8] 0, 128
          %3338 = vxpose.xlu0.c.b16.cont [4/8] 0, 128
          %3339 = vxpose.xlu0.c.b16.cont [5/8] 0, 128
          %3340 = vxpose.xlu0.c.b16.cont [6/8] 0, 128
          %3341 = vxpose.xlu0.c.b16.cont [7/8] 0, 128
          %3342 = vxpose.xlu0.c.b16.end [8/8] 0, 128
          %v3343 = vpop.trf.xlu0
          %v3344 = vpop.trf.xlu0
          %v3345 = vpop.trf.xlu0
          %v3346 = vpop.trf.xlu0
          %v3347 = vpop.trf.xlu0
          %v3348 = vpop.trf.xlu0
          %v3349 = vpop.trf.xlu0
          %v3350 = vpop.trf.xlu0
          %3351 = vxpose.xlu0.c.b16.start [1/8] %v3273, 128
          %3352 = vxpose.xlu0.c.b16.cont [2/8] 0, 128
          %3353 = vxpose.xlu0.c.b16.cont [3/8] 0, 128
          %3354 = vxpose.xlu0.c.b16.cont [4/8] 0, 128
          %3355 = vxpose.xlu0.c.b16.cont [5/8] 0, 128
          %3356 = vxpose.xlu0.c.b16.cont [6/8] 0, 128
          %3357 = vxpose.xlu0.c.b16.cont [7/8] 0, 128
          %3358 = vxpose.xlu0.c.b16.end [8/8] 0, 128
          %v3359 = vpop.trf.xlu0
          %v3360 = vpop.trf.xlu0
          %v3361 = vpop.trf.xlu0
          %v3362 = vpop.trf.xlu0
          %v3363 = vpop.trf.xlu0
          %v3364 = vpop.trf.xlu0
          %v3365 = vpop.trf.xlu0
          %v3366 = vpop.trf.xlu0
          %3367 = vxpose.xlu0.c.b16.start [1/8] %v3277, 128
          %3368 = vxpose.xlu0.c.b16.cont [2/8] 0, 128
          %3369 = vxpose.xlu0.c.b16.cont [3/8] 0, 128
          %3370 = vxpose.xlu0.c.b16.cont [4/8] 0, 128
          %3371 = vxpose.xlu0.c.b16.cont [5/8] 0, 128
          %3372 = vxpose.xlu0.c.b16.cont [6/8] 0, 128
          %3373 = vxpose.xlu0.c.b16.cont [7/8] 0, 128
          %3374 = vxpose.xlu0.c.b16.end [8/8] 0, 128
          %v3375 = vpop.trf.xlu0
          %v3376 = vpop.trf.xlu0
          %v3377 = vpop.trf.xlu0
          %v3378 = vpop.trf.xlu0
          %v3379 = vpop.trf.xlu0
          %v3380 = vpop.trf.xlu0
          %v3381 = vpop.trf.xlu0
          %v3382 = vpop.trf.xlu0
          %3383 = vxpose.xlu0.c.b16.start [1/8] %v3281, 128
          %3384 = vxpose.xlu0.c.b16.cont [2/8] 0, 128
          %3385 = vxpose.xlu0.c.b16.cont [3/8] 0, 128
          %3386 = vxpose.xlu0.c.b16.cont [4/8] 0, 128
          %3387 = vxpose.xlu0.c.b16.cont [5/8] 0, 128
          %3388 = vxpose.xlu0.c.b16.cont [6/8] 0, 128
          %3389 = vxpose.xlu0.c.b16.cont [7/8] 0, 128
          %3390 = vxpose.xlu0.c.b16.end [8/8] 0, 128
          %v3391 = vpop.trf.xlu0
          %v3392 = vpop.trf.xlu0
          %v3393 = vpop.trf.xlu0
          %v3394 = vpop.trf.xlu0
          %v3395 = vpop.trf.xlu0
          %v3396 = vpop.trf.xlu0
          %v3397 = vpop.trf.xlu0
          %v3398 = vpop.trf.xlu0
          %3399 = vxpose.xlu0.c.b16.start [1/8] %v3285, 128
          %3400 = vxpose.xlu0.c.b16.cont [2/8] 0, 128
          %3401 = vxpose.xlu0.c.b16.cont [3/8] 0, 128
          %3402 = vxpose.xlu0.c.b16.cont [4/8] 0, 128
          %3403 = vxpose.xlu0.c.b16.cont [5/8] 0, 128
          %3404 = vxpose.xlu0.c.b16.cont [6/8] 0, 128
          %3405 = vxpose.xlu0.c.b16.cont [7/8] 0, 128
          %3406 = vxpose.xlu0.c.b16.end [8/8] 0, 128
          %v3407 = vpop.trf.xlu0
          %v3408 = vpop.trf.xlu0
          %v3409 = vpop.trf.xlu0
          %v3410 = vpop.trf.xlu0
          %v3411 = vpop.trf.xlu0
          %v3412 = vpop.trf.xlu0
          %v3413 = vpop.trf.xlu0
          %v3414 = vpop.trf.xlu0
          %v3415 = vcombine.low %v3295, %v3359
          %v3417 = vunpack.c.l.s4 1983009808
          %v3418 = vunpack.c.0.s8 %v3417
          %v3419 = vlaneseq
          %v3420 = vshrl.u32 %v3419, 7
          %v3421 = vsub.s32 %v3418, %v3420
          %v3422 = vrot.slane %v3415, %v3421
          %v3423 = vcombine.low %v3327, %v3391
          %v3425 = vunpack.c.l.s4 1983009808
          %v3426 = vunpack.c.0.s8 %v3425
          %v3427 = vlaneseq
          %v3428 = vshrl.u32 %v3427, 7
          %v3429 = vsub.s32 %v3426, %v3428
          %v3430 = vrot.slane %v3423, %v3429
          %v3431 = vcombine.low %v3422, %v3430
          %v3433 = vunpack.c.l.s4 1934713408
          %v3434 = vunpack.c.0.s8 %v3433
          %v3435 = vlaneseq
          %v3436 = vshrl.u32 %v3435, 7
          %v3437 = vsub.s32 %v3434, %v3436
          %v3438 = vrot.slane %v3431, %v3437
          %v3439 = vcombine.high %v3438, 0
          %v3440 = vcombine.low %v3311, %v3375
          %v3442 = vunpack.c.l.s4 1983009808
          %v3443 = vunpack.c.0.s8 %v3442
          %v3444 = vlaneseq
          %v3445 = vshrl.u32 %v3444, 7
          %v3446 = vsub.s32 %v3443, %v3445
          %v3447 = vrot.slane %v3440, %v3446
          %v3448 = vcombine.low %v3343, %v3407
          %v3450 = vunpack.c.l.s4 1983009808
          %v3451 = vunpack.c.0.s8 %v3450
          %v3452 = vlaneseq
          %v3453 = vshrl.u32 %v3452, 7
          %v3454 = vsub.s32 %v3451, %v3453
          %v3455 = vrot.slane %v3448, %v3454
          %v3456 = vcombine.low %v3447, %v3455
          %v3458 = vunpack.c.l.s4 1934713408
          %v3459 = vunpack.c.0.s8 %v3458
          %v3460 = vlaneseq
          %v3461 = vshrl.u32 %v3460, 7
          %v3462 = vsub.s32 %v3459, %v3461
          %v3463 = vrot.slane %v3456, %v3462
          %v3464 = vcombine.high %v3463, 0
          %v3467 = vpack.i.b16 %v3463, %v3438
          %v3468 = vshrl.u32 %v3438, 16
          %v3469 = vshrl.u32 %v3463, 16
          %v3470 = vpack.i.b16 %v3469, %v3468
          %v3473 = vpack.i.b16 %v3464, %v3439
          %v3474 = vshrl.u32 %v3439, 16
          %v3475 = vshrl.u32 %v3464, 16
          %v3476 = vpack.i.b16 %v3475, %v3474
          %v3477 = vcombine.low %v3037, %v3049
          %v3479 = vunpack.c.l.s4 1983009808
          %v3480 = vunpack.c.0.s8 %v3479
          %v3481 = vlaneseq
          %v3482 = vshrl.u32 %v3481, 7
          %v3483 = vsub.s32 %v3480, %v3482
          %v3484 = vrot.slane %v3477, %v3483
          %vm3485 = vcmask 64512
          %v3487 = vsel %vm3485, %v3484, 0
          %vm3489 = vcmask 1043456
          %v3491 = vsel %vm3489, %v3467, 0
          %3493 = vmatprep.subr.bf16.mxu0 0
          %3494 = vmatpush1.bf16.msra.mxu0 %v3491
          %3495 = vmatprep.subr.bf16.mxu0 0
          %3496 = vmatpush1.bf16.msra.mxu0 0
          %3497 = vmatprep.subr.bf16.mxu0 0
          %3498 = vmatpush1.bf16.msra.mxu0 0
          %3499 = vmatprep.subr.bf16.mxu0 0
          %3500 = vmatpush1.bf16.msra.mxu0 0
          %3501 = vmatprep.subr.bf16.mxu0 0
          %3502 = vmatpush1.bf16.msra.mxu0 0
          %3503 = vmatprep.subr.bf16.mxu0 0
          %3504 = vmatpush1.bf16.msra.mxu0 0
          %3505 = vmatprep.subr.bf16.mxu0 0
          %3506 = vmatpush1.bf16.msra.mxu0 0
          %3507 = vmatprep.subr.bf16.mxu0 0
          %3508 = vmatpush1.bf16.msra.mxu0 0
          %3509 = vmatprep.subr.bf16.mxu0 0
          %3510 = vmatpush1.bf16.msra.mxu0 0
          %3511 = vmatprep.subr.bf16.mxu0 0
          %3512 = vmatpush1.bf16.msra.mxu0 0
          %3513 = vmatprep.subr.bf16.mxu0 0
          %3514 = vmatpush1.bf16.msra.mxu0 0
          %3515 = vmatprep.subr.bf16.mxu0 0
          %3516 = vmatpush1.bf16.msra.mxu0 0
          %3517 = vmatprep.subr.bf16.mxu0 0
          %3518 = vmatpush1.bf16.msra.mxu0 0
          %3519 = vmatprep.subr.bf16.mxu0 0
          %3520 = vmatpush1.bf16.msra.mxu0 0
          %3521 = vmatprep.subr.bf16.mxu0 0
          %3522 = vmatpush1.bf16.msra.mxu0 0
          %3523 = vmatprep.subr.bf16.mxu0 0
          %3524 = vmatpush1.bf16.msra.mxu0 0
          %3525 = vmatprep.mubr.bf16.mxu0 0
          %3526 = vmatmul.mubr.bf16.gmra.mrb[0].mxu0 %v3487
          %v3527 = vpop.f32.mrb[0].mxu0
          %v3528 = vadd.f32 0.0, %v3527
          %v3529 = vpop.f32.mrb[0].mxu0
          %v3530 = vpop.f32.mrb[0].mxu0
          %v3531 = vpop.f32.mrb[0].mxu0
          %3532 = vdwg.mxu0
          %v3533 = vcombine.low %v3040, %v3052
          %v3535 = vunpack.c.l.s4 1983009808
          %v3536 = vunpack.c.0.s8 %v3535
          %v3537 = vlaneseq
          %v3538 = vshrl.u32 %v3537, 7
          %v3539 = vsub.s32 %v3536, %v3538
          %v3540 = vrot.slane %v3533, %v3539
          %v3542 = vsel %vm3485, %v3540, 0
          %v3545 = vsel %vm3489, %v3470, 0
          %3547 = vmatprep.subr.bf16.mxu0 0
          %3548 = vmatpush1.bf16.msra.mxu0 %v3545
          %3549 = vmatprep.subr.bf16.mxu0 0
          %3550 = vmatpush1.bf16.msra.mxu0 0
          %3551 = vmatprep.subr.bf16.mxu0 0
          %3552 = vmatpush1.bf16.msra.mxu0 0
          %3553 = vmatprep.subr.bf16.mxu0 0
          %3554 = vmatpush1.bf16.msra.mxu0 0
          %3555 = vmatprep.subr.bf16.mxu0 0
          %3556 = vmatpush1.bf16.msra.mxu0 0
          %3557 = vmatprep.subr.bf16.mxu0 0
          %3558 = vmatpush1.bf16.msra.mxu0 0
          %3559 = vmatprep.subr.bf16.mxu0 0
          %3560 = vmatpush1.bf16.msra.mxu0 0
          %3561 = vmatprep.subr.bf16.mxu0 0
          %3562 = vmatpush1.bf16.msra.mxu0 0
          %3563 = vmatprep.subr.bf16.mxu0 0
          %3564 = vmatpush1.bf16.msra.mxu0 0
          %3565 = vmatprep.subr.bf16.mxu0 0
          %3566 = vmatpush1.bf16.msra.mxu0 0
          %3567 = vmatprep.subr.bf16.mxu0 0
          %3568 = vmatpush1.bf16.msra.mxu0 0
          %3569 = vmatprep.subr.bf16.mxu0 0
          %3570 = vmatpush1.bf16.msra.mxu0 0
          %3571 = vmatprep.subr.bf16.mxu0 0
          %3572 = vmatpush1.bf16.msra.mxu0 0
          %3573 = vmatprep.subr.bf16.mxu0 0
          %3574 = vmatpush1.bf16.msra.mxu0 0
          %3575 = vmatprep.subr.bf16.mxu0 0
          %3576 = vmatpush1.bf16.msra.mxu0 0
          %3577 = vmatprep.subr.bf16.mxu0 0
          %3578 = vmatpush1.bf16.msra.mxu0 0
          %3579 = vmatprep.mubr.bf16.mxu0 0
          %3580 = vmatmul.mubr.bf16.gmra.mrb[0].mxu0 %v3542
          %v3581 = vpop.f32.mrb[0].mxu0
          %v3582 = vadd.f32 0.0, %v3581
          %v3583 = vpop.f32.mrb[0].mxu0
          %v3584 = vpop.f32.mrb[0].mxu0
          %v3585 = vpop.f32.mrb[0].mxu0
          %3586 = vdwg.mxu0
          %v3587 = vcombine.low %v3043, %v3055
          %v3589 = vunpack.c.l.s4 1983009808
          %v3590 = vunpack.c.0.s8 %v3589
          %v3591 = vlaneseq
          %v3592 = vshrl.u32 %v3591, 7
          %v3593 = vsub.s32 %v3590, %v3592
          %v3594 = vrot.slane %v3587, %v3593
          %v3596 = vsel %vm3485, %v3594, 0
          %v3599 = vsel %vm3489, %v3473, 0
          %3601 = vmatprep.subr.bf16.mxu0 0
          %3602 = vmatpush1.bf16.msra.mxu0 %v3599
          %3603 = vmatprep.subr.bf16.mxu0 0
          %3604 = vmatpush1.bf16.msra.mxu0 0
          %3605 = vmatprep.subr.bf16.mxu0 0
          %3606 = vmatpush1.bf16.msra.mxu0 0
          %3607 = vmatprep.subr.bf16.mxu0 0
          %3608 = vmatpush1.bf16.msra.mxu0 0
          %3609 = vmatprep.subr.bf16.mxu0 0
          %3610 = vmatpush1.bf16.msra.mxu0 0
          %3611 = vmatprep.subr.bf16.mxu0 0
          %3612 = vmatpush1.bf16.msra.mxu0 0
          %3613 = vmatprep.subr.bf16.mxu0 0
          %3614 = vmatpush1.bf16.msra.mxu0 0
          %3615 = vmatprep.subr.bf16.mxu0 0
          %3616 = vmatpush1.bf16.msra.mxu0 0
          %3617 = vmatprep.subr.bf16.mxu0 0
          %3618 = vmatpush1.bf16.msra.mxu0 0
          %3619 = vmatprep.subr.bf16.mxu0 0
          %3620 = vmatpush1.bf16.msra.mxu0 0
          %3621 = vmatprep.subr.bf16.mxu0 0
          %3622 = vmatpush1.bf16.msra.mxu0 0
          %3623 = vmatprep.subr.bf16.mxu0 0
          %3624 = vmatpush1.bf16.msra.mxu0 0
          %3625 = vmatprep.subr.bf16.mxu0 0
          %3626 = vmatpush1.bf16.msra.mxu0 0
          %3627 = vmatprep.subr.bf16.mxu0 0
          %3628 = vmatpush1.bf16.msra.mxu0 0
          %3629 = vmatprep.subr.bf16.mxu0 0
          %3630 = vmatpush1.bf16.msra.mxu0 0
          %3631 = vmatprep.subr.bf16.mxu0 0
          %3632 = vmatpush1.bf16.msra.mxu0 0
          %3633 = vmatprep.mubr.bf16.mxu0 0
          %3634 = vmatmul.mubr.bf16.gmra.mrb[0].mxu0 %v3596
          %v3635 = vpop.f32.mrb[0].mxu0
          %v3636 = vadd.f32 0.0, %v3635
          %v3637 = vpop.f32.mrb[0].mxu0
          %v3638 = vpop.f32.mrb[0].mxu0
          %v3639 = vpop.f32.mrb[0].mxu0
          %3640 = vdwg.mxu0
          %v3641 = vcombine.low %v3046, %v3058
          %v3643 = vunpack.c.l.s4 1983009808
          %v3644 = vunpack.c.0.s8 %v3643
          %v3645 = vlaneseq
          %v3646 = vshrl.u32 %v3645, 7
          %v3647 = vsub.s32 %v3644, %v3646
          %v3648 = vrot.slane %v3641, %v3647
          %v3650 = vsel %vm3485, %v3648, 0
          %v3653 = vsel %vm3489, %v3476, 0
          %3655 = vmatprep.subr.bf16.mxu0 0
          %3656 = vmatpush1.bf16.msra.mxu0 %v3653
          %3657 = vmatprep.subr.bf16.mxu0 0
          %3658 = vmatpush1.bf16.msra.mxu0 0
          %3659 = vmatprep.subr.bf16.mxu0 0
          %3660 = vmatpush1.bf16.msra.mxu0 0
          %3661 = vmatprep.subr.bf16.mxu0 0
          %3662 = vmatpush1.bf16.msra.mxu0 0
          %3663 = vmatprep.subr.bf16.mxu0 0
          %3664 = vmatpush1.bf16.msra.mxu0 0
          %3665 = vmatprep.subr.bf16.mxu0 0
          %3666 = vmatpush1.bf16.msra.mxu0 0
          %3667 = vmatprep.subr.bf16.mxu0 0
          %3668 = vmatpush1.bf16.msra.mxu0 0
          %3669 = vmatprep.subr.bf16.mxu0 0
          %3670 = vmatpush1.bf16.msra.mxu0 0
          %3671 = vmatprep.subr.bf16.mxu0 0
          %3672 = vmatpush1.bf16.msra.mxu0 0
          %3673 = vmatprep.subr.bf16.mxu0 0
          %3674 = vmatpush1.bf16.msra.mxu0 0
          %3675 = vmatprep.subr.bf16.mxu0 0
          %3676 = vmatpush1.bf16.msra.mxu0 0
          %3677 = vmatprep.subr.bf16.mxu0 0
          %3678 = vmatpush1.bf16.msra.mxu0 0
          %3679 = vmatprep.subr.bf16.mxu0 0
          %3680 = vmatpush1.bf16.msra.mxu0 0
          %3681 = vmatprep.subr.bf16.mxu0 0
          %3682 = vmatpush1.bf16.msra.mxu0 0
          %3683 = vmatprep.subr.bf16.mxu0 0
          %3684 = vmatpush1.bf16.msra.mxu0 0
          %3685 = vmatprep.subr.bf16.mxu0 0
          %3686 = vmatpush1.bf16.msra.mxu0 0
          %3687 = vmatprep.mubr.bf16.mxu0 0
          %3688 = vmatmul.mubr.bf16.gmra.mrb[0].mxu0 %v3650
          %v3689 = vpop.f32.mrb[0].mxu0
          %v3690 = vadd.f32 0.0, %v3689
          %v3691 = vpop.f32.mrb[0].mxu0
          %v3692 = vpop.f32.mrb[0].mxu0
          %v3693 = vpop.f32.mrb[0].mxu0
          %3694 = vdwg.mxu0
          %s3695 = smul.u32 %s24, 8
          %v3696 = vlaneseq
          %v3697 = vshrl.u32 %v3696, 7
          %v3698 = vstv %s3695
          %v3699 = vadd.s32 %v3698, %v3697
          %s3700 = smul.u32 %s25, 8
          %v3701 = vlaneseq
          %v3702 = vand.u32 %v3701, 127
          %v3703 = vstv %s3700
          %v3704 = vadd.s32 %v3703, %v3702
          %vm3705 = vcmp.le.s32.totalorder %v3704, %v3699
          %vm3706 = vcmp.lt.s32.totalorder %v3704, 8
          %vm3707 = vmand %vm3705, %vm3706
          %v3708 = vsel %vm3707, 1, 0
          %vm3709 = vcmp.eq.s32.totalorder %v3708, 1
          %v3710 = vsel %vm3709, %v3528, -1e+30
          %v3711 = vsel %vm3709, %v3582, -1e+30
          %v3712 = vsel %vm3709, %v3636, -1e+30
          %v3713 = vsel %vm3709, %v3690, -1e+30
          %v3714 = vld [vmem:[#allocation3] sm:$0xff]
          %v3715 = vld [vmem:[#allocation3 + $0x8] sm:$0xff]
          %v3716 = vld [vmem:[#allocation3 + $0x10] sm:$0xff]
          %v3717 = vld [vmem:[#allocation3 + $0x18] sm:$0xff]
          %v3718 = vsel %vm3485, %v3710, -inf
          %3719 = vmax.xlane.f32.xlu0 %v3718
          %v3720 = vpop.xlane.xlu0 %3719
          %v3721 = vsel %vm3485, %v3711, -inf
          %3722 = vmax.xlane.f32.xlu0 %v3721
          %v3723 = vpop.xlane.xlu0 %3722
          %v3724 = vsel %vm3485, %v3712, -inf
          %3725 = vmax.xlane.f32.xlu0 %v3724
          %v3726 = vpop.xlane.xlu0 %3725
          %v3727 = vsel %vm3485, %v3713, -inf
          %3728 = vmax.xlane.f32.xlu0 %v3727
          %v3729 = vpop.xlane.xlu0 %3728
          %v3730 = vmax.f32 %v3714, %v3720
          %v3731 = vmax.f32 %v3715, %v3723
          %v3732 = vmax.f32 %v3716, %v3726
          %v3733 = vmax.f32 %v3717, %v3729
          %v3734 = vsub.f32 %v3714, %v3730
          %v3735 = vsub.f32 %v3715, %v3731
          %v3736 = vsub.f32 %v3716, %v3732
          %v3737 = vsub.f32 %v3717, %v3733
          %v3738 = vmul.f32 %v3734, 1.442695
          %v3739 = vpow.pop %v3738
          %v3740 = vmul.f32 %v3735, 1.442695
          %v3741 = vpow.pop %v3740
          %v3742 = vmul.f32 %v3736, 1.442695
          %v3743 = vpow.pop %v3742
          %v3744 = vmul.f32 %v3737, 1.442695
          %v3745 = vpow.pop %v3744
          %3747 = vset.pattern.permute.xlu0 0
          %3748 = vperm.xlu0 %3747, %v3730
          %v3749 = vpop.permute.xlu0 %3748
          %3752 = vset.pattern.permute.xlu0 0
          %3753 = vperm.xlu0 %3752, %v3731
          %v3754 = vpop.permute.xlu0 %3753
          %3757 = vset.pattern.permute.xlu0 0
          %3758 = vperm.xlu0 %3757, %v3732
          %v3759 = vpop.permute.xlu0 %3758
          %3762 = vset.pattern.permute.xlu0 0
          %3763 = vperm.xlu0 %3762, %v3733
          %v3764 = vpop.permute.xlu0 %3763
          %v3766 = vsub.f32 %v3710, %v3749
          %v3767 = vsub.f32 %v3711, %v3754
          %v3768 = vsub.f32 %v3712, %v3759
          %v3769 = vsub.f32 %v3713, %v3764
          %v3770 = vmul.f32 %v3766, 1.442695
          %v3771 = vpow.pop %v3770
          %v3772 = vmul.f32 %v3767, 1.442695
          %v3773 = vpow.pop %v3772
          %v3774 = vmul.f32 %v3768, 1.442695
          %v3775 = vpow.pop %v3774
          %v3776 = vmul.f32 %v3769, 1.442695
          %v3777 = vpow.pop %v3776
          %v3778 = vld [vmem:[#allocation4] sm:$0xff]
          %v3779 = vld [vmem:[#allocation4 + $0x8] sm:$0xff]
          %v3780 = vld [vmem:[#allocation4 + $0x10] sm:$0xff]
          %v3781 = vld [vmem:[#allocation4 + $0x18] sm:$0xff]
          %v3782 = vmul.f32 %v3739, %v3778
          %v3783 = vmul.f32 %v3741, %v3779
          %v3784 = vmul.f32 %v3743, %v3780
          %v3785 = vmul.f32 %v3745, %v3781
          %v3786 = vsel %vm3485, %v3771, 0.0
          %3787 = vadd.xlane.f32.xlu0 %v3786
          %v3788 = vpop.xlane.xlu0 %3787
          %v3789 = vsel %vm3485, %v3773, 0.0
          %3790 = vadd.xlane.f32.xlu0 %v3789
          %v3791 = vpop.xlane.xlu0 %3790
          %v3792 = vsel %vm3485, %v3775, 0.0
          %3793 = vadd.xlane.f32.xlu0 %v3792
          %v3794 = vpop.xlane.xlu0 %3793
          %v3795 = vsel %vm3485, %v3777, 0.0
          %3796 = vadd.xlane.f32.xlu0 %v3795
          %v3797 = vpop.xlane.xlu0 %3796
          %v3798 = vadd.f32 %v3782, %v3788
          %v3799 = vadd.f32 %v3783, %v3791
          %v3800 = vadd.f32 %v3784, %v3794
          %v3801 = vadd.f32 %v3785, %v3797
          %vm3802 = vcmask 7168
          %3803 = vst.msk [vmem:[#allocation4] sm:$0xff] %vm3802, %v3798
          %3804 = vst.msk [vmem:[#allocation4 + $0x8] sm:$0xff] %vm3802, %v3799
          %3805 = vst.msk [vmem:[#allocation4 + $0x10] sm:$0xff] %vm3802, %v3800
          %3806 = vst.msk [vmem:[#allocation4 + $0x18] sm:$0xff] %vm3802, %v3801
          %v3807 = vpack.c.bf16 %v3771, %v3771
          %v3808 = vpack.c.bf16 %v3773, %v3773
          %v3809 = vpack.c.bf16 %v3775, %v3775
          %v3810 = vpack.c.bf16 %v3777, %v3777
          %v3811 = vld [vmem:[%s589] sm:$0x3]
          %v3812 = vld [vmem:[%s589 + $0x2] sm:$0x3]
          %v3813 = vld [vmem:[%s589 + $0x4] sm:$0x3]
          %v3814 = vld [vmem:[%s589 + $0x6] sm:$0x3]
          %v3815 = vld [vmem:[%s589 + $0x8] sm:$0x3]
          %v3816 = vld [vmem:[%s589 + $0xa] sm:$0x3]
          %v3817 = vld [vmem:[%s589 + $0xc] sm:$0x3]
          %v3818 = vld [vmem:[%s589 + $0xe] sm:$0x3]
          %v3819 = vcombine.low %v3811, %v3813
          %v3821 = vunpack.c.l.s4 1934713408
          %v3822 = vunpack.c.0.s8 %v3821
          %v3823 = vlaneseq
          %v3824 = vshrl.u32 %v3823, 7
          %v3825 = vsub.s32 %v3822, %v3824
          %v3826 = vrot.slane %v3819, %v3825
          %v3827 = vcombine.high %v3826, 0
          %v3828 = vcombine.low %v3812, %v3814
          %v3830 = vunpack.c.l.s4 1934713408
          %v3831 = vunpack.c.0.s8 %v3830
          %v3832 = vlaneseq
          %v3833 = vshrl.u32 %v3832, 7
          %v3834 = vsub.s32 %v3831, %v3833
          %v3835 = vrot.slane %v3828, %v3834
          %v3836 = vcombine.high %v3835, 0
          %v3837 = vcombine.low %v3815, %v3817
          %v3839 = vunpack.c.l.s4 1934713408
          %v3840 = vunpack.c.0.s8 %v3839
          %v3841 = vlaneseq
          %v3842 = vshrl.u32 %v3841, 7
          %v3843 = vsub.s32 %v3840, %v3842
          %v3844 = vrot.slane %v3837, %v3843
          %v3845 = vcombine.high %v3844, 0
          %v3846 = vcombine.low %v3816, %v3818
          %v3848 = vunpack.c.l.s4 1934713408
          %v3849 = vunpack.c.0.s8 %v3848
          %v3850 = vlaneseq
          %v3851 = vshrl.u32 %v3850, 7
          %v3852 = vsub.s32 %v3849, %v3851
          %v3853 = vrot.slane %v3846, %v3852
          %v3854 = vcombine.high %v3853, 0
          %v3857 = vpack.i.b16 %v3835, %v3826
          %v3858 = vshrl.u32 %v3826, 16
          %v3859 = vshrl.u32 %v3835, 16
          %v3860 = vpack.i.b16 %v3859, %v3858
          %v3863 = vpack.i.b16 %v3836, %v3827
          %v3864 = vshrl.u32 %v3827, 16
          %v3865 = vshrl.u32 %v3836, 16
          %v3866 = vpack.i.b16 %v3865, %v3864
          %v3869 = vpack.i.b16 %v3853, %v3844
          %v3870 = vshrl.u32 %v3844, 16
          %v3871 = vshrl.u32 %v3853, 16
          %v3872 = vpack.i.b16 %v3871, %v3870
          %v3875 = vpack.i.b16 %v3854, %v3845
          %v3876 = vshrl.u32 %v3845, 16
          %v3877 = vshrl.u32 %v3854, 16
          %v3878 = vpack.i.b16 %v3877, %v3876
          %v3879 = vcombine.low %v3857, %v3869
          %v3881 = vunpack.c.l.s4 1983009808
          %v3882 = vunpack.c.0.s8 %v3881
          %v3883 = vlaneseq
          %v3884 = vshrl.u32 %v3883, 7
          %v3885 = vsub.s32 %v3882, %v3884
          %v3886 = vrot.slane %v3879, %v3885
          %v3888 = vsel %vm3485, %v3807, 0
          %v3891 = vsel %vm3489, %v3886, 0
          %3893 = vmatprep.subr.bf16.mxu0 0
          %3894 = vmatpush1.bf16.msra.mxu0 %v3891
          %3895 = vmatprep.subr.bf16.mxu0 0
          %3896 = vmatpush1.bf16.msra.mxu0 0
          %3897 = vmatprep.subr.bf16.mxu0 0
          %3898 = vmatpush1.bf16.msra.mxu0 0
          %3899 = vmatprep.subr.bf16.mxu0 0
          %3900 = vmatpush1.bf16.msra.mxu0 0
          %3901 = vmatprep.subr.bf16.mxu0 0
          %3902 = vmatpush1.bf16.msra.mxu0 0
          %3903 = vmatprep.subr.bf16.mxu0 0
          %3904 = vmatpush1.bf16.msra.mxu0 0
          %3905 = vmatprep.subr.bf16.mxu0 0
          %3906 = vmatpush1.bf16.msra.mxu0 0
          %3907 = vmatprep.subr.bf16.mxu0 0
          %3908 = vmatpush1.bf16.msra.mxu0 0
          %3909 = vmatprep.subr.bf16.mxu0 0
          %3910 = vmatpush1.bf16.msra.mxu0 0
          %3911 = vmatprep.subr.bf16.mxu0 0
          %3912 = vmatpush1.bf16.msra.mxu0 0
          %3913 = vmatprep.subr.bf16.mxu0 0
          %3914 = vmatpush1.bf16.msra.mxu0 0
          %3915 = vmatprep.subr.bf16.mxu0 0
          %3916 = vmatpush1.bf16.msra.mxu0 0
          %3917 = vmatprep.subr.bf16.mxu0 0
          %3918 = vmatpush1.bf16.msra.mxu0 0
          %3919 = vmatprep.subr.bf16.mxu0 0
          %3920 = vmatpush1.bf16.msra.mxu0 0
          %3921 = vmatprep.subr.bf16.mxu0 0
          %3922 = vmatpush1.bf16.msra.mxu0 0
          %3923 = vmatprep.subr.bf16.mxu0 0
          %3924 = vmatpush1.bf16.msra.mxu0 0
          %3925 = vmatprep.mubr.bf16.mxu0 0
          %3926 = vmatmul.mubr.bf16.gmra.mrb[0].mxu0 %v3888
          %v3927 = vpop.f32.mrb[0].mxu0
          %v3928 = vadd.f32 0.0, %v3927
          %v3929 = vpop.f32.mrb[0].mxu0
          %v3930 = vpop.f32.mrb[0].mxu0
          %v3931 = vpop.f32.mrb[0].mxu0
          %3932 = vdwg.mxu0
          %v3933 = vcombine.low %v3860, %v3872
          %v3935 = vunpack.c.l.s4 1983009808
          %v3936 = vunpack.c.0.s8 %v3935
          %v3937 = vlaneseq
          %v3938 = vshrl.u32 %v3937, 7
          %v3939 = vsub.s32 %v3936, %v3938
          %v3940 = vrot.slane %v3933, %v3939
          %v3942 = vsel %vm3485, %v3808, 0
          %v3945 = vsel %vm3489, %v3940, 0
          %3947 = vmatprep.subr.bf16.mxu0 0
          %3948 = vmatpush1.bf16.msra.mxu0 %v3945
          %3949 = vmatprep.subr.bf16.mxu0 0
          %3950 = vmatpush1.bf16.msra.mxu0 0
          %3951 = vmatprep.subr.bf16.mxu0 0
          %3952 = vmatpush1.bf16.msra.mxu0 0
          %3953 = vmatprep.subr.bf16.mxu0 0
          %3954 = vmatpush1.bf16.msra.mxu0 0
          %3955 = vmatprep.subr.bf16.mxu0 0
          %3956 = vmatpush1.bf16.msra.mxu0 0
          %3957 = vmatprep.subr.bf16.mxu0 0
          %3958 = vmatpush1.bf16.msra.mxu0 0
          %3959 = vmatprep.subr.bf16.mxu0 0
          %3960 = vmatpush1.bf16.msra.mxu0 0
          %3961 = vmatprep.subr.bf16.mxu0 0
          %3962 = vmatpush1.bf16.msra.mxu0 0
          %3963 = vmatprep.subr.bf16.mxu0 0
          %3964 = vmatpush1.bf16.msra.mxu0 0
          %3965 = vmatprep.subr.bf16.mxu0 0
          %3966 = vmatpush1.bf16.msra.mxu0 0
          %3967 = vmatprep.subr.bf16.mxu0 0
          %3968 = vmatpush1.bf16.msra.mxu0 0
          %3969 = vmatprep.subr.bf16.mxu0 0
          %3970 = vmatpush1.bf16.msra.mxu0 0
          %3971 = vmatprep.subr.bf16.mxu0 0
          %3972 = vmatpush1.bf16.msra.mxu0 0
          %3973 = vmatprep.subr.bf16.mxu0 0
          %3974 = vmatpush1.bf16.msra.mxu0 0
          %3975 = vmatprep.subr.bf16.mxu0 0
          %3976 = vmatpush1.bf16.msra.mxu0 0
          %3977 = vmatprep.subr.bf16.mxu0 0
          %3978 = vmatpush1.bf16.msra.mxu0 0
          %3979 = vmatprep.mubr.bf16.mxu0 0
          %3980 = vmatmul.mubr.bf16.gmra.mrb[0].mxu0 %v3942
          %v3981 = vpop.f32.mrb[0].mxu0
          %v3982 = vadd.f32 0.0, %v3981
          %v3983 = vpop.f32.mrb[0].mxu0
          %v3984 = vpop.f32.mrb[0].mxu0
          %v3985 = vpop.f32.mrb[0].mxu0
          %3986 = vdwg.mxu0
          %v3987 = vcombine.low %v3863, %v3875
          %v3989 = vunpack.c.l.s4 1983009808
          %v3990 = vunpack.c.0.s8 %v3989
          %v3991 = vlaneseq
          %v3992 = vshrl.u32 %v3991, 7
          %v3993 = vsub.s32 %v3990, %v3992
          %v3994 = vrot.slane %v3987, %v3993
          %v3996 = vsel %vm3485, %v3809, 0
          %v3999 = vsel %vm3489, %v3994, 0
          %4001 = vmatprep.subr.bf16.mxu0 0
          %4002 = vmatpush1.bf16.msra.mxu0 %v3999
          %4003 = vmatprep.subr.bf16.mxu0 0
          %4004 = vmatpush1.bf16.msra.mxu0 0
          %4005 = vmatprep.subr.bf16.mxu0 0
          %4006 = vmatpush1.bf16.msra.mxu0 0
          %4007 = vmatprep.subr.bf16.mxu0 0
          %4008 = vmatpush1.bf16.msra.mxu0 0
          %4009 = vmatprep.subr.bf16.mxu0 0
          %4010 = vmatpush1.bf16.msra.mxu0 0
          %4011 = vmatprep.subr.bf16.mxu0 0
          %4012 = vmatpush1.bf16.msra.mxu0 0
          %4013 = vmatprep.subr.bf16.mxu0 0
          %4014 = vmatpush1.bf16.msra.mxu0 0
          %4015 = vmatprep.subr.bf16.mxu0 0
          %4016 = vmatpush1.bf16.msra.mxu0 0
          %4017 = vmatprep.subr.bf16.mxu0 0
          %4018 = vmatpush1.bf16.msra.mxu0 0
          %4019 = vmatprep.subr.bf16.mxu0 0
          %4020 = vmatpush1.bf16.msra.mxu0 0
          %4021 = vmatprep.subr.bf16.mxu0 0
          %4022 = vmatpush1.bf16.msra.mxu0 0
          %4023 = vmatprep.subr.bf16.mxu0 0
          %4024 = vmatpush1.bf16.msra.mxu0 0
          %4025 = vmatprep.subr.bf16.mxu0 0
          %4026 = vmatpush1.bf16.msra.mxu0 0
          %4027 = vmatprep.subr.bf16.mxu0 0
          %4028 = vmatpush1.bf16.msra.mxu0 0
          %4029 = vmatprep.subr.bf16.mxu0 0
          %4030 = vmatpush1.bf16.msra.mxu0 0
          %4031 = vmatprep.subr.bf16.mxu0 0
          %4032 = vmatpush1.bf16.msra.mxu0 0
          %4033 = vmatprep.mubr.bf16.mxu0 0
          %4034 = vmatmul.mubr.bf16.gmra.mrb[0].mxu0 %v3996
          %v4035 = vpop.f32.mrb[0].mxu0
          %v4036 = vadd.f32 0.0, %v4035
          %v4037 = vpop.f32.mrb[0].mxu0
          %v4038 = vpop.f32.mrb[0].mxu0
          %v4039 = vpop.f32.mrb[0].mxu0
          %4040 = vdwg.mxu0
          %v4041 = vcombine.low %v3866, %v3878
          %v4043 = vunpack.c.l.s4 1983009808
          %v4044 = vunpack.c.0.s8 %v4043
          %v4045 = vlaneseq
          %v4046 = vshrl.u32 %v4045, 7
          %v4047 = vsub.s32 %v4044, %v4046
          %v4048 = vrot.slane %v4041, %v4047
          %v4050 = vsel %vm3485, %v3810, 0
          %v4053 = vsel %vm3489, %v4048, 0
          %4055 = vmatprep.subr.bf16.mxu0 0
          %4056 = vmatpush1.bf16.msra.mxu0 %v4053
          %4057 = vmatprep.subr.bf16.mxu0 0
          %4058 = vmatpush1.bf16.msra.mxu0 0
          %4059 = vmatprep.subr.bf16.mxu0 0
          %4060 = vmatpush1.bf16.msra.mxu0 0
          %4061 = vmatprep.subr.bf16.mxu0 0
          %4062 = vmatpush1.bf16.msra.mxu0 0
          %4063 = vmatprep.subr.bf16.mxu0 0
          %4064 = vmatpush1.bf16.msra.mxu0 0
          %4065 = vmatprep.subr.bf16.mxu0 0
          %4066 = vmatpush1.bf16.msra.mxu0 0
          %4067 = vmatprep.subr.bf16.mxu0 0
          %4068 = vmatpush1.bf16.msra.mxu0 0
          %4069 = vmatprep.subr.bf16.mxu0 0
          %4070 = vmatpush1.bf16.msra.mxu0 0
          %4071 = vmatprep.subr.bf16.mxu0 0
          %4072 = vmatpush1.bf16.msra.mxu0 0
          %4073 = vmatprep.subr.bf16.mxu0 0
          %4074 = vmatpush1.bf16.msra.mxu0 0
          %4075 = vmatprep.subr.bf16.mxu0 0
          %4076 = vmatpush1.bf16.msra.mxu0 0
          %4077 = vmatprep.subr.bf16.mxu0 0
          %4078 = vmatpush1.bf16.msra.mxu0 0
          %4079 = vmatprep.subr.bf16.mxu0 0
          %4080 = vmatpush1.bf16.msra.mxu0 0
          %4081 = vmatprep.subr.bf16.mxu0 0
          %4082 = vmatpush1.bf16.msra.mxu0 0
          %4083 = vmatprep.subr.bf16.mxu0 0
          %4084 = vmatpush1.bf16.msra.mxu0 0
          %4085 = vmatprep.subr.bf16.mxu0 0
          %4086 = vmatpush1.bf16.msra.mxu0 0
          %4087 = vmatprep.mubr.bf16.mxu0 0
          %4088 = vmatmul.mubr.bf16.gmra.mrb[0].mxu0 %v4050
          %v4089 = vpop.f32.mrb[0].mxu0
          %v4090 = vadd.f32 0.0, %v4089
          %v4091 = vpop.f32.mrb[0].mxu0
          %v4092 = vpop.f32.mrb[0].mxu0
          %v4093 = vpop.f32.mrb[0].mxu0
          %4094 = vdwg.mxu0
          %v4095 = vld [vmem:[#allocation5] sm:$0xff]
          %v4096 = vld [vmem:[#allocation5 + $0x8] sm:$0xff]
          %v4097 = vld [vmem:[#allocation5 + $0x10] sm:$0xff]
          %v4098 = vld [vmem:[#allocation5 + $0x18] sm:$0xff]
          %4100 = vset.pattern.permute.xlu0 0
          %4101 = vperm.xlu0 %4100, %v3739
          %v4102 = vpop.permute.xlu0 %4101
          %4105 = vset.pattern.permute.xlu0 0
          %4106 = vperm.xlu0 %4105, %v3741
          %v4107 = vpop.permute.xlu0 %4106
          %4110 = vset.pattern.permute.xlu0 0
          %4111 = vperm.xlu0 %4110, %v3743
          %v4112 = vpop.permute.xlu0 %4111
          %4115 = vset.pattern.permute.xlu0 0
          %4116 = vperm.xlu0 %4115, %v3745
          %v4117 = vpop.permute.xlu0 %4116
          %v4119 = vmul.f32 %v4102, %v4095
          %v4120 = vmul.f32 %v4107, %v4096
          %v4121 = vmul.f32 %v4112, %v4097
          %v4122 = vmul.f32 %v4117, %v4098
          %v4123 = vadd.f32 %v4119, %v3928
          %v4124 = vadd.f32 %v4120, %v3982
          %v4125 = vadd.f32 %v4121, %v4036
          %v4126 = vadd.f32 %v4122, %v4090
          %4127 = vst.msk [vmem:[#allocation5] sm:$0xff] %vm3485, %v4123
          %4128 = vst.msk [vmem:[#allocation5 + $0x8] sm:$0xff] %vm3485, %v4124
          %4129 = vst.msk [vmem:[#allocation5 + $0x10] sm:$0xff] %vm3485, %v4125
          %4130 = vst.msk [vmem:[#allocation5 + $0x18] sm:$0xff] %vm3485, %v4126
          %4131 = vst.msk [vmem:[#allocation3] sm:$0xff] %vm3802, %v3730
          %4132 = vst.msk [vmem:[#allocation3 + $0x8] sm:$0xff] %vm3802, %v3731
          %4133 = vst.msk [vmem:[#allocation3 + $0x10] sm:$0xff] %vm3802, %v3732
          %4134 = vst.msk [vmem:[#allocation3 + $0x18] sm:$0xff] %vm3802, %v3733
        $region183: #{llama_forward.12} parent=158 // pred_fallthru
          _
        // Predicated region
        $region184: #{llama_forward.12} parent=158 // pred_check
          %p4135 = pneg %p692
        $region185: #{llama_forward.12} parent=158 // pred_check_branch
          %4137 = sbr.rel (%p4135) target = $region187
        $region186: #{llama_forward.12} parent=158 // pred_region
          %v4138 = vld [vmem:[#allocation4] sm:$0xff]
          %v4139 = vld [vmem:[#allocation4 + $0x8] sm:$0xff]
          %v4140 = vld [vmem:[#allocation4 + $0x10] sm:$0xff]
          %v4141 = vld [vmem:[#allocation4 + $0x18] sm:$0xff]
          %vm4142 = vcmp.eq.f32.partialorder %v4138, 0.0
          %vm4143 = vcmp.eq.f32.partialorder %v4139, 0.0
          %vm4144 = vcmp.eq.f32.partialorder %v4140, 0.0
          %vm4145 = vcmp.eq.f32.partialorder %v4141, 0.0
          %v4146 = vsel %vm4142, 1.0, %v4138
          %v4147 = vsel %vm4143, 1.0, %v4139
          %v4148 = vsel %vm4144, 1.0, %v4140
          %v4149 = vsel %vm4145, 1.0, %v4141
          %v4150 = vld [vmem:[#allocation5] sm:$0xff]
          %v4151 = vld [vmem:[#allocation5 + $0x8] sm:$0xff]
          %v4152 = vld [vmem:[#allocation5 + $0x10] sm:$0xff]
          %v4153 = vld [vmem:[#allocation5 + $0x18] sm:$0xff]
          %v4154 = vrcp.pop %v4146
          %v4155 = vrcp.pop %v4147
          %v4156 = vrcp.pop %v4148
          %v4157 = vrcp.pop %v4149
          %4159 = vset.pattern.permute.xlu0 0
          %4160 = vperm.xlu0 %4159, %v4154
          %v4161 = vpop.permute.xlu0 %4160
          %4164 = vset.pattern.permute.xlu0 0
          %4165 = vperm.xlu0 %4164, %v4155
          %v4166 = vpop.permute.xlu0 %4165
          %4169 = vset.pattern.permute.xlu0 0
          %4170 = vperm.xlu0 %4169, %v4156
          %v4171 = vpop.permute.xlu0 %4170
          %4174 = vset.pattern.permute.xlu0 0
          %4175 = vperm.xlu0 %4174, %v4157
          %v4176 = vpop.permute.xlu0 %4175
          %v4178 = vmul.f32 %v4150, %v4161
          %v4179 = vmul.f32 %v4151, %v4166
          %v4180 = vmul.f32 %v4152, %v4171
          %v4181 = vmul.f32 %v4153, %v4176
          %v4182 = vpack.c.bf16 %v4178, %v4178
          %v4185 = vunpack.c.l.s4 1966171168
          %v4186 = vunpack.c.0.s8 %v4185
          %v4187 = vlaneseq
          %v4188 = vshrl.u32 %v4187, 7
          %v4189 = vsub.s32 %v4186, %v4188
          %v4190 = vrot.slane %v4182, %v4189
          %v4191 = vcombine.high %v4190, %v4190
          %v4193 = vunpack.c.l.s4 1966171168
          %v4194 = vunpack.c.0.s8 %v4193
          %v4195 = vlaneseq
          %v4196 = vshrl.u32 %v4195, 7
          %v4197 = vsub.s32 %v4194, %v4196
          %v4198 = vrot.slane %v4190, %v4197
          %v4200 = vunpack.c.l.s4 1966171168
          %v4201 = vunpack.c.0.s8 %v4200
          %v4202 = vlaneseq
          %v4203 = vshrl.u32 %v4202, 7
          %v4204 = vsub.s32 %v4201, %v4203
          %v4205 = vrot.slane %v4191, %v4204
          %v4206 = vcombine.high %v4198, %v4198
          %v4207 = vcombine.high %v4205, %v4205
          %v4208 = vunpack.i.l.s16 %v4198
          %v4209 = vunpack.i.h.s16 %v4198
          %v4210 = vunpack.i.l.s16 %v4205
          %v4211 = vunpack.i.h.s16 %v4205
          %v4212 = vunpack.i.l.s16 %v4206
          %v4213 = vunpack.i.h.s16 %v4206
          %v4214 = vunpack.i.l.s16 %v4207
          %v4215 = vunpack.i.h.s16 %v4207
          %v4216 = vpack.i.b16 %v4208, %v4208
          %v4217 = vpack.i.b16 %v4209, %v4209
          %v4218 = vpack.i.b16 %v4210, %v4210
          %v4219 = vpack.i.b16 %v4211, %v4211
          %v4220 = vpack.i.b16 %v4212, %v4212
          %v4221 = vpack.i.b16 %v4213, %v4213
          %v4222 = vpack.i.b16 %v4214, %v4214
          %v4223 = vpack.i.b16 %v4215, %v4215
          %v4225 = vunpack.c.l.s4 857870592
          %v4226 = vunpack.c.0.s8 %v4225
          %v4227 = vlaneseq
          %v4228 = vshrl.u32 %v4227, 7
          %v4229 = vsub.s32 %v4226, %v4228
          %v4230 = vrot.slane %v4216, %v4229
          %v4232 = vunpack.c.l.s4 857870592
          %v4233 = vunpack.c.0.s8 %v4232
          %v4234 = vlaneseq
          %v4235 = vshrl.u32 %v4234, 7
          %v4236 = vsub.s32 %v4233, %v4235
          %v4237 = vrot.slane %v4217, %v4236
          %v4239 = vunpack.c.l.s4 857870592
          %v4240 = vunpack.c.0.s8 %v4239
          %v4241 = vlaneseq
          %v4242 = vshrl.u32 %v4241, 7
          %v4243 = vsub.s32 %v4240, %v4242
          %v4244 = vrot.slane %v4218, %v4243
          %v4246 = vunpack.c.l.s4 857870592
          %v4247 = vunpack.c.0.s8 %v4246
          %v4248 = vlaneseq
          %v4249 = vshrl.u32 %v4248, 7
          %v4250 = vsub.s32 %v4247, %v4249
          %v4251 = vrot.slane %v4219, %v4250
          %v4253 = vunpack.c.l.s4 857870592
          %v4254 = vunpack.c.0.s8 %v4253
          %v4255 = vlaneseq
          %v4256 = vshrl.u32 %v4255, 7
          %v4257 = vsub.s32 %v4254, %v4256
          %v4258 = vrot.slane %v4220, %v4257
          %v4260 = vunpack.c.l.s4 857870592
          %v4261 = vunpack.c.0.s8 %v4260
          %v4262 = vlaneseq
          %v4263 = vshrl.u32 %v4262, 7
          %v4264 = vsub.s32 %v4261, %v4263
          %v4265 = vrot.slane %v4221, %v4264
          %v4267 = vunpack.c.l.s4 857870592
          %v4268 = vunpack.c.0.s8 %v4267
          %v4269 = vlaneseq
          %v4270 = vshrl.u32 %v4269, 7
          %v4271 = vsub.s32 %v4268, %v4270
          %v4272 = vrot.slane %v4222, %v4271
          %v4274 = vunpack.c.l.s4 857870592
          %v4275 = vunpack.c.0.s8 %v4274
          %v4276 = vlaneseq
          %v4277 = vshrl.u32 %v4276, 7
          %v4278 = vsub.s32 %v4275, %v4277
          %v4279 = vrot.slane %v4223, %v4278
          %vm4288 = vcmask 57344
          %vm4289 = vsmask.f32 256
          %vm4290 = vmand %vm4288, %vm4289
          %v4291 = vld [vmem:[%s689] sm:$0x1]
          %v4292 = vsel %vm4290, %v4230, %v4291
          %4293 = vst [vmem:[%s689] sm:$0x1] %v4292
          %v4294 = vld [vmem:[%s689 + $0x2] sm:$0x1]
          %v4295 = vsel %vm4290, %v4237, %v4294
          %4296 = vst [vmem:[%s689 + $0x2] sm:$0x1] %v4295
          %v4297 = vld [vmem:[%s689 + $0x4] sm:$0x1]
          %v4298 = vsel %vm4290, %v4244, %v4297
          %4299 = vst [vmem:[%s689 + $0x4] sm:$0x1] %v4298
          %v4300 = vld [vmem:[%s689 + $0x6] sm:$0x1]
          %v4301 = vsel %vm4290, %v4251, %v4300
          %4302 = vst [vmem:[%s689 + $0x6] sm:$0x1] %v4301
          %v4303 = vld [vmem:[%s689 + $0x8] sm:$0x1]
          %v4304 = vsel %vm4290, %v4258, %v4303
          %4305 = vst [vmem:[%s689 + $0x8] sm:$0x1] %v4304
          %v4306 = vld [vmem:[%s689 + $0xa] sm:$0x1]
          %v4307 = vsel %vm4290, %v4265, %v4306
          %4308 = vst [vmem:[%s689 + $0xa] sm:$0x1] %v4307
          %v4309 = vld [vmem:[%s689 + $0xc] sm:$0x1]
          %v4310 = vsel %vm4290, %v4272, %v4309
          %4311 = vst [vmem:[%s689 + $0xc] sm:$0x1] %v4310
          %v4312 = vld [vmem:[%s689 + $0xe] sm:$0x1]
          %v4313 = vsel %vm4290, %v4279, %v4312
          %4314 = vst [vmem:[%s689 + $0xe] sm:$0x1] %v4313
          %v4315 = vpack.c.bf16 %v4179, %v4179
          %v4318 = vunpack.c.l.s4 1966171168
          %v4319 = vunpack.c.0.s8 %v4318
          %v4320 = vlaneseq
          %v4321 = vshrl.u32 %v4320, 7
          %v4322 = vsub.s32 %v4319, %v4321
          %v4323 = vrot.slane %v4315, %v4322
          %v4324 = vcombine.high %v4323, %v4323
          %v4326 = vunpack.c.l.s4 1966171168
          %v4327 = vunpack.c.0.s8 %v4326
          %v4328 = vlaneseq
          %v4329 = vshrl.u32 %v4328, 7
          %v4330 = vsub.s32 %v4327, %v4329
          %v4331 = vrot.slane %v4323, %v4330
          %v4333 = vunpack.c.l.s4 1966171168
          %v4334 = vunpack.c.0.s8 %v4333
          %v4335 = vlaneseq
          %v4336 = vshrl.u32 %v4335, 7
          %v4337 = vsub.s32 %v4334, %v4336
          %v4338 = vrot.slane %v4324, %v4337
          %v4339 = vcombine.high %v4331, %v4331
          %v4340 = vcombine.high %v4338, %v4338
          %v4341 = vunpack.i.l.s16 %v4331
          %v4342 = vunpack.i.h.s16 %v4331
          %v4343 = vunpack.i.l.s16 %v4338
          %v4344 = vunpack.i.h.s16 %v4338
          %v4345 = vunpack.i.l.s16 %v4339
          %v4346 = vunpack.i.h.s16 %v4339
          %v4347 = vunpack.i.l.s16 %v4340
          %v4348 = vunpack.i.h.s16 %v4340
          %v4349 = vpack.i.b16 %v4341, %v4341
          %v4350 = vpack.i.b16 %v4342, %v4342
          %v4351 = vpack.i.b16 %v4343, %v4343
          %v4352 = vpack.i.b16 %v4344, %v4344
          %v4353 = vpack.i.b16 %v4345, %v4345
          %v4354 = vpack.i.b16 %v4346, %v4346
          %v4355 = vpack.i.b16 %v4347, %v4347
          %v4356 = vpack.i.b16 %v4348, %v4348
          %v4358 = vunpack.c.l.s4 857870592
          %v4359 = vunpack.c.0.s8 %v4358
          %v4360 = vlaneseq
          %v4361 = vshrl.u32 %v4360, 7
          %v4362 = vsub.s32 %v4359, %v4361
          %v4363 = vrot.slane %v4349, %v4362
          %v4365 = vunpack.c.l.s4 857870592
          %v4366 = vunpack.c.0.s8 %v4365
          %v4367 = vlaneseq
          %v4368 = vshrl.u32 %v4367, 7
          %v4369 = vsub.s32 %v4366, %v4368
          %v4370 = vrot.slane %v4350, %v4369
          %v4372 = vunpack.c.l.s4 857870592
          %v4373 = vunpack.c.0.s8 %v4372
          %v4374 = vlaneseq
          %v4375 = vshrl.u32 %v4374, 7
          %v4376 = vsub.s32 %v4373, %v4375
          %v4377 = vrot.slane %v4351, %v4376
          %v4379 = vunpack.c.l.s4 857870592
          %v4380 = vunpack.c.0.s8 %v4379
          %v4381 = vlaneseq
          %v4382 = vshrl.u32 %v4381, 7
          %v4383 = vsub.s32 %v4380, %v4382
          %v4384 = vrot.slane %v4352, %v4383
          %v4386 = vunpack.c.l.s4 857870592
          %v4387 = vunpack.c.0.s8 %v4386
          %v4388 = vlaneseq
          %v4389 = vshrl.u32 %v4388, 7
          %v4390 = vsub.s32 %v4387, %v4389
          %v4391 = vrot.slane %v4353, %v4390
          %v4393 = vunpack.c.l.s4 857870592
          %v4394 = vunpack.c.0.s8 %v4393
          %v4395 = vlaneseq
          %v4396 = vshrl.u32 %v4395, 7
          %v4397 = vsub.s32 %v4394, %v4396
          %v4398 = vrot.slane %v4354, %v4397
          %v4400 = vunpack.c.l.s4 857870592
          %v4401 = vunpack.c.0.s8 %v4400
          %v4402 = vlaneseq
          %v4403 = vshrl.u32 %v4402, 7
          %v4404 = vsub.s32 %v4401, %v4403
          %v4405 = vrot.slane %v4355, %v4404
          %v4407 = vunpack.c.l.s4 857870592
          %v4408 = vunpack.c.0.s8 %v4407
          %v4409 = vlaneseq
          %v4410 = vshrl.u32 %v4409, 7
          %v4411 = vsub.s32 %v4408, %v4410
          %v4412 = vrot.slane %v4356, %v4411
          %vm4421 = vsmask.f32 7938
          %vm4422 = vmand %vm4288, %vm4421
          %v4423 = vld [vmem:[%s689] sm:$0x1]
          %v4424 = vsel %vm4422, %v4363, %v4423
          %4425 = vst [vmem:[%s689] sm:$0x1] %v4424
          %v4426 = vld [vmem:[%s689 + $0x2] sm:$0x1]
          %v4427 = vsel %vm4422, %v4370, %v4426
          %4428 = vst [vmem:[%s689 + $0x2] sm:$0x1] %v4427
          %v4429 = vld [vmem:[%s689 + $0x4] sm:$0x1]
          %v4430 = vsel %vm4422, %v4377, %v4429
          %4431 = vst [vmem:[%s689 + $0x4] sm:$0x1] %v4430
          %v4432 = vld [vmem:[%s689 + $0x6] sm:$0x1]
          %v4433 = vsel %vm4422, %v4384, %v4432
          %4434 = vst [vmem:[%s689 + $0x6] sm:$0x1] %v4433
          %v4435 = vld [vmem:[%s689 + $0x8] sm:$0x1]
          %v4436 = vsel %vm4422, %v4391, %v4435
          %4437 = vst [vmem:[%s689 + $0x8] sm:$0x1] %v4436
          %v4438 = vld [vmem:[%s689 + $0xa] sm:$0x1]
          %v4439 = vsel %vm4422, %v4398, %v4438
          %4440 = vst [vmem:[%s689 + $0xa] sm:$0x1] %v4439
          %v4441 = vld [vmem:[%s689 + $0xc] sm:$0x1]
          %v4442 = vsel %vm4422, %v4405, %v4441
          %4443 = vst [vmem:[%s689 + $0xc] sm:$0x1] %v4442
          %v4444 = vld [vmem:[%s689 + $0xe] sm:$0x1]
          %v4445 = vsel %vm4422, %v4412, %v4444
          %4446 = vst [vmem:[%s689 + $0xe] sm:$0x1] %v4445
          %v4447 = vpack.c.bf16 %v4180, %v4180
          %v4450 = vunpack.c.l.s4 1966171168
          %v4451 = vunpack.c.0.s8 %v4450
          %v4452 = vlaneseq
          %v4453 = vshrl.u32 %v4452, 7
          %v4454 = vsub.s32 %v4451, %v4453
          %v4455 = vrot.slane %v4447, %v4454
          %v4456 = vcombine.high %v4455, %v4455
          %v4458 = vunpack.c.l.s4 1966171168
          %v4459 = vunpack.c.0.s8 %v4458
          %v4460 = vlaneseq
          %v4461 = vshrl.u32 %v4460, 7
          %v4462 = vsub.s32 %v4459, %v4461
          %v4463 = vrot.slane %v4455, %v4462
          %v4465 = vunpack.c.l.s4 1966171168
          %v4466 = vunpack.c.0.s8 %v4465
          %v4467 = vlaneseq
          %v4468 = vshrl.u32 %v4467, 7
          %v4469 = vsub.s32 %v4466, %v4468
          %v4470 = vrot.slane %v4456, %v4469
          %v4471 = vcombine.high %v4463, %v4463
          %v4472 = vcombine.high %v4470, %v4470
          %v4473 = vunpack.i.l.s16 %v4463
          %v4474 = vunpack.i.h.s16 %v4463
          %v4475 = vunpack.i.l.s16 %v4470
          %v4476 = vunpack.i.h.s16 %v4470
          %v4477 = vunpack.i.l.s16 %v4471
          %v4478 = vunpack.i.h.s16 %v4471
          %v4479 = vunpack.i.l.s16 %v4472
          %v4480 = vunpack.i.h.s16 %v4472
          %v4481 = vpack.i.b16 %v4473, %v4473
          %v4482 = vpack.i.b16 %v4474, %v4474
          %v4483 = vpack.i.b16 %v4475, %v4475
          %v4484 = vpack.i.b16 %v4476, %v4476
          %v4485 = vpack.i.b16 %v4477, %v4477
          %v4486 = vpack.i.b16 %v4478, %v4478
          %v4487 = vpack.i.b16 %v4479, %v4479
          %v4488 = vpack.i.b16 %v4480, %v4480
          %v4490 = vunpack.c.l.s4 857870592
          %v4491 = vunpack.c.0.s8 %v4490
          %v4492 = vlaneseq
          %v4493 = vshrl.u32 %v4492, 7
          %v4494 = vsub.s32 %v4491, %v4493
          %v4495 = vrot.slane %v4481, %v4494
          %v4497 = vunpack.c.l.s4 857870592
          %v4498 = vunpack.c.0.s8 %v4497
          %v4499 = vlaneseq
          %v4500 = vshrl.u32 %v4499, 7
          %v4501 = vsub.s32 %v4498, %v4500
          %v4502 = vrot.slane %v4482, %v4501
          %v4504 = vunpack.c.l.s4 857870592
          %v4505 = vunpack.c.0.s8 %v4504
          %v4506 = vlaneseq
          %v4507 = vshrl.u32 %v4506, 7
          %v4508 = vsub.s32 %v4505, %v4507
          %v4509 = vrot.slane %v4483, %v4508
          %v4511 = vunpack.c.l.s4 857870592
          %v4512 = vunpack.c.0.s8 %v4511
          %v4513 = vlaneseq
          %v4514 = vshrl.u32 %v4513, 7
          %v4515 = vsub.s32 %v4512, %v4514
          %v4516 = vrot.slane %v4484, %v4515
          %v4518 = vunpack.c.l.s4 857870592
          %v4519 = vunpack.c.0.s8 %v4518
          %v4520 = vlaneseq
          %v4521 = vshrl.u32 %v4520, 7
          %v4522 = vsub.s32 %v4519, %v4521
          %v4523 = vrot.slane %v4485, %v4522
          %v4525 = vunpack.c.l.s4 857870592
          %v4526 = vunpack.c.0.s8 %v4525
          %v4527 = vlaneseq
          %v4528 = vshrl.u32 %v4527, 7
          %v4529 = vsub.s32 %v4526, %v4528
          %v4530 = vrot.slane %v4486, %v4529
          %v4532 = vunpack.c.l.s4 857870592
          %v4533 = vunpack.c.0.s8 %v4532
          %v4534 = vlaneseq
          %v4535 = vshrl.u32 %v4534, 7
          %v4536 = vsub.s32 %v4533, %v4535
          %v4537 = vrot.slane %v4487, %v4536
          %v4539 = vunpack.c.l.s4 857870592
          %v4540 = vunpack.c.0.s8 %v4539
          %v4541 = vlaneseq
          %v4542 = vshrl.u32 %v4541, 7
          %v4543 = vsub.s32 %v4540, %v4542
          %v4544 = vrot.slane %v4488, %v4543
          %vm4553 = vcmask 58369
          %vm4554 = vsmask.f32 1280
          %vm4555 = vmand %vm4553, %vm4554
          %v4556 = vld [vmem:[%s689] sm:$0x2]
          %v4557 = vsel %vm4555, %v4495, %v4556
          %4558 = vst [vmem:[%s689] sm:$0x2] %v4557
          %v4559 = vld [vmem:[%s689 + $0x2] sm:$0x2]
          %v4560 = vsel %vm4555, %v4502, %v4559
          %4561 = vst [vmem:[%s689 + $0x2] sm:$0x2] %v4560
          %v4562 = vld [vmem:[%s689 + $0x4] sm:$0x2]
          %v4563 = vsel %vm4555, %v4509, %v4562
          %4564 = vst [vmem:[%s689 + $0x4] sm:$0x2] %v4563
          %v4565 = vld [vmem:[%s689 + $0x6] sm:$0x2]
          %v4566 = vsel %vm4555, %v4516, %v4565
          %4567 = vst [vmem:[%s689 + $0x6] sm:$0x2] %v4566
          %v4568 = vld [vmem:[%s689 + $0x8] sm:$0x2]
          %v4569 = vsel %vm4555, %v4523, %v4568
          %4570 = vst [vmem:[%s689 + $0x8] sm:$0x2] %v4569
          %v4571 = vld [vmem:[%s689 + $0xa] sm:$0x2]
          %v4572 = vsel %vm4555, %v4530, %v4571
          %4573 = vst [vmem:[%s689 + $0xa] sm:$0x2] %v4572
          %v4574 = vld [vmem:[%s689 + $0xc] sm:$0x2]
          %v4575 = vsel %vm4555, %v4537, %v4574
          %4576 = vst [vmem:[%s689 + $0xc] sm:$0x2] %v4575
          %v4577 = vld [vmem:[%s689 + $0xe] sm:$0x2]
          %v4578 = vsel %vm4555, %v4544, %v4577
          %4579 = vst [vmem:[%s689 + $0xe] sm:$0x2] %v4578
          %v4580 = vpack.c.bf16 %v4181, %v4181
          %v4583 = vunpack.c.l.s4 1966171168
          %v4584 = vunpack.c.0.s8 %v4583
          %v4585 = vlaneseq
          %v4586 = vshrl.u32 %v4585, 7
          %v4587 = vsub.s32 %v4584, %v4586
          %v4588 = vrot.slane %v4580, %v4587
          %v4589 = vcombine.high %v4588, %v4588
          %v4591 = vunpack.c.l.s4 1966171168
          %v4592 = vunpack.c.0.s8 %v4591
          %v4593 = vlaneseq
          %v4594 = vshrl.u32 %v4593, 7
          %v4595 = vsub.s32 %v4592, %v4594
          %v4596 = vrot.slane %v4588, %v4595
          %v4598 = vunpack.c.l.s4 1966171168
          %v4599 = vunpack.c.0.s8 %v4598
          %v4600 = vlaneseq
          %v4601 = vshrl.u32 %v4600, 7
          %v4602 = vsub.s32 %v4599, %v4601
          %v4603 = vrot.slane %v4589, %v4602
          %v4604 = vcombine.high %v4596, %v4596
          %v4605 = vcombine.high %v4603, %v4603
          %v4606 = vunpack.i.l.s16 %v4596
          %v4607 = vunpack.i.h.s16 %v4596
          %v4608 = vunpack.i.l.s16 %v4603
          %v4609 = vunpack.i.h.s16 %v4603
          %v4610 = vunpack.i.l.s16 %v4604
          %v4611 = vunpack.i.h.s16 %v4604
          %v4612 = vunpack.i.l.s16 %v4605
          %v4613 = vunpack.i.h.s16 %v4605
          %v4614 = vpack.i.b16 %v4606, %v4606
          %v4615 = vpack.i.b16 %v4607, %v4607
          %v4616 = vpack.i.b16 %v4608, %v4608
          %v4617 = vpack.i.b16 %v4609, %v4609
          %v4618 = vpack.i.b16 %v4610, %v4610
          %v4619 = vpack.i.b16 %v4611, %v4611
          %v4620 = vpack.i.b16 %v4612, %v4612
          %v4621 = vpack.i.b16 %v4613, %v4613
          %v4623 = vunpack.c.l.s4 857870592
          %v4624 = vunpack.c.0.s8 %v4623
          %v4625 = vlaneseq
          %v4626 = vshrl.u32 %v4625, 7
          %v4627 = vsub.s32 %v4624, %v4626
          %v4628 = vrot.slane %v4614, %v4627
          %v4630 = vunpack.c.l.s4 857870592
          %v4631 = vunpack.c.0.s8 %v4630
          %v4632 = vlaneseq
          %v4633 = vshrl.u32 %v4632, 7
          %v4634 = vsub.s32 %v4631, %v4633
          %v4635 = vrot.slane %v4615, %v4634
          %v4637 = vunpack.c.l.s4 857870592
          %v4638 = vunpack.c.0.s8 %v4637
          %v4639 = vlaneseq
          %v4640 = vshrl.u32 %v4639, 7
          %v4641 = vsub.s32 %v4638, %v4640
          %v4642 = vrot.slane %v4616, %v4641
          %v4644 = vunpack.c.l.s4 857870592
          %v4645 = vunpack.c.0.s8 %v4644
          %v4646 = vlaneseq
          %v4647 = vshrl.u32 %v4646, 7
          %v4648 = vsub.s32 %v4645, %v4647
          %v4649 = vrot.slane %v4617, %v4648
          %v4651 = vunpack.c.l.s4 857870592
          %v4652 = vunpack.c.0.s8 %v4651
          %v4653 = vlaneseq
          %v4654 = vshrl.u32 %v4653, 7
          %v4655 = vsub.s32 %v4652, %v4654
          %v4656 = vrot.slane %v4618, %v4655
          %v4658 = vunpack.c.l.s4 857870592
          %v4659 = vunpack.c.0.s8 %v4658
          %v4660 = vlaneseq
          %v4661 = vshrl.u32 %v4660, 7
          %v4662 = vsub.s32 %v4659, %v4661
          %v4663 = vrot.slane %v4619, %v4662
          %v4665 = vunpack.c.l.s4 857870592
          %v4666 = vunpack.c.0.s8 %v4665
          %v4667 = vlaneseq
          %v4668 = vshrl.u32 %v4667, 7
          %v4669 = vsub.s32 %v4666, %v4668
          %v4670 = vrot.slane %v4620, %v4669
          %v4672 = vunpack.c.l.s4 857870592
          %v4673 = vunpack.c.0.s8 %v4672
          %v4674 = vlaneseq
          %v4675 = vshrl.u32 %v4674, 7
          %v4676 = vsub.s32 %v4673, %v4675
          %v4677 = vrot.slane %v4621, %v4676
          %vm4686 = vsmask.f32 7942
          %vm4687 = vmand %vm4553, %vm4686
          %v4688 = vld [vmem:[%s689] sm:$0x2]
          %v4689 = vsel %vm4687, %v4628, %v4688
          %4690 = vst [vmem:[%s689] sm:$0x2] %v4689
          %v4691 = vld [vmem:[%s689 + $0x2] sm:$0x2]
          %v4692 = vsel %vm4687, %v4635, %v4691
          %4693 = vst [vmem:[%s689 + $0x2] sm:$0x2] %v4692
          %v4694 = vld [vmem:[%s689 + $0x4] sm:$0x2]
          %v4695 = vsel %vm4687, %v4642, %v4694
          %4696 = vst [vmem:[%s689 + $0x4] sm:$0x2] %v4695
          %v4697 = vld [vmem:[%s689 + $0x6] sm:$0x2]
          %v4698 = vsel %vm4687, %v4649, %v4697
          %4699 = vst [vmem:[%s689 + $0x6] sm:$0x2] %v4698
          %v4700 = vld [vmem:[%s689 + $0x8] sm:$0x2]
          %v4701 = vsel %vm4687, %v4656, %v4700
          %4702 = vst [vmem:[%s689 + $0x8] sm:$0x2] %v4701
          %v4703 = vld [vmem:[%s689 + $0xa] sm:$0x2]
          %v4704 = vsel %vm4687, %v4663, %v4703
          %4705 = vst [vmem:[%s689 + $0xa] sm:$0x2] %v4704
          %v4706 = vld [vmem:[%s689 + $0xc] sm:$0x2]
          %v4707 = vsel %vm4687, %v4670, %v4706
          %4708 = vst [vmem:[%s689 + $0xc] sm:$0x2] %v4707
          %v4709 = vld [vmem:[%s689 + $0xe] sm:$0x2]
          %v4710 = vsel %vm4687, %v4677, %v4709
          %4711 = vst [vmem:[%s689 + $0xe] sm:$0x2] %v4710
        $region187: #{llama_forward.12} parent=158 // pred_fallthru
          _
        %s4712 = smul.u32 8, %s24
        %p4713 = scmp.lt.s32.totalorder %s23, 1
        %s4714 = scalar_select %p4713, %s23, 1
        %p4715 = scmp.lt.s32.totalorder %s4712, 7
        %s4716 = scalar_select %p4715, %s4712, 7
        %s4717 = smul.addr %s4714, 8
        %s4718 = sadd.s32 %s4716, %s4717
        %s4719 = smul.addr %s4718, 2
        %s4720 = scalar_lea.vmem %s7, %s4719
        // Predicated region
        $region188: #{llama_forward.12} parent=158 // pred_check
          %p4721 = pneg %p261
        $region189: #{llama_forward.12} parent=158 // pred_check_branch
          %4723 = sbr.rel (%p4721) target = $region191
        $region190: #{llama_forward.12} parent=158 // pred_region
          %s4724 = smul.u32 8, %s24
        $region191: #{llama_forward.12} parent=158 // pred_fallthru
          _
      $region159: #{llama_forward.12} parent=5 // pred_fallthru
        _
      %p4725 = scmp.le.s32.totalorder 2, %s13
      // Predicated region
      $region192: #{llama_forward.12} parent=5 // pred_check
        %p4726 = pneg %p4725
      $region193: #{llama_forward.12} parent=5 // pred_check_branch
        %4728 = sbr.rel (%p4726) target = $region195
      $region194: #{llama_forward.12} parent=5 // pred_region
        %s4729 = ssub.s32 %s13, 2
        // Predicated region
        $region196: #{llama_forward.12} parent=194 // pred_check
          %p4730 = pneg %p267
        $region197: #{llama_forward.12} parent=194 // pred_check_branch
          %4732 = sbr.rel (%p4730) target = $region199
        $region198: #{llama_forward.12} parent=194 // pred_region
          %s4733 = smul.u32 8, %s27
          %p4734 = scmp.lt.s32.totalorder %s26, 1
          %s4735 = scalar_select %p4734, %s26, 1
          %p4736 = scmp.lt.s32.totalorder %s4733, 7
          %s4737 = scalar_select %p4736, %s4733, 7
          %s4738 = smul.addr %s4735, 8
          %s4739 = sadd.s32 %s4737, %s4738
          %s4740 = smul.addr %s4739, 2
          %s4741 = scalar_lea.vmem %s7, %s4740
        $region199: #{llama_forward.12} parent=194 // pred_fallthru
          _
      $region195: #{llama_forward.12} parent=5 // pred_fallthru
        _
    $region6: #{llama_forward.12} parent=1 // loop_footer
      %s17 = sadd.s32 1, %s13
    $region7: #{llama_forward.12} parent=1 // loop_footer_branch
      %12 = sbr.rel target = $region3
    $region8: #{llama_forward.12} parent=1 // loop_exit
      _

</llo_original>
